<compile_context>
chip_gen: v5e
topology: v5e:2x2
jax: 0.10.0
libtpu: 0.0.40
codegen_flags: <defaults>
</compile_context>

<pallas_src>
import functools

import jax
import jax.numpy as jnp
from jax.experimental import pallas as pl
from jax.experimental.pallas import tpu as pltpu

VMEM_LIMIT = 32 * 1024 * 1024   # portable scoped-VMEM cap (safe on v5e/v6e/v7x)
LANE = 128                      # lane width: all matmul N padded to a multiple
IN_CH = 8                       # input channels padded 3 -> 8 (conv1 K = 128)
FC_K_CHUNK = 1024               # K chunk for the fused fc pipeline (4 steps)


# ----------------------------- Pallas kernels ------------------------------

def _matmul_bias_act_kernel(x_ref, w_ref, b_ref, o_ref, *, activation):
    acc = jnp.dot(x_ref[...], w_ref[...], preferred_element_type=jnp.float32)
    acc = acc + b_ref[...]
    if activation == "relu":
        acc = jnp.maximum(acc, 0.0)
    elif activation == "tanh":
        acc = jnp.tanh(acc)
    o_ref[...] = acc.astype(o_ref.dtype)


def _pick_tm(M, preferred=256):
    """Largest row tile <= preferred (multiple of 8) dividing M so the grid has
    >= 2 steps where possible (v7x megacore); otherwise one full-M block
    (always legal and tiny at B=2, well under the scoped VMEM limit)."""
    if M <= preferred:
        return M
    top = min(preferred, M // 2)
    top -= top % 8
    for tm in range(top, 7, -8):
        if M % tm == 0:
            return tm
    return M


def matmul_bias_act(x, w, b, activation="none", out_dtype=jnp.float32):
    """y = act(x @ w + b); x:[M,K], w:[K,N] bf16 pre-packed, b:[N] f32.
    N is always a multiple of 128 so every output store is lane-dense."""
    M, K = x.shape
    K2, N = w.shape
    assert K == K2 and N % LANE == 0
    tm = _pick_tm(M)
    kernel = functools.partial(_matmul_bias_act_kernel, activation=activation)
    return pl.pallas_call(
        kernel,
        out_shape=jax.ShapeDtypeStruct((M, N), out_dtype),
        grid=(M // tm,),
        in_specs=[
            pl.BlockSpec((tm, K), lambda i: (i, 0)),
            pl.BlockSpec((K, N), lambda i: (0, 0)),
            pl.BlockSpec((1, N), lambda i: (0, 0)),
        ],
        out_specs=pl.BlockSpec((tm, N), lambda i: (i, 0)),
        compiler_params=pltpu.CompilerParams(
            dimension_semantics=("parallel",),
            vmem_limit_bytes=VMEM_LIMIT),
    )(x.astype(jnp.bfloat16), w, b.astype(jnp.float32).reshape(1, N))


def _fc_fused_kernel(h_ref, wmv_ref, bmv_ref, eps_ref, wd_ref, bd_ref,
                     mu_ref, lv_ref, hd_ref, acc_ref, *, latent):
    """K-chunked [mu|logvar] matmul with fused reparameterize + fc_decode."""
    k = pl.program_id(0)

    @pl.when(k == 0)
    def _():
        acc_ref[...] = jnp.zeros_like(acc_ref)

    acc_ref[...] += jnp.dot(h_ref[...], wmv_ref[...],
                            preferred_element_type=jnp.float32)

    @pl.when(k == pl.num_programs(0) - 1)
    def _():
        acc = acc_ref[...] + bmv_ref[...]
        mu = acc[:, :latent]
        lv = acc[:, latent:]
        std = jnp.exp(0.5 * lv)
        z = mu + eps_ref[...] * std
        mu_ref[...] = mu
        lv_ref[...] = lv
        hd = jnp.dot(z.astype(wd_ref.dtype), wd_ref[...],
                     preferred_element_type=jnp.float32) + bd_ref[...]
        hd_ref[...] = hd.astype(hd_ref.dtype)


def fc_fused(h_flat, w_mulv, b_mulv, eps, w_dec, b_dec, latent):
    """Fused fc_mu + fc_logvar + reparameterize + fc_decode (one pallas_call)."""
    M, K = h_flat.shape
    N = w_mulv.shape[1]
    Nd = w_dec.shape[1]
    kc = FC_K_CHUNK
    assert K % kc == 0 and N == 2 * latent
    kernel = functools.partial(_fc_fused_kernel, latent=latent)
    return pl.pallas_call(
        kernel,
        out_shape=(jax.ShapeDtypeStruct((M, latent), jnp.float32),
                   jax.ShapeDtypeStruct((M, latent), jnp.float32),
                   jax.ShapeDtypeStruct((M, Nd), jnp.bfloat16)),
        grid=(K // kc,),
        in_specs=[
            pl.BlockSpec((M, kc), lambda k: (0, k)),
            pl.BlockSpec((kc, N), lambda k: (k, 0)),
            pl.BlockSpec((1, N), lambda k: (0, 0)),
            pl.BlockSpec((M, latent), lambda k: (0, 0)),
            pl.BlockSpec((latent, Nd), lambda k: (0, 0)),
            pl.BlockSpec((1, Nd), lambda k: (0, 0)),
        ],
        out_specs=[
            pl.BlockSpec((M, latent), lambda k: (0, 0)),
            pl.BlockSpec((M, latent), lambda k: (0, 0)),
            pl.BlockSpec((M, Nd), lambda k: (0, 0)),
        ],
        scratch_shapes=[pltpu.VMEM((M, N), jnp.float32)],
        compiler_params=pltpu.CompilerParams(
            dimension_semantics=("arbitrary",),
            vmem_limit_bytes=VMEM_LIMIT),
    )(h_flat.astype(jnp.bfloat16), w_mulv,
      b_mulv.astype(jnp.float32).reshape(1, N),
      eps.astype(jnp.float32), w_dec,
      b_dec.astype(jnp.float32).reshape(1, Nd))


# ----------------------------- conv glue (NHWC) ------------------------------

def _im2col_nhwc(xp, k, stride, Ho, Wo):
    # xp: [B, Hp, Wp, C] -> [B*Ho*Wo, k*k*C]   (K ordered (kh, kw, c))
    B, _, _, C = xp.shape
    patches = []
    for i in range(k):
        for j in range(k):
            patches.append(
                xp[:, i:i + stride * Ho:stride, j:j + stride * Wo:stride, :])
    cols = jnp.stack(patches, axis=3)            # [B, Ho, Wo, k*k, C]
    return cols.reshape(B * Ho * Wo, k * k * C)
# TODO(synk): im2col is still a (fused) XLA slice/stack outside the kernel;
# could move in-kernel with strided VMEM reads if the cols round-trip shows up.


def conv2d_nhwc(x, wm, b, k, stride, pad, activation, out_dtype):
    # x: [B, H, W, Cin] NHWC bf16; wm: [k*k*Cin, Cout_pad] pre-packed bf16
    B, H, W, Cin = x.shape
    Cout = wm.shape[1]
    Ho = (H + 2 * pad - k) // stride + 1
    Wo = (W + 2 * pad - k) // stride + 1
    xp = jnp.pad(x, ((0, 0), (pad, pad), (pad, pad), (0, 0)))
    cols = _im2col_nhwc(xp, k, stride, Ho, Wo)
    out = matmul_bias_act(cols, wm, b, activation, out_dtype=out_dtype)
    return out.reshape(B, Ho, Wo, Cout)


def conv_transpose2d_subpixel_nhwc(x, wm, b, cout, activation, out_dtype):
    """ConvTranspose2d(k=4, s=2, p=1) via sub-pixel decomposition: one matmul
    over 2x2 stride-1 windows of the 1-padded input computes all four output
    parity phases (N = 4*cout_pad, lane-dense); phases are interleaved after."""
    B, H, W, Cin = x.shape
    cout_pad = wm.shape[1] // 4
    xp = jnp.pad(x, ((0, 0), (1, 1), (1, 1), (0, 0)))
    cols = _im2col_nhwc(xp, 2, 1, H + 1, W + 1)          # [B*(H+1)*(W+1), 4*Cin]
    y = matmul_bias_act(cols, wm, b, activation, out_dtype=out_dtype)
    y = y.reshape(B, H + 1, W + 1, 2, 2, cout_pad)       # (b, i, j, rh, rw, c)
    rows = []
    for rh in range(2):
        cs = []
        for rw in range(2):
            cs.append(y[:, rh:rh + H, rw:rw + W, rh, rw, :cout])  # [B,H,W,cout]
        rows.append(jnp.stack(cs, axis=3))               # [B,H,W,2,cout]
    t = jnp.stack(rows, axis=2)                          # [B,H,2,W,2,cout]
    return t.reshape(B, 2 * H, 2 * W, cout)


# ------------------------------- params --------------------------------------

def init_params(key, latent_dim=128):
    """PyTorch-layout parameters (Conv2d / ConvTranspose2d / Linear conventions)."""
    ks = jax.random.split(key, 14)

    def w(k, shape, scale):
        return (scale * jax.random.normal(k, shape)).astype(jnp.float32)

    p = {}
    p["conv1_w"] = w(ks[0], (32, 3, 4, 4), 0.05)
    p["conv1_b"] = w(ks[1], (32,), 0.05)
    p["conv2_w"] = w(ks[2], (64, 32, 4, 4), 0.05)
    p["conv2_b"] = w(ks[3], (64,), 0.05)
    p["fc_mu_w"] = w(ks[4], (latent_dim, 64 * 8 * 8), 0.02)
    p["fc_mu_b"] = w(ks[5], (latent_dim,), 0.02)
    p["fc_lv_w"] = w(ks[6], (latent_dim, 64 * 8 * 8), 0.02)
    p["fc_lv_b"] = w(ks[7], (latent_dim,), 0.02)
    p["fc_dec_w"] = w(ks[8], (64 * 8 * 8, latent_dim), 0.02)
    p["fc_dec_b"] = w(ks[9], (64 * 8 * 8,), 0.02)
    p["deconv1_w"] = w(ks[10], (64, 32, 4, 4), 0.05)   # ConvTranspose2d(64,32)
    p["deconv1_b"] = w(ks[11], (32,), 0.05)
    p["deconv2_w"] = w(ks[12], (32, 3, 4, 4), 0.05)    # ConvTranspose2d(32,3)
    p["deconv2_b"] = w(ks[13], (3,), 0.05)
    return p


def pack_params(p, latent_dim=128):
    """One-time weight packing (outside the jitted forward): bf16, matmul-ready,
    lane-padded channel counts, NHWC-permuted fc weights, sub-pixel deconv weights."""
    C, H, W = 64, 8, 8

    def conv_pack(w, cin_pad, cout_pad):     # [Cout,Cin,k,k] -> [k*k*cin_pad, cout_pad]
        Cout, Cin, kh, kw = w.shape
        wt = jnp.transpose(w, (2, 3, 1, 0))
        wt = jnp.pad(wt, ((0, 0), (0, 0), (0, cin_pad - Cin), (0, cout_pad - Cout)))
        return wt.reshape(kh * kw * cin_pad, cout_pad).astype(jnp.bfloat16)

    def pad_bias(b, n):
        return jnp.pad(b, (0, n - b.shape[0])).astype(jnp.float32)

    def deconv_pack_subpixel(w, b, cout_pad):
        # [Cin,Cout,4,4] -> [4*Cin, 4*cout_pad]; K ordered (wr, wc, ci),
        # N ordered (rh, rw, co): kernel tap for phase (rh,rw) at window pos
        # (wr,wc) is the torch kernel index (3-rh-2*wr, 3-rw-2*wc).
        Cin, Cout = w.shape[0], w.shape[1]
        wt = jnp.transpose(w, (2, 3, 0, 1))              # [kh, kw, Cin, Cout]
        blk = jnp.zeros((2, 2, Cin, 2, 2, Cout), w.dtype)
        for wr in range(2):
            for wc in range(2):
                for rh in range(2):
                    for rw in range(2):
                        blk = blk.at[wr, wc, :, rh, rw, :].set(
                            wt[3 - rh - 2 * wr, 3 - rw - 2 * wc])
        blk = jnp.pad(blk, ((0, 0), (0, 0), (0, 0), (0, 0), (0, 0),
                            (0, cout_pad - Cout)))
        wm = blk.reshape(4 * Cin, 4 * cout_pad).astype(jnp.bfloat16)
        bb = jnp.tile(jnp.pad(b, (0, cout_pad - Cout)), 4).astype(jnp.float32)
        return wm, bb

    def fc_enc_pack(w):                      # [latent, C*H*W (c,h,w)] -> [H*W*C (h,w,c), latent]
        latent = w.shape[0]
        return (w.reshape(latent, C, H, W).transpose(2, 3, 1, 0)
                .reshape(H * W * C, latent))

    q = {}
    q["conv1_w"] = conv_pack(p["conv1_w"], IN_CH, LANE)          # [128, 128]
    q["conv1_b"] = pad_bias(p["conv1_b"], LANE)
    q["conv2_w"] = conv_pack(p["conv2_w"], LANE, LANE)           # [2048, 128]
    q["conv2_b"] = pad_bias(p["conv2_b"], LANE)

    # fused fc_mu / fc_logvar: [4096, 2*latent]
    w_mu = fc_enc_pack(p["fc_mu_w"])
    w_lv = fc_enc_pack(p["fc_lv_w"])
    q["fc_mulv_w"] = jnp.concatenate([w_mu, w_lv], axis=1).astype(jnp.bfloat16)
    q["fc_mulv_b"] = jnp.concatenate([p["fc_mu_b"], p["fc_lv_b"]]).astype(jnp.float32)

    # fc_decode: output permuted (c,h,w) -> (h,w,c) so result is NHWC directly.
    wd = (p["fc_dec_w"].reshape(C, H, W, latent_dim).transpose(1, 2, 0, 3)
          .reshape(H * W * C, latent_dim).T)
    q["fc_dec_w"] = wd.astype(jnp.bfloat16)                      # [latent, 4096]
    q["fc_dec_b"] = (p["fc_dec_b"].reshape(C, H, W).transpose(1, 2, 0)
                     .reshape(-1).astype(jnp.float32))

    q["deconv1_w"], q["deconv1_b"] = deconv_pack_subpixel(
        p["deconv1_w"], p["deconv1_b"], 32)                      # [256, 128]
    q["deconv2_w"], q["deconv2_b"] = deconv_pack_subpixel(
        p["deconv2_w"], p["deconv2_b"], 32)                      # [128, 128]
    return q


# ------------------------------- VAE forward --------------------------------

def vae_forward(packed, x, eps):
    """x: [B, 3, 32, 32] NCHW (PyTorch convention); eps: [B, latent]."""
    B = x.shape[0]
    latent = eps.shape[1]

    xh = x.transpose(0, 2, 3, 1).astype(jnp.bfloat16)              # NCHW -> NHWC, bf16
    xh = jnp.pad(xh, ((0, 0), (0, 0), (0, 0), (0, IN_CH - 3)))     # 3 -> 8 channels

    # encode (NHWC, bf16 intermediates, 128-padded channels -> lane-dense stores)
    h = conv2d_nhwc(xh, packed["conv1_w"], packed["conv1_b"],
                    4, 2, 1, "relu", jnp.bfloat16)                 # [B,16,16,128]
    h = conv2d_nhwc(h, packed["conv2_w"], packed["conv2_b"],
                    4, 2, 1, "relu", jnp.bfloat16)                 # [B,8,8,128]
    h_flat = h[..., :64].reshape(B, 8 * 8 * 64)                    # drop zero pad -> [B,4096]

    # fused fc_mu + fc_logvar + reparameterize + fc_decode (one pallas_call)
    mu, logvar, hd = fc_fused(h_flat, packed["fc_mulv_w"], packed["fc_mulv_b"],
                              eps, packed["fc_dec_w"], packed["fc_dec_b"], latent)

    # decode (sub-pixel transposed convs, N=128 lane-dense)
    hd = hd.reshape(B, 8, 8, 64)                                   # NHWC
    d = conv_transpose2d_subpixel_nhwc(hd, packed["deconv1_w"], packed["deconv1_b"],
                                       32, "relu", jnp.bfloat16)   # [B,16,16,32]
    r = conv_transpose2d_subpixel_nhwc(d, packed["deconv2_w"], packed["deconv2_b"],
                                       3, "tanh", jnp.float32)     # [B,32,32,3]
    recon = r.transpose(0, 3, 1, 2)                                # NHWC -> NCHW
    return recon, mu, logvar


if __name__ == "__main__":
    key = jax.random.PRNGKey(0)
    kx, keps, kp = jax.random.split(key, 3)
    B, latent_dim = 2, 128
    # 64*8*8 flatten implies 32x32 spatial input (32 -> 16 -> 8)
    x = jax.random.normal(kx, (B, 3, 32, 32), jnp.float32)
    # TODO(synk): torch.randn_like noise is passed in as eps for determinism
    # (could be generated in-kernel with pltpu.prng_random_bits).
    eps = jax.random.normal(keps, (B, latent_dim), jnp.float32)

    params = init_params(kp, latent_dim)
    packed = pack_params(params, latent_dim)   # one-time pack, outside the jitted forward

    fwd = jax.jit(vae_forward)
    recon, mu, logvar = fwd(packed, x, eps)
    jax.block_until_ready((recon, mu, logvar))

    assert recon.shape == (B, 3, 32, 32)
    assert mu.shape == (B, latent_dim)
    assert logvar.shape == (B, latent_dim)
    assert bool(jnp.all(jnp.isfinite(recon)))
    assert bool(jnp.all(jnp.isfinite(mu)))
    assert bool(jnp.all(jnp.isfinite(logvar)))
    print("KERNEL_OK")
</pallas_src>

<mosaic_0001>
module attributes {stable_mosaic.version = 11 : i64} {
  func.func @_matmul_bias_act_kernel(%arg0: i32, %arg1: memref<256x128xbf16, #tpu.memory_space<vmem>>, %arg2: memref<128x128xbf16, #tpu.memory_space<vmem>>, %arg3: memref<1x128xf32, #tpu.memory_space<vmem>>, %arg4: memref<256x128xbf16, #tpu.memory_space<vmem>>) attributes {dimension_semantics = [#tpu.dimension_semantics<parallel>], iteration_bounds = array<i64: 2>, scalar_prefetch = 0 : i64, scratch_operands = 0 : i64, tpu.core_type = #tpu.core_type<tc>, window_params = [{transform_indices = @transform_0, window_bounds = array<i64: 256, 128>}, {pipeline_mode = #tpu.pipeline_mode<synchronous>, transform_indices = @transform_1, window_bounds = array<i64: 128, 128>}, {pipeline_mode = #tpu.pipeline_mode<synchronous>, transform_indices = @transform_2, window_bounds = array<i64: 1, 128>}, {transform_indices = @transform_3, window_bounds = array<i64: 256, 128>}]} {
    %c0 = arith.constant 0 : index
    %c0_0 = arith.constant 0 : index
    %0 = vector.load %arg1[%c0, %c0_0] : memref<256x128xbf16, #tpu.memory_space<vmem>>, vector<256x128xbf16>
    %c0_1 = arith.constant 0 : index
    %c0_2 = arith.constant 0 : index
    %1 = vector.load %arg2[%c0_1, %c0_2] : memref<128x128xbf16, #tpu.memory_space<vmem>>, vector<128x128xbf16>
    %cst = arith.constant dense<0.000000e+00> : vector<256x128xf32>
    %2 = tpu.matmul %0, %1, %cst {dimension_numbers = #tpu.dot_dimension_numbers<[1], [0], [0], [1], [0, 0, 1, 1], [], []>} : vector<256x128xbf16>, vector<128x128xbf16>, vector<256x128xf32> -> vector<256x128xf32>
    %c0_3 = arith.constant 0 : index
    %c0_4 = arith.constant 0 : index
    %3 = vector.load %arg3[%c0_3, %c0_4] : memref<1x128xf32, #tpu.memory_space<vmem>>, vector<1x128xf32>
    %4 = vector.broadcast %3 : vector<1x128xf32> to vector<256x128xf32>
    %5 = arith.addf %2, %4 : vector<256x128xf32>
    %cst_5 = arith.constant 0.000000e+00 : f32
    %6 = vector.broadcast %cst_5 : f32 to vector<256x128xf32>
    %7 = arith.maximumf %5, %6 : vector<256x128xf32>
    %8 = arith.truncf %7 : vector<256x128xf32> to vector<256x128xbf16>
    %c0_6 = arith.constant 0 : index
    %c0_7 = arith.constant 0 : index
    %9 = vector.load %arg4[%c0_6, %c0_7] : memref<256x128xbf16, #tpu.memory_space<vmem>>, vector<256x128xbf16>
    tpu.vector_store %arg4[%c0_6, %c0_7], %8 {strides = array<i32>} : memref<256x128xbf16, #tpu.memory_space<vmem>>, vector<256x128xbf16>,
    return
  }
  func.func @transform_0(%arg0: i32) -> (i32, i32) {
    %c0_i32 = arith.constant 0 : i32
    %c0_i32_0 = arith.constant 0 : i32
    return %arg0, %c0_i32 : i32, i32
  }
  func.func @transform_1(%arg0: i32) -> (i32, i32) {
    %c0_i32 = arith.constant 0 : i32
    %c0_i32_0 = arith.constant 0 : i32
    %c0_i32_1 = arith.constant 0 : i32
    return %c0_i32, %c0_i32_0 : i32, i32
  }
  func.func @transform_2(%arg0: i32) -> (i32, i32) {
    %c0_i32 = arith.constant 0 : i32
    %c0_i32_0 = arith.constant 0 : i32
    %c0_i32_1 = arith.constant 0 : i32
    return %c0_i32, %c0_i32_0 : i32, i32
  }
  func.func @transform_3(%arg0: i32) -> (i32, i32) {
    %c0_i32 = arith.constant 0 : i32
    %c0_i32_0 = arith.constant 0 : i32
    return %arg0, %c0_i32 : i32, i32
  }
}

module attributes {stable_mosaic.version = 11 : i64} {
  func.func @_matmul_bias_act_kernel(%arg0: i32, %arg1: memref<128x2048xbf16, #tpu.memory_space<vmem>>, %arg2: memref<2048x128xbf16, #tpu.memory_space<vmem>>, %arg3: memref<1x128xf32, #tpu.memory_space<vmem>>, %arg4: memref<128x128xbf16, #tpu.memory_space<vmem>>) attributes {dimension_semantics = [#tpu.dimension_semantics<parallel>], iteration_bounds = array<i64: 1>, scalar_prefetch = 0 : i64, scratch_operands = 0 : i64, tpu.core_type = #tpu.core_type<tc>, window_params = [{transform_indices = @transform_0, window_bounds = array<i64: 128, 2048>}, {pipeline_mode = #tpu.pipeline_mode<synchronous>, transform_indices = @transform_1, window_bounds = array<i64: 2048, 128>}, {pipeline_mode = #tpu.pipeline_mode<synchronous>, transform_indices = @transform_2, window_bounds = array<i64: 1, 128>}, {transform_indices = @transform_3, window_bounds = array<i64: 128, 128>}]} {
    %c0 = arith.constant 0 : index
    %c0_0 = arith.constant 0 : index
    %0 = vector.load %arg1[%c0, %c0_0] : memref<128x2048xbf16, #tpu.memory_space<vmem>>, vector<128x2048xbf16>
    %c0_1 = arith.constant 0 : index
    %c0_2 = arith.constant 0 : index
    %1 = vector.load %arg2[%c0_1, %c0_2] : memref<2048x128xbf16, #tpu.memory_space<vmem>>, vector<2048x128xbf16>
    %cst = arith.constant dense<0.000000e+00> : vector<128x128xf32>
    %2 = tpu.matmul %0, %1, %cst {dimension_numbers = #tpu.dot_dimension_numbers<[1], [0], [0], [1], [0, 0, 1, 1], [], []>} : vector<128x2048xbf16>, vector<2048x128xbf16>, vector<128x128xf32> -> vector<128x128xf32>
    %c0_3 = arith.constant 0 : index
    %c0_4 = arith.constant 0 : index
    %3 = vector.load %arg3[%c0_3, %c0_4] : memref<1x128xf32, #tpu.memory_space<vmem>>, vector<1x128xf32>
    %4 = vector.broadcast %3 : vector<1x128xf32> to vector<128x128xf32>
    %5 = arith.addf %2, %4 : vector<128x128xf32>
    %cst_5 = arith.constant 0.000000e+00 : f32
    %6 = vector.broadcast %cst_5 : f32 to vector<128x128xf32>
    %7 = arith.maximumf %5, %6 : vector<128x128xf32>
    %8 = arith.truncf %7 : vector<128x128xf32> to vector<128x128xbf16>
    %c0_6 = arith.constant 0 : index
    %c0_7 = arith.constant 0 : index
    %9 = vector.load %arg4[%c0_6, %c0_7] : memref<128x128xbf16, #tpu.memory_space<vmem>>, vector<128x128xbf16>
    tpu.vector_store %arg4[%c0_6, %c0_7], %8 {strides = array<i32>} : memref<128x128xbf16, #tpu.memory_space<vmem>>, vector<128x128xbf16>,
    return
  }
  func.func @transform_0(%arg0: i32) -> (i32, i32) {
    %c0_i32 = arith.constant 0 : i32
    %c0_i32_0 = arith.constant 0 : i32
    return %arg0, %c0_i32 : i32, i32
  }
  func.func @transform_1(%arg0: i32) -> (i32, i32) {
    %c0_i32 = arith.constant 0 : i32
    %c0_i32_0 = arith.constant 0 : i32
    %c0_i32_1 = arith.constant 0 : i32
    return %c0_i32, %c0_i32_0 : i32, i32
  }
  func.func @transform_2(%arg0: i32) -> (i32, i32) {
    %c0_i32 = arith.constant 0 : i32
    %c0_i32_0 = arith.constant 0 : i32
    %c0_i32_1 = arith.constant 0 : i32
    return %c0_i32, %c0_i32_0 : i32, i32
  }
  func.func @transform_3(%arg0: i32) -> (i32, i32) {
    %c0_i32 = arith.constant 0 : i32
    %c0_i32_0 = arith.constant 0 : i32
    return %arg0, %c0_i32 : i32, i32
  }
}

module attributes {stable_mosaic.version = 11 : i64} {
  func.func @_fc_fused_kernel(%arg0: i32, %arg1: memref<2x1024xbf16, #tpu.memory_space<vmem>>, %arg2: memref<1024x256xbf16, #tpu.memory_space<vmem>>, %arg3: memref<1x256xf32, #tpu.memory_space<vmem>>, %arg4: memref<2x128xf32, #tpu.memory_space<vmem>>, %arg5: memref<128x4096xbf16, #tpu.memory_space<vmem>>, %arg6: memref<1x4096xf32, #tpu.memory_space<vmem>>, %arg7: memref<2x128xf32, #tpu.memory_space<vmem>>, %arg8: memref<2x128xf32, #tpu.memory_space<vmem>>, %arg9: memref<2x4096xbf16, #tpu.memory_space<vmem>>, %arg10: memref<2x256xf32, #tpu.memory_space<vmem>>) attributes {dimension_semantics = [#tpu.dimension_semantics<arbitrary>], iteration_bounds = array<i64: 4>, scalar_prefetch = 0 : i64, scratch_operands = 1 : i64, tpu.core_type = #tpu.core_type<tc>, window_params = [{transform_indices = @transform_0, window_bounds = array<i64: 2, 1024>}, {transform_indices = @transform_1, window_bounds = array<i64: 1024, 256>}, {pipeline_mode = #tpu.pipeline_mode<synchronous>, transform_indices = @transform_2, window_bounds = array<i64: 1, 256>}, {pipeline_mode = #tpu.pipeline_mode<synchronous>, transform_indices = @transform_3, window_bounds = array<i64: 2, 128>}, {pipeline_mode = #tpu.pipeline_mode<synchronous>, transform_indices = @transform_4, window_bounds = array<i64: 128, 4096>}, {pipeline_mode = #tpu.pipeline_mode<synchronous>, transform_indices = @transform_5, window_bounds = array<i64: 1, 4096>}, {pipeline_mode = #tpu.pipeline_mode<synchronous>, transform_indices = @transform_6, window_bounds = array<i64: 2, 128>}, {pipeline_mode = #tpu.pipeline_mode<synchronous>, transform_indices = @transform_7, window_bounds = array<i64: 2, 128>}, {pipeline_mode = #tpu.pipeline_mode<synchronous>, transform_indices = @transform_8, window_bounds = array<i64: 2, 4096>}]} {
    %c0_i32 = arith.constant 0 : i32
    %0 = arith.cmpi eq, %arg0, %c0_i32 : i32
    %1 = arith.extui %0 : i1 to i32
    %c0_i32_0 = arith.constant 0 : i32
    %2 = arith.cmpi ne, %1, %c0_i32_0 : i32
    scf.if %2 {
      %cst_9 = arith.constant 0.000000e+00 : f32
      %12 = vector.broadcast %cst_9 : f32 to vector<2x256xf32>
      %c0_10 = arith.constant 0 : index
      %c0_11 = arith.constant 0 : index
      %13 = vector.load %arg10[%c0_10, %c0_11] : memref<2x256xf32, #tpu.memory_space<vmem>>, vector<2x256xf32>
      tpu.vector_store %arg10[%c0_10, %c0_11], %12 {strides = array<i32>} : memref<2x256xf32, #tpu.memory_space<vmem>>, vector<2x256xf32>,
    } else {
    }
    %c0 = arith.constant 0 : index
    %c0_1 = arith.constant 0 : index
    %3 = vector.load %arg10[%c0, %c0_1] : memref<2x256xf32, #tpu.memory_space<vmem>>, vector<2x256xf32>
    %c0_2 = arith.constant 0 : index
    %c0_3 = arith.constant 0 : index
    %4 = vector.load %arg1[%c0_2, %c0_3] : memref<2x1024xbf16, #tpu.memory_space<vmem>>, vector<2x1024xbf16>
    %c0_4 = arith.constant 0 : index
    %c0_5 = arith.constant 0 : index
    %5 = vector.load %arg2[%c0_4, %c0_5] : memref<1024x256xbf16, #tpu.memory_space<vmem>>, vector<1024x256xbf16>
    %cst = arith.constant dense<0.000000e+00> : vector<2x256xf32>
    %6 = tpu.matmul %4, %5, %cst {dimension_numbers = #tpu.dot_dimension_numbers<[1], [0], [0], [1], [0, 0, 1, 1], [], []>} : vector<2x1024xbf16>, vector<1024x256xbf16>, vector<2x256xf32> -> vector<2x256xf32>
    %7 = arith.addf %3, %6 : vector<2x256xf32>
    %c0_6 = arith.constant 0 : index
    %c0_7 = arith.constant 0 : index
    %8 = vector.load %arg10[%c0_6, %c0_7] : memref<2x256xf32, #tpu.memory_space<vmem>>, vector<2x256xf32>
    tpu.vector_store %arg10[%c0_6, %c0_7], %7 {strides = array<i32>} : memref<2x256xf32, #tpu.memory_space<vmem>>, vector<2x256xf32>,
    %c3_i32 = arith.constant 3 : i32
    %9 = arith.cmpi eq, %arg0, %c3_i32 : i32
    %10 = arith.extui %9 : i1 to i32
    %c0_i32_8 = arith.constant 0 : i32
    %11 = arith.cmpi ne, %10, %c0_i32_8 : i32
    scf.if %11 {
      %c0_9 = arith.constant 0 : index
      %c0_10 = arith.constant 0 : index
      %12 = vector.load %arg10[%c0_9, %c0_10] : memref<2x256xf32, #tpu.memory_space<vmem>>, vector<2x256xf32>
      %c0_11 = arith.constant 0 : index
      %c0_12 = arith.constant 0 : index
      %13 = vector.load %arg3[%c0_11, %c0_12] : memref<1x256xf32, #tpu.memory_space<vmem>>, vector<1x256xf32>
      %14 = vector.broadcast %13 : vector<1x256xf32> to vector<2x256xf32>
      %15 = arith.addf %12, %14 : vector<2x256xf32>
      %16 = vector.extract_strided_slice %15 {offsets = [0, 0], sizes = [2, 128], strides = [1, 1]} : vector<2x256xf32> to vector<2x128xf32>
      %17 = vector.extract_strided_slice %15 {offsets = [0, 128], sizes = [2, 128], strides = [1, 1]} : vector<2x256xf32> to vector<2x128xf32>
      %cst_13 = arith.constant 5.000000e-01 : f32
      %18 = vector.broadcast %cst_13 : f32 to vector<2x128xf32>
      %19 = arith.mulf %18, %17 : vector<2x128xf32>
      %20 = math.exp %19 : vector<2x128xf32>
      %c0_14 = arith.constant 0 : index
      %c0_15 = arith.constant 0 : index
      %21 = vector.load %arg4[%c0_14, %c0_15] : memref<2x128xf32, #tpu.memory_space<vmem>>, vector<2x128xf32>
      %22 = arith.mulf %21, %20 : vector<2x128xf32>
      %23 = arith.addf %16, %22 : vector<2x128xf32>
      %c0_16 = arith.constant 0 : index
      %c0_17 = arith.constant 0 : index
      %24 = vector.load %arg7[%c0_16, %c0_17] : memref<2x128xf32, #tpu.memory_space<vmem>>, vector<2x128xf32>
      tpu.vector_store %arg7[%c0_16, %c0_17], %16 {strides = array<i32>} : memref<2x128xf32, #tpu.memory_space<vmem>>, vector<2x128xf32>,
      %c0_18 = arith.constant 0 : index
      %c0_19 = arith.constant 0 : index
      %25 = vector.load %arg8[%c0_18, %c0_19] : memref<2x128xf32, #tpu.memory_space<vmem>>, vector<2x128xf32>
      tpu.vector_store %arg8[%c0_18, %c0_19], %17 {strides = array<i32>} : memref<2x128xf32, #tpu.memory_space<vmem>>, vector<2x128xf32>,
      %26 = arith.truncf %23 : vector<2x128xf32> to vector<2x128xbf16>
      %c0_20 = arith.constant 0 : index
      %c0_21 = arith.constant 0 : index
      %27 = vector.load %arg5[%c0_20, %c0_21] : memref<128x4096xbf16, #tpu.memory_space<vmem>>, vector<128x4096xbf16>
      %cst_22 = arith.constant dense<0.000000e+00> : vector<2x4096xf32>
      %28 = tpu.matmul %26, %27, %cst_22 {dimension_numbers = #tpu.dot_dimension_numbers<[1], [0], [0], [1], [0, 0, 1, 1], [], []>} : vector<2x128xbf16>, vector<128x4096xbf16>, vector<2x4096xf32> -> vector<2x4096xf32>
      %c0_23 = arith.constant 0 : index
      %c0_24 = arith.constant 0 : index
      %29 = vector.load %arg6[%c0_23, %c0_24] : memref<1x4096xf32, #tpu.memory_space<vmem>>, vector<1x4096xf32>
      %30 = vector.broadcast %29 : vector<1x4096xf32> to vector<2x4096xf32>
      %31 = arith.addf %28, %30 : vector<2x4096xf32>
      %32 = arith.truncf %31 : vector<2x4096xf32> to vector<2x4096xbf16>
      %c0_25 = arith.constant 0 : index
      %c0_26 = arith.constant 0 : index
      %33 = vector.load %arg9[%c0_25, %c0_26] : memref<2x4096xbf16, #tpu.memory_space<vmem>>, vector<2x4096xbf16>
      tpu.vector_store %arg9[%c0_25, %c0_26], %32 {strides = array<i32>} : memref<2x4096xbf16, #tpu.memory_space<vmem>>, vector<2x4096xbf16>,
    } else {
    }
    return
  }
  func.func @transform_0(%arg0: i32) -> (i32, i32) {
    %c0_i32 = arith.constant 0 : i32
    %c0_i32_0 = arith.constant 0 : i32
    return %c0_i32, %arg0 : i32, i32
  }
  func.func @transform_1(%arg0: i32) -> (i32, i32) {
    %c0_i32 = arith.constant 0 : i32
    %c0_i32_0 = arith.constant 0 : i32
    return %arg0, %c0_i32 : i32, i32
  }
  func.func @transform_2(%arg0: i32) -> (i32, i32) {
    %c0_i32 = arith.constant 0 : i32
    %c0_i32_0 = arith.constant 0 : i32
    %c0_i32_1 = arith.constant 0 : i32
    return %c0_i32, %c0_i32_0 : i32, i32
  }
  func.func @transform_3(%arg0: i32) -> (i32, i32) {
    %c0_i32 = arith.constant 0 : i32
    %c0_i32_0 = arith.constant 0 : i32
    %c0_i32_1 = arith.constant 0 : i32
    return %c0_i32, %c0_i32_0 : i32, i32
  }
  func.func @transform_4(%arg0: i32) -> (i32, i32) {
    %c0_i32 = arith.constant 0 : i32
    %c0_i32_0 = arith.constant 0 : i32
    %c0_i32_1 = arith.constant 0 : i32
    return %c0_i32, %c0_i32_0 : i32, i32
  }
  func.func @transform_5(%arg0: i32) -> (i32, i32) {
    %c0_i32 = arith.constant 0 : i32
    %c0_i32_0 = arith.constant 0 : i32
    %c0_i32_1 = arith.constant 0 : i32
    return %c0_i32, %c0_i32_0 : i32, i32
  }
  func.func @transform_6(%arg0: i32) -> (i32, i32) {
    %c0_i32 = arith.constant 0 : i32
    %c0_i32_0 = arith.constant 0 : i32
    %c0_i32_1 = arith.constant 0 : i32
    return %c0_i32, %c0_i32_0 : i32, i32
  }
  func.func @transform_7(%arg0: i32) -> (i32, i32) {
    %c0_i32 = arith.constant 0 : i32
    %c0_i32_0 = arith.constant 0 : i32
    %c0_i32_1 = arith.constant 0 : i32
    return %c0_i32, %c0_i32_0 : i32, i32
  }
  func.func @transform_8(%arg0: i32) -> (i32, i32) {
    %c0_i32 = arith.constant 0 : i32
    %c0_i32_0 = arith.constant 0 : i32
    %c0_i32_1 = arith.constant 0 : i32
    return %c0_i32, %c0_i32_0 : i32, i32
  }
}

module attributes {stable_mosaic.version = 11 : i64} {
  func.func @_matmul_bias_act_kernel(%arg0: i32, %arg1: memref<162x256xbf16, #tpu.memory_space<vmem>>, %arg2: memref<256x128xbf16, #tpu.memory_space<vmem>>, %arg3: memref<1x128xf32, #tpu.memory_space<vmem>>, %arg4: memref<162x128xbf16, #tpu.memory_space<vmem>>) attributes {dimension_semantics = [#tpu.dimension_semantics<parallel>], iteration_bounds = array<i64: 1>, scalar_prefetch = 0 : i64, scratch_operands = 0 : i64, tpu.core_type = #tpu.core_type<tc>, window_params = [{transform_indices = @transform_0, window_bounds = array<i64: 162, 256>}, {pipeline_mode = #tpu.pipeline_mode<synchronous>, transform_indices = @transform_1, window_bounds = array<i64: 256, 128>}, {pipeline_mode = #tpu.pipeline_mode<synchronous>, transform_indices = @transform_2, window_bounds = array<i64: 1, 128>}, {transform_indices = @transform_3, window_bounds = array<i64: 162, 128>}]} {
    %c0 = arith.constant 0 : index
    %c0_0 = arith.constant 0 : index
    %0 = vector.load %arg1[%c0, %c0_0] : memref<162x256xbf16, #tpu.memory_space<vmem>>, vector<162x256xbf16>
    %c0_1 = arith.constant 0 : index
    %c0_2 = arith.constant 0 : index
    %1 = vector.load %arg2[%c0_1, %c0_2] : memref<256x128xbf16, #tpu.memory_space<vmem>>, vector<256x128xbf16>
    %cst = arith.constant dense<0.000000e+00> : vector<162x128xf32>
    %2 = tpu.matmul %0, %1, %cst {dimension_numbers = #tpu.dot_dimension_numbers<[1], [0], [0], [1], [0, 0, 1, 1], [], []>} : vector<162x256xbf16>, vector<256x128xbf16>, vector<162x128xf32> -> vector<162x128xf32>
    %c0_3 = arith.constant 0 : index
    %c0_4 = arith.constant 0 : index
    %3 = vector.load %arg3[%c0_3, %c0_4] : memref<1x128xf32, #tpu.memory_space<vmem>>, vector<1x128xf32>
    %4 = vector.broadcast %3 : vector<1x128xf32> to vector<162x128xf32>
    %5 = arith.addf %2, %4 : vector<162x128xf32>
    %cst_5 = arith.constant 0.000000e+00 : f32
    %6 = vector.broadcast %cst_5 : f32 to vector<162x128xf32>
    %7 = arith.maximumf %5, %6 : vector<162x128xf32>
    %8 = arith.truncf %7 : vector<162x128xf32> to vector<162x128xbf16>
    %c0_6 = arith.constant 0 : index
    %c0_7 = arith.constant 0 : index
    %9 = vector.load %arg4[%c0_6, %c0_7] : memref<162x128xbf16, #tpu.memory_space<vmem>>, vector<162x128xbf16>
    tpu.vector_store %arg4[%c0_6, %c0_7], %8 {strides = array<i32>} : memref<162x128xbf16, #tpu.memory_space<vmem>>, vector<162x128xbf16>,
    return
  }
  func.func @transform_0(%arg0: i32) -> (i32, i32) {
    %c0_i32 = arith.constant 0 : i32
    %c0_i32_0 = arith.constant 0 : i32
    return %arg0, %c0_i32 : i32, i32
  }
  func.func @transform_1(%arg0: i32) -> (i32, i32) {
    %c0_i32 = arith.constant 0 : i32
    %c0_i32_0 = arith.constant 0 : i32
    %c0_i32_1 = arith.constant 0 : i32
    return %c0_i32, %c0_i32_0 : i32, i32
  }
  func.func @transform_2(%arg0: i32) -> (i32, i32) {
    %c0_i32 = arith.constant 0 : i32
    %c0_i32_0 = arith.constant 0 : i32
    %c0_i32_1 = arith.constant 0 : i32
    return %c0_i32, %c0_i32_0 : i32, i32
  }
  func.func @transform_3(%arg0: i32) -> (i32, i32) {
    %c0_i32 = arith.constant 0 : i32
    %c0_i32_0 = arith.constant 0 : i32
    return %arg0, %c0_i32 : i32, i32
  }
}

module attributes {stable_mosaic.version = 11 : i64} {
  func.func @_matmul_bias_act_kernel(%arg0: i32, %arg1: memref<578x128xbf16, #tpu.memory_space<vmem>>, %arg2: memref<128x128xbf16, #tpu.memory_space<vmem>>, %arg3: memref<1x128xf32, #tpu.memory_space<vmem>>, %arg4: memref<578x128xf32, #tpu.memory_space<vmem>>) attributes {dimension_semantics = [#tpu.dimension_semantics<parallel>], iteration_bounds = array<i64: 1>, scalar_prefetch = 0 : i64, scratch_operands = 0 : i64, tpu.core_type = #tpu.core_type<tc>, window_params = [{transform_indices = @transform_0, window_bounds = array<i64: 578, 128>}, {pipeline_mode = #tpu.pipeline_mode<synchronous>, transform_indices = @transform_1, window_bounds = array<i64: 128, 128>}, {pipeline_mode = #tpu.pipeline_mode<synchronous>, transform_indices = @transform_2, window_bounds = array<i64: 1, 128>}, {transform_indices = @transform_3, window_bounds = array<i64: 578, 128>}]} {
    %c0 = arith.constant 0 : index
    %c0_0 = arith.constant 0 : index
    %0 = vector.load %arg1[%c0, %c0_0] : memref<578x128xbf16, #tpu.memory_space<vmem>>, vector<578x128xbf16>
    %c0_1 = arith.constant 0 : index
    %c0_2 = arith.constant 0 : index
    %1 = vector.load %arg2[%c0_1, %c0_2] : memref<128x128xbf16, #tpu.memory_space<vmem>>, vector<128x128xbf16>
    %cst = arith.constant dense<0.000000e+00> : vector<578x128xf32>
    %2 = tpu.matmul %0, %1, %cst {dimension_numbers = #tpu.dot_dimension_numbers<[1], [0], [0], [1], [0, 0, 1, 1], [], []>} : vector<578x128xbf16>, vector<128x128xbf16>, vector<578x128xf32> -> vector<578x128xf32>
    %c0_3 = arith.constant 0 : index
    %c0_4 = arith.constant 0 : index
    %3 = vector.load %arg3[%c0_3, %c0_4] : memref<1x128xf32, #tpu.memory_space<vmem>>, vector<1x128xf32>
    %4 = vector.broadcast %3 : vector<1x128xf32> to vector<578x128xf32>
    %5 = arith.addf %2, %4 : vector<578x128xf32>
    %6 = math.tanh %5 : vector<578x128xf32>
    %c0_5 = arith.constant 0 : index
    %c0_6 = arith.constant 0 : index
    %7 = vector.load %arg4[%c0_5, %c0_6] : memref<578x128xf32, #tpu.memory_space<vmem>>, vector<578x128xf32>
    tpu.vector_store %arg4[%c0_5, %c0_6], %6 {strides = array<i32>} : memref<578x128xf32, #tpu.memory_space<vmem>>, vector<578x128xf32>,
    return
  }
  func.func @transform_0(%arg0: i32) -> (i32, i32) {
    %c0_i32 = arith.constant 0 : i32
    %c0_i32_0 = arith.constant 0 : i32
    return %arg0, %c0_i32 : i32, i32
  }
  func.func @transform_1(%arg0: i32) -> (i32, i32) {
    %c0_i32 = arith.constant 0 : i32
    %c0_i32_0 = arith.constant 0 : i32
    %c0_i32_1 = arith.constant 0 : i32
    return %c0_i32, %c0_i32_0 : i32, i32
  }
  func.func @transform_2(%arg0: i32) -> (i32, i32) {
    %c0_i32 = arith.constant 0 : i32
    %c0_i32_0 = arith.constant 0 : i32
    %c0_i32_1 = arith.constant 0 : i32
    return %c0_i32, %c0_i32_0 : i32, i32
  }
  func.func @transform_3(%arg0: i32) -> (i32, i32) {
    %c0_i32 = arith.constant 0 : i32
    %c0_i32_0 = arith.constant 0 : i32
    return %arg0, %c0_i32 : i32, i32
  }
}

</mosaic_0001>

<llo_original>
// kernel: vae_forward.5
$region0: #{vae_forward.5}
  #allocation0 [shape = 'u32[]', space=smem, size = 0x4, offset = 0x4, fixed_abs, tag = 'smem constant byte address 0x4 - core index']
  #allocation1 [shape = 'u32[72,128]{1,0:T(1,128)}', space=vmem, size = 0x9000, scoped, tag = 'internal scratch']
  %s0 = inlined_call_operand.vmem [shape: bf16[512,128], index: 0, kind: input, shape index: {}]
  %s1 = inlined_call_operand.vmem [shape: bf16[128,128], index: 1, kind: input, shape index: {}]
  %s2 = inlined_call_operand.vmem [shape: f32[1,128], index: 2, kind: input, shape index: {}]
  %s3 = inlined_call_operand.vmem [shape: bf16[512,128], index: 3, kind: output, shape index: {}]
  %s4 = sld [smem:[#allocation0]]
  $region45: #{vae_forward.5} parent=0
    _
  %s6 = ssub.s32 1, %s4
  %s7 = scalar_select 0, %s6, %s4
  loop: start=0, step=1, limit=4
  $region2: #{vae_forward.5} parent=0 // loop_pre_header
    _
  $region3: #{vae_forward.5} parent=0 // loop_header
    %s9 = sphi 0, %s13
    %p10 = scmp.ge.s32.totalorder %s9, 4
    %s19 = sphi 0, %s21
    %s22 = sphi 0, %s19
    %s23 = sphi 0, %s22
    %s39 = sphi 0, %s23
    %s43 = sphi 0, %s43
    %s45 = sphi 0, %s43
    %s46 = sphi 0, %s45
    %s60 = sphi 0, %s46
    %s64 = sphi 0, %s64
    %s66 = sphi 0, %s64
    %s67 = sphi 0, %s66
    %s81 = sphi 0, %s67
    %s87 = sphi 0, %s89
    %s90 = sphi 0, %s87
    %s91 = sphi 0, %s90
    %s107 = sphi 0, %s91
  $region4: #{vae_forward.5} parent=0 // loop_header_branch
    %12 = sbr.rel (%p10) target = $region8
  $region5: #{vae_forward.5} parent=0 // loop_body
    %s14 = ssub.s32 %s9, 1
    %s15 = ssub.s32 %s9, 2
    %s16 = sadd.s32 %s9, 1
    %s17 = ssub.s32 %s9, %s16
    %p18 = scmp.eq.s32.totalorder %s17, 0
    %s20 = sadd.s32 %s19, 1
    %s21 = scalar_select %p18, %s19, %s20
    %p24 = pneg %p18
    %p25 = scmp.eq.s32.totalorder %s9, 1
    %p26 = por %p24, %p25
    %p27 = scmp.ne.s32.totalorder %s19, %s22
    %p28 = scmp.eq.s32.totalorder %s9, 0
    %p29 = por %p27, %p28
    %p30 = scmp.ne.s32.totalorder %s19, %s22
    %p31 = scmp.eq.s32.totalorder %s14, 1
    %p32 = por %p30, %p31
    %p33 = scmp.ne.s32.totalorder %s22, %s23
    %p34 = scmp.eq.s32.totalorder %s14, 0
    %p35 = por %p33, %p34
    %p36 = scmp.ne.s32.totalorder %s22, %s23
    %p37 = scmp.eq.s32.totalorder %s15, 1
    %p38 = por %p36, %p37
    %p40 = scmp.ne.s32.totalorder %s23, %s39
    %p41 = scmp.eq.s32.totalorder %s15, 0
    %p42 = por %p40, %p41
    %s44 = sadd.s32 %s43, 1
    %p47 = scmp.eq.s32.totalorder %s9, 1
    %p48 = scmp.ne.s32.totalorder %s43, %s45
    %p49 = scmp.eq.s32.totalorder %s9, 0
    %p50 = por %p48, %p49
    %p51 = scmp.ne.s32.totalorder %s43, %s45
    %p52 = scmp.eq.s32.totalorder %s14, 1
    %p53 = por %p51, %p52
    %p54 = scmp.ne.s32.totalorder %s45, %s46
    %p55 = scmp.eq.s32.totalorder %s14, 0
    %p56 = por %p54, %p55
    %p57 = scmp.ne.s32.totalorder %s45, %s46
    %p58 = scmp.eq.s32.totalorder %s15, 1
    %p59 = por %p57, %p58
    %p61 = scmp.ne.s32.totalorder %s46, %s60
    %p62 = scmp.eq.s32.totalorder %s15, 0
    %p63 = por %p61, %p62
    %s65 = sadd.s32 %s64, 1
    %p68 = scmp.eq.s32.totalorder %s9, 1
    %p69 = scmp.ne.s32.totalorder %s64, %s66
    %p70 = scmp.eq.s32.totalorder %s9, 0
    %p71 = por %p69, %p70
    %p72 = scmp.ne.s32.totalorder %s64, %s66
    %p73 = scmp.eq.s32.totalorder %s14, 1
    %p74 = por %p72, %p73
    %p75 = scmp.ne.s32.totalorder %s66, %s67
    %p76 = scmp.eq.s32.totalorder %s14, 0
    %p77 = por %p75, %p76
    %p78 = scmp.ne.s32.totalorder %s66, %s67
    %p79 = scmp.eq.s32.totalorder %s15, 1
    %p80 = por %p78, %p79
    %p82 = scmp.ne.s32.totalorder %s67, %s81
    %p83 = scmp.eq.s32.totalorder %s15, 0
    %p84 = por %p82, %p83
    %s85 = ssub.s32 %s9, %s16
    %p86 = scmp.eq.s32.totalorder %s85, 0
    %s88 = sadd.s32 %s87, 1
    %s89 = scalar_select %p86, %s87, %s88
    %p92 = pneg %p86
    %p93 = scmp.eq.s32.totalorder %s9, 1
    %p94 = por %p92, %p93
    %p95 = scmp.ne.s32.totalorder %s87, %s90
    %p96 = scmp.eq.s32.totalorder %s9, 0
    %p97 = por %p95, %p96
    %p98 = scmp.ne.s32.totalorder %s87, %s90
    %p99 = scmp.eq.s32.totalorder %s14, 1
    %p100 = por %p98, %p99
    %p101 = scmp.ne.s32.totalorder %s90, %s91
    %p102 = scmp.eq.s32.totalorder %s14, 0
    %p103 = por %p101, %p102
    %p104 = scmp.ne.s32.totalorder %s90, %s91
    %p105 = scmp.eq.s32.totalorder %s15, 1
    %p106 = por %p104, %p105
    %p108 = scmp.ne.s32.totalorder %s91, %s107
    %p109 = scmp.eq.s32.totalorder %s15, 0
    %p110 = por %p108, %p109
    %p111 = scmp.le.s32.totalorder 1, %s9
    %p112 = scmp.lt.s32.totalorder %s9, 3
    %p113 = pnand %p111, %p112
    %p114 = pneg %p113
    // Predicated region
    $region9: #{vae_forward.5} parent=5 // pred_check
      _
    $region10: #{vae_forward.5} parent=5 // pred_check_branch
      %116 = sbr.rel (%p113) target = $region12
    $region11: #{vae_forward.5} parent=5 // pred_region
      %s117 = ssub.s32 %s9, 1
      // Predicated region
      $region13: #{vae_forward.5} parent=11 // pred_check
        %p118 = pneg %p56
      $region14: #{vae_forward.5} parent=11 // pred_check_branch
        %120 = sbr.rel (%p118) target = $region16
      $region15: #{vae_forward.5} parent=11 // pred_region
        _
      $region16: #{vae_forward.5} parent=11 // pred_fallthru
        _
      // Predicated region
      $region17: #{vae_forward.5} parent=11 // pred_check
        %p121 = pneg %p77
      $region18: #{vae_forward.5} parent=11 // pred_check_branch
        %123 = sbr.rel (%p121) target = $region20
      $region19: #{vae_forward.5} parent=11 // pred_region
        _
      $region20: #{vae_forward.5} parent=11 // pred_fallthru
        _
    $region12: #{vae_forward.5} parent=5 // pred_fallthru
      _
    %p124 = scmp.lt.s32.totalorder %s9, 2
    // Predicated region
    $region21: #{vae_forward.5} parent=5 // pred_check
      %p125 = pneg %p124
    $region22: #{vae_forward.5} parent=5 // pred_check_branch
      %127 = sbr.rel (%p125) target = $region24
    $region23: #{vae_forward.5} parent=5 // pred_region
      // Predicated region
      $region25: #{vae_forward.5} parent=23 // pred_check
        %p128 = pneg %p29
      $region26: #{vae_forward.5} parent=23 // pred_check_branch
        %130 = sbr.rel (%p128) target = $region28
      $region27: #{vae_forward.5} parent=23 // pred_region
        %s131 = smul.u32 32, %s9
        %p132 = scmp.lt.s32.totalorder %s131, 63
        %s133 = scalar_select %p132, %s131, 63
        %s134 = smul.addr %s133, 4
        %s135 = scalar_lea.vmem %s0, %s134
        %s136 = smul.u32 32, %s9
      $region28: #{vae_forward.5} parent=23 // pred_fallthru
        _
    $region24: #{vae_forward.5} parent=5 // pred_fallthru
      _
    %p137 = scmp.le.s32.totalorder 1, %s9
    %p138 = scmp.lt.s32.totalorder %s9, 3
    %p139 = pnand %p137, %p138
    %p140 = pneg %p139
    // Predicated region
    $region29: #{vae_forward.5} parent=5 // pred_check
      _
    $region30: #{vae_forward.5} parent=5 // pred_check_branch
      %142 = sbr.rel (%p139) target = $region32
    $region31: #{vae_forward.5} parent=5 // pred_region
      %s143 = ssub.s32 %s9, 1
      %s144 = smul.u32 32, %s14
      %p145 = scmp.lt.s32.totalorder %s144, 63
      %s146 = scalar_select %p145, %s144, 63
      %s147 = smul.addr %s146, 4
      %s148 = scalar_lea.vmem %s0, %s147
      %p149 = pneg %p35
      %p150 = pneg %p32
      %p151 = pneg %p56
      %p152 = pneg %p53
      %p153 = pneg %p77
      %p154 = pneg %p74
      %p155 = pneg %p103
      %p156 = pneg %p100
      %s157 = smul.u32 32, %s14
      %p158 = scmp.lt.s32.totalorder %s157, 63
      %s159 = scalar_select %p158, %s157, 63
      %s160 = smul.addr %s159, 4
      %s161 = scalar_lea.vmem %s3, %s160
      %s162 = smul.u32 32, %s14
      %p163 = scmp.lt.s32.totalorder %s162, 63
      %s164 = scalar_select %p163, %s162, 63
      %s165 = smul.addr %s164, 4
      %s166 = scalar_lea.vmem %s0, %s165
      %s167 = smul.u32 32, %s14
      %s168 = smul.u32 32, %s14
      %p169 = scmp.lt.s32.totalorder %s168, 63
      %s170 = scalar_select %p169, %s168, 63
      %s171 = smul.addr %s170, 4
      %s172 = scalar_lea.vmem %s3, %s171
      %s173 = smul.u32 32, %s14
      %v174 = vld [vmem:[%s166] sm:$0xf]
      %v175 = vld [vmem:[%s166 + $0x4] sm:$0xf]
      %v176 = vld [vmem:[%s166 + $0x8] sm:$0xf]
      %v177 = vld [vmem:[%s166 + $0xc] sm:$0xf]
      %v178 = vld [vmem:[%s166 + $0x10] sm:$0xf]
      %v179 = vld [vmem:[%s166 + $0x14] sm:$0xf]
      %v180 = vld [vmem:[%s166 + $0x18] sm:$0xf]
      %v181 = vld [vmem:[%s166 + $0x1c] sm:$0xf]
      %v182 = vld [vmem:[%s166 + $0x20] sm:$0xf]
      %v183 = vld [vmem:[%s166 + $0x24] sm:$0xf]
      %v184 = vld [vmem:[%s166 + $0x28] sm:$0xf]
      %v185 = vld [vmem:[%s166 + $0x2c] sm:$0xf]
      %v186 = vld [vmem:[%s166 + $0x30] sm:$0xf]
      %v187 = vld [vmem:[%s166 + $0x34] sm:$0xf]
      %v188 = vld [vmem:[%s166 + $0x38] sm:$0xf]
      %v189 = vld [vmem:[%s166 + $0x3c] sm:$0xf]
      %v190 = vld [vmem:[%s166 + $0x40] sm:$0xf]
      %v191 = vld [vmem:[%s166 + $0x44] sm:$0xf]
      %v192 = vld [vmem:[%s166 + $0x48] sm:$0xf]
      %v193 = vld [vmem:[%s166 + $0x4c] sm:$0xf]
      %v194 = vld [vmem:[%s166 + $0x50] sm:$0xf]
      %v195 = vld [vmem:[%s166 + $0x54] sm:$0xf]
      %v196 = vld [vmem:[%s166 + $0x58] sm:$0xf]
      %v197 = vld [vmem:[%s166 + $0x5c] sm:$0xf]
      %v198 = vld [vmem:[%s166 + $0x60] sm:$0xf]
      %v199 = vld [vmem:[%s166 + $0x64] sm:$0xf]
      %v200 = vld [vmem:[%s166 + $0x68] sm:$0xf]
      %v201 = vld [vmem:[%s166 + $0x6c] sm:$0xf]
      %v202 = vld [vmem:[%s166 + $0x70] sm:$0xf]
      %v203 = vld [vmem:[%s166 + $0x74] sm:$0xf]
      %v204 = vld [vmem:[%s166 + $0x78] sm:$0xf]
      %v205 = vld [vmem:[%s166 + $0x7c] sm:$0xf]
      %v206 = vld [vmem:[%s1] sm:$0xf]
      %v207 = vld [vmem:[%s1 + $0x4] sm:$0xf]
      %v208 = vld [vmem:[%s1 + $0x8] sm:$0xf]
      %v209 = vld [vmem:[%s1 + $0xc] sm:$0xf]
      %v210 = vld [vmem:[%s1 + $0x10] sm:$0xf]
      %v211 = vld [vmem:[%s1 + $0x14] sm:$0xf]
      %v212 = vld [vmem:[%s1 + $0x18] sm:$0xf]
      %v213 = vld [vmem:[%s1 + $0x1c] sm:$0xf]
      %v214 = vld [vmem:[%s1 + $0x20] sm:$0xf]
      %v215 = vld [vmem:[%s1 + $0x24] sm:$0xf]
      %v216 = vld [vmem:[%s1 + $0x28] sm:$0xf]
      %v217 = vld [vmem:[%s1 + $0x2c] sm:$0xf]
      %v218 = vld [vmem:[%s1 + $0x30] sm:$0xf]
      %v219 = vld [vmem:[%s1 + $0x34] sm:$0xf]
      %v220 = vld [vmem:[%s1 + $0x38] sm:$0xf]
      %v221 = vld [vmem:[%s1 + $0x3c] sm:$0xf]
      %v222 = vld [vmem:[%s2] sm:$0x1]
      %v224 = vperm.slane %v222, 0
      %v258 = vunpack.c.l.b16 %v174
      %v259 = vunpack.c.l.b16 %v175
      %v260 = vunpack.c.l.b16 %v176
      %v261 = vunpack.c.l.b16 %v177
      %v262 = vunpack.c.l.b16 %v178
      %v263 = vunpack.c.l.b16 %v179
      %v264 = vunpack.c.l.b16 %v180
      %v265 = vunpack.c.l.b16 %v181
      %v266 = vunpack.c.l.b16 %v182
      %v267 = vunpack.c.l.b16 %v183
      %v268 = vunpack.c.l.b16 %v184
      %v269 = vunpack.c.l.b16 %v185
      %v270 = vunpack.c.l.b16 %v186
      %v271 = vunpack.c.l.b16 %v187
      %v272 = vunpack.c.l.b16 %v188
      %v273 = vunpack.c.l.b16 %v189
      %v274 = vunpack.c.l.b16 %v190
      %v275 = vunpack.c.l.b16 %v191
      %v276 = vunpack.c.l.b16 %v192
      %v277 = vunpack.c.l.b16 %v193
      %v278 = vunpack.c.l.b16 %v194
      %v279 = vunpack.c.l.b16 %v195
      %v280 = vunpack.c.l.b16 %v196
      %v281 = vunpack.c.l.b16 %v197
      %v282 = vunpack.c.l.b16 %v198
      %v283 = vunpack.c.l.b16 %v199
      %v284 = vunpack.c.l.b16 %v200
      %v285 = vunpack.c.l.b16 %v201
      %v286 = vunpack.c.l.b16 %v202
      %v287 = vunpack.c.l.b16 %v203
      %v288 = vunpack.c.l.b16 %v204
      %v289 = vunpack.c.l.b16 %v205
      %v290 = vpack.c.b16 %v259, %v258
      %v291 = vpack.c.b16 %v261, %v260
      %v292 = vpack.c.b16 %v263, %v262
      %v293 = vpack.c.b16 %v265, %v264
      %v294 = vpack.c.b16 %v267, %v266
      %v295 = vpack.c.b16 %v269, %v268
      %v296 = vpack.c.b16 %v271, %v270
      %v297 = vpack.c.b16 %v273, %v272
      %v298 = vpack.c.b16 %v275, %v274
      %v299 = vpack.c.b16 %v277, %v276
      %v300 = vpack.c.b16 %v279, %v278
      %v301 = vpack.c.b16 %v281, %v280
      %v302 = vpack.c.b16 %v283, %v282
      %v303 = vpack.c.b16 %v285, %v284
      %v304 = vpack.c.b16 %v287, %v286
      %v305 = vpack.c.b16 %v289, %v288
      %v338 = vunpack.c.l.b16 %v206
      %v339 = vunpack.c.l.b16 %v207
      %v340 = vunpack.c.l.b16 %v208
      %v341 = vunpack.c.l.b16 %v209
      %v342 = vunpack.c.l.b16 %v210
      %v343 = vunpack.c.l.b16 %v211
      %v344 = vunpack.c.l.b16 %v212
      %v345 = vunpack.c.l.b16 %v213
      %v346 = vunpack.c.l.b16 %v214
      %v347 = vunpack.c.l.b16 %v215
      %v348 = vunpack.c.l.b16 %v216
      %v349 = vunpack.c.l.b16 %v217
      %v350 = vunpack.c.l.b16 %v218
      %v351 = vunpack.c.l.b16 %v219
      %v352 = vunpack.c.l.b16 %v220
      %v353 = vunpack.c.l.b16 %v221
      %v354 = vpack.c.b16 %v339, %v338
      %v355 = vpack.c.b16 %v341, %v340
      %v356 = vpack.c.b16 %v343, %v342
      %v357 = vpack.c.b16 %v345, %v344
      %v358 = vpack.c.b16 %v347, %v346
      %v359 = vpack.c.b16 %v349, %v348
      %v360 = vpack.c.b16 %v351, %v350
      %v361 = vpack.c.b16 %v353, %v352
      %370 = vmatpush.bf16.msra.mxu0 %v361
      %371 = vmatpush.bf16.msra.mxu0 %v360
      %372 = vmatpush.bf16.msra.mxu0 %v359
      %373 = vmatpush.bf16.msra.mxu0 %v358
      %374 = vmatpush.bf16.msra.mxu0 %v357
      %375 = vmatpush.bf16.msra.mxu0 %v356
      %376 = vmatpush.bf16.msra.mxu0 %v355
      %377 = vmatpush.bf16.msra.mxu0 %v354
      %378 = vmatmul.bf16.gmra.mxu0 %v290
      %v379 = vpop.f32.mrf.mxu0
      %v380 = vadd.f32 %v224, %v379
      %v381 = vpop.f32.mrf.mxu0
      %v382 = vadd.f32 %v224, %v381
      %383 = vmatmul.bf16.gmra.mxu0 %v291
      %v384 = vpop.f32.mrf.mxu0
      %v385 = vadd.f32 %v224, %v384
      %v386 = vpop.f32.mrf.mxu0
      %v387 = vadd.f32 %v224, %v386
      %388 = vmatmul.bf16.gmra.mxu0 %v292
      %v389 = vpop.f32.mrf.mxu0
      %v390 = vadd.f32 %v224, %v389
      %v391 = vpop.f32.mrf.mxu0
      %v392 = vadd.f32 %v224, %v391
      %393 = vmatmul.bf16.gmra.mxu0 %v293
      %v394 = vpop.f32.mrf.mxu0
      %v395 = vadd.f32 %v224, %v394
      %v396 = vpop.f32.mrf.mxu0
      %v397 = vadd.f32 %v224, %v396
      %398 = vmatmul.bf16.gmra.mxu0 %v294
      %v399 = vpop.f32.mrf.mxu0
      %v400 = vadd.f32 %v224, %v399
      %v401 = vpop.f32.mrf.mxu0
      %v402 = vadd.f32 %v224, %v401
      %403 = vmatmul.bf16.gmra.mxu0 %v295
      %v404 = vpop.f32.mrf.mxu0
      %v405 = vadd.f32 %v224, %v404
      %v406 = vpop.f32.mrf.mxu0
      %v407 = vadd.f32 %v224, %v406
      %408 = vmatmul.bf16.gmra.mxu0 %v296
      %v409 = vpop.f32.mrf.mxu0
      %v410 = vadd.f32 %v224, %v409
      %v411 = vpop.f32.mrf.mxu0
      %v412 = vadd.f32 %v224, %v411
      %413 = vmatmul.bf16.gmra.mxu0 %v297
      %v414 = vpop.f32.mrf.mxu0
      %v415 = vadd.f32 %v224, %v414
      %v416 = vpop.f32.mrf.mxu0
      %v417 = vadd.f32 %v224, %v416
      %418 = vmatmul.bf16.gmra.mxu0 %v298
      %v419 = vpop.f32.mrf.mxu0
      %v420 = vadd.f32 %v224, %v419
      %v421 = vpop.f32.mrf.mxu0
      %v422 = vadd.f32 %v224, %v421
      %423 = vmatmul.bf16.gmra.mxu0 %v299
      %v424 = vpop.f32.mrf.mxu0
      %v425 = vadd.f32 %v224, %v424
      %v426 = vpop.f32.mrf.mxu0
      %v427 = vadd.f32 %v224, %v426
      %428 = vmatmul.bf16.gmra.mxu0 %v300
      %v429 = vpop.f32.mrf.mxu0
      %v430 = vadd.f32 %v224, %v429
      %v431 = vpop.f32.mrf.mxu0
      %v432 = vadd.f32 %v224, %v431
      %433 = vmatmul.bf16.gmra.mxu0 %v301
      %v434 = vpop.f32.mrf.mxu0
      %v435 = vadd.f32 %v224, %v434
      %v436 = vpop.f32.mrf.mxu0
      %v437 = vadd.f32 %v224, %v436
      %438 = vmatmul.bf16.gmra.mxu0 %v302
      %v439 = vpop.f32.mrf.mxu0
      %v440 = vadd.f32 %v224, %v439
      %v441 = vpop.f32.mrf.mxu0
      %v442 = vadd.f32 %v224, %v441
      %443 = vmatmul.bf16.gmra.mxu0 %v303
      %v444 = vpop.f32.mrf.mxu0
      %v445 = vadd.f32 %v224, %v444
      %v446 = vpop.f32.mrf.mxu0
      %v447 = vadd.f32 %v224, %v446
      %448 = vmatmul.bf16.gmra.mxu0 %v304
      %v449 = vpop.f32.mrf.mxu0
      %v450 = vadd.f32 %v224, %v449
      %v451 = vpop.f32.mrf.mxu0
      %v452 = vadd.f32 %v224, %v451
      %453 = vmatmul.bf16.gmra.mxu0 %v305
      %v454 = vpop.f32.mrf.mxu0
      %v455 = vadd.f32 %v224, %v454
      %v456 = vpop.f32.mrf.mxu0
      %v457 = vadd.f32 %v224, %v456
      %458 = vdwg.mxu0
      %v459 = vmax.f32 %v380, 0.0
      %v460 = vmax.f32 %v382, 0.0
      %v461 = vmax.f32 %v385, 0.0
      %v462 = vmax.f32 %v387, 0.0
      %v463 = vmax.f32 %v390, 0.0
      %v464 = vmax.f32 %v392, 0.0
      %v465 = vmax.f32 %v395, 0.0
      %v466 = vmax.f32 %v397, 0.0
      %v467 = vmax.f32 %v400, 0.0
      %v468 = vmax.f32 %v402, 0.0
      %v469 = vmax.f32 %v405, 0.0
      %v470 = vmax.f32 %v407, 0.0
      %v471 = vmax.f32 %v410, 0.0
      %v472 = vmax.f32 %v412, 0.0
      %v473 = vmax.f32 %v415, 0.0
      %v474 = vmax.f32 %v417, 0.0
      %v475 = vmax.f32 %v420, 0.0
      %v476 = vmax.f32 %v422, 0.0
      %v477 = vmax.f32 %v425, 0.0
      %v478 = vmax.f32 %v427, 0.0
      %v479 = vmax.f32 %v430, 0.0
      %v480 = vmax.f32 %v432, 0.0
      %v481 = vmax.f32 %v435, 0.0
      %v482 = vmax.f32 %v437, 0.0
      %v483 = vmax.f32 %v440, 0.0
      %v484 = vmax.f32 %v442, 0.0
      %v485 = vmax.f32 %v445, 0.0
      %v486 = vmax.f32 %v447, 0.0
      %v487 = vmax.f32 %v450, 0.0
      %v488 = vmax.f32 %v452, 0.0
      %v489 = vmax.f32 %v455, 0.0
      %v490 = vmax.f32 %v457, 0.0
      %v491 = vpack.c.bf16 %v459, %v459
      %v492 = vpack.c.bf16 %v460, %v460
      %v493 = vpack.c.bf16 %v461, %v461
      %v494 = vpack.c.bf16 %v462, %v462
      %v495 = vpack.c.bf16 %v463, %v463
      %v496 = vpack.c.bf16 %v464, %v464
      %v497 = vpack.c.bf16 %v465, %v465
      %v498 = vpack.c.bf16 %v466, %v466
      %v499 = vpack.c.bf16 %v467, %v467
      %v500 = vpack.c.bf16 %v468, %v468
      %v501 = vpack.c.bf16 %v469, %v469
      %v502 = vpack.c.bf16 %v470, %v470
      %v503 = vpack.c.bf16 %v471, %v471
      %v504 = vpack.c.bf16 %v472, %v472
      %v505 = vpack.c.bf16 %v473, %v473
      %v506 = vpack.c.bf16 %v474, %v474
      %v507 = vpack.c.bf16 %v475, %v475
      %v508 = vpack.c.bf16 %v476, %v476
      %v509 = vpack.c.bf16 %v477, %v477
      %v510 = vpack.c.bf16 %v478, %v478
      %v511 = vpack.c.bf16 %v479, %v479
      %v512 = vpack.c.bf16 %v480, %v480
      %v513 = vpack.c.bf16 %v481, %v481
      %v514 = vpack.c.bf16 %v482, %v482
      %v515 = vpack.c.bf16 %v483, %v483
      %v516 = vpack.c.bf16 %v484, %v484
      %v517 = vpack.c.bf16 %v485, %v485
      %v518 = vpack.c.bf16 %v486, %v486
      %v519 = vpack.c.bf16 %v487, %v487
      %v520 = vpack.c.bf16 %v488, %v488
      %v521 = vpack.c.bf16 %v489, %v489
      %v522 = vpack.c.bf16 %v490, %v490
      %523 = vst [vmem:[%s172] sm:$0xf] %v491
      %524 = vst [vmem:[%s172 + $0x4] sm:$0xf] %v492
      %525 = vst [vmem:[%s172 + $0x8] sm:$0xf] %v493
      %526 = vst [vmem:[%s172 + $0xc] sm:$0xf] %v494
      %527 = vst [vmem:[%s172 + $0x10] sm:$0xf] %v495
      %528 = vst [vmem:[%s172 + $0x14] sm:$0xf] %v496
      %529 = vst [vmem:[%s172 + $0x18] sm:$0xf] %v497
      %530 = vst [vmem:[%s172 + $0x1c] sm:$0xf] %v498
      %531 = vst [vmem:[%s172 + $0x20] sm:$0xf] %v499
      %532 = vst [vmem:[%s172 + $0x24] sm:$0xf] %v500
      %533 = vst [vmem:[%s172 + $0x28] sm:$0xf] %v501
      %534 = vst [vmem:[%s172 + $0x2c] sm:$0xf] %v502
      %535 = vst [vmem:[%s172 + $0x30] sm:$0xf] %v503
      %536 = vst [vmem:[%s172 + $0x34] sm:$0xf] %v504
      %537 = vst [vmem:[%s172 + $0x38] sm:$0xf] %v505
      %538 = vst [vmem:[%s172 + $0x3c] sm:$0xf] %v506
      %539 = vst [vmem:[%s172 + $0x40] sm:$0xf] %v507
      %540 = vst [vmem:[%s172 + $0x44] sm:$0xf] %v508
      %541 = vst [vmem:[%s172 + $0x48] sm:$0xf] %v509
      %542 = vst [vmem:[%s172 + $0x4c] sm:$0xf] %v510
      %543 = vst [vmem:[%s172 + $0x50] sm:$0xf] %v511
      %544 = vst [vmem:[%s172 + $0x54] sm:$0xf] %v512
      %545 = vst [vmem:[%s172 + $0x58] sm:$0xf] %v513
      %546 = vst [vmem:[%s172 + $0x5c] sm:$0xf] %v514
      %547 = vst [vmem:[%s172 + $0x60] sm:$0xf] %v515
      %548 = vst [vmem:[%s172 + $0x64] sm:$0xf] %v516
      %549 = vst [vmem:[%s172 + $0x68] sm:$0xf] %v517
      %550 = vst [vmem:[%s172 + $0x6c] sm:$0xf] %v518
      %551 = vst [vmem:[%s172 + $0x70] sm:$0xf] %v519
      %552 = vst [vmem:[%s172 + $0x74] sm:$0xf] %v520
      %553 = vst [vmem:[%s172 + $0x78] sm:$0xf] %v521
      %554 = vst [vmem:[%s172 + $0x7c] sm:$0xf] %v522
      %s555 = smul.u32 32, %s14
      %p556 = scmp.lt.s32.totalorder %s555, 63
      %s557 = scalar_select %p556, %s555, 63
      %s558 = smul.addr %s557, 4
      %s559 = scalar_lea.vmem %s3, %s558
      // Predicated region
      $region33: #{vae_forward.5} parent=31 // pred_check
        %p560 = pneg %p100
      $region34: #{vae_forward.5} parent=31 // pred_check_branch
        %562 = sbr.rel (%p560) target = $region36
      $region35: #{vae_forward.5} parent=31 // pred_region
        %s563 = smul.u32 32, %s14
      $region36: #{vae_forward.5} parent=31 // pred_fallthru
        _
    $region32: #{vae_forward.5} parent=5 // pred_fallthru
      _
    %p564 = scmp.le.s32.totalorder 2, %s9
    // Predicated region
    $region37: #{vae_forward.5} parent=5 // pred_check
      %p565 = pneg %p564
    $region38: #{vae_forward.5} parent=5 // pred_check_branch
      %567 = sbr.rel (%p565) target = $region40
    $region39: #{vae_forward.5} parent=5 // pred_region
      %s568 = ssub.s32 %s9, 2
      // Predicated region
      $region41: #{vae_forward.5} parent=39 // pred_check
        %p569 = pneg %p106
      $region42: #{vae_forward.5} parent=39 // pred_check_branch
        %571 = sbr.rel (%p569) target = $region44
      $region43: #{vae_forward.5} parent=39 // pred_region
        %s572 = smul.u32 32, %s15
        %p573 = scmp.lt.s32.totalorder %s572, 63
        %s574 = scalar_select %p573, %s572, 63
        %s575 = smul.addr %s574, 4
        %s576 = scalar_lea.vmem %s3, %s575
      $region44: #{vae_forward.5} parent=39 // pred_fallthru
        _
    $region40: #{vae_forward.5} parent=5 // pred_fallthru
      _
  $region6: #{vae_forward.5} parent=0 // loop_footer
    %s13 = sadd.s32 1, %s9
  $region7: #{vae_forward.5} parent=0 // loop_footer_branch
    %8 = sbr.rel target = $region3
  $region8: #{vae_forward.5} parent=0 // loop_exit
    _

// kernel: vae_forward.6
$region0: #{vae_forward.6}
  #allocation0 [shape = 'u32[]', space=smem, size = 0x4, offset = 0x4, fixed_abs, tag = 'smem constant byte address 0x4 - core index']
  #allocation1 [shape = 'u32[72,128]{1,0:T(1,128)}', space=vmem, size = 0x9000, scoped, tag = 'internal scratch']
  %s0 = inlined_call_operand.vmem [shape: bf16[128,2048], index: 0, kind: input, shape index: {}]
  %s1 = inlined_call_operand.vmem [shape: bf16[2048,128], index: 1, kind: input, shape index: {}]
  %s2 = inlined_call_operand.vmem [shape: f32[1,128], index: 2, kind: input, shape index: {}]
  %s3 = inlined_call_operand.vmem [shape: bf16[128,128], index: 3, kind: output, shape index: {}]
  %s4 = sld [smem:[#allocation0]]
  $region22: #{vae_forward.6} parent=0
    _
  %s6 = ssub.s32 1, %s4
  %s7 = scalar_select 0, %s6, %s4
  // Predicated region
  $region2: #{vae_forward.6} parent=0 // pred_check
    _
  $region3: #{vae_forward.6} parent=0 // pred_check_branch
    %9 = sbr.rel (0) target = $region5
  $region4: #{vae_forward.6} parent=0 // pred_region
    _
  $region5: #{vae_forward.6} parent=0 // pred_fallthru
    _
  // Predicated region
  $region6: #{vae_forward.6} parent=0 // pred_check
    _
  $region7: #{vae_forward.6} parent=0 // pred_check_branch
    %11 = sbr.rel (0) target = $region9
  $region8: #{vae_forward.6} parent=0 // pred_region
    _
  $region9: #{vae_forward.6} parent=0 // pred_fallthru
    _
  // Predicated region
  $region10: #{vae_forward.6} parent=0 // pred_check
    _
  $region11: #{vae_forward.6} parent=0 // pred_check_branch
    %13 = sbr.rel (0) target = $region13
  $region12: #{vae_forward.6} parent=0 // pred_region
    _
  $region13: #{vae_forward.6} parent=0 // pred_fallthru
    _
  %v14 = vld [vmem:[%s0] sm:$0xff]
  %v15 = vld [vmem:[%s0 + $0x8] sm:$0xff]
  %v16 = vld [vmem:[%s0 + $0x10] sm:$0xff]
  %v17 = vld [vmem:[%s0 + $0x18] sm:$0xff]
  %v18 = vld [vmem:[%s0 + $0x20] sm:$0xff]
  %v19 = vld [vmem:[%s0 + $0x28] sm:$0xff]
  %v20 = vld [vmem:[%s0 + $0x30] sm:$0xff]
  %v21 = vld [vmem:[%s0 + $0x38] sm:$0xff]
  %v22 = vld [vmem:[%s0 + $0x40] sm:$0xff]
  %v23 = vld [vmem:[%s0 + $0x48] sm:$0xff]
  %v24 = vld [vmem:[%s0 + $0x50] sm:$0xff]
  %v25 = vld [vmem:[%s0 + $0x58] sm:$0xff]
  %v26 = vld [vmem:[%s0 + $0x60] sm:$0xff]
  %v27 = vld [vmem:[%s0 + $0x68] sm:$0xff]
  %v28 = vld [vmem:[%s0 + $0x70] sm:$0xff]
  %v29 = vld [vmem:[%s0 + $0x78] sm:$0xff]
  %v30 = vld [vmem:[%s0 + $0x80] sm:$0xff]
  %v31 = vld [vmem:[%s0 + $0x88] sm:$0xff]
  %v32 = vld [vmem:[%s0 + $0x90] sm:$0xff]
  %v33 = vld [vmem:[%s0 + $0x98] sm:$0xff]
  %v34 = vld [vmem:[%s0 + $0xa0] sm:$0xff]
  %v35 = vld [vmem:[%s0 + $0xa8] sm:$0xff]
  %v36 = vld [vmem:[%s0 + $0xb0] sm:$0xff]
  %v37 = vld [vmem:[%s0 + $0xb8] sm:$0xff]
  %v38 = vld [vmem:[%s0 + $0xc0] sm:$0xff]
  %v39 = vld [vmem:[%s0 + $0xc8] sm:$0xff]
  %v40 = vld [vmem:[%s0 + $0xd0] sm:$0xff]
  %v41 = vld [vmem:[%s0 + $0xd8] sm:$0xff]
  %v42 = vld [vmem:[%s0 + $0xe0] sm:$0xff]
  %v43 = vld [vmem:[%s0 + $0xe8] sm:$0xff]
  %v44 = vld [vmem:[%s0 + $0xf0] sm:$0xff]
  %v45 = vld [vmem:[%s0 + $0xf8] sm:$0xff]
  %v46 = vld [vmem:[%s0 + $0x100] sm:$0xff]
  %v47 = vld [vmem:[%s0 + $0x108] sm:$0xff]
  %v48 = vld [vmem:[%s0 + $0x110] sm:$0xff]
  %v49 = vld [vmem:[%s0 + $0x118] sm:$0xff]
  %v50 = vld [vmem:[%s0 + $0x120] sm:$0xff]
  %v51 = vld [vmem:[%s0 + $0x128] sm:$0xff]
  %v52 = vld [vmem:[%s0 + $0x130] sm:$0xff]
  %v53 = vld [vmem:[%s0 + $0x138] sm:$0xff]
  %v54 = vld [vmem:[%s0 + $0x140] sm:$0xff]
  %v55 = vld [vmem:[%s0 + $0x148] sm:$0xff]
  %v56 = vld [vmem:[%s0 + $0x150] sm:$0xff]
  %v57 = vld [vmem:[%s0 + $0x158] sm:$0xff]
  %v58 = vld [vmem:[%s0 + $0x160] sm:$0xff]
  %v59 = vld [vmem:[%s0 + $0x168] sm:$0xff]
  %v60 = vld [vmem:[%s0 + $0x170] sm:$0xff]
  %v61 = vld [vmem:[%s0 + $0x178] sm:$0xff]
  %v62 = vld [vmem:[%s0 + $0x180] sm:$0xff]
  %v63 = vld [vmem:[%s0 + $0x188] sm:$0xff]
  %v64 = vld [vmem:[%s0 + $0x190] sm:$0xff]
  %v65 = vld [vmem:[%s0 + $0x198] sm:$0xff]
  %v66 = vld [vmem:[%s0 + $0x1a0] sm:$0xff]
  %v67 = vld [vmem:[%s0 + $0x1a8] sm:$0xff]
  %v68 = vld [vmem:[%s0 + $0x1b0] sm:$0xff]
  %v69 = vld [vmem:[%s0 + $0x1b8] sm:$0xff]
  %v70 = vld [vmem:[%s0 + $0x1c0] sm:$0xff]
  %v71 = vld [vmem:[%s0 + $0x1c8] sm:$0xff]
  %v72 = vld [vmem:[%s0 + $0x1d0] sm:$0xff]
  %v73 = vld [vmem:[%s0 + $0x1d8] sm:$0xff]
  %v74 = vld [vmem:[%s0 + $0x1e0] sm:$0xff]
  %v75 = vld [vmem:[%s0 + $0x1e8] sm:$0xff]
  %v76 = vld [vmem:[%s0 + $0x1f0] sm:$0xff]
  %v77 = vld [vmem:[%s0 + $0x1f8] sm:$0xff]
  %v78 = vld [vmem:[%s0 + $0x200] sm:$0xff]
  %v79 = vld [vmem:[%s0 + $0x208] sm:$0xff]
  %v80 = vld [vmem:[%s0 + $0x210] sm:$0xff]
  %v81 = vld [vmem:[%s0 + $0x218] sm:$0xff]
  %v82 = vld [vmem:[%s0 + $0x220] sm:$0xff]
  %v83 = vld [vmem:[%s0 + $0x228] sm:$0xff]
  %v84 = vld [vmem:[%s0 + $0x230] sm:$0xff]
  %v85 = vld [vmem:[%s0 + $0x238] sm:$0xff]
  %v86 = vld [vmem:[%s0 + $0x240] sm:$0xff]
  %v87 = vld [vmem:[%s0 + $0x248] sm:$0xff]
  %v88 = vld [vmem:[%s0 + $0x250] sm:$0xff]
  %v89 = vld [vmem:[%s0 + $0x258] sm:$0xff]
  %v90 = vld [vmem:[%s0 + $0x260] sm:$0xff]
  %v91 = vld [vmem:[%s0 + $0x268] sm:$0xff]
  %v92 = vld [vmem:[%s0 + $0x270] sm:$0xff]
  %v93 = vld [vmem:[%s0 + $0x278] sm:$0xff]
  %v94 = vld [vmem:[%s0 + $0x280] sm:$0xff]
  %v95 = vld [vmem:[%s0 + $0x288] sm:$0xff]
  %v96 = vld [vmem:[%s0 + $0x290] sm:$0xff]
  %v97 = vld [vmem:[%s0 + $0x298] sm:$0xff]
  %v98 = vld [vmem:[%s0 + $0x2a0] sm:$0xff]
  %v99 = vld [vmem:[%s0 + $0x2a8] sm:$0xff]
  %v100 = vld [vmem:[%s0 + $0x2b0] sm:$0xff]
  %v101 = vld [vmem:[%s0 + $0x2b8] sm:$0xff]
  %v102 = vld [vmem:[%s0 + $0x2c0] sm:$0xff]
  %v103 = vld [vmem:[%s0 + $0x2c8] sm:$0xff]
  %v104 = vld [vmem:[%s0 + $0x2d0] sm:$0xff]
  %v105 = vld [vmem:[%s0 + $0x2d8] sm:$0xff]
  %v106 = vld [vmem:[%s0 + $0x2e0] sm:$0xff]
  %v107 = vld [vmem:[%s0 + $0x2e8] sm:$0xff]
  %v108 = vld [vmem:[%s0 + $0x2f0] sm:$0xff]
  %v109 = vld [vmem:[%s0 + $0x2f8] sm:$0xff]
  %v110 = vld [vmem:[%s0 + $0x300] sm:$0xff]
  %v111 = vld [vmem:[%s0 + $0x308] sm:$0xff]
  %v112 = vld [vmem:[%s0 + $0x310] sm:$0xff]
  %v113 = vld [vmem:[%s0 + $0x318] sm:$0xff]
  %v114 = vld [vmem:[%s0 + $0x320] sm:$0xff]
  %v115 = vld [vmem:[%s0 + $0x328] sm:$0xff]
  %v116 = vld [vmem:[%s0 + $0x330] sm:$0xff]
  %v117 = vld [vmem:[%s0 + $0x338] sm:$0xff]
  %v118 = vld [vmem:[%s0 + $0x340] sm:$0xff]
  %v119 = vld [vmem:[%s0 + $0x348] sm:$0xff]
  %v120 = vld [vmem:[%s0 + $0x350] sm:$0xff]
  %v121 = vld [vmem:[%s0 + $0x358] sm:$0xff]
  %v122 = vld [vmem:[%s0 + $0x360] sm:$0xff]
  %v123 = vld [vmem:[%s0 + $0x368] sm:$0xff]
  %v124 = vld [vmem:[%s0 + $0x370] sm:$0xff]
  %v125 = vld [vmem:[%s0 + $0x378] sm:$0xff]
  %v126 = vld [vmem:[%s0 + $0x380] sm:$0xff]
  %v127 = vld [vmem:[%s0 + $0x388] sm:$0xff]
  %v128 = vld [vmem:[%s0 + $0x390] sm:$0xff]
  %v129 = vld [vmem:[%s0 + $0x398] sm:$0xff]
  %v130 = vld [vmem:[%s0 + $0x3a0] sm:$0xff]
  %v131 = vld [vmem:[%s0 + $0x3a8] sm:$0xff]
  %v132 = vld [vmem:[%s0 + $0x3b0] sm:$0xff]
  %v133 = vld [vmem:[%s0 + $0x3b8] sm:$0xff]
  %v134 = vld [vmem:[%s0 + $0x3c0] sm:$0xff]
  %v135 = vld [vmem:[%s0 + $0x3c8] sm:$0xff]
  %v136 = vld [vmem:[%s0 + $0x3d0] sm:$0xff]
  %v137 = vld [vmem:[%s0 + $0x3d8] sm:$0xff]
  %v138 = vld [vmem:[%s0 + $0x3e0] sm:$0xff]
  %v139 = vld [vmem:[%s0 + $0x3e8] sm:$0xff]
  %v140 = vld [vmem:[%s0 + $0x3f0] sm:$0xff]
  %v141 = vld [vmem:[%s0 + $0x3f8] sm:$0xff]
  %v142 = vld [vmem:[%s1] sm:$0xf]
  %v143 = vld [vmem:[%s1 + $0x4] sm:$0xf]
  %v144 = vld [vmem:[%s1 + $0x8] sm:$0xf]
  %v145 = vld [vmem:[%s1 + $0xc] sm:$0xf]
  %v146 = vld [vmem:[%s1 + $0x10] sm:$0xf]
  %v147 = vld [vmem:[%s1 + $0x14] sm:$0xf]
  %v148 = vld [vmem:[%s1 + $0x18] sm:$0xf]
  %v149 = vld [vmem:[%s1 + $0x1c] sm:$0xf]
  %v150 = vld [vmem:[%s1 + $0x20] sm:$0xf]
  %v151 = vld [vmem:[%s1 + $0x24] sm:$0xf]
  %v152 = vld [vmem:[%s1 + $0x28] sm:$0xf]
  %v153 = vld [vmem:[%s1 + $0x2c] sm:$0xf]
  %v154 = vld [vmem:[%s1 + $0x30] sm:$0xf]
  %v155 = vld [vmem:[%s1 + $0x34] sm:$0xf]
  %v156 = vld [vmem:[%s1 + $0x38] sm:$0xf]
  %v157 = vld [vmem:[%s1 + $0x3c] sm:$0xf]
  %v158 = vld [vmem:[%s1 + $0x40] sm:$0xf]
  %v159 = vld [vmem:[%s1 + $0x44] sm:$0xf]
  %v160 = vld [vmem:[%s1 + $0x48] sm:$0xf]
  %v161 = vld [vmem:[%s1 + $0x4c] sm:$0xf]
  %v162 = vld [vmem:[%s1 + $0x50] sm:$0xf]
  %v163 = vld [vmem:[%s1 + $0x54] sm:$0xf]
  %v164 = vld [vmem:[%s1 + $0x58] sm:$0xf]
  %v165 = vld [vmem:[%s1 + $0x5c] sm:$0xf]
  %v166 = vld [vmem:[%s1 + $0x60] sm:$0xf]
  %v167 = vld [vmem:[%s1 + $0x64] sm:$0xf]
  %v168 = vld [vmem:[%s1 + $0x68] sm:$0xf]
  %v169 = vld [vmem:[%s1 + $0x6c] sm:$0xf]
  %v170 = vld [vmem:[%s1 + $0x70] sm:$0xf]
  %v171 = vld [vmem:[%s1 + $0x74] sm:$0xf]
  %v172 = vld [vmem:[%s1 + $0x78] sm:$0xf]
  %v173 = vld [vmem:[%s1 + $0x7c] sm:$0xf]
  %v174 = vld [vmem:[%s1 + $0x80] sm:$0xf]
  %v175 = vld [vmem:[%s1 + $0x84] sm:$0xf]
  %v176 = vld [vmem:[%s1 + $0x88] sm:$0xf]
  %v177 = vld [vmem:[%s1 + $0x8c] sm:$0xf]
  %v178 = vld [vmem:[%s1 + $0x90] sm:$0xf]
  %v179 = vld [vmem:[%s1 + $0x94] sm:$0xf]
  %v180 = vld [vmem:[%s1 + $0x98] sm:$0xf]
  %v181 = vld [vmem:[%s1 + $0x9c] sm:$0xf]
  %v182 = vld [vmem:[%s1 + $0xa0] sm:$0xf]
  %v183 = vld [vmem:[%s1 + $0xa4] sm:$0xf]
  %v184 = vld [vmem:[%s1 + $0xa8] sm:$0xf]
  %v185 = vld [vmem:[%s1 + $0xac] sm:$0xf]
  %v186 = vld [vmem:[%s1 + $0xb0] sm:$0xf]
  %v187 = vld [vmem:[%s1 + $0xb4] sm:$0xf]
  %v188 = vld [vmem:[%s1 + $0xb8] sm:$0xf]
  %v189 = vld [vmem:[%s1 + $0xbc] sm:$0xf]
  %v190 = vld [vmem:[%s1 + $0xc0] sm:$0xf]
  %v191 = vld [vmem:[%s1 + $0xc4] sm:$0xf]
  %v192 = vld [vmem:[%s1 + $0xc8] sm:$0xf]
  %v193 = vld [vmem:[%s1 + $0xcc] sm:$0xf]
  %v194 = vld [vmem:[%s1 + $0xd0] sm:$0xf]
  %v195 = vld [vmem:[%s1 + $0xd4] sm:$0xf]
  %v196 = vld [vmem:[%s1 + $0xd8] sm:$0xf]
  %v197 = vld [vmem:[%s1 + $0xdc] sm:$0xf]
  %v198 = vld [vmem:[%s1 + $0xe0] sm:$0xf]
  %v199 = vld [vmem:[%s1 + $0xe4] sm:$0xf]
  %v200 = vld [vmem:[%s1 + $0xe8] sm:$0xf]
  %v201 = vld [vmem:[%s1 + $0xec] sm:$0xf]
  %v202 = vld [vmem:[%s1 + $0xf0] sm:$0xf]
  %v203 = vld [vmem:[%s1 + $0xf4] sm:$0xf]
  %v204 = vld [vmem:[%s1 + $0xf8] sm:$0xf]
  %v205 = vld [vmem:[%s1 + $0xfc] sm:$0xf]
  %v206 = vld [vmem:[%s1 + $0x100] sm:$0xf]
  %v207 = vld [vmem:[%s1 + $0x104] sm:$0xf]
  %v208 = vld [vmem:[%s1 + $0x108] sm:$0xf]
  %v209 = vld [vmem:[%s1 + $0x10c] sm:$0xf]
  %v210 = vld [vmem:[%s1 + $0x110] sm:$0xf]
  %v211 = vld [vmem:[%s1 + $0x114] sm:$0xf]
  %v212 = vld [vmem:[%s1 + $0x118] sm:$0xf]
  %v213 = vld [vmem:[%s1 + $0x11c] sm:$0xf]
  %v214 = vld [vmem:[%s1 + $0x120] sm:$0xf]
  %v215 = vld [vmem:[%s1 + $0x124] sm:$0xf]
  %v216 = vld [vmem:[%s1 + $0x128] sm:$0xf]
  %v217 = vld [vmem:[%s1 + $0x12c] sm:$0xf]
  %v218 = vld [vmem:[%s1 + $0x130] sm:$0xf]
  %v219 = vld [vmem:[%s1 + $0x134] sm:$0xf]
  %v220 = vld [vmem:[%s1 + $0x138] sm:$0xf]
  %v221 = vld [vmem:[%s1 + $0x13c] sm:$0xf]
  %v222 = vld [vmem:[%s1 + $0x140] sm:$0xf]
  %v223 = vld [vmem:[%s1 + $0x144] sm:$0xf]
  %v224 = vld [vmem:[%s1 + $0x148] sm:$0xf]
  %v225 = vld [vmem:[%s1 + $0x14c] sm:$0xf]
  %v226 = vld [vmem:[%s1 + $0x150] sm:$0xf]
  %v227 = vld [vmem:[%s1 + $0x154] sm:$0xf]
  %v228 = vld [vmem:[%s1 + $0x158] sm:$0xf]
  %v229 = vld [vmem:[%s1 + $0x15c] sm:$0xf]
  %v230 = vld [vmem:[%s1 + $0x160] sm:$0xf]
  %v231 = vld [vmem:[%s1 + $0x164] sm:$0xf]
  %v232 = vld [vmem:[%s1 + $0x168] sm:$0xf]
  %v233 = vld [vmem:[%s1 + $0x16c] sm:$0xf]
  %v234 = vld [vmem:[%s1 + $0x170] sm:$0xf]
  %v235 = vld [vmem:[%s1 + $0x174] sm:$0xf]
  %v236 = vld [vmem:[%s1 + $0x178] sm:$0xf]
  %v237 = vld [vmem:[%s1 + $0x17c] sm:$0xf]
  %v238 = vld [vmem:[%s1 + $0x180] sm:$0xf]
  %v239 = vld [vmem:[%s1 + $0x184] sm:$0xf]
  %v240 = vld [vmem:[%s1 + $0x188] sm:$0xf]
  %v241 = vld [vmem:[%s1 + $0x18c] sm:$0xf]
  %v242 = vld [vmem:[%s1 + $0x190] sm:$0xf]
  %v243 = vld [vmem:[%s1 + $0x194] sm:$0xf]
  %v244 = vld [vmem:[%s1 + $0x198] sm:$0xf]
  %v245 = vld [vmem:[%s1 + $0x19c] sm:$0xf]
  %v246 = vld [vmem:[%s1 + $0x1a0] sm:$0xf]
  %v247 = vld [vmem:[%s1 + $0x1a4] sm:$0xf]
  %v248 = vld [vmem:[%s1 + $0x1a8] sm:$0xf]
  %v249 = vld [vmem:[%s1 + $0x1ac] sm:$0xf]
  %v250 = vld [vmem:[%s1 + $0x1b0] sm:$0xf]
  %v251 = vld [vmem:[%s1 + $0x1b4] sm:$0xf]
  %v252 = vld [vmem:[%s1 + $0x1b8] sm:$0xf]
  %v253 = vld [vmem:[%s1 + $0x1bc] sm:$0xf]
  %v254 = vld [vmem:[%s1 + $0x1c0] sm:$0xf]
  %v255 = vld [vmem:[%s1 + $0x1c4] sm:$0xf]
  %v256 = vld [vmem:[%s1 + $0x1c8] sm:$0xf]
  %v257 = vld [vmem:[%s1 + $0x1cc] sm:$0xf]
  %v258 = vld [vmem:[%s1 + $0x1d0] sm:$0xf]
  %v259 = vld [vmem:[%s1 + $0x1d4] sm:$0xf]
  %v260 = vld [vmem:[%s1 + $0x1d8] sm:$0xf]
  %v261 = vld [vmem:[%s1 + $0x1dc] sm:$0xf]
  %v262 = vld [vmem:[%s1 + $0x1e0] sm:$0xf]
  %v263 = vld [vmem:[%s1 + $0x1e4] sm:$0xf]
  %v264 = vld [vmem:[%s1 + $0x1e8] sm:$0xf]
  %v265 = vld [vmem:[%s1 + $0x1ec] sm:$0xf]
  %v266 = vld [vmem:[%s1 + $0x1f0] sm:$0xf]
  %v267 = vld [vmem:[%s1 + $0x1f4] sm:$0xf]
  %v268 = vld [vmem:[%s1 + $0x1f8] sm:$0xf]
  %v269 = vld [vmem:[%s1 + $0x1fc] sm:$0xf]
  %v270 = vld [vmem:[%s1 + $0x200] sm:$0xf]
  %v271 = vld [vmem:[%s1 + $0x204] sm:$0xf]
  %v272 = vld [vmem:[%s1 + $0x208] sm:$0xf]
  %v273 = vld [vmem:[%s1 + $0x20c] sm:$0xf]
  %v274 = vld [vmem:[%s1 + $0x210] sm:$0xf]
  %v275 = vld [vmem:[%s1 + $0x214] sm:$0xf]
  %v276 = vld [vmem:[%s1 + $0x218] sm:$0xf]
  %v277 = vld [vmem:[%s1 + $0x21c] sm:$0xf]
  %v278 = vld [vmem:[%s1 + $0x220] sm:$0xf]
  %v279 = vld [vmem:[%s1 + $0x224] sm:$0xf]
  %v280 = vld [vmem:[%s1 + $0x228] sm:$0xf]
  %v281 = vld [vmem:[%s1 + $0x22c] sm:$0xf]
  %v282 = vld [vmem:[%s1 + $0x230] sm:$0xf]
  %v283 = vld [vmem:[%s1 + $0x234] sm:$0xf]
  %v284 = vld [vmem:[%s1 + $0x238] sm:$0xf]
  %v285 = vld [vmem:[%s1 + $0x23c] sm:$0xf]
  %v286 = vld [vmem:[%s1 + $0x240] sm:$0xf]
  %v287 = vld [vmem:[%s1 + $0x244] sm:$0xf]
  %v288 = vld [vmem:[%s1 + $0x248] sm:$0xf]
  %v289 = vld [vmem:[%s1 + $0x24c] sm:$0xf]
  %v290 = vld [vmem:[%s1 + $0x250] sm:$0xf]
  %v291 = vld [vmem:[%s1 + $0x254] sm:$0xf]
  %v292 = vld [vmem:[%s1 + $0x258] sm:$0xf]
  %v293 = vld [vmem:[%s1 + $0x25c] sm:$0xf]
  %v294 = vld [vmem:[%s1 + $0x260] sm:$0xf]
  %v295 = vld [vmem:[%s1 + $0x264] sm:$0xf]
  %v296 = vld [vmem:[%s1 + $0x268] sm:$0xf]
  %v297 = vld [vmem:[%s1 + $0x26c] sm:$0xf]
  %v298 = vld [vmem:[%s1 + $0x270] sm:$0xf]
  %v299 = vld [vmem:[%s1 + $0x274] sm:$0xf]
  %v300 = vld [vmem:[%s1 + $0x278] sm:$0xf]
  %v301 = vld [vmem:[%s1 + $0x27c] sm:$0xf]
  %v302 = vld [vmem:[%s1 + $0x280] sm:$0xf]
  %v303 = vld [vmem:[%s1 + $0x284] sm:$0xf]
  %v304 = vld [vmem:[%s1 + $0x288] sm:$0xf]
  %v305 = vld [vmem:[%s1 + $0x28c] sm:$0xf]
  %v306 = vld [vmem:[%s1 + $0x290] sm:$0xf]
  %v307 = vld [vmem:[%s1 + $0x294] sm:$0xf]
  %v308 = vld [vmem:[%s1 + $0x298] sm:$0xf]
  %v309 = vld [vmem:[%s1 + $0x29c] sm:$0xf]
  %v310 = vld [vmem:[%s1 + $0x2a0] sm:$0xf]
  %v311 = vld [vmem:[%s1 + $0x2a4] sm:$0xf]
  %v312 = vld [vmem:[%s1 + $0x2a8] sm:$0xf]
  %v313 = vld [vmem:[%s1 + $0x2ac] sm:$0xf]
  %v314 = vld [vmem:[%s1 + $0x2b0] sm:$0xf]
  %v315 = vld [vmem:[%s1 + $0x2b4] sm:$0xf]
  %v316 = vld [vmem:[%s1 + $0x2b8] sm:$0xf]
  %v317 = vld [vmem:[%s1 + $0x2bc] sm:$0xf]
  %v318 = vld [vmem:[%s1 + $0x2c0] sm:$0xf]
  %v319 = vld [vmem:[%s1 + $0x2c4] sm:$0xf]
  %v320 = vld [vmem:[%s1 + $0x2c8] sm:$0xf]
  %v321 = vld [vmem:[%s1 + $0x2cc] sm:$0xf]
  %v322 = vld [vmem:[%s1 + $0x2d0] sm:$0xf]
  %v323 = vld [vmem:[%s1 + $0x2d4] sm:$0xf]
  %v324 = vld [vmem:[%s1 + $0x2d8] sm:$0xf]
  %v325 = vld [vmem:[%s1 + $0x2dc] sm:$0xf]
  %v326 = vld [vmem:[%s1 + $0x2e0] sm:$0xf]
  %v327 = vld [vmem:[%s1 + $0x2e4] sm:$0xf]
  %v328 = vld [vmem:[%s1 + $0x2e8] sm:$0xf]
  %v329 = vld [vmem:[%s1 + $0x2ec] sm:$0xf]
  %v330 = vld [vmem:[%s1 + $0x2f0] sm:$0xf]
  %v331 = vld [vmem:[%s1 + $0x2f4] sm:$0xf]
  %v332 = vld [vmem:[%s1 + $0x2f8] sm:$0xf]
  %v333 = vld [vmem:[%s1 + $0x2fc] sm:$0xf]
  %v334 = vld [vmem:[%s1 + $0x300] sm:$0xf]
  %v335 = vld [vmem:[%s1 + $0x304] sm:$0xf]
  %v336 = vld [vmem:[%s1 + $0x308] sm:$0xf]
  %v337 = vld [vmem:[%s1 + $0x30c] sm:$0xf]
  %v338 = vld [vmem:[%s1 + $0x310] sm:$0xf]
  %v339 = vld [vmem:[%s1 + $0x314] sm:$0xf]
  %v340 = vld [vmem:[%s1 + $0x318] sm:$0xf]
  %v341 = vld [vmem:[%s1 + $0x31c] sm:$0xf]
  %v342 = vld [vmem:[%s1 + $0x320] sm:$0xf]
  %v343 = vld [vmem:[%s1 + $0x324] sm:$0xf]
  %v344 = vld [vmem:[%s1 + $0x328] sm:$0xf]
  %v345 = vld [vmem:[%s1 + $0x32c] sm:$0xf]
  %v346 = vld [vmem:[%s1 + $0x330] sm:$0xf]
  %v347 = vld [vmem:[%s1 + $0x334] sm:$0xf]
  %v348 = vld [vmem:[%s1 + $0x338] sm:$0xf]
  %v349 = vld [vmem:[%s1 + $0x33c] sm:$0xf]
  %v350 = vld [vmem:[%s1 + $0x340] sm:$0xf]
  %v351 = vld [vmem:[%s1 + $0x344] sm:$0xf]
  %v352 = vld [vmem:[%s1 + $0x348] sm:$0xf]
  %v353 = vld [vmem:[%s1 + $0x34c] sm:$0xf]
  %v354 = vld [vmem:[%s1 + $0x350] sm:$0xf]
  %v355 = vld [vmem:[%s1 + $0x354] sm:$0xf]
  %v356 = vld [vmem:[%s1 + $0x358] sm:$0xf]
  %v357 = vld [vmem:[%s1 + $0x35c] sm:$0xf]
  %v358 = vld [vmem:[%s1 + $0x360] sm:$0xf]
  %v359 = vld [vmem:[%s1 + $0x364] sm:$0xf]
  %v360 = vld [vmem:[%s1 + $0x368] sm:$0xf]
  %v361 = vld [vmem:[%s1 + $0x36c] sm:$0xf]
  %v362 = vld [vmem:[%s1 + $0x370] sm:$0xf]
  %v363 = vld [vmem:[%s1 + $0x374] sm:$0xf]
  %v364 = vld [vmem:[%s1 + $0x378] sm:$0xf]
  %v365 = vld [vmem:[%s1 + $0x37c] sm:$0xf]
  %v366 = vld [vmem:[%s1 + $0x380] sm:$0xf]
  %v367 = vld [vmem:[%s1 + $0x384] sm:$0xf]
  %v368 = vld [vmem:[%s1 + $0x388] sm:$0xf]
  %v369 = vld [vmem:[%s1 + $0x38c] sm:$0xf]
  %v370 = vld [vmem:[%s1 + $0x390] sm:$0xf]
  %v371 = vld [vmem:[%s1 + $0x394] sm:$0xf]
  %v372 = vld [vmem:[%s1 + $0x398] sm:$0xf]
  %v373 = vld [vmem:[%s1 + $0x39c] sm:$0xf]
  %v374 = vld [vmem:[%s1 + $0x3a0] sm:$0xf]
  %v375 = vld [vmem:[%s1 + $0x3a4] sm:$0xf]
  %v376 = vld [vmem:[%s1 + $0x3a8] sm:$0xf]
  %v377 = vld [vmem:[%s1 + $0x3ac] sm:$0xf]
  %v378 = vld [vmem:[%s1 + $0x3b0] sm:$0xf]
  %v379 = vld [vmem:[%s1 + $0x3b4] sm:$0xf]
  %v380 = vld [vmem:[%s1 + $0x3b8] sm:$0xf]
  %v381 = vld [vmem:[%s1 + $0x3bc] sm:$0xf]
  %v382 = vld [vmem:[%s1 + $0x3c0] sm:$0xf]
  %v383 = vld [vmem:[%s1 + $0x3c4] sm:$0xf]
  %v384 = vld [vmem:[%s1 + $0x3c8] sm:$0xf]
  %v385 = vld [vmem:[%s1 + $0x3cc] sm:$0xf]
  %v386 = vld [vmem:[%s1 + $0x3d0] sm:$0xf]
  %v387 = vld [vmem:[%s1 + $0x3d4] sm:$0xf]
  %v388 = vld [vmem:[%s1 + $0x3d8] sm:$0xf]
  %v389 = vld [vmem:[%s1 + $0x3dc] sm:$0xf]
  %v390 = vld [vmem:[%s1 + $0x3e0] sm:$0xf]
  %v391 = vld [vmem:[%s1 + $0x3e4] sm:$0xf]
  %v392 = vld [vmem:[%s1 + $0x3e8] sm:$0xf]
  %v393 = vld [vmem:[%s1 + $0x3ec] sm:$0xf]
  %v394 = vld [vmem:[%s1 + $0x3f0] sm:$0xf]
  %v395 = vld [vmem:[%s1 + $0x3f4] sm:$0xf]
  %v396 = vld [vmem:[%s1 + $0x3f8] sm:$0xf]
  %v397 = vld [vmem:[%s1 + $0x3fc] sm:$0xf]
  %v398 = vld [vmem:[%s2] sm:$0x1]
  %v400 = vperm.slane %v398, 0
  %v530 = vunpack.c.l.b16 %v14
  %v531 = vunpack.c.h.b16 %v14
  %v532 = vunpack.c.l.b16 %v15
  %v533 = vunpack.c.h.b16 %v15
  %v534 = vunpack.c.l.b16 %v16
  %v535 = vunpack.c.h.b16 %v16
  %v536 = vunpack.c.l.b16 %v17
  %v537 = vunpack.c.h.b16 %v17
  %v538 = vunpack.c.l.b16 %v18
  %v539 = vunpack.c.h.b16 %v18
  %v540 = vunpack.c.l.b16 %v19
  %v541 = vunpack.c.h.b16 %v19
  %v542 = vunpack.c.l.b16 %v20
  %v543 = vunpack.c.h.b16 %v20
  %v544 = vunpack.c.l.b16 %v21
  %v545 = vunpack.c.h.b16 %v21
  %v546 = vunpack.c.l.b16 %v22
  %v547 = vunpack.c.h.b16 %v22
  %v548 = vunpack.c.l.b16 %v23
  %v549 = vunpack.c.h.b16 %v23
  %v550 = vunpack.c.l.b16 %v24
  %v551 = vunpack.c.h.b16 %v24
  %v552 = vunpack.c.l.b16 %v25
  %v553 = vunpack.c.h.b16 %v25
  %v554 = vunpack.c.l.b16 %v26
  %v555 = vunpack.c.h.b16 %v26
  %v556 = vunpack.c.l.b16 %v27
  %v557 = vunpack.c.h.b16 %v27
  %v558 = vunpack.c.l.b16 %v28
  %v559 = vunpack.c.h.b16 %v28
  %v560 = vunpack.c.l.b16 %v29
  %v561 = vunpack.c.h.b16 %v29
  %v562 = vunpack.c.l.b16 %v30
  %v563 = vunpack.c.h.b16 %v30
  %v564 = vunpack.c.l.b16 %v31
  %v565 = vunpack.c.h.b16 %v31
  %v566 = vunpack.c.l.b16 %v32
  %v567 = vunpack.c.h.b16 %v32
  %v568 = vunpack.c.l.b16 %v33
  %v569 = vunpack.c.h.b16 %v33
  %v570 = vunpack.c.l.b16 %v34
  %v571 = vunpack.c.h.b16 %v34
  %v572 = vunpack.c.l.b16 %v35
  %v573 = vunpack.c.h.b16 %v35
  %v574 = vunpack.c.l.b16 %v36
  %v575 = vunpack.c.h.b16 %v36
  %v576 = vunpack.c.l.b16 %v37
  %v577 = vunpack.c.h.b16 %v37
  %v578 = vunpack.c.l.b16 %v38
  %v579 = vunpack.c.h.b16 %v38
  %v580 = vunpack.c.l.b16 %v39
  %v581 = vunpack.c.h.b16 %v39
  %v582 = vunpack.c.l.b16 %v40
  %v583 = vunpack.c.h.b16 %v40
  %v584 = vunpack.c.l.b16 %v41
  %v585 = vunpack.c.h.b16 %v41
  %v586 = vunpack.c.l.b16 %v42
  %v587 = vunpack.c.h.b16 %v42
  %v588 = vunpack.c.l.b16 %v43
  %v589 = vunpack.c.h.b16 %v43
  %v590 = vunpack.c.l.b16 %v44
  %v591 = vunpack.c.h.b16 %v44
  %v592 = vunpack.c.l.b16 %v45
  %v593 = vunpack.c.h.b16 %v45
  %v594 = vunpack.c.l.b16 %v46
  %v595 = vunpack.c.h.b16 %v46
  %v596 = vunpack.c.l.b16 %v47
  %v597 = vunpack.c.h.b16 %v47
  %v598 = vunpack.c.l.b16 %v48
  %v599 = vunpack.c.h.b16 %v48
  %v600 = vunpack.c.l.b16 %v49
  %v601 = vunpack.c.h.b16 %v49
  %v602 = vunpack.c.l.b16 %v50
  %v603 = vunpack.c.h.b16 %v50
  %v604 = vunpack.c.l.b16 %v51
  %v605 = vunpack.c.h.b16 %v51
  %v606 = vunpack.c.l.b16 %v52
  %v607 = vunpack.c.h.b16 %v52
  %v608 = vunpack.c.l.b16 %v53
  %v609 = vunpack.c.h.b16 %v53
  %v610 = vunpack.c.l.b16 %v54
  %v611 = vunpack.c.h.b16 %v54
  %v612 = vunpack.c.l.b16 %v55
  %v613 = vunpack.c.h.b16 %v55
  %v614 = vunpack.c.l.b16 %v56
  %v615 = vunpack.c.h.b16 %v56
  %v616 = vunpack.c.l.b16 %v57
  %v617 = vunpack.c.h.b16 %v57
  %v618 = vunpack.c.l.b16 %v58
  %v619 = vunpack.c.h.b16 %v58
  %v620 = vunpack.c.l.b16 %v59
  %v621 = vunpack.c.h.b16 %v59
  %v622 = vunpack.c.l.b16 %v60
  %v623 = vunpack.c.h.b16 %v60
  %v624 = vunpack.c.l.b16 %v61
  %v625 = vunpack.c.h.b16 %v61
  %v626 = vunpack.c.l.b16 %v62
  %v627 = vunpack.c.h.b16 %v62
  %v628 = vunpack.c.l.b16 %v63
  %v629 = vunpack.c.h.b16 %v63
  %v630 = vunpack.c.l.b16 %v64
  %v631 = vunpack.c.h.b16 %v64
  %v632 = vunpack.c.l.b16 %v65
  %v633 = vunpack.c.h.b16 %v65
  %v634 = vunpack.c.l.b16 %v66
  %v635 = vunpack.c.h.b16 %v66
  %v636 = vunpack.c.l.b16 %v67
  %v637 = vunpack.c.h.b16 %v67
  %v638 = vunpack.c.l.b16 %v68
  %v639 = vunpack.c.h.b16 %v68
  %v640 = vunpack.c.l.b16 %v69
  %v641 = vunpack.c.h.b16 %v69
  %v642 = vunpack.c.l.b16 %v70
  %v643 = vunpack.c.h.b16 %v70
  %v644 = vunpack.c.l.b16 %v71
  %v645 = vunpack.c.h.b16 %v71
  %v646 = vunpack.c.l.b16 %v72
  %v647 = vunpack.c.h.b16 %v72
  %v648 = vunpack.c.l.b16 %v73
  %v649 = vunpack.c.h.b16 %v73
  %v650 = vunpack.c.l.b16 %v74
  %v651 = vunpack.c.h.b16 %v74
  %v652 = vunpack.c.l.b16 %v75
  %v653 = vunpack.c.h.b16 %v75
  %v654 = vunpack.c.l.b16 %v76
  %v655 = vunpack.c.h.b16 %v76
  %v656 = vunpack.c.l.b16 %v77
  %v657 = vunpack.c.h.b16 %v77
  %v658 = vunpack.c.l.b16 %v78
  %v659 = vunpack.c.h.b16 %v78
  %v660 = vunpack.c.l.b16 %v79
  %v661 = vunpack.c.h.b16 %v79
  %v662 = vunpack.c.l.b16 %v80
  %v663 = vunpack.c.h.b16 %v80
  %v664 = vunpack.c.l.b16 %v81
  %v665 = vunpack.c.h.b16 %v81
  %v666 = vunpack.c.l.b16 %v82
  %v667 = vunpack.c.h.b16 %v82
  %v668 = vunpack.c.l.b16 %v83
  %v669 = vunpack.c.h.b16 %v83
  %v670 = vunpack.c.l.b16 %v84
  %v671 = vunpack.c.h.b16 %v84
  %v672 = vunpack.c.l.b16 %v85
  %v673 = vunpack.c.h.b16 %v85
  %v674 = vunpack.c.l.b16 %v86
  %v675 = vunpack.c.h.b16 %v86
  %v676 = vunpack.c.l.b16 %v87
  %v677 = vunpack.c.h.b16 %v87
  %v678 = vunpack.c.l.b16 %v88
  %v679 = vunpack.c.h.b16 %v88
  %v680 = vunpack.c.l.b16 %v89
  %v681 = vunpack.c.h.b16 %v89
  %v682 = vunpack.c.l.b16 %v90
  %v683 = vunpack.c.h.b16 %v90
  %v684 = vunpack.c.l.b16 %v91
  %v685 = vunpack.c.h.b16 %v91
  %v686 = vunpack.c.l.b16 %v92
  %v687 = vunpack.c.h.b16 %v92
  %v688 = vunpack.c.l.b16 %v93
  %v689 = vunpack.c.h.b16 %v93
  %v690 = vunpack.c.l.b16 %v94
  %v691 = vunpack.c.h.b16 %v94
  %v692 = vunpack.c.l.b16 %v95
  %v693 = vunpack.c.h.b16 %v95
  %v694 = vunpack.c.l.b16 %v96
  %v695 = vunpack.c.h.b16 %v96
  %v696 = vunpack.c.l.b16 %v97
  %v697 = vunpack.c.h.b16 %v97
  %v698 = vunpack.c.l.b16 %v98
  %v699 = vunpack.c.h.b16 %v98
  %v700 = vunpack.c.l.b16 %v99
  %v701 = vunpack.c.h.b16 %v99
  %v702 = vunpack.c.l.b16 %v100
  %v703 = vunpack.c.h.b16 %v100
  %v704 = vunpack.c.l.b16 %v101
  %v705 = vunpack.c.h.b16 %v101
  %v706 = vunpack.c.l.b16 %v102
  %v707 = vunpack.c.h.b16 %v102
  %v708 = vunpack.c.l.b16 %v103
  %v709 = vunpack.c.h.b16 %v103
  %v710 = vunpack.c.l.b16 %v104
  %v711 = vunpack.c.h.b16 %v104
  %v712 = vunpack.c.l.b16 %v105
  %v713 = vunpack.c.h.b16 %v105
  %v714 = vunpack.c.l.b16 %v106
  %v715 = vunpack.c.h.b16 %v106
  %v716 = vunpack.c.l.b16 %v107
  %v717 = vunpack.c.h.b16 %v107
  %v718 = vunpack.c.l.b16 %v108
  %v719 = vunpack.c.h.b16 %v108
  %v720 = vunpack.c.l.b16 %v109
  %v721 = vunpack.c.h.b16 %v109
  %v722 = vunpack.c.l.b16 %v110
  %v723 = vunpack.c.h.b16 %v110
  %v724 = vunpack.c.l.b16 %v111
  %v725 = vunpack.c.h.b16 %v111
  %v726 = vunpack.c.l.b16 %v112
  %v727 = vunpack.c.h.b16 %v112
  %v728 = vunpack.c.l.b16 %v113
  %v729 = vunpack.c.h.b16 %v113
  %v730 = vunpack.c.l.b16 %v114
  %v731 = vunpack.c.h.b16 %v114
  %v732 = vunpack.c.l.b16 %v115
  %v733 = vunpack.c.h.b16 %v115
  %v734 = vunpack.c.l.b16 %v116
  %v735 = vunpack.c.h.b16 %v116
  %v736 = vunpack.c.l.b16 %v117
  %v737 = vunpack.c.h.b16 %v117
  %v738 = vunpack.c.l.b16 %v118
  %v739 = vunpack.c.h.b16 %v118
  %v740 = vunpack.c.l.b16 %v119
  %v741 = vunpack.c.h.b16 %v119
  %v742 = vunpack.c.l.b16 %v120
  %v743 = vunpack.c.h.b16 %v120
  %v744 = vunpack.c.l.b16 %v121
  %v745 = vunpack.c.h.b16 %v121
  %v746 = vunpack.c.l.b16 %v122
  %v747 = vunpack.c.h.b16 %v122
  %v748 = vunpack.c.l.b16 %v123
  %v749 = vunpack.c.h.b16 %v123
  %v750 = vunpack.c.l.b16 %v124
  %v751 = vunpack.c.h.b16 %v124
  %v752 = vunpack.c.l.b16 %v125
  %v753 = vunpack.c.h.b16 %v125
  %v754 = vunpack.c.l.b16 %v126
  %v755 = vunpack.c.h.b16 %v126
  %v756 = vunpack.c.l.b16 %v127
  %v757 = vunpack.c.h.b16 %v127
  %v758 = vunpack.c.l.b16 %v128
  %v759 = vunpack.c.h.b16 %v128
  %v760 = vunpack.c.l.b16 %v129
  %v761 = vunpack.c.h.b16 %v129
  %v762 = vunpack.c.l.b16 %v130
  %v763 = vunpack.c.h.b16 %v130
  %v764 = vunpack.c.l.b16 %v131
  %v765 = vunpack.c.h.b16 %v131
  %v766 = vunpack.c.l.b16 %v132
  %v767 = vunpack.c.h.b16 %v132
  %v768 = vunpack.c.l.b16 %v133
  %v769 = vunpack.c.h.b16 %v133
  %v770 = vunpack.c.l.b16 %v134
  %v771 = vunpack.c.h.b16 %v134
  %v772 = vunpack.c.l.b16 %v135
  %v773 = vunpack.c.h.b16 %v135
  %v774 = vunpack.c.l.b16 %v136
  %v775 = vunpack.c.h.b16 %v136
  %v776 = vunpack.c.l.b16 %v137
  %v777 = vunpack.c.h.b16 %v137
  %v778 = vunpack.c.l.b16 %v138
  %v779 = vunpack.c.h.b16 %v138
  %v780 = vunpack.c.l.b16 %v139
  %v781 = vunpack.c.h.b16 %v139
  %v782 = vunpack.c.l.b16 %v140
  %v783 = vunpack.c.h.b16 %v140
  %v784 = vunpack.c.l.b16 %v141
  %v785 = vunpack.c.h.b16 %v141
  %v786 = vpack.c.b16 %v546, %v530
  %v787 = vpack.c.b16 %v547, %v531
  %v788 = vpack.c.b16 %v548, %v532
  %v789 = vpack.c.b16 %v549, %v533
  %v790 = vpack.c.b16 %v550, %v534
  %v791 = vpack.c.b16 %v551, %v535
  %v792 = vpack.c.b16 %v552, %v536
  %v793 = vpack.c.b16 %v553, %v537
  %v794 = vpack.c.b16 %v554, %v538
  %v795 = vpack.c.b16 %v555, %v539
  %v796 = vpack.c.b16 %v556, %v540
  %v797 = vpack.c.b16 %v557, %v541
  %v798 = vpack.c.b16 %v558, %v542
  %v799 = vpack.c.b16 %v559, %v543
  %v800 = vpack.c.b16 %v560, %v544
  %v801 = vpack.c.b16 %v561, %v545
  %v802 = vpack.c.b16 %v578, %v562
  %v803 = vpack.c.b16 %v579, %v563
  %v804 = vpack.c.b16 %v580, %v564
  %v805 = vpack.c.b16 %v581, %v565
  %v806 = vpack.c.b16 %v582, %v566
  %v807 = vpack.c.b16 %v583, %v567
  %v808 = vpack.c.b16 %v584, %v568
  %v809 = vpack.c.b16 %v585, %v569
  %v810 = vpack.c.b16 %v586, %v570
  %v811 = vpack.c.b16 %v587, %v571
  %v812 = vpack.c.b16 %v588, %v572
  %v813 = vpack.c.b16 %v589, %v573
  %v814 = vpack.c.b16 %v590, %v574
  %v815 = vpack.c.b16 %v591, %v575
  %v816 = vpack.c.b16 %v592, %v576
  %v817 = vpack.c.b16 %v593, %v577
  %v818 = vpack.c.b16 %v610, %v594
  %v819 = vpack.c.b16 %v611, %v595
  %v820 = vpack.c.b16 %v612, %v596
  %v821 = vpack.c.b16 %v613, %v597
  %v822 = vpack.c.b16 %v614, %v598
  %v823 = vpack.c.b16 %v615, %v599
  %v824 = vpack.c.b16 %v616, %v600
  %v825 = vpack.c.b16 %v617, %v601
  %v826 = vpack.c.b16 %v618, %v602
  %v827 = vpack.c.b16 %v619, %v603
  %v828 = vpack.c.b16 %v620, %v604
  %v829 = vpack.c.b16 %v621, %v605
  %v830 = vpack.c.b16 %v622, %v606
  %v831 = vpack.c.b16 %v623, %v607
  %v832 = vpack.c.b16 %v624, %v608
  %v833 = vpack.c.b16 %v625, %v609
  %v834 = vpack.c.b16 %v642, %v626
  %v835 = vpack.c.b16 %v643, %v627
  %v836 = vpack.c.b16 %v644, %v628
  %v837 = vpack.c.b16 %v645, %v629
  %v838 = vpack.c.b16 %v646, %v630
  %v839 = vpack.c.b16 %v647, %v631
  %v840 = vpack.c.b16 %v648, %v632
  %v841 = vpack.c.b16 %v649, %v633
  %v842 = vpack.c.b16 %v650, %v634
  %v843 = vpack.c.b16 %v651, %v635
  %v844 = vpack.c.b16 %v652, %v636
  %v845 = vpack.c.b16 %v653, %v637
  %v846 = vpack.c.b16 %v654, %v638
  %v847 = vpack.c.b16 %v655, %v639
  %v848 = vpack.c.b16 %v656, %v640
  %v849 = vpack.c.b16 %v657, %v641
  %v850 = vpack.c.b16 %v674, %v658
  %v851 = vpack.c.b16 %v675, %v659
  %v852 = vpack.c.b16 %v676, %v660
  %v853 = vpack.c.b16 %v677, %v661
  %v854 = vpack.c.b16 %v678, %v662
  %v855 = vpack.c.b16 %v679, %v663
  %v856 = vpack.c.b16 %v680, %v664
  %v857 = vpack.c.b16 %v681, %v665
  %v858 = vpack.c.b16 %v682, %v666
  %v859 = vpack.c.b16 %v683, %v667
  %v860 = vpack.c.b16 %v684, %v668
  %v861 = vpack.c.b16 %v685, %v669
  %v862 = vpack.c.b16 %v686, %v670
  %v863 = vpack.c.b16 %v687, %v671
  %v864 = vpack.c.b16 %v688, %v672
  %v865 = vpack.c.b16 %v689, %v673
  %v866 = vpack.c.b16 %v706, %v690
  %v867 = vpack.c.b16 %v707, %v691
  %v868 = vpack.c.b16 %v708, %v692
  %v869 = vpack.c.b16 %v709, %v693
  %v870 = vpack.c.b16 %v710, %v694
  %v871 = vpack.c.b16 %v711, %v695
  %v872 = vpack.c.b16 %v712, %v696
  %v873 = vpack.c.b16 %v713, %v697
  %v874 = vpack.c.b16 %v714, %v698
  %v875 = vpack.c.b16 %v715, %v699
  %v876 = vpack.c.b16 %v716, %v700
  %v877 = vpack.c.b16 %v717, %v701
  %v878 = vpack.c.b16 %v718, %v702
  %v879 = vpack.c.b16 %v719, %v703
  %v880 = vpack.c.b16 %v720, %v704
  %v881 = vpack.c.b16 %v721, %v705
  %v882 = vpack.c.b16 %v738, %v722
  %v883 = vpack.c.b16 %v739, %v723
  %v884 = vpack.c.b16 %v740, %v724
  %v885 = vpack.c.b16 %v741, %v725
  %v886 = vpack.c.b16 %v742, %v726
  %v887 = vpack.c.b16 %v743, %v727
  %v888 = vpack.c.b16 %v744, %v728
  %v889 = vpack.c.b16 %v745, %v729
  %v890 = vpack.c.b16 %v746, %v730
  %v891 = vpack.c.b16 %v747, %v731
  %v892 = vpack.c.b16 %v748, %v732
  %v893 = vpack.c.b16 %v749, %v733
  %v894 = vpack.c.b16 %v750, %v734
  %v895 = vpack.c.b16 %v751, %v735
  %v896 = vpack.c.b16 %v752, %v736
  %v897 = vpack.c.b16 %v753, %v737
  %v898 = vpack.c.b16 %v770, %v754
  %v899 = vpack.c.b16 %v771, %v755
  %v900 = vpack.c.b16 %v772, %v756
  %v901 = vpack.c.b16 %v773, %v757
  %v902 = vpack.c.b16 %v774, %v758
  %v903 = vpack.c.b16 %v775, %v759
  %v904 = vpack.c.b16 %v776, %v760
  %v905 = vpack.c.b16 %v777, %v761
  %v906 = vpack.c.b16 %v778, %v762
  %v907 = vpack.c.b16 %v779, %v763
  %v908 = vpack.c.b16 %v780, %v764
  %v909 = vpack.c.b16 %v781, %v765
  %v910 = vpack.c.b16 %v782, %v766
  %v911 = vpack.c.b16 %v783, %v767
  %v912 = vpack.c.b16 %v784, %v768
  %v913 = vpack.c.b16 %v785, %v769
  %v1298 = vunpack.c.l.b16 %v142
  %v1299 = vunpack.c.l.b16 %v143
  %v1300 = vunpack.c.l.b16 %v144
  %v1301 = vunpack.c.l.b16 %v145
  %v1302 = vunpack.c.l.b16 %v146
  %v1303 = vunpack.c.l.b16 %v147
  %v1304 = vunpack.c.l.b16 %v148
  %v1305 = vunpack.c.l.b16 %v149
  %v1306 = vunpack.c.l.b16 %v150
  %v1307 = vunpack.c.l.b16 %v151
  %v1308 = vunpack.c.l.b16 %v152
  %v1309 = vunpack.c.l.b16 %v153
  %v1310 = vunpack.c.l.b16 %v154
  %v1311 = vunpack.c.l.b16 %v155
  %v1312 = vunpack.c.l.b16 %v156
  %v1313 = vunpack.c.l.b16 %v157
  %v1314 = vunpack.c.l.b16 %v158
  %v1315 = vunpack.c.l.b16 %v159
  %v1316 = vunpack.c.l.b16 %v160
  %v1317 = vunpack.c.l.b16 %v161
  %v1318 = vunpack.c.l.b16 %v162
  %v1319 = vunpack.c.l.b16 %v163
  %v1320 = vunpack.c.l.b16 %v164
  %v1321 = vunpack.c.l.b16 %v165
  %v1322 = vunpack.c.l.b16 %v166
  %v1323 = vunpack.c.l.b16 %v167
  %v1324 = vunpack.c.l.b16 %v168
  %v1325 = vunpack.c.l.b16 %v169
  %v1326 = vunpack.c.l.b16 %v170
  %v1327 = vunpack.c.l.b16 %v171
  %v1328 = vunpack.c.l.b16 %v172
  %v1329 = vunpack.c.l.b16 %v173
  %v1330 = vunpack.c.l.b16 %v174
  %v1331 = vunpack.c.l.b16 %v175
  %v1332 = vunpack.c.l.b16 %v176
  %v1333 = vunpack.c.l.b16 %v177
  %v1334 = vunpack.c.l.b16 %v178
  %v1335 = vunpack.c.l.b16 %v179
  %v1336 = vunpack.c.l.b16 %v180
  %v1337 = vunpack.c.l.b16 %v181
  %v1338 = vunpack.c.l.b16 %v182
  %v1339 = vunpack.c.l.b16 %v183
  %v1340 = vunpack.c.l.b16 %v184
  %v1341 = vunpack.c.l.b16 %v185
  %v1342 = vunpack.c.l.b16 %v186
  %v1343 = vunpack.c.l.b16 %v187
  %v1344 = vunpack.c.l.b16 %v188
  %v1345 = vunpack.c.l.b16 %v189
  %v1346 = vunpack.c.l.b16 %v190
  %v1347 = vunpack.c.l.b16 %v191
  %v1348 = vunpack.c.l.b16 %v192
  %v1349 = vunpack.c.l.b16 %v193
  %v1350 = vunpack.c.l.b16 %v194
  %v1351 = vunpack.c.l.b16 %v195
  %v1352 = vunpack.c.l.b16 %v196
  %v1353 = vunpack.c.l.b16 %v197
  %v1354 = vunpack.c.l.b16 %v198
  %v1355 = vunpack.c.l.b16 %v199
  %v1356 = vunpack.c.l.b16 %v200
  %v1357 = vunpack.c.l.b16 %v201
  %v1358 = vunpack.c.l.b16 %v202
  %v1359 = vunpack.c.l.b16 %v203
  %v1360 = vunpack.c.l.b16 %v204
  %v1361 = vunpack.c.l.b16 %v205
  %v1362 = vunpack.c.l.b16 %v206
  %v1363 = vunpack.c.l.b16 %v207
  %v1364 = vunpack.c.l.b16 %v208
  %v1365 = vunpack.c.l.b16 %v209
  %v1366 = vunpack.c.l.b16 %v210
  %v1367 = vunpack.c.l.b16 %v211
  %v1368 = vunpack.c.l.b16 %v212
  %v1369 = vunpack.c.l.b16 %v213
  %v1370 = vunpack.c.l.b16 %v214
  %v1371 = vunpack.c.l.b16 %v215
  %v1372 = vunpack.c.l.b16 %v216
  %v1373 = vunpack.c.l.b16 %v217
  %v1374 = vunpack.c.l.b16 %v218
  %v1375 = vunpack.c.l.b16 %v219
  %v1376 = vunpack.c.l.b16 %v220
  %v1377 = vunpack.c.l.b16 %v221
  %v1378 = vunpack.c.l.b16 %v222
  %v1379 = vunpack.c.l.b16 %v223
  %v1380 = vunpack.c.l.b16 %v224
  %v1381 = vunpack.c.l.b16 %v225
  %v1382 = vunpack.c.l.b16 %v226
  %v1383 = vunpack.c.l.b16 %v227
  %v1384 = vunpack.c.l.b16 %v228
  %v1385 = vunpack.c.l.b16 %v229
  %v1386 = vunpack.c.l.b16 %v230
  %v1387 = vunpack.c.l.b16 %v231
  %v1388 = vunpack.c.l.b16 %v232
  %v1389 = vunpack.c.l.b16 %v233
  %v1390 = vunpack.c.l.b16 %v234
  %v1391 = vunpack.c.l.b16 %v235
  %v1392 = vunpack.c.l.b16 %v236
  %v1393 = vunpack.c.l.b16 %v237
  %v1394 = vunpack.c.l.b16 %v238
  %v1395 = vunpack.c.l.b16 %v239
  %v1396 = vunpack.c.l.b16 %v240
  %v1397 = vunpack.c.l.b16 %v241
  %v1398 = vunpack.c.l.b16 %v242
  %v1399 = vunpack.c.l.b16 %v243
  %v1400 = vunpack.c.l.b16 %v244
  %v1401 = vunpack.c.l.b16 %v245
  %v1402 = vunpack.c.l.b16 %v246
  %v1403 = vunpack.c.l.b16 %v247
  %v1404 = vunpack.c.l.b16 %v248
  %v1405 = vunpack.c.l.b16 %v249
  %v1406 = vunpack.c.l.b16 %v250
  %v1407 = vunpack.c.l.b16 %v251
  %v1408 = vunpack.c.l.b16 %v252
  %v1409 = vunpack.c.l.b16 %v253
  %v1410 = vunpack.c.l.b16 %v254
  %v1411 = vunpack.c.l.b16 %v255
  %v1412 = vunpack.c.l.b16 %v256
  %v1413 = vunpack.c.l.b16 %v257
  %v1414 = vunpack.c.l.b16 %v258
  %v1415 = vunpack.c.l.b16 %v259
  %v1416 = vunpack.c.l.b16 %v260
  %v1417 = vunpack.c.l.b16 %v261
  %v1418 = vunpack.c.l.b16 %v262
  %v1419 = vunpack.c.l.b16 %v263
  %v1420 = vunpack.c.l.b16 %v264
  %v1421 = vunpack.c.l.b16 %v265
  %v1422 = vunpack.c.l.b16 %v266
  %v1423 = vunpack.c.l.b16 %v267
  %v1424 = vunpack.c.l.b16 %v268
  %v1425 = vunpack.c.l.b16 %v269
  %v1426 = vunpack.c.l.b16 %v270
  %v1427 = vunpack.c.l.b16 %v271
  %v1428 = vunpack.c.l.b16 %v272
  %v1429 = vunpack.c.l.b16 %v273
  %v1430 = vunpack.c.l.b16 %v274
  %v1431 = vunpack.c.l.b16 %v275
  %v1432 = vunpack.c.l.b16 %v276
  %v1433 = vunpack.c.l.b16 %v277
  %v1434 = vunpack.c.l.b16 %v278
  %v1435 = vunpack.c.l.b16 %v279
  %v1436 = vunpack.c.l.b16 %v280
  %v1437 = vunpack.c.l.b16 %v281
  %v1438 = vunpack.c.l.b16 %v282
  %v1439 = vunpack.c.l.b16 %v283
  %v1440 = vunpack.c.l.b16 %v284
  %v1441 = vunpack.c.l.b16 %v285
  %v1442 = vunpack.c.l.b16 %v286
  %v1443 = vunpack.c.l.b16 %v287
  %v1444 = vunpack.c.l.b16 %v288
  %v1445 = vunpack.c.l.b16 %v289
  %v1446 = vunpack.c.l.b16 %v290
  %v1447 = vunpack.c.l.b16 %v291
  %v1448 = vunpack.c.l.b16 %v292
  %v1449 = vunpack.c.l.b16 %v293
  %v1450 = vunpack.c.l.b16 %v294
  %v1451 = vunpack.c.l.b16 %v295
  %v1452 = vunpack.c.l.b16 %v296
  %v1453 = vunpack.c.l.b16 %v297
  %v1454 = vunpack.c.l.b16 %v298
  %v1455 = vunpack.c.l.b16 %v299
  %v1456 = vunpack.c.l.b16 %v300
  %v1457 = vunpack.c.l.b16 %v301
  %v1458 = vunpack.c.l.b16 %v302
  %v1459 = vunpack.c.l.b16 %v303
  %v1460 = vunpack.c.l.b16 %v304
  %v1461 = vunpack.c.l.b16 %v305
  %v1462 = vunpack.c.l.b16 %v306
  %v1463 = vunpack.c.l.b16 %v307
  %v1464 = vunpack.c.l.b16 %v308
  %v1465 = vunpack.c.l.b16 %v309
  %v1466 = vunpack.c.l.b16 %v310
  %v1467 = vunpack.c.l.b16 %v311
  %v1468 = vunpack.c.l.b16 %v312
  %v1469 = vunpack.c.l.b16 %v313
  %v1470 = vunpack.c.l.b16 %v314
  %v1471 = vunpack.c.l.b16 %v315
  %v1472 = vunpack.c.l.b16 %v316
  %v1473 = vunpack.c.l.b16 %v317
  %v1474 = vunpack.c.l.b16 %v318
  %v1475 = vunpack.c.l.b16 %v319
  %v1476 = vunpack.c.l.b16 %v320
  %v1477 = vunpack.c.l.b16 %v321
  %v1478 = vunpack.c.l.b16 %v322
  %v1479 = vunpack.c.l.b16 %v323
  %v1480 = vunpack.c.l.b16 %v324
  %v1481 = vunpack.c.l.b16 %v325
  %v1482 = vunpack.c.l.b16 %v326
  %v1483 = vunpack.c.l.b16 %v327
  %v1484 = vunpack.c.l.b16 %v328
  %v1485 = vunpack.c.l.b16 %v329
  %v1486 = vunpack.c.l.b16 %v330
  %v1487 = vunpack.c.l.b16 %v331
  %v1488 = vunpack.c.l.b16 %v332
  %v1489 = vunpack.c.l.b16 %v333
  %v1490 = vunpack.c.l.b16 %v334
  %v1491 = vunpack.c.l.b16 %v335
  %v1492 = vunpack.c.l.b16 %v336
  %v1493 = vunpack.c.l.b16 %v337
  %v1494 = vunpack.c.l.b16 %v338
  %v1495 = vunpack.c.l.b16 %v339
  %v1496 = vunpack.c.l.b16 %v340
  %v1497 = vunpack.c.l.b16 %v341
  %v1498 = vunpack.c.l.b16 %v342
  %v1499 = vunpack.c.l.b16 %v343
  %v1500 = vunpack.c.l.b16 %v344
  %v1501 = vunpack.c.l.b16 %v345
  %v1502 = vunpack.c.l.b16 %v346
  %v1503 = vunpack.c.l.b16 %v347
  %v1504 = vunpack.c.l.b16 %v348
  %v1505 = vunpack.c.l.b16 %v349
  %v1506 = vunpack.c.l.b16 %v350
  %v1507 = vunpack.c.l.b16 %v351
  %v1508 = vunpack.c.l.b16 %v352
  %v1509 = vunpack.c.l.b16 %v353
  %v1510 = vunpack.c.l.b16 %v354
  %v1511 = vunpack.c.l.b16 %v355
  %v1512 = vunpack.c.l.b16 %v356
  %v1513 = vunpack.c.l.b16 %v357
  %v1514 = vunpack.c.l.b16 %v358
  %v1515 = vunpack.c.l.b16 %v359
  %v1516 = vunpack.c.l.b16 %v360
  %v1517 = vunpack.c.l.b16 %v361
  %v1518 = vunpack.c.l.b16 %v362
  %v1519 = vunpack.c.l.b16 %v363
  %v1520 = vunpack.c.l.b16 %v364
  %v1521 = vunpack.c.l.b16 %v365
  %v1522 = vunpack.c.l.b16 %v366
  %v1523 = vunpack.c.l.b16 %v367
  %v1524 = vunpack.c.l.b16 %v368
  %v1525 = vunpack.c.l.b16 %v369
  %v1526 = vunpack.c.l.b16 %v370
  %v1527 = vunpack.c.l.b16 %v371
  %v1528 = vunpack.c.l.b16 %v372
  %v1529 = vunpack.c.l.b16 %v373
  %v1530 = vunpack.c.l.b16 %v374
  %v1531 = vunpack.c.l.b16 %v375
  %v1532 = vunpack.c.l.b16 %v376
  %v1533 = vunpack.c.l.b16 %v377
  %v1534 = vunpack.c.l.b16 %v378
  %v1535 = vunpack.c.l.b16 %v379
  %v1536 = vunpack.c.l.b16 %v380
  %v1537 = vunpack.c.l.b16 %v381
  %v1538 = vunpack.c.l.b16 %v382
  %v1539 = vunpack.c.l.b16 %v383
  %v1540 = vunpack.c.l.b16 %v384
  %v1541 = vunpack.c.l.b16 %v385
  %v1542 = vunpack.c.l.b16 %v386
  %v1543 = vunpack.c.l.b16 %v387
  %v1544 = vunpack.c.l.b16 %v388
  %v1545 = vunpack.c.l.b16 %v389
  %v1546 = vunpack.c.l.b16 %v390
  %v1547 = vunpack.c.l.b16 %v391
  %v1548 = vunpack.c.l.b16 %v392
  %v1549 = vunpack.c.l.b16 %v393
  %v1550 = vunpack.c.l.b16 %v394
  %v1551 = vunpack.c.l.b16 %v395
  %v1552 = vunpack.c.l.b16 %v396
  %v1553 = vunpack.c.l.b16 %v397
  %v1554 = vpack.c.b16 %v1299, %v1298
  %v1555 = vpack.c.b16 %v1301, %v1300
  %v1556 = vpack.c.b16 %v1303, %v1302
  %v1557 = vpack.c.b16 %v1305, %v1304
  %v1558 = vpack.c.b16 %v1307, %v1306
  %v1559 = vpack.c.b16 %v1309, %v1308
  %v1560 = vpack.c.b16 %v1311, %v1310
  %v1561 = vpack.c.b16 %v1313, %v1312
  %v1562 = vpack.c.b16 %v1315, %v1314
  %v1563 = vpack.c.b16 %v1317, %v1316
  %v1564 = vpack.c.b16 %v1319, %v1318
  %v1565 = vpack.c.b16 %v1321, %v1320
  %v1566 = vpack.c.b16 %v1323, %v1322
  %v1567 = vpack.c.b16 %v1325, %v1324
  %v1568 = vpack.c.b16 %v1327, %v1326
  %v1569 = vpack.c.b16 %v1329, %v1328
  %v1570 = vpack.c.b16 %v1331, %v1330
  %v1571 = vpack.c.b16 %v1333, %v1332
  %v1572 = vpack.c.b16 %v1335, %v1334
  %v1573 = vpack.c.b16 %v1337, %v1336
  %v1574 = vpack.c.b16 %v1339, %v1338
  %v1575 = vpack.c.b16 %v1341, %v1340
  %v1576 = vpack.c.b16 %v1343, %v1342
  %v1577 = vpack.c.b16 %v1345, %v1344
  %v1578 = vpack.c.b16 %v1347, %v1346
  %v1579 = vpack.c.b16 %v1349, %v1348
  %v1580 = vpack.c.b16 %v1351, %v1350
  %v1581 = vpack.c.b16 %v1353, %v1352
  %v1582 = vpack.c.b16 %v1355, %v1354
  %v1583 = vpack.c.b16 %v1357, %v1356
  %v1584 = vpack.c.b16 %v1359, %v1358
  %v1585 = vpack.c.b16 %v1361, %v1360
  %v1586 = vpack.c.b16 %v1363, %v1362
  %v1587 = vpack.c.b16 %v1365, %v1364
  %v1588 = vpack.c.b16 %v1367, %v1366
  %v1589 = vpack.c.b16 %v1369, %v1368
  %v1590 = vpack.c.b16 %v1371, %v1370
  %v1591 = vpack.c.b16 %v1373, %v1372
  %v1592 = vpack.c.b16 %v1375, %v1374
  %v1593 = vpack.c.b16 %v1377, %v1376
  %v1594 = vpack.c.b16 %v1379, %v1378
  %v1595 = vpack.c.b16 %v1381, %v1380
  %v1596 = vpack.c.b16 %v1383, %v1382
  %v1597 = vpack.c.b16 %v1385, %v1384
  %v1598 = vpack.c.b16 %v1387, %v1386
  %v1599 = vpack.c.b16 %v1389, %v1388
  %v1600 = vpack.c.b16 %v1391, %v1390
  %v1601 = vpack.c.b16 %v1393, %v1392
  %v1602 = vpack.c.b16 %v1395, %v1394
  %v1603 = vpack.c.b16 %v1397, %v1396
  %v1604 = vpack.c.b16 %v1399, %v1398
  %v1605 = vpack.c.b16 %v1401, %v1400
  %v1606 = vpack.c.b16 %v1403, %v1402
  %v1607 = vpack.c.b16 %v1405, %v1404
  %v1608 = vpack.c.b16 %v1407, %v1406
  %v1609 = vpack.c.b16 %v1409, %v1408
  %v1610 = vpack.c.b16 %v1411, %v1410
  %v1611 = vpack.c.b16 %v1413, %v1412
  %v1612 = vpack.c.b16 %v1415, %v1414
  %v1613 = vpack.c.b16 %v1417, %v1416
  %v1614 = vpack.c.b16 %v1419, %v1418
  %v1615 = vpack.c.b16 %v1421, %v1420
  %v1616 = vpack.c.b16 %v1423, %v1422
  %v1617 = vpack.c.b16 %v1425, %v1424
  %v1618 = vpack.c.b16 %v1427, %v1426
  %v1619 = vpack.c.b16 %v1429, %v1428
  %v1620 = vpack.c.b16 %v1431, %v1430
  %v1621 = vpack.c.b16 %v1433, %v1432
  %v1622 = vpack.c.b16 %v1435, %v1434
  %v1623 = vpack.c.b16 %v1437, %v1436
  %v1624 = vpack.c.b16 %v1439, %v1438
  %v1625 = vpack.c.b16 %v1441, %v1440
  %v1626 = vpack.c.b16 %v1443, %v1442
  %v1627 = vpack.c.b16 %v1445, %v1444
  %v1628 = vpack.c.b16 %v1447, %v1446
  %v1629 = vpack.c.b16 %v1449, %v1448
  %v1630 = vpack.c.b16 %v1451, %v1450
  %v1631 = vpack.c.b16 %v1453, %v1452
  %v1632 = vpack.c.b16 %v1455, %v1454
  %v1633 = vpack.c.b16 %v1457, %v1456
  %v1634 = vpack.c.b16 %v1459, %v1458
  %v1635 = vpack.c.b16 %v1461, %v1460
  %v1636 = vpack.c.b16 %v1463, %v1462
  %v1637 = vpack.c.b16 %v1465, %v1464
  %v1638 = vpack.c.b16 %v1467, %v1466
  %v1639 = vpack.c.b16 %v1469, %v1468
  %v1640 = vpack.c.b16 %v1471, %v1470
  %v1641 = vpack.c.b16 %v1473, %v1472
  %v1642 = vpack.c.b16 %v1475, %v1474
  %v1643 = vpack.c.b16 %v1477, %v1476
  %v1644 = vpack.c.b16 %v1479, %v1478
  %v1645 = vpack.c.b16 %v1481, %v1480
  %v1646 = vpack.c.b16 %v1483, %v1482
  %v1647 = vpack.c.b16 %v1485, %v1484
  %v1648 = vpack.c.b16 %v1487, %v1486
  %v1649 = vpack.c.b16 %v1489, %v1488
  %v1650 = vpack.c.b16 %v1491, %v1490
  %v1651 = vpack.c.b16 %v1493, %v1492
  %v1652 = vpack.c.b16 %v1495, %v1494
  %v1653 = vpack.c.b16 %v1497, %v1496
  %v1654 = vpack.c.b16 %v1499, %v1498
  %v1655 = vpack.c.b16 %v1501, %v1500
  %v1656 = vpack.c.b16 %v1503, %v1502
  %v1657 = vpack.c.b16 %v1505, %v1504
  %v1658 = vpack.c.b16 %v1507, %v1506
  %v1659 = vpack.c.b16 %v1509, %v1508
  %v1660 = vpack.c.b16 %v1511, %v1510
  %v1661 = vpack.c.b16 %v1513, %v1512
  %v1662 = vpack.c.b16 %v1515, %v1514
  %v1663 = vpack.c.b16 %v1517, %v1516
  %v1664 = vpack.c.b16 %v1519, %v1518
  %v1665 = vpack.c.b16 %v1521, %v1520
  %v1666 = vpack.c.b16 %v1523, %v1522
  %v1667 = vpack.c.b16 %v1525, %v1524
  %v1668 = vpack.c.b16 %v1527, %v1526
  %v1669 = vpack.c.b16 %v1529, %v1528
  %v1670 = vpack.c.b16 %v1531, %v1530
  %v1671 = vpack.c.b16 %v1533, %v1532
  %v1672 = vpack.c.b16 %v1535, %v1534
  %v1673 = vpack.c.b16 %v1537, %v1536
  %v1674 = vpack.c.b16 %v1539, %v1538
  %v1675 = vpack.c.b16 %v1541, %v1540
  %v1676 = vpack.c.b16 %v1543, %v1542
  %v1677 = vpack.c.b16 %v1545, %v1544
  %v1678 = vpack.c.b16 %v1547, %v1546
  %v1679 = vpack.c.b16 %v1549, %v1548
  %v1680 = vpack.c.b16 %v1551, %v1550
  %v1681 = vpack.c.b16 %v1553, %v1552
  %1810 = vmatpush.bf16.msra.mxu0 %v1561
  %1811 = vmatpush.bf16.msra.mxu0 %v1560
  %1812 = vmatpush.bf16.msra.mxu0 %v1559
  %1813 = vmatpush.bf16.msra.mxu0 %v1558
  %1814 = vmatpush.bf16.msra.mxu0 %v1557
  %1815 = vmatpush.bf16.msra.mxu0 %v1556
  %1816 = vmatpush.bf16.msra.mxu0 %v1555
  %1817 = vmatpush.bf16.msra.mxu0 %v1554
  %1818 = vmatmul.bf16.gmra.mxu0 %v786
  %v1819 = vpop.f32.mrf.mxu0
  %v1820 = vadd.f32 %v400, %v1819
  %v1821 = vpop.f32.mrf.mxu0
  %v1822 = vadd.f32 %v400, %v1821
  %1823 = vmatmul.bf16.gmra.mxu0 %v802
  %v1824 = vpop.f32.mrf.mxu0
  %v1825 = vadd.f32 %v400, %v1824
  %v1826 = vpop.f32.mrf.mxu0
  %v1827 = vadd.f32 %v400, %v1826
  %1828 = vmatmul.bf16.gmra.mxu0 %v818
  %v1829 = vpop.f32.mrf.mxu0
  %v1830 = vadd.f32 %v400, %v1829
  %v1831 = vpop.f32.mrf.mxu0
  %v1832 = vadd.f32 %v400, %v1831
  %1833 = vmatmul.bf16.gmra.mxu0 %v834
  %v1834 = vpop.f32.mrf.mxu0
  %v1835 = vadd.f32 %v400, %v1834
  %v1836 = vpop.f32.mrf.mxu0
  %v1837 = vadd.f32 %v400, %v1836
  %1838 = vmatmul.bf16.gmra.mxu0 %v850
  %v1839 = vpop.f32.mrf.mxu0
  %v1840 = vadd.f32 %v400, %v1839
  %v1841 = vpop.f32.mrf.mxu0
  %v1842 = vadd.f32 %v400, %v1841
  %1843 = vmatmul.bf16.gmra.mxu0 %v866
  %v1844 = vpop.f32.mrf.mxu0
  %v1845 = vadd.f32 %v400, %v1844
  %v1846 = vpop.f32.mrf.mxu0
  %v1847 = vadd.f32 %v400, %v1846
  %1848 = vmatmul.bf16.gmra.mxu0 %v882
  %v1849 = vpop.f32.mrf.mxu0
  %v1850 = vadd.f32 %v400, %v1849
  %v1851 = vpop.f32.mrf.mxu0
  %v1852 = vadd.f32 %v400, %v1851
  %1853 = vmatmul.bf16.gmra.mxu0 %v898
  %v1854 = vpop.f32.mrf.mxu0
  %v1855 = vadd.f32 %v400, %v1854
  %v1856 = vpop.f32.mrf.mxu0
  %v1857 = vadd.f32 %v400, %v1856
  %1858 = vdwg.mxu0
  %1859 = vmatpush.bf16.msra.mxu0 %v1569
  %1860 = vmatpush.bf16.msra.mxu0 %v1568
  %1861 = vmatpush.bf16.msra.mxu0 %v1567
  %1862 = vmatpush.bf16.msra.mxu0 %v1566
  %1863 = vmatpush.bf16.msra.mxu0 %v1565
  %1864 = vmatpush.bf16.msra.mxu0 %v1564
  %1865 = vmatpush.bf16.msra.mxu0 %v1563
  %1866 = vmatpush.bf16.msra.mxu0 %v1562
  %1867 = vmatmul.bf16.gmra.mxu0 %v787
  %v1868 = vpop.f32.mrf.mxu0
  %v1869 = vadd.f32 %v1820, %v1868
  %v1870 = vpop.f32.mrf.mxu0
  %v1871 = vadd.f32 %v1822, %v1870
  %1872 = vmatmul.bf16.gmra.mxu0 %v803
  %v1873 = vpop.f32.mrf.mxu0
  %v1874 = vadd.f32 %v1825, %v1873
  %v1875 = vpop.f32.mrf.mxu0
  %v1876 = vadd.f32 %v1827, %v1875
  %1877 = vmatmul.bf16.gmra.mxu0 %v819
  %v1878 = vpop.f32.mrf.mxu0
  %v1879 = vadd.f32 %v1830, %v1878
  %v1880 = vpop.f32.mrf.mxu0
  %v1881 = vadd.f32 %v1832, %v1880
  %1882 = vmatmul.bf16.gmra.mxu0 %v835
  %v1883 = vpop.f32.mrf.mxu0
  %v1884 = vadd.f32 %v1835, %v1883
  %v1885 = vpop.f32.mrf.mxu0
  %v1886 = vadd.f32 %v1837, %v1885
  %1887 = vmatmul.bf16.gmra.mxu0 %v851
  %v1888 = vpop.f32.mrf.mxu0
  %v1889 = vadd.f32 %v1840, %v1888
  %v1890 = vpop.f32.mrf.mxu0
  %v1891 = vadd.f32 %v1842, %v1890
  %1892 = vmatmul.bf16.gmra.mxu0 %v867
  %v1893 = vpop.f32.mrf.mxu0
  %v1894 = vadd.f32 %v1845, %v1893
  %v1895 = vpop.f32.mrf.mxu0
  %v1896 = vadd.f32 %v1847, %v1895
  %1897 = vmatmul.bf16.gmra.mxu0 %v883
  %v1898 = vpop.f32.mrf.mxu0
  %v1899 = vadd.f32 %v1850, %v1898
  %v1900 = vpop.f32.mrf.mxu0
  %v1901 = vadd.f32 %v1852, %v1900
  %1902 = vmatmul.bf16.gmra.mxu0 %v899
  %v1903 = vpop.f32.mrf.mxu0
  %v1904 = vadd.f32 %v1855, %v1903
  %v1905 = vpop.f32.mrf.mxu0
  %v1906 = vadd.f32 %v1857, %v1905
  %1907 = vdwg.mxu0
  %1908 = vmatpush.bf16.msra.mxu0 %v1577
  %1909 = vmatpush.bf16.msra.mxu0 %v1576
  %1910 = vmatpush.bf16.msra.mxu0 %v1575
  %1911 = vmatpush.bf16.msra.mxu0 %v1574
  %1912 = vmatpush.bf16.msra.mxu0 %v1573
  %1913 = vmatpush.bf16.msra.mxu0 %v1572
  %1914 = vmatpush.bf16.msra.mxu0 %v1571
  %1915 = vmatpush.bf16.msra.mxu0 %v1570
  %1916 = vmatmul.bf16.gmra.mxu0 %v788
  %v1917 = vpop.f32.mrf.mxu0
  %v1918 = vadd.f32 %v1869, %v1917
  %v1919 = vpop.f32.mrf.mxu0
  %v1920 = vadd.f32 %v1871, %v1919
  %1921 = vmatmul.bf16.gmra.mxu0 %v804
  %v1922 = vpop.f32.mrf.mxu0
  %v1923 = vadd.f32 %v1874, %v1922
  %v1924 = vpop.f32.mrf.mxu0
  %v1925 = vadd.f32 %v1876, %v1924
  %1926 = vmatmul.bf16.gmra.mxu0 %v820
  %v1927 = vpop.f32.mrf.mxu0
  %v1928 = vadd.f32 %v1879, %v1927
  %v1929 = vpop.f32.mrf.mxu0
  %v1930 = vadd.f32 %v1881, %v1929
  %1931 = vmatmul.bf16.gmra.mxu0 %v836
  %v1932 = vpop.f32.mrf.mxu0
  %v1933 = vadd.f32 %v1884, %v1932
  %v1934 = vpop.f32.mrf.mxu0
  %v1935 = vadd.f32 %v1886, %v1934
  %1936 = vmatmul.bf16.gmra.mxu0 %v852
  %v1937 = vpop.f32.mrf.mxu0
  %v1938 = vadd.f32 %v1889, %v1937
  %v1939 = vpop.f32.mrf.mxu0
  %v1940 = vadd.f32 %v1891, %v1939
  %1941 = vmatmul.bf16.gmra.mxu0 %v868
  %v1942 = vpop.f32.mrf.mxu0
  %v1943 = vadd.f32 %v1894, %v1942
  %v1944 = vpop.f32.mrf.mxu0
  %v1945 = vadd.f32 %v1896, %v1944
  %1946 = vmatmul.bf16.gmra.mxu0 %v884
  %v1947 = vpop.f32.mrf.mxu0
  %v1948 = vadd.f32 %v1899, %v1947
  %v1949 = vpop.f32.mrf.mxu0
  %v1950 = vadd.f32 %v1901, %v1949
  %1951 = vmatmul.bf16.gmra.mxu0 %v900
  %v1952 = vpop.f32.mrf.mxu0
  %v1953 = vadd.f32 %v1904, %v1952
  %v1954 = vpop.f32.mrf.mxu0
  %v1955 = vadd.f32 %v1906, %v1954
  %1956 = vdwg.mxu0
  %1957 = vmatpush.bf16.msra.mxu0 %v1585
  %1958 = vmatpush.bf16.msra.mxu0 %v1584
  %1959 = vmatpush.bf16.msra.mxu0 %v1583
  %1960 = vmatpush.bf16.msra.mxu0 %v1582
  %1961 = vmatpush.bf16.msra.mxu0 %v1581
  %1962 = vmatpush.bf16.msra.mxu0 %v1580
  %1963 = vmatpush.bf16.msra.mxu0 %v1579
  %1964 = vmatpush.bf16.msra.mxu0 %v1578
  %1965 = vmatmul.bf16.gmra.mxu0 %v789
  %v1966 = vpop.f32.mrf.mxu0
  %v1967 = vadd.f32 %v1918, %v1966
  %v1968 = vpop.f32.mrf.mxu0
  %v1969 = vadd.f32 %v1920, %v1968
  %1970 = vmatmul.bf16.gmra.mxu0 %v805
  %v1971 = vpop.f32.mrf.mxu0
  %v1972 = vadd.f32 %v1923, %v1971
  %v1973 = vpop.f32.mrf.mxu0
  %v1974 = vadd.f32 %v1925, %v1973
  %1975 = vmatmul.bf16.gmra.mxu0 %v821
  %v1976 = vpop.f32.mrf.mxu0
  %v1977 = vadd.f32 %v1928, %v1976
  %v1978 = vpop.f32.mrf.mxu0
  %v1979 = vadd.f32 %v1930, %v1978
  %1980 = vmatmul.bf16.gmra.mxu0 %v837
  %v1981 = vpop.f32.mrf.mxu0
  %v1982 = vadd.f32 %v1933, %v1981
  %v1983 = vpop.f32.mrf.mxu0
  %v1984 = vadd.f32 %v1935, %v1983
  %1985 = vmatmul.bf16.gmra.mxu0 %v853
  %v1986 = vpop.f32.mrf.mxu0
  %v1987 = vadd.f32 %v1938, %v1986
  %v1988 = vpop.f32.mrf.mxu0
  %v1989 = vadd.f32 %v1940, %v1988
  %1990 = vmatmul.bf16.gmra.mxu0 %v869
  %v1991 = vpop.f32.mrf.mxu0
  %v1992 = vadd.f32 %v1943, %v1991
  %v1993 = vpop.f32.mrf.mxu0
  %v1994 = vadd.f32 %v1945, %v1993
  %1995 = vmatmul.bf16.gmra.mxu0 %v885
  %v1996 = vpop.f32.mrf.mxu0
  %v1997 = vadd.f32 %v1948, %v1996
  %v1998 = vpop.f32.mrf.mxu0
  %v1999 = vadd.f32 %v1950, %v1998
  %2000 = vmatmul.bf16.gmra.mxu0 %v901
  %v2001 = vpop.f32.mrf.mxu0
  %v2002 = vadd.f32 %v1953, %v2001
  %v2003 = vpop.f32.mrf.mxu0
  %v2004 = vadd.f32 %v1955, %v2003
  %2005 = vdwg.mxu0
  %2006 = vmatpush.bf16.msra.mxu0 %v1593
  %2007 = vmatpush.bf16.msra.mxu0 %v1592
  %2008 = vmatpush.bf16.msra.mxu0 %v1591
  %2009 = vmatpush.bf16.msra.mxu0 %v1590
  %2010 = vmatpush.bf16.msra.mxu0 %v1589
  %2011 = vmatpush.bf16.msra.mxu0 %v1588
  %2012 = vmatpush.bf16.msra.mxu0 %v1587
  %2013 = vmatpush.bf16.msra.mxu0 %v1586
  %2014 = vmatmul.bf16.gmra.mxu0 %v790
  %v2015 = vpop.f32.mrf.mxu0
  %v2016 = vadd.f32 %v1967, %v2015
  %v2017 = vpop.f32.mrf.mxu0
  %v2018 = vadd.f32 %v1969, %v2017
  %2019 = vmatmul.bf16.gmra.mxu0 %v806
  %v2020 = vpop.f32.mrf.mxu0
  %v2021 = vadd.f32 %v1972, %v2020
  %v2022 = vpop.f32.mrf.mxu0
  %v2023 = vadd.f32 %v1974, %v2022
  %2024 = vmatmul.bf16.gmra.mxu0 %v822
  %v2025 = vpop.f32.mrf.mxu0
  %v2026 = vadd.f32 %v1977, %v2025
  %v2027 = vpop.f32.mrf.mxu0
  %v2028 = vadd.f32 %v1979, %v2027
  %2029 = vmatmul.bf16.gmra.mxu0 %v838
  %v2030 = vpop.f32.mrf.mxu0
  %v2031 = vadd.f32 %v1982, %v2030
  %v2032 = vpop.f32.mrf.mxu0
  %v2033 = vadd.f32 %v1984, %v2032
  %2034 = vmatmul.bf16.gmra.mxu0 %v854
  %v2035 = vpop.f32.mrf.mxu0
  %v2036 = vadd.f32 %v1987, %v2035
  %v2037 = vpop.f32.mrf.mxu0
  %v2038 = vadd.f32 %v1989, %v2037
  %2039 = vmatmul.bf16.gmra.mxu0 %v870
  %v2040 = vpop.f32.mrf.mxu0
  %v2041 = vadd.f32 %v1992, %v2040
  %v2042 = vpop.f32.mrf.mxu0
  %v2043 = vadd.f32 %v1994, %v2042
  %2044 = vmatmul.bf16.gmra.mxu0 %v886
  %v2045 = vpop.f32.mrf.mxu0
  %v2046 = vadd.f32 %v1997, %v2045
  %v2047 = vpop.f32.mrf.mxu0
  %v2048 = vadd.f32 %v1999, %v2047
  %2049 = vmatmul.bf16.gmra.mxu0 %v902
  %v2050 = vpop.f32.mrf.mxu0
  %v2051 = vadd.f32 %v2002, %v2050
  %v2052 = vpop.f32.mrf.mxu0
  %v2053 = vadd.f32 %v2004, %v2052
  %2054 = vdwg.mxu0
  %2055 = vmatpush.bf16.msra.mxu0 %v1601
  %2056 = vmatpush.bf16.msra.mxu0 %v1600
  %2057 = vmatpush.bf16.msra.mxu0 %v1599
  %2058 = vmatpush.bf16.msra.mxu0 %v1598
  %2059 = vmatpush.bf16.msra.mxu0 %v1597
  %2060 = vmatpush.bf16.msra.mxu0 %v1596
  %2061 = vmatpush.bf16.msra.mxu0 %v1595
  %2062 = vmatpush.bf16.msra.mxu0 %v1594
  %2063 = vmatmul.bf16.gmra.mxu0 %v791
  %v2064 = vpop.f32.mrf.mxu0
  %v2065 = vadd.f32 %v2016, %v2064
  %v2066 = vpop.f32.mrf.mxu0
  %v2067 = vadd.f32 %v2018, %v2066
  %2068 = vmatmul.bf16.gmra.mxu0 %v807
  %v2069 = vpop.f32.mrf.mxu0
  %v2070 = vadd.f32 %v2021, %v2069
  %v2071 = vpop.f32.mrf.mxu0
  %v2072 = vadd.f32 %v2023, %v2071
  %2073 = vmatmul.bf16.gmra.mxu0 %v823
  %v2074 = vpop.f32.mrf.mxu0
  %v2075 = vadd.f32 %v2026, %v2074
  %v2076 = vpop.f32.mrf.mxu0
  %v2077 = vadd.f32 %v2028, %v2076
  %2078 = vmatmul.bf16.gmra.mxu0 %v839
  %v2079 = vpop.f32.mrf.mxu0
  %v2080 = vadd.f32 %v2031, %v2079
  %v2081 = vpop.f32.mrf.mxu0
  %v2082 = vadd.f32 %v2033, %v2081
  %2083 = vmatmul.bf16.gmra.mxu0 %v855
  %v2084 = vpop.f32.mrf.mxu0
  %v2085 = vadd.f32 %v2036, %v2084
  %v2086 = vpop.f32.mrf.mxu0
  %v2087 = vadd.f32 %v2038, %v2086
  %2088 = vmatmul.bf16.gmra.mxu0 %v871
  %v2089 = vpop.f32.mrf.mxu0
  %v2090 = vadd.f32 %v2041, %v2089
  %v2091 = vpop.f32.mrf.mxu0
  %v2092 = vadd.f32 %v2043, %v2091
  %2093 = vmatmul.bf16.gmra.mxu0 %v887
  %v2094 = vpop.f32.mrf.mxu0
  %v2095 = vadd.f32 %v2046, %v2094
  %v2096 = vpop.f32.mrf.mxu0
  %v2097 = vadd.f32 %v2048, %v2096
  %2098 = vmatmul.bf16.gmra.mxu0 %v903
  %v2099 = vpop.f32.mrf.mxu0
  %v2100 = vadd.f32 %v2051, %v2099
  %v2101 = vpop.f32.mrf.mxu0
  %v2102 = vadd.f32 %v2053, %v2101
  %2103 = vdwg.mxu0
  %2104 = vmatpush.bf16.msra.mxu0 %v1609
  %2105 = vmatpush.bf16.msra.mxu0 %v1608
  %2106 = vmatpush.bf16.msra.mxu0 %v1607
  %2107 = vmatpush.bf16.msra.mxu0 %v1606
  %2108 = vmatpush.bf16.msra.mxu0 %v1605
  %2109 = vmatpush.bf16.msra.mxu0 %v1604
  %2110 = vmatpush.bf16.msra.mxu0 %v1603
  %2111 = vmatpush.bf16.msra.mxu0 %v1602
  %2112 = vmatmul.bf16.gmra.mxu0 %v792
  %v2113 = vpop.f32.mrf.mxu0
  %v2114 = vadd.f32 %v2065, %v2113
  %v2115 = vpop.f32.mrf.mxu0
  %v2116 = vadd.f32 %v2067, %v2115
  %2117 = vmatmul.bf16.gmra.mxu0 %v808
  %v2118 = vpop.f32.mrf.mxu0
  %v2119 = vadd.f32 %v2070, %v2118
  %v2120 = vpop.f32.mrf.mxu0
  %v2121 = vadd.f32 %v2072, %v2120
  %2122 = vmatmul.bf16.gmra.mxu0 %v824
  %v2123 = vpop.f32.mrf.mxu0
  %v2124 = vadd.f32 %v2075, %v2123
  %v2125 = vpop.f32.mrf.mxu0
  %v2126 = vadd.f32 %v2077, %v2125
  %2127 = vmatmul.bf16.gmra.mxu0 %v840
  %v2128 = vpop.f32.mrf.mxu0
  %v2129 = vadd.f32 %v2080, %v2128
  %v2130 = vpop.f32.mrf.mxu0
  %v2131 = vadd.f32 %v2082, %v2130
  %2132 = vmatmul.bf16.gmra.mxu0 %v856
  %v2133 = vpop.f32.mrf.mxu0
  %v2134 = vadd.f32 %v2085, %v2133
  %v2135 = vpop.f32.mrf.mxu0
  %v2136 = vadd.f32 %v2087, %v2135
  %2137 = vmatmul.bf16.gmra.mxu0 %v872
  %v2138 = vpop.f32.mrf.mxu0
  %v2139 = vadd.f32 %v2090, %v2138
  %v2140 = vpop.f32.mrf.mxu0
  %v2141 = vadd.f32 %v2092, %v2140
  %2142 = vmatmul.bf16.gmra.mxu0 %v888
  %v2143 = vpop.f32.mrf.mxu0
  %v2144 = vadd.f32 %v2095, %v2143
  %v2145 = vpop.f32.mrf.mxu0
  %v2146 = vadd.f32 %v2097, %v2145
  %2147 = vmatmul.bf16.gmra.mxu0 %v904
  %v2148 = vpop.f32.mrf.mxu0
  %v2149 = vadd.f32 %v2100, %v2148
  %v2150 = vpop.f32.mrf.mxu0
  %v2151 = vadd.f32 %v2102, %v2150
  %2152 = vdwg.mxu0
  %2153 = vmatpush.bf16.msra.mxu0 %v1617
  %2154 = vmatpush.bf16.msra.mxu0 %v1616
  %2155 = vmatpush.bf16.msra.mxu0 %v1615
  %2156 = vmatpush.bf16.msra.mxu0 %v1614
  %2157 = vmatpush.bf16.msra.mxu0 %v1613
  %2158 = vmatpush.bf16.msra.mxu0 %v1612
  %2159 = vmatpush.bf16.msra.mxu0 %v1611
  %2160 = vmatpush.bf16.msra.mxu0 %v1610
  %2161 = vmatmul.bf16.gmra.mxu0 %v793
  %v2162 = vpop.f32.mrf.mxu0
  %v2163 = vadd.f32 %v2114, %v2162
  %v2164 = vpop.f32.mrf.mxu0
  %v2165 = vadd.f32 %v2116, %v2164
  %2166 = vmatmul.bf16.gmra.mxu0 %v809
  %v2167 = vpop.f32.mrf.mxu0
  %v2168 = vadd.f32 %v2119, %v2167
  %v2169 = vpop.f32.mrf.mxu0
  %v2170 = vadd.f32 %v2121, %v2169
  %2171 = vmatmul.bf16.gmra.mxu0 %v825
  %v2172 = vpop.f32.mrf.mxu0
  %v2173 = vadd.f32 %v2124, %v2172
  %v2174 = vpop.f32.mrf.mxu0
  %v2175 = vadd.f32 %v2126, %v2174
  %2176 = vmatmul.bf16.gmra.mxu0 %v841
  %v2177 = vpop.f32.mrf.mxu0
  %v2178 = vadd.f32 %v2129, %v2177
  %v2179 = vpop.f32.mrf.mxu0
  %v2180 = vadd.f32 %v2131, %v2179
  %2181 = vmatmul.bf16.gmra.mxu0 %v857
  %v2182 = vpop.f32.mrf.mxu0
  %v2183 = vadd.f32 %v2134, %v2182
  %v2184 = vpop.f32.mrf.mxu0
  %v2185 = vadd.f32 %v2136, %v2184
  %2186 = vmatmul.bf16.gmra.mxu0 %v873
  %v2187 = vpop.f32.mrf.mxu0
  %v2188 = vadd.f32 %v2139, %v2187
  %v2189 = vpop.f32.mrf.mxu0
  %v2190 = vadd.f32 %v2141, %v2189
  %2191 = vmatmul.bf16.gmra.mxu0 %v889
  %v2192 = vpop.f32.mrf.mxu0
  %v2193 = vadd.f32 %v2144, %v2192
  %v2194 = vpop.f32.mrf.mxu0
  %v2195 = vadd.f32 %v2146, %v2194
  %2196 = vmatmul.bf16.gmra.mxu0 %v905
  %v2197 = vpop.f32.mrf.mxu0
  %v2198 = vadd.f32 %v2149, %v2197
  %v2199 = vpop.f32.mrf.mxu0
  %v2200 = vadd.f32 %v2151, %v2199
  %2201 = vdwg.mxu0
  %2202 = vmatpush.bf16.msra.mxu0 %v1625
  %2203 = vmatpush.bf16.msra.mxu0 %v1624
  %2204 = vmatpush.bf16.msra.mxu0 %v1623
  %2205 = vmatpush.bf16.msra.mxu0 %v1622
  %2206 = vmatpush.bf16.msra.mxu0 %v1621
  %2207 = vmatpush.bf16.msra.mxu0 %v1620
  %2208 = vmatpush.bf16.msra.mxu0 %v1619
  %2209 = vmatpush.bf16.msra.mxu0 %v1618
  %2210 = vmatmul.bf16.gmra.mxu0 %v794
  %v2211 = vpop.f32.mrf.mxu0
  %v2212 = vadd.f32 %v2163, %v2211
  %v2213 = vpop.f32.mrf.mxu0
  %v2214 = vadd.f32 %v2165, %v2213
  %2215 = vmatmul.bf16.gmra.mxu0 %v810
  %v2216 = vpop.f32.mrf.mxu0
  %v2217 = vadd.f32 %v2168, %v2216
  %v2218 = vpop.f32.mrf.mxu0
  %v2219 = vadd.f32 %v2170, %v2218
  %2220 = vmatmul.bf16.gmra.mxu0 %v826
  %v2221 = vpop.f32.mrf.mxu0
  %v2222 = vadd.f32 %v2173, %v2221
  %v2223 = vpop.f32.mrf.mxu0
  %v2224 = vadd.f32 %v2175, %v2223
  %2225 = vmatmul.bf16.gmra.mxu0 %v842
  %v2226 = vpop.f32.mrf.mxu0
  %v2227 = vadd.f32 %v2178, %v2226
  %v2228 = vpop.f32.mrf.mxu0
  %v2229 = vadd.f32 %v2180, %v2228
  %2230 = vmatmul.bf16.gmra.mxu0 %v858
  %v2231 = vpop.f32.mrf.mxu0
  %v2232 = vadd.f32 %v2183, %v2231
  %v2233 = vpop.f32.mrf.mxu0
  %v2234 = vadd.f32 %v2185, %v2233
  %2235 = vmatmul.bf16.gmra.mxu0 %v874
  %v2236 = vpop.f32.mrf.mxu0
  %v2237 = vadd.f32 %v2188, %v2236
  %v2238 = vpop.f32.mrf.mxu0
  %v2239 = vadd.f32 %v2190, %v2238
  %2240 = vmatmul.bf16.gmra.mxu0 %v890
  %v2241 = vpop.f32.mrf.mxu0
  %v2242 = vadd.f32 %v2193, %v2241
  %v2243 = vpop.f32.mrf.mxu0
  %v2244 = vadd.f32 %v2195, %v2243
  %2245 = vmatmul.bf16.gmra.mxu0 %v906
  %v2246 = vpop.f32.mrf.mxu0
  %v2247 = vadd.f32 %v2198, %v2246
  %v2248 = vpop.f32.mrf.mxu0
  %v2249 = vadd.f32 %v2200, %v2248
  %2250 = vdwg.mxu0
  %2251 = vmatpush.bf16.msra.mxu0 %v1633
  %2252 = vmatpush.bf16.msra.mxu0 %v1632
  %2253 = vmatpush.bf16.msra.mxu0 %v1631
  %2254 = vmatpush.bf16.msra.mxu0 %v1630
  %2255 = vmatpush.bf16.msra.mxu0 %v1629
  %2256 = vmatpush.bf16.msra.mxu0 %v1628
  %2257 = vmatpush.bf16.msra.mxu0 %v1627
  %2258 = vmatpush.bf16.msra.mxu0 %v1626
  %2259 = vmatmul.bf16.gmra.mxu0 %v795
  %v2260 = vpop.f32.mrf.mxu0
  %v2261 = vadd.f32 %v2212, %v2260
  %v2262 = vpop.f32.mrf.mxu0
  %v2263 = vadd.f32 %v2214, %v2262
  %2264 = vmatmul.bf16.gmra.mxu0 %v811
  %v2265 = vpop.f32.mrf.mxu0
  %v2266 = vadd.f32 %v2217, %v2265
  %v2267 = vpop.f32.mrf.mxu0
  %v2268 = vadd.f32 %v2219, %v2267
  %2269 = vmatmul.bf16.gmra.mxu0 %v827
  %v2270 = vpop.f32.mrf.mxu0
  %v2271 = vadd.f32 %v2222, %v2270
  %v2272 = vpop.f32.mrf.mxu0
  %v2273 = vadd.f32 %v2224, %v2272
  %2274 = vmatmul.bf16.gmra.mxu0 %v843
  %v2275 = vpop.f32.mrf.mxu0
  %v2276 = vadd.f32 %v2227, %v2275
  %v2277 = vpop.f32.mrf.mxu0
  %v2278 = vadd.f32 %v2229, %v2277
  %2279 = vmatmul.bf16.gmra.mxu0 %v859
  %v2280 = vpop.f32.mrf.mxu0
  %v2281 = vadd.f32 %v2232, %v2280
  %v2282 = vpop.f32.mrf.mxu0
  %v2283 = vadd.f32 %v2234, %v2282
  %2284 = vmatmul.bf16.gmra.mxu0 %v875
  %v2285 = vpop.f32.mrf.mxu0
  %v2286 = vadd.f32 %v2237, %v2285
  %v2287 = vpop.f32.mrf.mxu0
  %v2288 = vadd.f32 %v2239, %v2287
  %2289 = vmatmul.bf16.gmra.mxu0 %v891
  %v2290 = vpop.f32.mrf.mxu0
  %v2291 = vadd.f32 %v2242, %v2290
  %v2292 = vpop.f32.mrf.mxu0
  %v2293 = vadd.f32 %v2244, %v2292
  %2294 = vmatmul.bf16.gmra.mxu0 %v907
  %v2295 = vpop.f32.mrf.mxu0
  %v2296 = vadd.f32 %v2247, %v2295
  %v2297 = vpop.f32.mrf.mxu0
  %v2298 = vadd.f32 %v2249, %v2297
  %2299 = vdwg.mxu0
  %2300 = vmatpush.bf16.msra.mxu0 %v1641
  %2301 = vmatpush.bf16.msra.mxu0 %v1640
  %2302 = vmatpush.bf16.msra.mxu0 %v1639
  %2303 = vmatpush.bf16.msra.mxu0 %v1638
  %2304 = vmatpush.bf16.msra.mxu0 %v1637
  %2305 = vmatpush.bf16.msra.mxu0 %v1636
  %2306 = vmatpush.bf16.msra.mxu0 %v1635
  %2307 = vmatpush.bf16.msra.mxu0 %v1634
  %2308 = vmatmul.bf16.gmra.mxu0 %v796
  %v2309 = vpop.f32.mrf.mxu0
  %v2310 = vadd.f32 %v2261, %v2309
  %v2311 = vpop.f32.mrf.mxu0
  %v2312 = vadd.f32 %v2263, %v2311
  %2313 = vmatmul.bf16.gmra.mxu0 %v812
  %v2314 = vpop.f32.mrf.mxu0
  %v2315 = vadd.f32 %v2266, %v2314
  %v2316 = vpop.f32.mrf.mxu0
  %v2317 = vadd.f32 %v2268, %v2316
  %2318 = vmatmul.bf16.gmra.mxu0 %v828
  %v2319 = vpop.f32.mrf.mxu0
  %v2320 = vadd.f32 %v2271, %v2319
  %v2321 = vpop.f32.mrf.mxu0
  %v2322 = vadd.f32 %v2273, %v2321
  %2323 = vmatmul.bf16.gmra.mxu0 %v844
  %v2324 = vpop.f32.mrf.mxu0
  %v2325 = vadd.f32 %v2276, %v2324
  %v2326 = vpop.f32.mrf.mxu0
  %v2327 = vadd.f32 %v2278, %v2326
  %2328 = vmatmul.bf16.gmra.mxu0 %v860
  %v2329 = vpop.f32.mrf.mxu0
  %v2330 = vadd.f32 %v2281, %v2329
  %v2331 = vpop.f32.mrf.mxu0
  %v2332 = vadd.f32 %v2283, %v2331
  %2333 = vmatmul.bf16.gmra.mxu0 %v876
  %v2334 = vpop.f32.mrf.mxu0
  %v2335 = vadd.f32 %v2286, %v2334
  %v2336 = vpop.f32.mrf.mxu0
  %v2337 = vadd.f32 %v2288, %v2336
  %2338 = vmatmul.bf16.gmra.mxu0 %v892
  %v2339 = vpop.f32.mrf.mxu0
  %v2340 = vadd.f32 %v2291, %v2339
  %v2341 = vpop.f32.mrf.mxu0
  %v2342 = vadd.f32 %v2293, %v2341
  %2343 = vmatmul.bf16.gmra.mxu0 %v908
  %v2344 = vpop.f32.mrf.mxu0
  %v2345 = vadd.f32 %v2296, %v2344
  %v2346 = vpop.f32.mrf.mxu0
  %v2347 = vadd.f32 %v2298, %v2346
  %2348 = vdwg.mxu0
  %2349 = vmatpush.bf16.msra.mxu0 %v1649
  %2350 = vmatpush.bf16.msra.mxu0 %v1648
  %2351 = vmatpush.bf16.msra.mxu0 %v1647
  %2352 = vmatpush.bf16.msra.mxu0 %v1646
  %2353 = vmatpush.bf16.msra.mxu0 %v1645
  %2354 = vmatpush.bf16.msra.mxu0 %v1644
  %2355 = vmatpush.bf16.msra.mxu0 %v1643
  %2356 = vmatpush.bf16.msra.mxu0 %v1642
  %2357 = vmatmul.bf16.gmra.mxu0 %v797
  %v2358 = vpop.f32.mrf.mxu0
  %v2359 = vadd.f32 %v2310, %v2358
  %v2360 = vpop.f32.mrf.mxu0
  %v2361 = vadd.f32 %v2312, %v2360
  %2362 = vmatmul.bf16.gmra.mxu0 %v813
  %v2363 = vpop.f32.mrf.mxu0
  %v2364 = vadd.f32 %v2315, %v2363
  %v2365 = vpop.f32.mrf.mxu0
  %v2366 = vadd.f32 %v2317, %v2365
  %2367 = vmatmul.bf16.gmra.mxu0 %v829
  %v2368 = vpop.f32.mrf.mxu0
  %v2369 = vadd.f32 %v2320, %v2368
  %v2370 = vpop.f32.mrf.mxu0
  %v2371 = vadd.f32 %v2322, %v2370
  %2372 = vmatmul.bf16.gmra.mxu0 %v845
  %v2373 = vpop.f32.mrf.mxu0
  %v2374 = vadd.f32 %v2325, %v2373
  %v2375 = vpop.f32.mrf.mxu0
  %v2376 = vadd.f32 %v2327, %v2375
  %2377 = vmatmul.bf16.gmra.mxu0 %v861
  %v2378 = vpop.f32.mrf.mxu0
  %v2379 = vadd.f32 %v2330, %v2378
  %v2380 = vpop.f32.mrf.mxu0
  %v2381 = vadd.f32 %v2332, %v2380
  %2382 = vmatmul.bf16.gmra.mxu0 %v877
  %v2383 = vpop.f32.mrf.mxu0
  %v2384 = vadd.f32 %v2335, %v2383
  %v2385 = vpop.f32.mrf.mxu0
  %v2386 = vadd.f32 %v2337, %v2385
  %2387 = vmatmul.bf16.gmra.mxu0 %v893
  %v2388 = vpop.f32.mrf.mxu0
  %v2389 = vadd.f32 %v2340, %v2388
  %v2390 = vpop.f32.mrf.mxu0
  %v2391 = vadd.f32 %v2342, %v2390
  %2392 = vmatmul.bf16.gmra.mxu0 %v909
  %v2393 = vpop.f32.mrf.mxu0
  %v2394 = vadd.f32 %v2345, %v2393
  %v2395 = vpop.f32.mrf.mxu0
  %v2396 = vadd.f32 %v2347, %v2395
  %2397 = vdwg.mxu0
  %2398 = vmatpush.bf16.msra.mxu0 %v1657
  %2399 = vmatpush.bf16.msra.mxu0 %v1656
  %2400 = vmatpush.bf16.msra.mxu0 %v1655
  %2401 = vmatpush.bf16.msra.mxu0 %v1654
  %2402 = vmatpush.bf16.msra.mxu0 %v1653
  %2403 = vmatpush.bf16.msra.mxu0 %v1652
  %2404 = vmatpush.bf16.msra.mxu0 %v1651
  %2405 = vmatpush.bf16.msra.mxu0 %v1650
  %2406 = vmatmul.bf16.gmra.mxu0 %v798
  %v2407 = vpop.f32.mrf.mxu0
  %v2408 = vadd.f32 %v2359, %v2407
  %v2409 = vpop.f32.mrf.mxu0
  %v2410 = vadd.f32 %v2361, %v2409
  %2411 = vmatmul.bf16.gmra.mxu0 %v814
  %v2412 = vpop.f32.mrf.mxu0
  %v2413 = vadd.f32 %v2364, %v2412
  %v2414 = vpop.f32.mrf.mxu0
  %v2415 = vadd.f32 %v2366, %v2414
  %2416 = vmatmul.bf16.gmra.mxu0 %v830
  %v2417 = vpop.f32.mrf.mxu0
  %v2418 = vadd.f32 %v2369, %v2417
  %v2419 = vpop.f32.mrf.mxu0
  %v2420 = vadd.f32 %v2371, %v2419
  %2421 = vmatmul.bf16.gmra.mxu0 %v846
  %v2422 = vpop.f32.mrf.mxu0
  %v2423 = vadd.f32 %v2374, %v2422
  %v2424 = vpop.f32.mrf.mxu0
  %v2425 = vadd.f32 %v2376, %v2424
  %2426 = vmatmul.bf16.gmra.mxu0 %v862
  %v2427 = vpop.f32.mrf.mxu0
  %v2428 = vadd.f32 %v2379, %v2427
  %v2429 = vpop.f32.mrf.mxu0
  %v2430 = vadd.f32 %v2381, %v2429
  %2431 = vmatmul.bf16.gmra.mxu0 %v878
  %v2432 = vpop.f32.mrf.mxu0
  %v2433 = vadd.f32 %v2384, %v2432
  %v2434 = vpop.f32.mrf.mxu0
  %v2435 = vadd.f32 %v2386, %v2434
  %2436 = vmatmul.bf16.gmra.mxu0 %v894
  %v2437 = vpop.f32.mrf.mxu0
  %v2438 = vadd.f32 %v2389, %v2437
  %v2439 = vpop.f32.mrf.mxu0
  %v2440 = vadd.f32 %v2391, %v2439
  %2441 = vmatmul.bf16.gmra.mxu0 %v910
  %v2442 = vpop.f32.mrf.mxu0
  %v2443 = vadd.f32 %v2394, %v2442
  %v2444 = vpop.f32.mrf.mxu0
  %v2445 = vadd.f32 %v2396, %v2444
  %2446 = vdwg.mxu0
  %2447 = vmatpush.bf16.msra.mxu0 %v1665
  %2448 = vmatpush.bf16.msra.mxu0 %v1664
  %2449 = vmatpush.bf16.msra.mxu0 %v1663
  %2450 = vmatpush.bf16.msra.mxu0 %v1662
  %2451 = vmatpush.bf16.msra.mxu0 %v1661
  %2452 = vmatpush.bf16.msra.mxu0 %v1660
  %2453 = vmatpush.bf16.msra.mxu0 %v1659
  %2454 = vmatpush.bf16.msra.mxu0 %v1658
  %2455 = vmatmul.bf16.gmra.mxu0 %v799
  %v2456 = vpop.f32.mrf.mxu0
  %v2457 = vadd.f32 %v2408, %v2456
  %v2458 = vpop.f32.mrf.mxu0
  %v2459 = vadd.f32 %v2410, %v2458
  %2460 = vmatmul.bf16.gmra.mxu0 %v815
  %v2461 = vpop.f32.mrf.mxu0
  %v2462 = vadd.f32 %v2413, %v2461
  %v2463 = vpop.f32.mrf.mxu0
  %v2464 = vadd.f32 %v2415, %v2463
  %2465 = vmatmul.bf16.gmra.mxu0 %v831
  %v2466 = vpop.f32.mrf.mxu0
  %v2467 = vadd.f32 %v2418, %v2466
  %v2468 = vpop.f32.mrf.mxu0
  %v2469 = vadd.f32 %v2420, %v2468
  %2470 = vmatmul.bf16.gmra.mxu0 %v847
  %v2471 = vpop.f32.mrf.mxu0
  %v2472 = vadd.f32 %v2423, %v2471
  %v2473 = vpop.f32.mrf.mxu0
  %v2474 = vadd.f32 %v2425, %v2473
  %2475 = vmatmul.bf16.gmra.mxu0 %v863
  %v2476 = vpop.f32.mrf.mxu0
  %v2477 = vadd.f32 %v2428, %v2476
  %v2478 = vpop.f32.mrf.mxu0
  %v2479 = vadd.f32 %v2430, %v2478
  %2480 = vmatmul.bf16.gmra.mxu0 %v879
  %v2481 = vpop.f32.mrf.mxu0
  %v2482 = vadd.f32 %v2433, %v2481
  %v2483 = vpop.f32.mrf.mxu0
  %v2484 = vadd.f32 %v2435, %v2483
  %2485 = vmatmul.bf16.gmra.mxu0 %v895
  %v2486 = vpop.f32.mrf.mxu0
  %v2487 = vadd.f32 %v2438, %v2486
  %v2488 = vpop.f32.mrf.mxu0
  %v2489 = vadd.f32 %v2440, %v2488
  %2490 = vmatmul.bf16.gmra.mxu0 %v911
  %v2491 = vpop.f32.mrf.mxu0
  %v2492 = vadd.f32 %v2443, %v2491
  %v2493 = vpop.f32.mrf.mxu0
  %v2494 = vadd.f32 %v2445, %v2493
  %2495 = vdwg.mxu0
  %2496 = vmatpush.bf16.msra.mxu0 %v1673
  %2497 = vmatpush.bf16.msra.mxu0 %v1672
  %2498 = vmatpush.bf16.msra.mxu0 %v1671
  %2499 = vmatpush.bf16.msra.mxu0 %v1670
  %2500 = vmatpush.bf16.msra.mxu0 %v1669
  %2501 = vmatpush.bf16.msra.mxu0 %v1668
  %2502 = vmatpush.bf16.msra.mxu0 %v1667
  %2503 = vmatpush.bf16.msra.mxu0 %v1666
  %2504 = vmatmul.bf16.gmra.mxu0 %v800
  %v2505 = vpop.f32.mrf.mxu0
  %v2506 = vadd.f32 %v2457, %v2505
  %v2507 = vpop.f32.mrf.mxu0
  %v2508 = vadd.f32 %v2459, %v2507
  %2509 = vmatmul.bf16.gmra.mxu0 %v816
  %v2510 = vpop.f32.mrf.mxu0
  %v2511 = vadd.f32 %v2462, %v2510
  %v2512 = vpop.f32.mrf.mxu0
  %v2513 = vadd.f32 %v2464, %v2512
  %2514 = vmatmul.bf16.gmra.mxu0 %v832
  %v2515 = vpop.f32.mrf.mxu0
  %v2516 = vadd.f32 %v2467, %v2515
  %v2517 = vpop.f32.mrf.mxu0
  %v2518 = vadd.f32 %v2469, %v2517
  %2519 = vmatmul.bf16.gmra.mxu0 %v848
  %v2520 = vpop.f32.mrf.mxu0
  %v2521 = vadd.f32 %v2472, %v2520
  %v2522 = vpop.f32.mrf.mxu0
  %v2523 = vadd.f32 %v2474, %v2522
  %2524 = vmatmul.bf16.gmra.mxu0 %v864
  %v2525 = vpop.f32.mrf.mxu0
  %v2526 = vadd.f32 %v2477, %v2525
  %v2527 = vpop.f32.mrf.mxu0
  %v2528 = vadd.f32 %v2479, %v2527
  %2529 = vmatmul.bf16.gmra.mxu0 %v880
  %v2530 = vpop.f32.mrf.mxu0
  %v2531 = vadd.f32 %v2482, %v2530
  %v2532 = vpop.f32.mrf.mxu0
  %v2533 = vadd.f32 %v2484, %v2532
  %2534 = vmatmul.bf16.gmra.mxu0 %v896
  %v2535 = vpop.f32.mrf.mxu0
  %v2536 = vadd.f32 %v2487, %v2535
  %v2537 = vpop.f32.mrf.mxu0
  %v2538 = vadd.f32 %v2489, %v2537
  %2539 = vmatmul.bf16.gmra.mxu0 %v912
  %v2540 = vpop.f32.mrf.mxu0
  %v2541 = vadd.f32 %v2492, %v2540
  %v2542 = vpop.f32.mrf.mxu0
  %v2543 = vadd.f32 %v2494, %v2542
  %2544 = vdwg.mxu0
  %2545 = vmatpush.bf16.msra.mxu0 %v1681
  %2546 = vmatpush.bf16.msra.mxu0 %v1680
  %2547 = vmatpush.bf16.msra.mxu0 %v1679
  %2548 = vmatpush.bf16.msra.mxu0 %v1678
  %2549 = vmatpush.bf16.msra.mxu0 %v1677
  %2550 = vmatpush.bf16.msra.mxu0 %v1676
  %2551 = vmatpush.bf16.msra.mxu0 %v1675
  %2552 = vmatpush.bf16.msra.mxu0 %v1674
  %2553 = vmatmul.bf16.gmra.mxu0 %v801
  %v2554 = vpop.f32.mrf.mxu0
  %v2555 = vadd.f32 %v2506, %v2554
  %v2556 = vpop.f32.mrf.mxu0
  %v2557 = vadd.f32 %v2508, %v2556
  %2558 = vmatmul.bf16.gmra.mxu0 %v817
  %v2559 = vpop.f32.mrf.mxu0
  %v2560 = vadd.f32 %v2511, %v2559
  %v2561 = vpop.f32.mrf.mxu0
  %v2562 = vadd.f32 %v2513, %v2561
  %2563 = vmatmul.bf16.gmra.mxu0 %v833
  %v2564 = vpop.f32.mrf.mxu0
  %v2565 = vadd.f32 %v2516, %v2564
  %v2566 = vpop.f32.mrf.mxu0
  %v2567 = vadd.f32 %v2518, %v2566
  %2568 = vmatmul.bf16.gmra.mxu0 %v849
  %v2569 = vpop.f32.mrf.mxu0
  %v2570 = vadd.f32 %v2521, %v2569
  %v2571 = vpop.f32.mrf.mxu0
  %v2572 = vadd.f32 %v2523, %v2571
  %2573 = vmatmul.bf16.gmra.mxu0 %v865
  %v2574 = vpop.f32.mrf.mxu0
  %v2575 = vadd.f32 %v2526, %v2574
  %v2576 = vpop.f32.mrf.mxu0
  %v2577 = vadd.f32 %v2528, %v2576
  %2578 = vmatmul.bf16.gmra.mxu0 %v881
  %v2579 = vpop.f32.mrf.mxu0
  %v2580 = vadd.f32 %v2531, %v2579
  %v2581 = vpop.f32.mrf.mxu0
  %v2582 = vadd.f32 %v2533, %v2581
  %2583 = vmatmul.bf16.gmra.mxu0 %v897
  %v2584 = vpop.f32.mrf.mxu0
  %v2585 = vadd.f32 %v2536, %v2584
  %v2586 = vpop.f32.mrf.mxu0
  %v2587 = vadd.f32 %v2538, %v2586
  %2588 = vmatmul.bf16.gmra.mxu0 %v913
  %v2589 = vpop.f32.mrf.mxu0
  %v2590 = vadd.f32 %v2541, %v2589
  %v2591 = vpop.f32.mrf.mxu0
  %v2592 = vadd.f32 %v2543, %v2591
  %2593 = vdwg.mxu0
  %v2594 = vmax.f32 %v2555, 0.0
  %v2595 = vmax.f32 %v2557, 0.0
  %v2596 = vmax.f32 %v2560, 0.0
  %v2597 = vmax.f32 %v2562, 0.0
  %v2598 = vmax.f32 %v2565, 0.0
  %v2599 = vmax.f32 %v2567, 0.0
  %v2600 = vmax.f32 %v2570, 0.0
  %v2601 = vmax.f32 %v2572, 0.0
  %v2602 = vmax.f32 %v2575, 0.0
  %v2603 = vmax.f32 %v2577, 0.0
  %v2604 = vmax.f32 %v2580, 0.0
  %v2605 = vmax.f32 %v2582, 0.0
  %v2606 = vmax.f32 %v2585, 0.0
  %v2607 = vmax.f32 %v2587, 0.0
  %v2608 = vmax.f32 %v2590, 0.0
  %v2609 = vmax.f32 %v2592, 0.0
  %v2610 = vpack.c.bf16 %v2594, %v2594
  %v2611 = vpack.c.bf16 %v2595, %v2595
  %v2612 = vpack.c.bf16 %v2596, %v2596
  %v2613 = vpack.c.bf16 %v2597, %v2597
  %v2614 = vpack.c.bf16 %v2598, %v2598
  %v2615 = vpack.c.bf16 %v2599, %v2599
  %v2616 = vpack.c.bf16 %v2600, %v2600
  %v2617 = vpack.c.bf16 %v2601, %v2601
  %v2618 = vpack.c.bf16 %v2602, %v2602
  %v2619 = vpack.c.bf16 %v2603, %v2603
  %v2620 = vpack.c.bf16 %v2604, %v2604
  %v2621 = vpack.c.bf16 %v2605, %v2605
  %v2622 = vpack.c.bf16 %v2606, %v2606
  %v2623 = vpack.c.bf16 %v2607, %v2607
  %v2624 = vpack.c.bf16 %v2608, %v2608
  %v2625 = vpack.c.bf16 %v2609, %v2609
  %2626 = vst [vmem:[%s3] sm:$0xf] %v2610
  %2627 = vst [vmem:[%s3 + $0x4] sm:$0xf] %v2611
  %2628 = vst [vmem:[%s3 + $0x8] sm:$0xf] %v2612
  %2629 = vst [vmem:[%s3 + $0xc] sm:$0xf] %v2613
  %2630 = vst [vmem:[%s3 + $0x10] sm:$0xf] %v2614
  %2631 = vst [vmem:[%s3 + $0x14] sm:$0xf] %v2615
  %2632 = vst [vmem:[%s3 + $0x18] sm:$0xf] %v2616
  %2633 = vst [vmem:[%s3 + $0x1c] sm:$0xf] %v2617
  %2634 = vst [vmem:[%s3 + $0x20] sm:$0xf] %v2618
  %2635 = vst [vmem:[%s3 + $0x24] sm:$0xf] %v2619
  %2636 = vst [vmem:[%s3 + $0x28] sm:$0xf] %v2620
  %2637 = vst [vmem:[%s3 + $0x2c] sm:$0xf] %v2621
  %2638 = vst [vmem:[%s3 + $0x30] sm:$0xf] %v2622
  %2639 = vst [vmem:[%s3 + $0x34] sm:$0xf] %v2623
  %2640 = vst [vmem:[%s3 + $0x38] sm:$0xf] %v2624
  %2641 = vst [vmem:[%s3 + $0x3c] sm:$0xf] %v2625
  // Predicated region
  $region14: #{vae_forward.6} parent=0 // pred_check
    _
  $region15: #{vae_forward.6} parent=0 // pred_check_branch
    %2643 = sbr.rel (0) target = $region17
  $region16: #{vae_forward.6} parent=0 // pred_region
    _
  $region17: #{vae_forward.6} parent=0 // pred_fallthru
    _
  // Predicated region
  $region18: #{vae_forward.6} parent=0 // pred_check
    _
  $region19: #{vae_forward.6} parent=0 // pred_check_branch
    %2645 = sbr.rel (0) target = $region21
  $region20: #{vae_forward.6} parent=0 // pred_region
    _
  $region21: #{vae_forward.6} parent=0 // pred_fallthru
    _

// kernel: vae_forward.7
$region0: #{vae_forward.7}
  #allocation0 [shape = 'u32[]', space=smem, size = 0x4, offset = 0x4, fixed_abs, tag = 'smem constant byte address 0x4 - core index']
  #allocation1 [shape = 'u32[72,128]{1,0:T(1,128)}', space=vmem, size = 0x9000, scoped, tag = 'internal scratch']
  #allocation2 [shape = 'f32[2,256]{1,0:T(2,128)}', space=vmem, size = 0x800, scoped, tag = 'scratch operand']
  %s0 = inlined_call_operand.vmem [shape: bf16[2,4096], index: 0, kind: input, shape index: {}]
  %s1 = inlined_call_operand.vmem [shape: bf16[4096,256], index: 1, kind: input, shape index: {}]
  %s2 = inlined_call_operand.vmem [shape: f32[1,256], index: 2, kind: input, shape index: {}]
  %s3 = inlined_call_operand.vmem [shape: f32[2,128], index: 3, kind: input, shape index: {}]
  %s4 = inlined_call_operand.vmem [shape: bf16[128,4096], index: 4, kind: input, shape index: {}]
  %s5 = inlined_call_operand.vmem [shape: f32[1,4096], index: 5, kind: input, shape index: {}]
  %s6 = inlined_call_operand.hbm [shape: f32[2,128], index: 6, kind: output, shape index: {0}]
  %s7 = inlined_call_operand.hbm [shape: f32[2,128], index: 7, kind: output, shape index: {1}]
  %s8 = inlined_call_operand.vmem [shape: bf16[2,4096], index: 8, kind: output, shape index: {2}]
  %9 = xla_tuple %s6, %s7, %s8
  %s10 = sld [smem:[#allocation0]]
  $region81: #{vae_forward.7} parent=0
    _
  %s12 = ssub.s32 1, %s10
  %s13 = scalar_select 0, %s12, %s10
  $region1: #{vae_forward.7} parent=0
    #allocation3 [shape = 'u8[1024]{0}', space=vmem, size = 0x400, scoped, tag = 'output window, operand 0, single buffered']
    #allocation4 [shape = 's32[2]{0}', space=sflag, size = 0x8, scoped, tag = 'scoped memory for vae_forward.7']
    #allocation5 [shape = 'u8[1024]{0}', space=vmem, size = 0x400, scoped, tag = 'output window, operand 1, single buffered']
    #allocation6 [shape = 's32[1]{0}', space=sflag, size = 0x4, scoped, tag = 'scoped memory for vae_forward.7']
    %14 = vsyncpa [#allocation4], 0
    %15 = vsyncpa [#allocation6], 0
    loop: start=0, step=1, limit=6
    $region2: #{vae_forward.7} parent=1 // loop_pre_header
      _
    $region3: #{vae_forward.7} parent=1 // loop_header
      %s17 = sphi 0, %s21
      %p18 = scmp.ge.s32.totalorder %s17, 6
      %s27 = sphi 0, %s29
      %s30 = sphi 0, %s27
      %s31 = sphi 0, %s30
      %s47 = sphi 0, %s31
      %s53 = sphi 0, %s55
      %s56 = sphi 0, %s53
      %s57 = sphi 0, %s56
      %s73 = sphi 0, %s57
      %s77 = sphi 0, %s77
      %s79 = sphi 0, %s77
      %s80 = sphi 0, %s79
      %s94 = sphi 0, %s80
      %s98 = sphi 0, %s98
      %s100 = sphi 0, %s98
      %s101 = sphi 0, %s100
      %s115 = sphi 0, %s101
      %s119 = sphi 0, %s119
      %s121 = sphi 0, %s119
      %s122 = sphi 0, %s121
      %s136 = sphi 0, %s122
      %s140 = sphi 0, %s140
      %s142 = sphi 0, %s140
      %s143 = sphi 0, %s142
      %s157 = sphi 0, %s143
      %s161 = sphi 0, %s161
      %s163 = sphi 0, %s161
      %s164 = sphi 0, %s163
      %s178 = sphi 0, %s164
      %s182 = sphi 0, %s182
      %s184 = sphi 0, %s182
      %s185 = sphi 0, %s184
      %s199 = sphi 0, %s185
      %s203 = sphi 0, %s203
      %s205 = sphi 0, %s203
      %s206 = sphi 0, %s205
      %s220 = sphi 0, %s206
    $region4: #{vae_forward.7} parent=1 // loop_header_branch
      %20 = sbr.rel (%p18) target = $region8
    $region5: #{vae_forward.7} parent=1 // loop_body
      %s22 = ssub.s32 %s17, 1
      %s23 = ssub.s32 %s17, 2
      %s24 = sadd.s32 %s17, 1
      %s25 = ssub.s32 %s17, %s24
      %p26 = scmp.eq.s32.totalorder %s25, 0
      %s28 = sadd.s32 %s27, 1
      %s29 = scalar_select %p26, %s27, %s28
      %p32 = pneg %p26
      %p33 = scmp.eq.s32.totalorder %s17, 3
      %p34 = por %p32, %p33
      %p35 = scmp.ne.s32.totalorder %s27, %s30
      %p36 = scmp.eq.s32.totalorder %s17, 0
      %p37 = por %p35, %p36
      %p38 = scmp.ne.s32.totalorder %s27, %s30
      %p39 = scmp.eq.s32.totalorder %s22, 3
      %p40 = por %p38, %p39
      %p41 = scmp.ne.s32.totalorder %s30, %s31
      %p42 = scmp.eq.s32.totalorder %s22, 0
      %p43 = por %p41, %p42
      %p44 = scmp.ne.s32.totalorder %s30, %s31
      %p45 = scmp.eq.s32.totalorder %s23, 3
      %p46 = por %p44, %p45
      %p48 = scmp.ne.s32.totalorder %s31, %s47
      %p49 = scmp.eq.s32.totalorder %s23, 0
      %p50 = por %p48, %p49
      %s51 = ssub.s32 %s17, %s24
      %p52 = scmp.eq.s32.totalorder %s51, 0
      %s54 = sadd.s32 %s53, 1
      %s55 = scalar_select %p52, %s53, %s54
      %p58 = pneg %p52
      %p59 = scmp.eq.s32.totalorder %s17, 3
      %p60 = por %p58, %p59
      %p61 = scmp.ne.s32.totalorder %s53, %s56
      %p62 = scmp.eq.s32.totalorder %s17, 0
      %p63 = por %p61, %p62
      %p64 = scmp.ne.s32.totalorder %s53, %s56
      %p65 = scmp.eq.s32.totalorder %s22, 3
      %p66 = por %p64, %p65
      %p67 = scmp.ne.s32.totalorder %s56, %s57
      %p68 = scmp.eq.s32.totalorder %s22, 0
      %p69 = por %p67, %p68
      %p70 = scmp.ne.s32.totalorder %s56, %s57
      %p71 = scmp.eq.s32.totalorder %s23, 3
      %p72 = por %p70, %p71
      %p74 = scmp.ne.s32.totalorder %s57, %s73
      %p75 = scmp.eq.s32.totalorder %s23, 0
      %p76 = por %p74, %p75
      %s78 = sadd.s32 %s77, 1
      %p81 = scmp.eq.s32.totalorder %s17, 3
      %p82 = scmp.ne.s32.totalorder %s77, %s79
      %p83 = scmp.eq.s32.totalorder %s17, 0
      %p84 = por %p82, %p83
      %p85 = scmp.ne.s32.totalorder %s77, %s79
      %p86 = scmp.eq.s32.totalorder %s22, 3
      %p87 = por %p85, %p86
      %p88 = scmp.ne.s32.totalorder %s79, %s80
      %p89 = scmp.eq.s32.totalorder %s22, 0
      %p90 = por %p88, %p89
      %p91 = scmp.ne.s32.totalorder %s79, %s80
      %p92 = scmp.eq.s32.totalorder %s23, 3
      %p93 = por %p91, %p92
      %p95 = scmp.ne.s32.totalorder %s80, %s94
      %p96 = scmp.eq.s32.totalorder %s23, 0
      %p97 = por %p95, %p96
      %s99 = sadd.s32 %s98, 1
      %p102 = scmp.eq.s32.totalorder %s17, 3
      %p103 = scmp.ne.s32.totalorder %s98, %s100
      %p104 = scmp.eq.s32.totalorder %s17, 0
      %p105 = por %p103, %p104
      %p106 = scmp.ne.s32.totalorder %s98, %s100
      %p107 = scmp.eq.s32.totalorder %s22, 3
      %p108 = por %p106, %p107
      %p109 = scmp.ne.s32.totalorder %s100, %s101
      %p110 = scmp.eq.s32.totalorder %s22, 0
      %p111 = por %p109, %p110
      %p112 = scmp.ne.s32.totalorder %s100, %s101
      %p113 = scmp.eq.s32.totalorder %s23, 3
      %p114 = por %p112, %p113
      %p116 = scmp.ne.s32.totalorder %s101, %s115
      %p117 = scmp.eq.s32.totalorder %s23, 0
      %p118 = por %p116, %p117
      %s120 = sadd.s32 %s119, 1
      %p123 = scmp.eq.s32.totalorder %s17, 3
      %p124 = scmp.ne.s32.totalorder %s119, %s121
      %p125 = scmp.eq.s32.totalorder %s17, 0
      %p126 = por %p124, %p125
      %p127 = scmp.ne.s32.totalorder %s119, %s121
      %p128 = scmp.eq.s32.totalorder %s22, 3
      %p129 = por %p127, %p128
      %p130 = scmp.ne.s32.totalorder %s121, %s122
      %p131 = scmp.eq.s32.totalorder %s22, 0
      %p132 = por %p130, %p131
      %p133 = scmp.ne.s32.totalorder %s121, %s122
      %p134 = scmp.eq.s32.totalorder %s23, 3
      %p135 = por %p133, %p134
      %p137 = scmp.ne.s32.totalorder %s122, %s136
      %p138 = scmp.eq.s32.totalorder %s23, 0
      %p139 = por %p137, %p138
      %s141 = sadd.s32 %s140, 1
      %p144 = scmp.eq.s32.totalorder %s17, 3
      %p145 = scmp.ne.s32.totalorder %s140, %s142
      %p146 = scmp.eq.s32.totalorder %s17, 0
      %p147 = por %p145, %p146
      %p148 = scmp.ne.s32.totalorder %s140, %s142
      %p149 = scmp.eq.s32.totalorder %s22, 3
      %p150 = por %p148, %p149
      %p151 = scmp.ne.s32.totalorder %s142, %s143
      %p152 = scmp.eq.s32.totalorder %s22, 0
      %p153 = por %p151, %p152
      %p154 = scmp.ne.s32.totalorder %s142, %s143
      %p155 = scmp.eq.s32.totalorder %s23, 3
      %p156 = por %p154, %p155
      %p158 = scmp.ne.s32.totalorder %s143, %s157
      %p159 = scmp.eq.s32.totalorder %s23, 0
      %p160 = por %p158, %p159
      %s162 = sadd.s32 %s161, 1
      %p165 = scmp.eq.s32.totalorder %s17, 3
      %p166 = scmp.ne.s32.totalorder %s161, %s163
      %p167 = scmp.eq.s32.totalorder %s17, 0
      %p168 = por %p166, %p167
      %p169 = scmp.ne.s32.totalorder %s161, %s163
      %p170 = scmp.eq.s32.totalorder %s22, 3
      %p171 = por %p169, %p170
      %p172 = scmp.ne.s32.totalorder %s163, %s164
      %p173 = scmp.eq.s32.totalorder %s22, 0
      %p174 = por %p172, %p173
      %p175 = scmp.ne.s32.totalorder %s163, %s164
      %p176 = scmp.eq.s32.totalorder %s23, 3
      %p177 = por %p175, %p176
      %p179 = scmp.ne.s32.totalorder %s164, %s178
      %p180 = scmp.eq.s32.totalorder %s23, 0
      %p181 = por %p179, %p180
      %s183 = sadd.s32 %s182, 1
      %p186 = scmp.eq.s32.totalorder %s17, 3
      %p187 = scmp.ne.s32.totalorder %s182, %s184
      %p188 = scmp.eq.s32.totalorder %s17, 0
      %p189 = por %p187, %p188
      %p190 = scmp.ne.s32.totalorder %s182, %s184
      %p191 = scmp.eq.s32.totalorder %s22, 3
      %p192 = por %p190, %p191
      %p193 = scmp.ne.s32.totalorder %s184, %s185
      %p194 = scmp.eq.s32.totalorder %s22, 0
      %p195 = por %p193, %p194
      %p196 = scmp.ne.s32.totalorder %s184, %s185
      %p197 = scmp.eq.s32.totalorder %s23, 3
      %p198 = por %p196, %p197
      %p200 = scmp.ne.s32.totalorder %s185, %s199
      %p201 = scmp.eq.s32.totalorder %s23, 0
      %p202 = por %p200, %p201
      %s204 = sadd.s32 %s203, 1
      %p207 = scmp.eq.s32.totalorder %s17, 3
      %p208 = scmp.ne.s32.totalorder %s203, %s205
      %p209 = scmp.eq.s32.totalorder %s17, 0
      %p210 = por %p208, %p209
      %p211 = scmp.ne.s32.totalorder %s203, %s205
      %p212 = scmp.eq.s32.totalorder %s22, 3
      %p213 = por %p211, %p212
      %p214 = scmp.ne.s32.totalorder %s205, %s206
      %p215 = scmp.eq.s32.totalorder %s22, 0
      %p216 = por %p214, %p215
      %p217 = scmp.ne.s32.totalorder %s205, %s206
      %p218 = scmp.eq.s32.totalorder %s23, 3
      %p219 = por %p217, %p218
      %p221 = scmp.ne.s32.totalorder %s206, %s220
      %p222 = scmp.eq.s32.totalorder %s23, 0
      %p223 = por %p221, %p222
      %p224 = scmp.le.s32.totalorder 1, %s17
      %p225 = scmp.lt.s32.totalorder %s17, 5
      %p226 = pnand %p224, %p225
      %p227 = pneg %p226
      // Predicated region
      $region9: #{vae_forward.7} parent=5 // pred_check
        _
      $region10: #{vae_forward.7} parent=5 // pred_check_branch
        %229 = sbr.rel (%p226) target = $region12
      $region11: #{vae_forward.7} parent=5 // pred_region
        %s230 = ssub.s32 %s17, 1
        // Predicated region
        $region13: #{vae_forward.7} parent=11 // pred_check
          %p231 = pneg %p90
        $region14: #{vae_forward.7} parent=11 // pred_check_branch
          %233 = sbr.rel (%p231) target = $region16
        $region15: #{vae_forward.7} parent=11 // pred_region
          _
        $region16: #{vae_forward.7} parent=11 // pred_fallthru
          _
        // Predicated region
        $region17: #{vae_forward.7} parent=11 // pred_check
          %p234 = pneg %p111
        $region18: #{vae_forward.7} parent=11 // pred_check_branch
          %236 = sbr.rel (%p234) target = $region20
        $region19: #{vae_forward.7} parent=11 // pred_region
          _
        $region20: #{vae_forward.7} parent=11 // pred_fallthru
          _
        // Predicated region
        $region21: #{vae_forward.7} parent=11 // pred_check
          %p237 = pneg %p132
        $region22: #{vae_forward.7} parent=11 // pred_check_branch
          %239 = sbr.rel (%p237) target = $region24
        $region23: #{vae_forward.7} parent=11 // pred_region
          _
        $region24: #{vae_forward.7} parent=11 // pred_fallthru
          _
        // Predicated region
        $region25: #{vae_forward.7} parent=11 // pred_check
          %p240 = pneg %p153
        $region26: #{vae_forward.7} parent=11 // pred_check_branch
          %242 = sbr.rel (%p240) target = $region28
        $region27: #{vae_forward.7} parent=11 // pred_region
          _
        $region28: #{vae_forward.7} parent=11 // pred_fallthru
          _
      $region12: #{vae_forward.7} parent=5 // pred_fallthru
        _
      %p243 = scmp.lt.s32.totalorder %s17, 4
      // Predicated region
      $region29: #{vae_forward.7} parent=5 // pred_check
        %p244 = pneg %p243
      $region30: #{vae_forward.7} parent=5 // pred_check_branch
        %246 = sbr.rel (%p244) target = $region32
      $region31: #{vae_forward.7} parent=5 // pred_region
        // Predicated region
        $region33: #{vae_forward.7} parent=31 // pred_check
          %p247 = pneg %p37
        $region34: #{vae_forward.7} parent=31 // pred_check_branch
          %249 = sbr.rel (%p247) target = $region36
        $region35: #{vae_forward.7} parent=31 // pred_region
          %s250 = smul.u32 8, %s17
          %p251 = scmp.lt.s32.totalorder %s250, 31
          %s252 = scalar_select %p251, %s250, 31
          %s253 = scalar_lea.vmem %s0, %s252
          %s254 = smul.u32 8, %s17
        $region36: #{vae_forward.7} parent=31 // pred_fallthru
          _
        // Predicated region
        $region37: #{vae_forward.7} parent=31 // pred_check
          %p255 = pneg %p63
        $region38: #{vae_forward.7} parent=31 // pred_check_branch
          %257 = sbr.rel (%p255) target = $region40
        $region39: #{vae_forward.7} parent=31 // pred_region
          %s258 = smul.u32 128, %s17
          %p259 = scmp.lt.s32.totalorder %s258, 511
          %s260 = scalar_select %p259, %s258, 511
          %s261 = smul.addr %s260, 2
          %s262 = smul.addr %s261, 4
          %s263 = scalar_lea.vmem %s1, %s262
          %s264 = smul.u32 128, %s17
        $region40: #{vae_forward.7} parent=31 // pred_fallthru
          _
      $region32: #{vae_forward.7} parent=5 // pred_fallthru
        _
      %p265 = scmp.le.s32.totalorder 1, %s17
      %p266 = scmp.lt.s32.totalorder %s17, 5
      %p267 = pnand %p265, %p266
      %p268 = pneg %p267
      // Predicated region
      $region41: #{vae_forward.7} parent=5 // pred_check
        _
      $region42: #{vae_forward.7} parent=5 // pred_check_branch
        %270 = sbr.rel (%p267) target = $region44
      $region43: #{vae_forward.7} parent=5 // pred_region
        %s271 = ssub.s32 %s17, 1
        %s272 = smul.u32 8, %s22
        %p273 = scmp.lt.s32.totalorder %s272, 31
        %s274 = scalar_select %p273, %s272, 31
        %s275 = scalar_lea.vmem %s0, %s274
        %p276 = pneg %p43
        %p277 = pneg %p40
        %s278 = smul.u32 128, %s22
        %p279 = scmp.lt.s32.totalorder %s278, 511
        %s280 = scalar_select %p279, %s278, 511
        %s281 = smul.addr %s280, 2
        %s282 = smul.addr %s281, 4
        %s283 = scalar_lea.vmem %s1, %s282
        %p284 = pneg %p69
        %p285 = pneg %p66
        %p286 = pneg %p90
        %p287 = pneg %p87
        %p288 = pneg %p111
        %p289 = pneg %p108
        %p290 = pneg %p132
        %p291 = pneg %p129
        %p292 = pneg %p153
        %p293 = pneg %p150
        %p294 = pneg %p174
        %p295 = pneg %p171
        %p296 = pneg %p195
        %p297 = pneg %p192
        %p298 = pneg %p216
        %p299 = pneg %p213
        %s300 = smul.u32 8, %s22
        %p301 = scmp.lt.s32.totalorder %s300, 31
        %s302 = scalar_select %p301, %s300, 31
        %s303 = scalar_lea.vmem %s0, %s302
        %s304 = smul.u32 8, %s22
        %s305 = smul.u32 128, %s22
        %p306 = scmp.lt.s32.totalorder %s305, 511
        %s307 = scalar_select %p306, %s305, 511
        %s308 = smul.addr %s307, 2
        %s309 = smul.addr %s308, 4
        %s310 = scalar_lea.vmem %s1, %s309
        %s311 = smul.u32 128, %s22
        %p312 = scmp.eq.s32.totalorder %s22, 0
        // Predicated region
        $region45: #{vae_forward.7} parent=43 // pred_check
          %p313 = pneg %p312
        $region46: #{vae_forward.7} parent=43 // pred_check_branch
          %315 = sbr.rel (%p313) target = $region48
        $region47: #{vae_forward.7} parent=43 // pred_region
          %316 = vst [vmem:[#allocation2] sm:$0xf] 0.0
        $region48: #{vae_forward.7} parent=43 // pred_fallthru
          _
        %v317 = vld [vmem:[#allocation2] sm:$0xf]
        %v318 = vld [vmem:[%s303] sm:$0xff]
        %v319 = vld [vmem:[%s310] sm:$0xff]
        %v320 = vld [vmem:[%s310 + $0x8] sm:$0xff]
        %v321 = vld [vmem:[%s310 + $0x10] sm:$0xff]
        %v322 = vld [vmem:[%s310 + $0x18] sm:$0xff]
        %v323 = vld [vmem:[%s310 + $0x20] sm:$0xff]
        %v324 = vld [vmem:[%s310 + $0x28] sm:$0xff]
        %v325 = vld [vmem:[%s310 + $0x30] sm:$0xff]
        %v326 = vld [vmem:[%s310 + $0x38] sm:$0xff]
        %v327 = vld [vmem:[%s310 + $0x40] sm:$0xff]
        %v328 = vld [vmem:[%s310 + $0x48] sm:$0xff]
        %v329 = vld [vmem:[%s310 + $0x50] sm:$0xff]
        %v330 = vld [vmem:[%s310 + $0x58] sm:$0xff]
        %v331 = vld [vmem:[%s310 + $0x60] sm:$0xff]
        %v332 = vld [vmem:[%s310 + $0x68] sm:$0xff]
        %v333 = vld [vmem:[%s310 + $0x70] sm:$0xff]
        %v334 = vld [vmem:[%s310 + $0x78] sm:$0xff]
        %v335 = vld [vmem:[%s310 + $0x80] sm:$0xff]
        %v336 = vld [vmem:[%s310 + $0x88] sm:$0xff]
        %v337 = vld [vmem:[%s310 + $0x90] sm:$0xff]
        %v338 = vld [vmem:[%s310 + $0x98] sm:$0xff]
        %v339 = vld [vmem:[%s310 + $0xa0] sm:$0xff]
        %v340 = vld [vmem:[%s310 + $0xa8] sm:$0xff]
        %v341 = vld [vmem:[%s310 + $0xb0] sm:$0xff]
        %v342 = vld [vmem:[%s310 + $0xb8] sm:$0xff]
        %v343 = vld [vmem:[%s310 + $0xc0] sm:$0xff]
        %v344 = vld [vmem:[%s310 + $0xc8] sm:$0xff]
        %v345 = vld [vmem:[%s310 + $0xd0] sm:$0xff]
        %v346 = vld [vmem:[%s310 + $0xd8] sm:$0xff]
        %v347 = vld [vmem:[%s310 + $0xe0] sm:$0xff]
        %v348 = vld [vmem:[%s310 + $0xe8] sm:$0xff]
        %v349 = vld [vmem:[%s310 + $0xf0] sm:$0xff]
        %v350 = vld [vmem:[%s310 + $0xf8] sm:$0xff]
        %v351 = vld [vmem:[%s310 + $0x100] sm:$0xff]
        %v352 = vld [vmem:[%s310 + $0x108] sm:$0xff]
        %v353 = vld [vmem:[%s310 + $0x110] sm:$0xff]
        %v354 = vld [vmem:[%s310 + $0x118] sm:$0xff]
        %v355 = vld [vmem:[%s310 + $0x120] sm:$0xff]
        %v356 = vld [vmem:[%s310 + $0x128] sm:$0xff]
        %v357 = vld [vmem:[%s310 + $0x130] sm:$0xff]
        %v358 = vld [vmem:[%s310 + $0x138] sm:$0xff]
        %v359 = vld [vmem:[%s310 + $0x140] sm:$0xff]
        %v360 = vld [vmem:[%s310 + $0x148] sm:$0xff]
        %v361 = vld [vmem:[%s310 + $0x150] sm:$0xff]
        %v362 = vld [vmem:[%s310 + $0x158] sm:$0xff]
        %v363 = vld [vmem:[%s310 + $0x160] sm:$0xff]
        %v364 = vld [vmem:[%s310 + $0x168] sm:$0xff]
        %v365 = vld [vmem:[%s310 + $0x170] sm:$0xff]
        %v366 = vld [vmem:[%s310 + $0x178] sm:$0xff]
        %v367 = vld [vmem:[%s310 + $0x180] sm:$0xff]
        %v368 = vld [vmem:[%s310 + $0x188] sm:$0xff]
        %v369 = vld [vmem:[%s310 + $0x190] sm:$0xff]
        %v370 = vld [vmem:[%s310 + $0x198] sm:$0xff]
        %v371 = vld [vmem:[%s310 + $0x1a0] sm:$0xff]
        %v372 = vld [vmem:[%s310 + $0x1a8] sm:$0xff]
        %v373 = vld [vmem:[%s310 + $0x1b0] sm:$0xff]
        %v374 = vld [vmem:[%s310 + $0x1b8] sm:$0xff]
        %v375 = vld [vmem:[%s310 + $0x1c0] sm:$0xff]
        %v376 = vld [vmem:[%s310 + $0x1c8] sm:$0xff]
        %v377 = vld [vmem:[%s310 + $0x1d0] sm:$0xff]
        %v378 = vld [vmem:[%s310 + $0x1d8] sm:$0xff]
        %v379 = vld [vmem:[%s310 + $0x1e0] sm:$0xff]
        %v380 = vld [vmem:[%s310 + $0x1e8] sm:$0xff]
        %v381 = vld [vmem:[%s310 + $0x1f0] sm:$0xff]
        %v382 = vld [vmem:[%s310 + $0x1f8] sm:$0xff]
        %v383 = vld [vmem:[%s310 + $0x200] sm:$0xff]
        %v384 = vld [vmem:[%s310 + $0x208] sm:$0xff]
        %v385 = vld [vmem:[%s310 + $0x210] sm:$0xff]
        %v386 = vld [vmem:[%s310 + $0x218] sm:$0xff]
        %v387 = vld [vmem:[%s310 + $0x220] sm:$0xff]
        %v388 = vld [vmem:[%s310 + $0x228] sm:$0xff]
        %v389 = vld [vmem:[%s310 + $0x230] sm:$0xff]
        %v390 = vld [vmem:[%s310 + $0x238] sm:$0xff]
        %v391 = vld [vmem:[%s310 + $0x240] sm:$0xff]
        %v392 = vld [vmem:[%s310 + $0x248] sm:$0xff]
        %v393 = vld [vmem:[%s310 + $0x250] sm:$0xff]
        %v394 = vld [vmem:[%s310 + $0x258] sm:$0xff]
        %v395 = vld [vmem:[%s310 + $0x260] sm:$0xff]
        %v396 = vld [vmem:[%s310 + $0x268] sm:$0xff]
        %v397 = vld [vmem:[%s310 + $0x270] sm:$0xff]
        %v398 = vld [vmem:[%s310 + $0x278] sm:$0xff]
        %v399 = vld [vmem:[%s310 + $0x280] sm:$0xff]
        %v400 = vld [vmem:[%s310 + $0x288] sm:$0xff]
        %v401 = vld [vmem:[%s310 + $0x290] sm:$0xff]
        %v402 = vld [vmem:[%s310 + $0x298] sm:$0xff]
        %v403 = vld [vmem:[%s310 + $0x2a0] sm:$0xff]
        %v404 = vld [vmem:[%s310 + $0x2a8] sm:$0xff]
        %v405 = vld [vmem:[%s310 + $0x2b0] sm:$0xff]
        %v406 = vld [vmem:[%s310 + $0x2b8] sm:$0xff]
        %v407 = vld [vmem:[%s310 + $0x2c0] sm:$0xff]
        %v408 = vld [vmem:[%s310 + $0x2c8] sm:$0xff]
        %v409 = vld [vmem:[%s310 + $0x2d0] sm:$0xff]
        %v410 = vld [vmem:[%s310 + $0x2d8] sm:$0xff]
        %v411 = vld [vmem:[%s310 + $0x2e0] sm:$0xff]
        %v412 = vld [vmem:[%s310 + $0x2e8] sm:$0xff]
        %v413 = vld [vmem:[%s310 + $0x2f0] sm:$0xff]
        %v414 = vld [vmem:[%s310 + $0x2f8] sm:$0xff]
        %v415 = vld [vmem:[%s310 + $0x300] sm:$0xff]
        %v416 = vld [vmem:[%s310 + $0x308] sm:$0xff]
        %v417 = vld [vmem:[%s310 + $0x310] sm:$0xff]
        %v418 = vld [vmem:[%s310 + $0x318] sm:$0xff]
        %v419 = vld [vmem:[%s310 + $0x320] sm:$0xff]
        %v420 = vld [vmem:[%s310 + $0x328] sm:$0xff]
        %v421 = vld [vmem:[%s310 + $0x330] sm:$0xff]
        %v422 = vld [vmem:[%s310 + $0x338] sm:$0xff]
        %v423 = vld [vmem:[%s310 + $0x340] sm:$0xff]
        %v424 = vld [vmem:[%s310 + $0x348] sm:$0xff]
        %v425 = vld [vmem:[%s310 + $0x350] sm:$0xff]
        %v426 = vld [vmem:[%s310 + $0x358] sm:$0xff]
        %v427 = vld [vmem:[%s310 + $0x360] sm:$0xff]
        %v428 = vld [vmem:[%s310 + $0x368] sm:$0xff]
        %v429 = vld [vmem:[%s310 + $0x370] sm:$0xff]
        %v430 = vld [vmem:[%s310 + $0x378] sm:$0xff]
        %v431 = vld [vmem:[%s310 + $0x380] sm:$0xff]
        %v432 = vld [vmem:[%s310 + $0x388] sm:$0xff]
        %v433 = vld [vmem:[%s310 + $0x390] sm:$0xff]
        %v434 = vld [vmem:[%s310 + $0x398] sm:$0xff]
        %v435 = vld [vmem:[%s310 + $0x3a0] sm:$0xff]
        %v436 = vld [vmem:[%s310 + $0x3a8] sm:$0xff]
        %v437 = vld [vmem:[%s310 + $0x3b0] sm:$0xff]
        %v438 = vld [vmem:[%s310 + $0x3b8] sm:$0xff]
        %v439 = vld [vmem:[%s310 + $0x3c0] sm:$0xff]
        %v440 = vld [vmem:[%s310 + $0x3c8] sm:$0xff]
        %v441 = vld [vmem:[%s310 + $0x3d0] sm:$0xff]
        %v442 = vld [vmem:[%s310 + $0x3d8] sm:$0xff]
        %v443 = vld [vmem:[%s310 + $0x3e0] sm:$0xff]
        %v444 = vld [vmem:[%s310 + $0x3e8] sm:$0xff]
        %v445 = vld [vmem:[%s310 + $0x3f0] sm:$0xff]
        %v446 = vld [vmem:[%s310 + $0x3f8] sm:$0xff]
        %448 = vst [vmem:[#allocation1] ss:$9 sm:$0xff] %v318
        %v449 = vld [vmem:[#allocation1] sm:$0xff]
        %v450 = vld [vmem:[#allocation1 + $0x9] sm:$0xff]
        %v451 = vld [vmem:[#allocation1 + $0x12] sm:$0xff]
        %v452 = vld [vmem:[#allocation1 + $0x1b] sm:$0xff]
        %v453 = vld [vmem:[#allocation1 + $0x24] sm:$0xff]
        %v454 = vld [vmem:[#allocation1 + $0x2d] sm:$0xff]
        %v455 = vld [vmem:[#allocation1 + $0x36] sm:$0xff]
        %v456 = vld [vmem:[#allocation1 + $0x3f] sm:$0xff]
        %v593 = vunpack.c.l.b16 %v319
        %v594 = vunpack.c.h.b16 %v319
        %v595 = vunpack.c.l.b16 %v320
        %v596 = vunpack.c.h.b16 %v320
        %v597 = vunpack.c.l.b16 %v321
        %v598 = vunpack.c.h.b16 %v321
        %v599 = vunpack.c.l.b16 %v322
        %v600 = vunpack.c.h.b16 %v322
        %v601 = vunpack.c.l.b16 %v323
        %v602 = vunpack.c.h.b16 %v323
        %v603 = vunpack.c.l.b16 %v324
        %v604 = vunpack.c.h.b16 %v324
        %v605 = vunpack.c.l.b16 %v325
        %v606 = vunpack.c.h.b16 %v325
        %v607 = vunpack.c.l.b16 %v326
        %v608 = vunpack.c.h.b16 %v326
        %v609 = vunpack.c.l.b16 %v327
        %v610 = vunpack.c.h.b16 %v327
        %v611 = vunpack.c.l.b16 %v328
        %v612 = vunpack.c.h.b16 %v328
        %v613 = vunpack.c.l.b16 %v329
        %v614 = vunpack.c.h.b16 %v329
        %v615 = vunpack.c.l.b16 %v330
        %v616 = vunpack.c.h.b16 %v330
        %v617 = vunpack.c.l.b16 %v331
        %v618 = vunpack.c.h.b16 %v331
        %v619 = vunpack.c.l.b16 %v332
        %v620 = vunpack.c.h.b16 %v332
        %v621 = vunpack.c.l.b16 %v333
        %v622 = vunpack.c.h.b16 %v333
        %v623 = vunpack.c.l.b16 %v334
        %v624 = vunpack.c.h.b16 %v334
        %v625 = vunpack.c.l.b16 %v335
        %v626 = vunpack.c.h.b16 %v335
        %v627 = vunpack.c.l.b16 %v336
        %v628 = vunpack.c.h.b16 %v336
        %v629 = vunpack.c.l.b16 %v337
        %v630 = vunpack.c.h.b16 %v337
        %v631 = vunpack.c.l.b16 %v338
        %v632 = vunpack.c.h.b16 %v338
        %v633 = vunpack.c.l.b16 %v339
        %v634 = vunpack.c.h.b16 %v339
        %v635 = vunpack.c.l.b16 %v340
        %v636 = vunpack.c.h.b16 %v340
        %v637 = vunpack.c.l.b16 %v341
        %v638 = vunpack.c.h.b16 %v341
        %v639 = vunpack.c.l.b16 %v342
        %v640 = vunpack.c.h.b16 %v342
        %v641 = vunpack.c.l.b16 %v343
        %v642 = vunpack.c.h.b16 %v343
        %v643 = vunpack.c.l.b16 %v344
        %v644 = vunpack.c.h.b16 %v344
        %v645 = vunpack.c.l.b16 %v345
        %v646 = vunpack.c.h.b16 %v345
        %v647 = vunpack.c.l.b16 %v346
        %v648 = vunpack.c.h.b16 %v346
        %v649 = vunpack.c.l.b16 %v347
        %v650 = vunpack.c.h.b16 %v347
        %v651 = vunpack.c.l.b16 %v348
        %v652 = vunpack.c.h.b16 %v348
        %v653 = vunpack.c.l.b16 %v349
        %v654 = vunpack.c.h.b16 %v349
        %v655 = vunpack.c.l.b16 %v350
        %v656 = vunpack.c.h.b16 %v350
        %v657 = vunpack.c.l.b16 %v351
        %v658 = vunpack.c.h.b16 %v351
        %v659 = vunpack.c.l.b16 %v352
        %v660 = vunpack.c.h.b16 %v352
        %v661 = vunpack.c.l.b16 %v353
        %v662 = vunpack.c.h.b16 %v353
        %v663 = vunpack.c.l.b16 %v354
        %v664 = vunpack.c.h.b16 %v354
        %v665 = vunpack.c.l.b16 %v355
        %v666 = vunpack.c.h.b16 %v355
        %v667 = vunpack.c.l.b16 %v356
        %v668 = vunpack.c.h.b16 %v356
        %v669 = vunpack.c.l.b16 %v357
        %v670 = vunpack.c.h.b16 %v357
        %v671 = vunpack.c.l.b16 %v358
        %v672 = vunpack.c.h.b16 %v358
        %v673 = vunpack.c.l.b16 %v359
        %v674 = vunpack.c.h.b16 %v359
        %v675 = vunpack.c.l.b16 %v360
        %v676 = vunpack.c.h.b16 %v360
        %v677 = vunpack.c.l.b16 %v361
        %v678 = vunpack.c.h.b16 %v361
        %v679 = vunpack.c.l.b16 %v362
        %v680 = vunpack.c.h.b16 %v362
        %v681 = vunpack.c.l.b16 %v363
        %v682 = vunpack.c.h.b16 %v363
        %v683 = vunpack.c.l.b16 %v364
        %v684 = vunpack.c.h.b16 %v364
        %v685 = vunpack.c.l.b16 %v365
        %v686 = vunpack.c.h.b16 %v365
        %v687 = vunpack.c.l.b16 %v366
        %v688 = vunpack.c.h.b16 %v366
        %v689 = vunpack.c.l.b16 %v367
        %v690 = vunpack.c.h.b16 %v367
        %v691 = vunpack.c.l.b16 %v368
        %v692 = vunpack.c.h.b16 %v368
        %v693 = vunpack.c.l.b16 %v369
        %v694 = vunpack.c.h.b16 %v369
        %v695 = vunpack.c.l.b16 %v370
        %v696 = vunpack.c.h.b16 %v370
        %v697 = vunpack.c.l.b16 %v371
        %v698 = vunpack.c.h.b16 %v371
        %v699 = vunpack.c.l.b16 %v372
        %v700 = vunpack.c.h.b16 %v372
        %v701 = vunpack.c.l.b16 %v373
        %v702 = vunpack.c.h.b16 %v373
        %v703 = vunpack.c.l.b16 %v374
        %v704 = vunpack.c.h.b16 %v374
        %v705 = vunpack.c.l.b16 %v375
        %v706 = vunpack.c.h.b16 %v375
        %v707 = vunpack.c.l.b16 %v376
        %v708 = vunpack.c.h.b16 %v376
        %v709 = vunpack.c.l.b16 %v377
        %v710 = vunpack.c.h.b16 %v377
        %v711 = vunpack.c.l.b16 %v378
        %v712 = vunpack.c.h.b16 %v378
        %v713 = vunpack.c.l.b16 %v379
        %v714 = vunpack.c.h.b16 %v379
        %v715 = vunpack.c.l.b16 %v380
        %v716 = vunpack.c.h.b16 %v380
        %v717 = vunpack.c.l.b16 %v381
        %v718 = vunpack.c.h.b16 %v381
        %v719 = vunpack.c.l.b16 %v382
        %v720 = vunpack.c.h.b16 %v382
        %v721 = vunpack.c.l.b16 %v383
        %v722 = vunpack.c.h.b16 %v383
        %v723 = vunpack.c.l.b16 %v384
        %v724 = vunpack.c.h.b16 %v384
        %v725 = vunpack.c.l.b16 %v385
        %v726 = vunpack.c.h.b16 %v385
        %v727 = vunpack.c.l.b16 %v386
        %v728 = vunpack.c.h.b16 %v386
        %v729 = vunpack.c.l.b16 %v387
        %v730 = vunpack.c.h.b16 %v387
        %v731 = vunpack.c.l.b16 %v388
        %v732 = vunpack.c.h.b16 %v388
        %v733 = vunpack.c.l.b16 %v389
        %v734 = vunpack.c.h.b16 %v389
        %v735 = vunpack.c.l.b16 %v390
        %v736 = vunpack.c.h.b16 %v390
        %v737 = vunpack.c.l.b16 %v391
        %v738 = vunpack.c.h.b16 %v391
        %v739 = vunpack.c.l.b16 %v392
        %v740 = vunpack.c.h.b16 %v392
        %v741 = vunpack.c.l.b16 %v393
        %v742 = vunpack.c.h.b16 %v393
        %v743 = vunpack.c.l.b16 %v394
        %v744 = vunpack.c.h.b16 %v394
        %v745 = vunpack.c.l.b16 %v395
        %v746 = vunpack.c.h.b16 %v395
        %v747 = vunpack.c.l.b16 %v396
        %v748 = vunpack.c.h.b16 %v396
        %v749 = vunpack.c.l.b16 %v397
        %v750 = vunpack.c.h.b16 %v397
        %v751 = vunpack.c.l.b16 %v398
        %v752 = vunpack.c.h.b16 %v398
        %v753 = vunpack.c.l.b16 %v399
        %v754 = vunpack.c.h.b16 %v399
        %v755 = vunpack.c.l.b16 %v400
        %v756 = vunpack.c.h.b16 %v400
        %v757 = vunpack.c.l.b16 %v401
        %v758 = vunpack.c.h.b16 %v401
        %v759 = vunpack.c.l.b16 %v402
        %v760 = vunpack.c.h.b16 %v402
        %v761 = vunpack.c.l.b16 %v403
        %v762 = vunpack.c.h.b16 %v403
        %v763 = vunpack.c.l.b16 %v404
        %v764 = vunpack.c.h.b16 %v404
        %v765 = vunpack.c.l.b16 %v405
        %v766 = vunpack.c.h.b16 %v405
        %v767 = vunpack.c.l.b16 %v406
        %v768 = vunpack.c.h.b16 %v406
        %v769 = vunpack.c.l.b16 %v407
        %v770 = vunpack.c.h.b16 %v407
        %v771 = vunpack.c.l.b16 %v408
        %v772 = vunpack.c.h.b16 %v408
        %v773 = vunpack.c.l.b16 %v409
        %v774 = vunpack.c.h.b16 %v409
        %v775 = vunpack.c.l.b16 %v410
        %v776 = vunpack.c.h.b16 %v410
        %v777 = vunpack.c.l.b16 %v411
        %v778 = vunpack.c.h.b16 %v411
        %v779 = vunpack.c.l.b16 %v412
        %v780 = vunpack.c.h.b16 %v412
        %v781 = vunpack.c.l.b16 %v413
        %v782 = vunpack.c.h.b16 %v413
        %v783 = vunpack.c.l.b16 %v414
        %v784 = vunpack.c.h.b16 %v414
        %v785 = vunpack.c.l.b16 %v415
        %v786 = vunpack.c.h.b16 %v415
        %v787 = vunpack.c.l.b16 %v416
        %v788 = vunpack.c.h.b16 %v416
        %v789 = vunpack.c.l.b16 %v417
        %v790 = vunpack.c.h.b16 %v417
        %v791 = vunpack.c.l.b16 %v418
        %v792 = vunpack.c.h.b16 %v418
        %v793 = vunpack.c.l.b16 %v419
        %v794 = vunpack.c.h.b16 %v419
        %v795 = vunpack.c.l.b16 %v420
        %v796 = vunpack.c.h.b16 %v420
        %v797 = vunpack.c.l.b16 %v421
        %v798 = vunpack.c.h.b16 %v421
        %v799 = vunpack.c.l.b16 %v422
        %v800 = vunpack.c.h.b16 %v422
        %v801 = vunpack.c.l.b16 %v423
        %v802 = vunpack.c.h.b16 %v423
        %v803 = vunpack.c.l.b16 %v424
        %v804 = vunpack.c.h.b16 %v424
        %v805 = vunpack.c.l.b16 %v425
        %v806 = vunpack.c.h.b16 %v425
        %v807 = vunpack.c.l.b16 %v426
        %v808 = vunpack.c.h.b16 %v426
        %v809 = vunpack.c.l.b16 %v427
        %v810 = vunpack.c.h.b16 %v427
        %v811 = vunpack.c.l.b16 %v428
        %v812 = vunpack.c.h.b16 %v428
        %v813 = vunpack.c.l.b16 %v429
        %v814 = vunpack.c.h.b16 %v429
        %v815 = vunpack.c.l.b16 %v430
        %v816 = vunpack.c.h.b16 %v430
        %v817 = vunpack.c.l.b16 %v431
        %v818 = vunpack.c.h.b16 %v431
        %v819 = vunpack.c.l.b16 %v432
        %v820 = vunpack.c.h.b16 %v432
        %v821 = vunpack.c.l.b16 %v433
        %v822 = vunpack.c.h.b16 %v433
        %v823 = vunpack.c.l.b16 %v434
        %v824 = vunpack.c.h.b16 %v434
        %v825 = vunpack.c.l.b16 %v435
        %v826 = vunpack.c.h.b16 %v435
        %v827 = vunpack.c.l.b16 %v436
        %v828 = vunpack.c.h.b16 %v436
        %v829 = vunpack.c.l.b16 %v437
        %v830 = vunpack.c.h.b16 %v437
        %v831 = vunpack.c.l.b16 %v438
        %v832 = vunpack.c.h.b16 %v438
        %v833 = vunpack.c.l.b16 %v439
        %v834 = vunpack.c.h.b16 %v439
        %v835 = vunpack.c.l.b16 %v440
        %v836 = vunpack.c.h.b16 %v440
        %v837 = vunpack.c.l.b16 %v441
        %v838 = vunpack.c.h.b16 %v441
        %v839 = vunpack.c.l.b16 %v442
        %v840 = vunpack.c.h.b16 %v442
        %v841 = vunpack.c.l.b16 %v443
        %v842 = vunpack.c.h.b16 %v443
        %v843 = vunpack.c.l.b16 %v444
        %v844 = vunpack.c.h.b16 %v444
        %v845 = vunpack.c.l.b16 %v445
        %v846 = vunpack.c.h.b16 %v445
        %v847 = vunpack.c.l.b16 %v446
        %v848 = vunpack.c.h.b16 %v446
        %v849 = vpack.c.b16 %v595, %v593
        %v850 = vpack.c.b16 %v596, %v594
        %v851 = vpack.c.b16 %v599, %v597
        %v852 = vpack.c.b16 %v600, %v598
        %v853 = vpack.c.b16 %v603, %v601
        %v854 = vpack.c.b16 %v604, %v602
        %v855 = vpack.c.b16 %v607, %v605
        %v856 = vpack.c.b16 %v608, %v606
        %v857 = vpack.c.b16 %v611, %v609
        %v858 = vpack.c.b16 %v612, %v610
        %v859 = vpack.c.b16 %v615, %v613
        %v860 = vpack.c.b16 %v616, %v614
        %v861 = vpack.c.b16 %v619, %v617
        %v862 = vpack.c.b16 %v620, %v618
        %v863 = vpack.c.b16 %v623, %v621
        %v864 = vpack.c.b16 %v624, %v622
        %v865 = vpack.c.b16 %v627, %v625
        %v866 = vpack.c.b16 %v628, %v626
        %v867 = vpack.c.b16 %v631, %v629
        %v868 = vpack.c.b16 %v632, %v630
        %v869 = vpack.c.b16 %v635, %v633
        %v870 = vpack.c.b16 %v636, %v634
        %v871 = vpack.c.b16 %v639, %v637
        %v872 = vpack.c.b16 %v640, %v638
        %v873 = vpack.c.b16 %v643, %v641
        %v874 = vpack.c.b16 %v644, %v642
        %v875 = vpack.c.b16 %v647, %v645
        %v876 = vpack.c.b16 %v648, %v646
        %v877 = vpack.c.b16 %v651, %v649
        %v878 = vpack.c.b16 %v652, %v650
        %v879 = vpack.c.b16 %v655, %v653
        %v880 = vpack.c.b16 %v656, %v654
        %v881 = vpack.c.b16 %v659, %v657
        %v882 = vpack.c.b16 %v660, %v658
        %v883 = vpack.c.b16 %v663, %v661
        %v884 = vpack.c.b16 %v664, %v662
        %v885 = vpack.c.b16 %v667, %v665
        %v886 = vpack.c.b16 %v668, %v666
        %v887 = vpack.c.b16 %v671, %v669
        %v888 = vpack.c.b16 %v672, %v670
        %v889 = vpack.c.b16 %v675, %v673
        %v890 = vpack.c.b16 %v676, %v674
        %v891 = vpack.c.b16 %v679, %v677
        %v892 = vpack.c.b16 %v680, %v678
        %v893 = vpack.c.b16 %v683, %v681
        %v894 = vpack.c.b16 %v684, %v682
        %v895 = vpack.c.b16 %v687, %v685
        %v896 = vpack.c.b16 %v688, %v686
        %v897 = vpack.c.b16 %v691, %v689
        %v898 = vpack.c.b16 %v692, %v690
        %v899 = vpack.c.b16 %v695, %v693
        %v900 = vpack.c.b16 %v696, %v694
        %v901 = vpack.c.b16 %v699, %v697
        %v902 = vpack.c.b16 %v700, %v698
        %v903 = vpack.c.b16 %v703, %v701
        %v904 = vpack.c.b16 %v704, %v702
        %v905 = vpack.c.b16 %v707, %v705
        %v906 = vpack.c.b16 %v708, %v706
        %v907 = vpack.c.b16 %v711, %v709
        %v908 = vpack.c.b16 %v712, %v710
        %v909 = vpack.c.b16 %v715, %v713
        %v910 = vpack.c.b16 %v716, %v714
        %v911 = vpack.c.b16 %v719, %v717
        %v912 = vpack.c.b16 %v720, %v718
        %v913 = vpack.c.b16 %v723, %v721
        %v914 = vpack.c.b16 %v724, %v722
        %v915 = vpack.c.b16 %v727, %v725
        %v916 = vpack.c.b16 %v728, %v726
        %v917 = vpack.c.b16 %v731, %v729
        %v918 = vpack.c.b16 %v732, %v730
        %v919 = vpack.c.b16 %v735, %v733
        %v920 = vpack.c.b16 %v736, %v734
        %v921 = vpack.c.b16 %v739, %v737
        %v922 = vpack.c.b16 %v740, %v738
        %v923 = vpack.c.b16 %v743, %v741
        %v924 = vpack.c.b16 %v744, %v742
        %v925 = vpack.c.b16 %v747, %v745
        %v926 = vpack.c.b16 %v748, %v746
        %v927 = vpack.c.b16 %v751, %v749
        %v928 = vpack.c.b16 %v752, %v750
        %v929 = vpack.c.b16 %v755, %v753
        %v930 = vpack.c.b16 %v756, %v754
        %v931 = vpack.c.b16 %v759, %v757
        %v932 = vpack.c.b16 %v760, %v758
        %v933 = vpack.c.b16 %v763, %v761
        %v934 = vpack.c.b16 %v764, %v762
        %v935 = vpack.c.b16 %v767, %v765
        %v936 = vpack.c.b16 %v768, %v766
        %v937 = vpack.c.b16 %v771, %v769
        %v938 = vpack.c.b16 %v772, %v770
        %v939 = vpack.c.b16 %v775, %v773
        %v940 = vpack.c.b16 %v776, %v774
        %v941 = vpack.c.b16 %v779, %v777
        %v942 = vpack.c.b16 %v780, %v778
        %v943 = vpack.c.b16 %v783, %v781
        %v944 = vpack.c.b16 %v784, %v782
        %v945 = vpack.c.b16 %v787, %v785
        %v946 = vpack.c.b16 %v788, %v786
        %v947 = vpack.c.b16 %v791, %v789
        %v948 = vpack.c.b16 %v792, %v790
        %v949 = vpack.c.b16 %v795, %v793
        %v950 = vpack.c.b16 %v796, %v794
        %v951 = vpack.c.b16 %v799, %v797
        %v952 = vpack.c.b16 %v800, %v798
        %v953 = vpack.c.b16 %v803, %v801
        %v954 = vpack.c.b16 %v804, %v802
        %v955 = vpack.c.b16 %v807, %v805
        %v956 = vpack.c.b16 %v808, %v806
        %v957 = vpack.c.b16 %v811, %v809
        %v958 = vpack.c.b16 %v812, %v810
        %v959 = vpack.c.b16 %v815, %v813
        %v960 = vpack.c.b16 %v816, %v814
        %v961 = vpack.c.b16 %v819, %v817
        %v962 = vpack.c.b16 %v820, %v818
        %v963 = vpack.c.b16 %v823, %v821
        %v964 = vpack.c.b16 %v824, %v822
        %v965 = vpack.c.b16 %v827, %v825
        %v966 = vpack.c.b16 %v828, %v826
        %v967 = vpack.c.b16 %v831, %v829
        %v968 = vpack.c.b16 %v832, %v830
        %v969 = vpack.c.b16 %v835, %v833
        %v970 = vpack.c.b16 %v836, %v834
        %v971 = vpack.c.b16 %v839, %v837
        %v972 = vpack.c.b16 %v840, %v838
        %v973 = vpack.c.b16 %v843, %v841
        %v974 = vpack.c.b16 %v844, %v842
        %v975 = vpack.c.b16 %v847, %v845
        %v976 = vpack.c.b16 %v848, %v846
        %1105 = vmatpush.bf16.msra.mxu0 %v863
        %1106 = vmatpush.bf16.msra.mxu0 %v861
        %1107 = vmatpush.bf16.msra.mxu0 %v859
        %1108 = vmatpush.bf16.msra.mxu0 %v857
        %1109 = vmatpush.bf16.msra.mxu0 %v855
        %1110 = vmatpush.bf16.msra.mxu0 %v853
        %1111 = vmatpush.bf16.msra.mxu0 %v851
        %1112 = vmatpush.bf16.msra.mxu0 %v849
        %1113 = vmatmul.bf16.gmra.mxu0 %v449
        %v1114 = vpop.f32.mrf.mxu0
        %v1115 = vadd.f32 0.0, %v1114
        %v1116 = vpop.f32.mrf.mxu0
        %1117 = vdwg.mxu0
        %1118 = vmatpush.bf16.msra.mxu0 %v879
        %1119 = vmatpush.bf16.msra.mxu0 %v877
        %1120 = vmatpush.bf16.msra.mxu0 %v875
        %1121 = vmatpush.bf16.msra.mxu0 %v873
        %1122 = vmatpush.bf16.msra.mxu0 %v871
        %1123 = vmatpush.bf16.msra.mxu0 %v869
        %1124 = vmatpush.bf16.msra.mxu0 %v867
        %1125 = vmatpush.bf16.msra.mxu0 %v865
        %1126 = vmatmul.bf16.gmra.mxu0 %v450
        %v1127 = vpop.f32.mrf.mxu0
        %v1128 = vadd.f32 %v1115, %v1127
        %v1129 = vpop.f32.mrf.mxu0
        %1130 = vdwg.mxu0
        %1131 = vmatpush.bf16.msra.mxu0 %v895
        %1132 = vmatpush.bf16.msra.mxu0 %v893
        %1133 = vmatpush.bf16.msra.mxu0 %v891
        %1134 = vmatpush.bf16.msra.mxu0 %v889
        %1135 = vmatpush.bf16.msra.mxu0 %v887
        %1136 = vmatpush.bf16.msra.mxu0 %v885
        %1137 = vmatpush.bf16.msra.mxu0 %v883
        %1138 = vmatpush.bf16.msra.mxu0 %v881
        %1139 = vmatmul.bf16.gmra.mxu0 %v451
        %v1140 = vpop.f32.mrf.mxu0
        %v1141 = vadd.f32 %v1128, %v1140
        %v1142 = vpop.f32.mrf.mxu0
        %1143 = vdwg.mxu0
        %1144 = vmatpush.bf16.msra.mxu0 %v911
        %1145 = vmatpush.bf16.msra.mxu0 %v909
        %1146 = vmatpush.bf16.msra.mxu0 %v907
        %1147 = vmatpush.bf16.msra.mxu0 %v905
        %1148 = vmatpush.bf16.msra.mxu0 %v903
        %1149 = vmatpush.bf16.msra.mxu0 %v901
        %1150 = vmatpush.bf16.msra.mxu0 %v899
        %1151 = vmatpush.bf16.msra.mxu0 %v897
        %1152 = vmatmul.bf16.gmra.mxu0 %v452
        %v1153 = vpop.f32.mrf.mxu0
        %v1154 = vadd.f32 %v1141, %v1153
        %v1155 = vpop.f32.mrf.mxu0
        %1156 = vdwg.mxu0
        %1157 = vmatpush.bf16.msra.mxu0 %v927
        %1158 = vmatpush.bf16.msra.mxu0 %v925
        %1159 = vmatpush.bf16.msra.mxu0 %v923
        %1160 = vmatpush.bf16.msra.mxu0 %v921
        %1161 = vmatpush.bf16.msra.mxu0 %v919
        %1162 = vmatpush.bf16.msra.mxu0 %v917
        %1163 = vmatpush.bf16.msra.mxu0 %v915
        %1164 = vmatpush.bf16.msra.mxu0 %v913
        %1165 = vmatmul.bf16.gmra.mxu0 %v453
        %v1166 = vpop.f32.mrf.mxu0
        %v1167 = vadd.f32 %v1154, %v1166
        %v1168 = vpop.f32.mrf.mxu0
        %1169 = vdwg.mxu0
        %1170 = vmatpush.bf16.msra.mxu0 %v943
        %1171 = vmatpush.bf16.msra.mxu0 %v941
        %1172 = vmatpush.bf16.msra.mxu0 %v939
        %1173 = vmatpush.bf16.msra.mxu0 %v937
        %1174 = vmatpush.bf16.msra.mxu0 %v935
        %1175 = vmatpush.bf16.msra.mxu0 %v933
        %1176 = vmatpush.bf16.msra.mxu0 %v931
        %1177 = vmatpush.bf16.msra.mxu0 %v929
        %1178 = vmatmul.bf16.gmra.mxu0 %v454
        %v1179 = vpop.f32.mrf.mxu0
        %v1180 = vadd.f32 %v1167, %v1179
        %v1181 = vpop.f32.mrf.mxu0
        %1182 = vdwg.mxu0
        %1183 = vmatpush.bf16.msra.mxu0 %v959
        %1184 = vmatpush.bf16.msra.mxu0 %v957
        %1185 = vmatpush.bf16.msra.mxu0 %v955
        %1186 = vmatpush.bf16.msra.mxu0 %v953
        %1187 = vmatpush.bf16.msra.mxu0 %v951
        %1188 = vmatpush.bf16.msra.mxu0 %v949
        %1189 = vmatpush.bf16.msra.mxu0 %v947
        %1190 = vmatpush.bf16.msra.mxu0 %v945
        %1191 = vmatmul.bf16.gmra.mxu0 %v455
        %v1192 = vpop.f32.mrf.mxu0
        %v1193 = vadd.f32 %v1180, %v1192
        %v1194 = vpop.f32.mrf.mxu0
        %1195 = vdwg.mxu0
        %1196 = vmatpush.bf16.msra.mxu0 %v975
        %1197 = vmatpush.bf16.msra.mxu0 %v973
        %1198 = vmatpush.bf16.msra.mxu0 %v971
        %1199 = vmatpush.bf16.msra.mxu0 %v969
        %1200 = vmatpush.bf16.msra.mxu0 %v967
        %1201 = vmatpush.bf16.msra.mxu0 %v965
        %1202 = vmatpush.bf16.msra.mxu0 %v963
        %1203 = vmatpush.bf16.msra.mxu0 %v961
        %1204 = vmatmul.bf16.gmra.mxu0 %v456
        %v1205 = vpop.f32.mrf.mxu0
        %v1206 = vadd.f32 %v1193, %v1205
        %v1207 = vpop.f32.mrf.mxu0
        %1208 = vdwg.mxu0
        %1209 = vmatpush.bf16.msra.mxu0 %v864
        %1210 = vmatpush.bf16.msra.mxu0 %v862
        %1211 = vmatpush.bf16.msra.mxu0 %v860
        %1212 = vmatpush.bf16.msra.mxu0 %v858
        %1213 = vmatpush.bf16.msra.mxu0 %v856
        %1214 = vmatpush.bf16.msra.mxu0 %v854
        %1215 = vmatpush.bf16.msra.mxu0 %v852
        %1216 = vmatpush.bf16.msra.mxu0 %v850
        %1217 = vmatmul.bf16.gmra.mxu0 %v449
        %v1218 = vpop.f32.mrf.mxu0
        %v1219 = vadd.f32 0.0, %v1218
        %v1220 = vpop.f32.mrf.mxu0
        %1221 = vdwg.mxu0
        %1222 = vmatpush.bf16.msra.mxu0 %v880
        %1223 = vmatpush.bf16.msra.mxu0 %v878
        %1224 = vmatpush.bf16.msra.mxu0 %v876
        %1225 = vmatpush.bf16.msra.mxu0 %v874
        %1226 = vmatpush.bf16.msra.mxu0 %v872
        %1227 = vmatpush.bf16.msra.mxu0 %v870
        %1228 = vmatpush.bf16.msra.mxu0 %v868
        %1229 = vmatpush.bf16.msra.mxu0 %v866
        %1230 = vmatmul.bf16.gmra.mxu0 %v450
        %v1231 = vpop.f32.mrf.mxu0
        %v1232 = vadd.f32 %v1219, %v1231
        %v1233 = vpop.f32.mrf.mxu0
        %1234 = vdwg.mxu0
        %1235 = vmatpush.bf16.msra.mxu0 %v896
        %1236 = vmatpush.bf16.msra.mxu0 %v894
        %1237 = vmatpush.bf16.msra.mxu0 %v892
        %1238 = vmatpush.bf16.msra.mxu0 %v890
        %1239 = vmatpush.bf16.msra.mxu0 %v888
        %1240 = vmatpush.bf16.msra.mxu0 %v886
        %1241 = vmatpush.bf16.msra.mxu0 %v884
        %1242 = vmatpush.bf16.msra.mxu0 %v882
        %1243 = vmatmul.bf16.gmra.mxu0 %v451
        %v1244 = vpop.f32.mrf.mxu0
        %v1245 = vadd.f32 %v1232, %v1244
        %v1246 = vpop.f32.mrf.mxu0
        %1247 = vdwg.mxu0
        %1248 = vmatpush.bf16.msra.mxu0 %v912
        %1249 = vmatpush.bf16.msra.mxu0 %v910
        %1250 = vmatpush.bf16.msra.mxu0 %v908
        %1251 = vmatpush.bf16.msra.mxu0 %v906
        %1252 = vmatpush.bf16.msra.mxu0 %v904
        %1253 = vmatpush.bf16.msra.mxu0 %v902
        %1254 = vmatpush.bf16.msra.mxu0 %v900
        %1255 = vmatpush.bf16.msra.mxu0 %v898
        %1256 = vmatmul.bf16.gmra.mxu0 %v452
        %v1257 = vpop.f32.mrf.mxu0
        %v1258 = vadd.f32 %v1245, %v1257
        %v1259 = vpop.f32.mrf.mxu0
        %1260 = vdwg.mxu0
        %1261 = vmatpush.bf16.msra.mxu0 %v928
        %1262 = vmatpush.bf16.msra.mxu0 %v926
        %1263 = vmatpush.bf16.msra.mxu0 %v924
        %1264 = vmatpush.bf16.msra.mxu0 %v922
        %1265 = vmatpush.bf16.msra.mxu0 %v920
        %1266 = vmatpush.bf16.msra.mxu0 %v918
        %1267 = vmatpush.bf16.msra.mxu0 %v916
        %1268 = vmatpush.bf16.msra.mxu0 %v914
        %1269 = vmatmul.bf16.gmra.mxu0 %v453
        %v1270 = vpop.f32.mrf.mxu0
        %v1271 = vadd.f32 %v1258, %v1270
        %v1272 = vpop.f32.mrf.mxu0
        %1273 = vdwg.mxu0
        %1274 = vmatpush.bf16.msra.mxu0 %v944
        %1275 = vmatpush.bf16.msra.mxu0 %v942
        %1276 = vmatpush.bf16.msra.mxu0 %v940
        %1277 = vmatpush.bf16.msra.mxu0 %v938
        %1278 = vmatpush.bf16.msra.mxu0 %v936
        %1279 = vmatpush.bf16.msra.mxu0 %v934
        %1280 = vmatpush.bf16.msra.mxu0 %v932
        %1281 = vmatpush.bf16.msra.mxu0 %v930
        %1282 = vmatmul.bf16.gmra.mxu0 %v454
        %v1283 = vpop.f32.mrf.mxu0
        %v1284 = vadd.f32 %v1271, %v1283
        %v1285 = vpop.f32.mrf.mxu0
        %1286 = vdwg.mxu0
        %1287 = vmatpush.bf16.msra.mxu0 %v960
        %1288 = vmatpush.bf16.msra.mxu0 %v958
        %1289 = vmatpush.bf16.msra.mxu0 %v956
        %1290 = vmatpush.bf16.msra.mxu0 %v954
        %1291 = vmatpush.bf16.msra.mxu0 %v952
        %1292 = vmatpush.bf16.msra.mxu0 %v950
        %1293 = vmatpush.bf16.msra.mxu0 %v948
        %1294 = vmatpush.bf16.msra.mxu0 %v946
        %1295 = vmatmul.bf16.gmra.mxu0 %v455
        %v1296 = vpop.f32.mrf.mxu0
        %v1297 = vadd.f32 %v1284, %v1296
        %v1298 = vpop.f32.mrf.mxu0
        %1299 = vdwg.mxu0
        %1300 = vmatpush.bf16.msra.mxu0 %v976
        %1301 = vmatpush.bf16.msra.mxu0 %v974
        %1302 = vmatpush.bf16.msra.mxu0 %v972
        %1303 = vmatpush.bf16.msra.mxu0 %v970
        %1304 = vmatpush.bf16.msra.mxu0 %v968
        %1305 = vmatpush.bf16.msra.mxu0 %v966
        %1306 = vmatpush.bf16.msra.mxu0 %v964
        %1307 = vmatpush.bf16.msra.mxu0 %v962
        %1308 = vmatmul.bf16.gmra.mxu0 %v456
        %v1309 = vpop.f32.mrf.mxu0
        %v1310 = vadd.f32 %v1297, %v1309
        %v1311 = vpop.f32.mrf.mxu0
        %1312 = vdwg.mxu0
        %v1315 = vrot.slane %v1310, 6
        %vm1316 = vcmask 1041408
        %v1317 = vsel %vm1316, %v1206, %v1315
        %v1319 = vadd.f32 %v317, %v1317
        %1320 = vst [vmem:[#allocation2] sm:$0xf] %v1319
        %p1321 = scmp.eq.s32.totalorder %s22, 3
        // Predicated region
        $region49: #{vae_forward.7} parent=43 // pred_check
          %p1322 = pneg %p1321
        $region50: #{vae_forward.7} parent=43 // pred_check_branch
          %1324 = sbr.rel (%p1322) target = $region52
        $region51: #{vae_forward.7} parent=43 // pred_region
          %v1325 = vld [vmem:[#allocation2] sm:$0xf]
          %v1326 = vld [vmem:[%s2] sm:$0x3]
          %v1328 = vperm.slane %v1326, 0
          %v1329 = vperm.slane %v1326, 1
          %v1330 = vrot.slane %v1329, 6
          %v1331 = vsel %vm1316, %v1328, %v1330
          %v1333 = vadd.f32 %v1325, %v1331
          %v1335 = vrot.slane %v1333, 2
          %v1337 = vmul.f32 %v1335, 0.5
          %v1338 = vmul.f32 %v1337, 1.442695
          %v1339 = vpow.pop %v1338
          %v1340 = vld [vmem:[%s3] sm:$0x3]
          %v1341 = vmul.f32 %v1340, %v1339
          %v1342 = vadd.f32 %v1333, %v1341
          %1343 = vst [vmem:[#allocation3] sm:$0x3] %v1333
          %1344 = vst [vmem:[#allocation1] ss:$4 sm:$0xff] %v1333
          %v1345 = vld.sshfl [vmem:[#allocation1 + $0x8] sm:$0xff pattern:$0x73625140]
          %1347 = vst [vmem:[#allocation5] sm:$0x3] %v1345
          %v1348 = vpack.c.bf16 %v1342, %v1342
          %v1349 = vld [vmem:[%s4] sm:$0xff]
          %v1350 = vld [vmem:[%s4 + $0x8] sm:$0xff]
          %v1351 = vld [vmem:[%s4 + $0x10] sm:$0xff]
          %v1352 = vld [vmem:[%s4 + $0x18] sm:$0xff]
          %v1353 = vld [vmem:[%s4 + $0x20] sm:$0xff]
          %v1354 = vld [vmem:[%s4 + $0x28] sm:$0xff]
          %v1355 = vld [vmem:[%s4 + $0x30] sm:$0xff]
          %v1356 = vld [vmem:[%s4 + $0x38] sm:$0xff]
          %v1357 = vld [vmem:[%s4 + $0x40] sm:$0xff]
          %v1358 = vld [vmem:[%s4 + $0x48] sm:$0xff]
          %v1359 = vld [vmem:[%s4 + $0x50] sm:$0xff]
          %v1360 = vld [vmem:[%s4 + $0x58] sm:$0xff]
          %v1361 = vld [vmem:[%s4 + $0x60] sm:$0xff]
          %v1362 = vld [vmem:[%s4 + $0x68] sm:$0xff]
          %v1363 = vld [vmem:[%s4 + $0x70] sm:$0xff]
          %v1364 = vld [vmem:[%s4 + $0x78] sm:$0xff]
          %v1365 = vld [vmem:[%s4 + $0x80] sm:$0xff]
          %v1366 = vld [vmem:[%s4 + $0x88] sm:$0xff]
          %v1367 = vld [vmem:[%s4 + $0x90] sm:$0xff]
          %v1368 = vld [vmem:[%s4 + $0x98] sm:$0xff]
          %v1369 = vld [vmem:[%s4 + $0xa0] sm:$0xff]
          %v1370 = vld [vmem:[%s4 + $0xa8] sm:$0xff]
          %v1371 = vld [vmem:[%s4 + $0xb0] sm:$0xff]
          %v1372 = vld [vmem:[%s4 + $0xb8] sm:$0xff]
          %v1373 = vld [vmem:[%s4 + $0xc0] sm:$0xff]
          %v1374 = vld [vmem:[%s4 + $0xc8] sm:$0xff]
          %v1375 = vld [vmem:[%s4 + $0xd0] sm:$0xff]
          %v1376 = vld [vmem:[%s4 + $0xd8] sm:$0xff]
          %v1377 = vld [vmem:[%s4 + $0xe0] sm:$0xff]
          %v1378 = vld [vmem:[%s4 + $0xe8] sm:$0xff]
          %v1379 = vld [vmem:[%s4 + $0xf0] sm:$0xff]
          %v1380 = vld [vmem:[%s4 + $0xf8] sm:$0xff]
          %v1381 = vld [vmem:[%s4 + $0x100] sm:$0xff]
          %v1382 = vld [vmem:[%s4 + $0x108] sm:$0xff]
          %v1383 = vld [vmem:[%s4 + $0x110] sm:$0xff]
          %v1384 = vld [vmem:[%s4 + $0x118] sm:$0xff]
          %v1385 = vld [vmem:[%s4 + $0x120] sm:$0xff]
          %v1386 = vld [vmem:[%s4 + $0x128] sm:$0xff]
          %v1387 = vld [vmem:[%s4 + $0x130] sm:$0xff]
          %v1388 = vld [vmem:[%s4 + $0x138] sm:$0xff]
          %v1389 = vld [vmem:[%s4 + $0x140] sm:$0xff]
          %v1390 = vld [vmem:[%s4 + $0x148] sm:$0xff]
          %v1391 = vld [vmem:[%s4 + $0x150] sm:$0xff]
          %v1392 = vld [vmem:[%s4 + $0x158] sm:$0xff]
          %v1393 = vld [vmem:[%s4 + $0x160] sm:$0xff]
          %v1394 = vld [vmem:[%s4 + $0x168] sm:$0xff]
          %v1395 = vld [vmem:[%s4 + $0x170] sm:$0xff]
          %v1396 = vld [vmem:[%s4 + $0x178] sm:$0xff]
          %v1397 = vld [vmem:[%s4 + $0x180] sm:$0xff]
          %v1398 = vld [vmem:[%s4 + $0x188] sm:$0xff]
          %v1399 = vld [vmem:[%s4 + $0x190] sm:$0xff]
          %v1400 = vld [vmem:[%s4 + $0x198] sm:$0xff]
          %v1401 = vld [vmem:[%s4 + $0x1a0] sm:$0xff]
          %v1402 = vld [vmem:[%s4 + $0x1a8] sm:$0xff]
          %v1403 = vld [vmem:[%s4 + $0x1b0] sm:$0xff]
          %v1404 = vld [vmem:[%s4 + $0x1b8] sm:$0xff]
          %v1405 = vld [vmem:[%s4 + $0x1c0] sm:$0xff]
          %v1406 = vld [vmem:[%s4 + $0x1c8] sm:$0xff]
          %v1407 = vld [vmem:[%s4 + $0x1d0] sm:$0xff]
          %v1408 = vld [vmem:[%s4 + $0x1d8] sm:$0xff]
          %v1409 = vld [vmem:[%s4 + $0x1e0] sm:$0xff]
          %v1410 = vld [vmem:[%s4 + $0x1e8] sm:$0xff]
          %v1411 = vld [vmem:[%s4 + $0x1f0] sm:$0xff]
          %v1412 = vld [vmem:[%s4 + $0x1f8] sm:$0xff]
          %v1413 = vld [vmem:[%s4 + $0x200] sm:$0xff]
          %v1414 = vld [vmem:[%s4 + $0x208] sm:$0xff]
          %v1415 = vld [vmem:[%s4 + $0x210] sm:$0xff]
          %v1416 = vld [vmem:[%s4 + $0x218] sm:$0xff]
          %v1417 = vld [vmem:[%s4 + $0x220] sm:$0xff]
          %v1418 = vld [vmem:[%s4 + $0x228] sm:$0xff]
          %v1419 = vld [vmem:[%s4 + $0x230] sm:$0xff]
          %v1420 = vld [vmem:[%s4 + $0x238] sm:$0xff]
          %v1421 = vld [vmem:[%s4 + $0x240] sm:$0xff]
          %v1422 = vld [vmem:[%s4 + $0x248] sm:$0xff]
          %v1423 = vld [vmem:[%s4 + $0x250] sm:$0xff]
          %v1424 = vld [vmem:[%s4 + $0x258] sm:$0xff]
          %v1425 = vld [vmem:[%s4 + $0x260] sm:$0xff]
          %v1426 = vld [vmem:[%s4 + $0x268] sm:$0xff]
          %v1427 = vld [vmem:[%s4 + $0x270] sm:$0xff]
          %v1428 = vld [vmem:[%s4 + $0x278] sm:$0xff]
          %v1429 = vld [vmem:[%s4 + $0x280] sm:$0xff]
          %v1430 = vld [vmem:[%s4 + $0x288] sm:$0xff]
          %v1431 = vld [vmem:[%s4 + $0x290] sm:$0xff]
          %v1432 = vld [vmem:[%s4 + $0x298] sm:$0xff]
          %v1433 = vld [vmem:[%s4 + $0x2a0] sm:$0xff]
          %v1434 = vld [vmem:[%s4 + $0x2a8] sm:$0xff]
          %v1435 = vld [vmem:[%s4 + $0x2b0] sm:$0xff]
          %v1436 = vld [vmem:[%s4 + $0x2b8] sm:$0xff]
          %v1437 = vld [vmem:[%s4 + $0x2c0] sm:$0xff]
          %v1438 = vld [vmem:[%s4 + $0x2c8] sm:$0xff]
          %v1439 = vld [vmem:[%s4 + $0x2d0] sm:$0xff]
          %v1440 = vld [vmem:[%s4 + $0x2d8] sm:$0xff]
          %v1441 = vld [vmem:[%s4 + $0x2e0] sm:$0xff]
          %v1442 = vld [vmem:[%s4 + $0x2e8] sm:$0xff]
          %v1443 = vld [vmem:[%s4 + $0x2f0] sm:$0xff]
          %v1444 = vld [vmem:[%s4 + $0x2f8] sm:$0xff]
          %v1445 = vld [vmem:[%s4 + $0x300] sm:$0xff]
          %v1446 = vld [vmem:[%s4 + $0x308] sm:$0xff]
          %v1447 = vld [vmem:[%s4 + $0x310] sm:$0xff]
          %v1448 = vld [vmem:[%s4 + $0x318] sm:$0xff]
          %v1449 = vld [vmem:[%s4 + $0x320] sm:$0xff]
          %v1450 = vld [vmem:[%s4 + $0x328] sm:$0xff]
          %v1451 = vld [vmem:[%s4 + $0x330] sm:$0xff]
          %v1452 = vld [vmem:[%s4 + $0x338] sm:$0xff]
          %v1453 = vld [vmem:[%s4 + $0x340] sm:$0xff]
          %v1454 = vld [vmem:[%s4 + $0x348] sm:$0xff]
          %v1455 = vld [vmem:[%s4 + $0x350] sm:$0xff]
          %v1456 = vld [vmem:[%s4 + $0x358] sm:$0xff]
          %v1457 = vld [vmem:[%s4 + $0x360] sm:$0xff]
          %v1458 = vld [vmem:[%s4 + $0x368] sm:$0xff]
          %v1459 = vld [vmem:[%s4 + $0x370] sm:$0xff]
          %v1460 = vld [vmem:[%s4 + $0x378] sm:$0xff]
          %v1461 = vld [vmem:[%s4 + $0x380] sm:$0xff]
          %v1462 = vld [vmem:[%s4 + $0x388] sm:$0xff]
          %v1463 = vld [vmem:[%s4 + $0x390] sm:$0xff]
          %v1464 = vld [vmem:[%s4 + $0x398] sm:$0xff]
          %v1465 = vld [vmem:[%s4 + $0x3a0] sm:$0xff]
          %v1466 = vld [vmem:[%s4 + $0x3a8] sm:$0xff]
          %v1467 = vld [vmem:[%s4 + $0x3b0] sm:$0xff]
          %v1468 = vld [vmem:[%s4 + $0x3b8] sm:$0xff]
          %v1469 = vld [vmem:[%s4 + $0x3c0] sm:$0xff]
          %v1470 = vld [vmem:[%s4 + $0x3c8] sm:$0xff]
          %v1471 = vld [vmem:[%s4 + $0x3d0] sm:$0xff]
          %v1472 = vld [vmem:[%s4 + $0x3d8] sm:$0xff]
          %v1473 = vld [vmem:[%s4 + $0x3e0] sm:$0xff]
          %v1474 = vld [vmem:[%s4 + $0x3e8] sm:$0xff]
          %v1475 = vld [vmem:[%s4 + $0x3f0] sm:$0xff]
          %v1476 = vld [vmem:[%s4 + $0x3f8] sm:$0xff]
          %v1477 = vld [vmem:[%s4 + $0x400] sm:$0xff]
          %v1478 = vld [vmem:[%s4 + $0x408] sm:$0xff]
          %v1479 = vld [vmem:[%s4 + $0x410] sm:$0xff]
          %v1480 = vld [vmem:[%s4 + $0x418] sm:$0xff]
          %v1481 = vld [vmem:[%s4 + $0x420] sm:$0xff]
          %v1482 = vld [vmem:[%s4 + $0x428] sm:$0xff]
          %v1483 = vld [vmem:[%s4 + $0x430] sm:$0xff]
          %v1484 = vld [vmem:[%s4 + $0x438] sm:$0xff]
          %v1485 = vld [vmem:[%s4 + $0x440] sm:$0xff]
          %v1486 = vld [vmem:[%s4 + $0x448] sm:$0xff]
          %v1487 = vld [vmem:[%s4 + $0x450] sm:$0xff]
          %v1488 = vld [vmem:[%s4 + $0x458] sm:$0xff]
          %v1489 = vld [vmem:[%s4 + $0x460] sm:$0xff]
          %v1490 = vld [vmem:[%s4 + $0x468] sm:$0xff]
          %v1491 = vld [vmem:[%s4 + $0x470] sm:$0xff]
          %v1492 = vld [vmem:[%s4 + $0x478] sm:$0xff]
          %v1493 = vld [vmem:[%s4 + $0x480] sm:$0xff]
          %v1494 = vld [vmem:[%s4 + $0x488] sm:$0xff]
          %v1495 = vld [vmem:[%s4 + $0x490] sm:$0xff]
          %v1496 = vld [vmem:[%s4 + $0x498] sm:$0xff]
          %v1497 = vld [vmem:[%s4 + $0x4a0] sm:$0xff]
          %v1498 = vld [vmem:[%s4 + $0x4a8] sm:$0xff]
          %v1499 = vld [vmem:[%s4 + $0x4b0] sm:$0xff]
          %v1500 = vld [vmem:[%s4 + $0x4b8] sm:$0xff]
          %v1501 = vld [vmem:[%s4 + $0x4c0] sm:$0xff]
          %v1502 = vld [vmem:[%s4 + $0x4c8] sm:$0xff]
          %v1503 = vld [vmem:[%s4 + $0x4d0] sm:$0xff]
          %v1504 = vld [vmem:[%s4 + $0x4d8] sm:$0xff]
          %v1505 = vld [vmem:[%s4 + $0x4e0] sm:$0xff]
          %v1506 = vld [vmem:[%s4 + $0x4e8] sm:$0xff]
          %v1507 = vld [vmem:[%s4 + $0x4f0] sm:$0xff]
          %v1508 = vld [vmem:[%s4 + $0x4f8] sm:$0xff]
          %v1509 = vld [vmem:[%s4 + $0x500] sm:$0xff]
          %v1510 = vld [vmem:[%s4 + $0x508] sm:$0xff]
          %v1511 = vld [vmem:[%s4 + $0x510] sm:$0xff]
          %v1512 = vld [vmem:[%s4 + $0x518] sm:$0xff]
          %v1513 = vld [vmem:[%s4 + $0x520] sm:$0xff]
          %v1514 = vld [vmem:[%s4 + $0x528] sm:$0xff]
          %v1515 = vld [vmem:[%s4 + $0x530] sm:$0xff]
          %v1516 = vld [vmem:[%s4 + $0x538] sm:$0xff]
          %v1517 = vld [vmem:[%s4 + $0x540] sm:$0xff]
          %v1518 = vld [vmem:[%s4 + $0x548] sm:$0xff]
          %v1519 = vld [vmem:[%s4 + $0x550] sm:$0xff]
          %v1520 = vld [vmem:[%s4 + $0x558] sm:$0xff]
          %v1521 = vld [vmem:[%s4 + $0x560] sm:$0xff]
          %v1522 = vld [vmem:[%s4 + $0x568] sm:$0xff]
          %v1523 = vld [vmem:[%s4 + $0x570] sm:$0xff]
          %v1524 = vld [vmem:[%s4 + $0x578] sm:$0xff]
          %v1525 = vld [vmem:[%s4 + $0x580] sm:$0xff]
          %v1526 = vld [vmem:[%s4 + $0x588] sm:$0xff]
          %v1527 = vld [vmem:[%s4 + $0x590] sm:$0xff]
          %v1528 = vld [vmem:[%s4 + $0x598] sm:$0xff]
          %v1529 = vld [vmem:[%s4 + $0x5a0] sm:$0xff]
          %v1530 = vld [vmem:[%s4 + $0x5a8] sm:$0xff]
          %v1531 = vld [vmem:[%s4 + $0x5b0] sm:$0xff]
          %v1532 = vld [vmem:[%s4 + $0x5b8] sm:$0xff]
          %v1533 = vld [vmem:[%s4 + $0x5c0] sm:$0xff]
          %v1534 = vld [vmem:[%s4 + $0x5c8] sm:$0xff]
          %v1535 = vld [vmem:[%s4 + $0x5d0] sm:$0xff]
          %v1536 = vld [vmem:[%s4 + $0x5d8] sm:$0xff]
          %v1537 = vld [vmem:[%s4 + $0x5e0] sm:$0xff]
          %v1538 = vld [vmem:[%s4 + $0x5e8] sm:$0xff]
          %v1539 = vld [vmem:[%s4 + $0x5f0] sm:$0xff]
          %v1540 = vld [vmem:[%s4 + $0x5f8] sm:$0xff]
          %v1541 = vld [vmem:[%s4 + $0x600] sm:$0xff]
          %v1542 = vld [vmem:[%s4 + $0x608] sm:$0xff]
          %v1543 = vld [vmem:[%s4 + $0x610] sm:$0xff]
          %v1544 = vld [vmem:[%s4 + $0x618] sm:$0xff]
          %v1545 = vld [vmem:[%s4 + $0x620] sm:$0xff]
          %v1546 = vld [vmem:[%s4 + $0x628] sm:$0xff]
          %v1547 = vld [vmem:[%s4 + $0x630] sm:$0xff]
          %v1548 = vld [vmem:[%s4 + $0x638] sm:$0xff]
          %v1549 = vld [vmem:[%s4 + $0x640] sm:$0xff]
          %v1550 = vld [vmem:[%s4 + $0x648] sm:$0xff]
          %v1551 = vld [vmem:[%s4 + $0x650] sm:$0xff]
          %v1552 = vld [vmem:[%s4 + $0x658] sm:$0xff]
          %v1553 = vld [vmem:[%s4 + $0x660] sm:$0xff]
          %v1554 = vld [vmem:[%s4 + $0x668] sm:$0xff]
          %v1555 = vld [vmem:[%s4 + $0x670] sm:$0xff]
          %v1556 = vld [vmem:[%s4 + $0x678] sm:$0xff]
          %v1557 = vld [vmem:[%s4 + $0x680] sm:$0xff]
          %v1558 = vld [vmem:[%s4 + $0x688] sm:$0xff]
          %v1559 = vld [vmem:[%s4 + $0x690] sm:$0xff]
          %v1560 = vld [vmem:[%s4 + $0x698] sm:$0xff]
          %v1561 = vld [vmem:[%s4 + $0x6a0] sm:$0xff]
          %v1562 = vld [vmem:[%s4 + $0x6a8] sm:$0xff]
          %v1563 = vld [vmem:[%s4 + $0x6b0] sm:$0xff]
          %v1564 = vld [vmem:[%s4 + $0x6b8] sm:$0xff]
          %v1565 = vld [vmem:[%s4 + $0x6c0] sm:$0xff]
          %v1566 = vld [vmem:[%s4 + $0x6c8] sm:$0xff]
          %v1567 = vld [vmem:[%s4 + $0x6d0] sm:$0xff]
          %v1568 = vld [vmem:[%s4 + $0x6d8] sm:$0xff]
          %v1569 = vld [vmem:[%s4 + $0x6e0] sm:$0xff]
          %v1570 = vld [vmem:[%s4 + $0x6e8] sm:$0xff]
          %v1571 = vld [vmem:[%s4 + $0x6f0] sm:$0xff]
          %v1572 = vld [vmem:[%s4 + $0x6f8] sm:$0xff]
          %v1573 = vld [vmem:[%s4 + $0x700] sm:$0xff]
          %v1574 = vld [vmem:[%s4 + $0x708] sm:$0xff]
          %v1575 = vld [vmem:[%s4 + $0x710] sm:$0xff]
          %v1576 = vld [vmem:[%s4 + $0x718] sm:$0xff]
          %v1577 = vld [vmem:[%s4 + $0x720] sm:$0xff]
          %v1578 = vld [vmem:[%s4 + $0x728] sm:$0xff]
          %v1579 = vld [vmem:[%s4 + $0x730] sm:$0xff]
          %v1580 = vld [vmem:[%s4 + $0x738] sm:$0xff]
          %v1581 = vld [vmem:[%s4 + $0x740] sm:$0xff]
          %v1582 = vld [vmem:[%s4 + $0x748] sm:$0xff]
          %v1583 = vld [vmem:[%s4 + $0x750] sm:$0xff]
          %v1584 = vld [vmem:[%s4 + $0x758] sm:$0xff]
          %v1585 = vld [vmem:[%s4 + $0x760] sm:$0xff]
          %v1586 = vld [vmem:[%s4 + $0x768] sm:$0xff]
          %v1587 = vld [vmem:[%s4 + $0x770] sm:$0xff]
          %v1588 = vld [vmem:[%s4 + $0x778] sm:$0xff]
          %v1589 = vld [vmem:[%s4 + $0x780] sm:$0xff]
          %v1590 = vld [vmem:[%s4 + $0x788] sm:$0xff]
          %v1591 = vld [vmem:[%s4 + $0x790] sm:$0xff]
          %v1592 = vld [vmem:[%s4 + $0x798] sm:$0xff]
          %v1593 = vld [vmem:[%s4 + $0x7a0] sm:$0xff]
          %v1594 = vld [vmem:[%s4 + $0x7a8] sm:$0xff]
          %v1595 = vld [vmem:[%s4 + $0x7b0] sm:$0xff]
          %v1596 = vld [vmem:[%s4 + $0x7b8] sm:$0xff]
          %v1597 = vld [vmem:[%s4 + $0x7c0] sm:$0xff]
          %v1598 = vld [vmem:[%s4 + $0x7c8] sm:$0xff]
          %v1599 = vld [vmem:[%s4 + $0x7d0] sm:$0xff]
          %v1600 = vld [vmem:[%s4 + $0x7d8] sm:$0xff]
          %v1601 = vld [vmem:[%s4 + $0x7e0] sm:$0xff]
          %v1602 = vld [vmem:[%s4 + $0x7e8] sm:$0xff]
          %v1603 = vld [vmem:[%s4 + $0x7f0] sm:$0xff]
          %v1604 = vld [vmem:[%s4 + $0x7f8] sm:$0xff]
          %v1605 = vld [vmem:[%s5] sm:$0xff]
          %v1606 = vld [vmem:[%s5 + $0x8] sm:$0xff]
          %v1607 = vld [vmem:[%s5 + $0x10] sm:$0xff]
          %v1608 = vld [vmem:[%s5 + $0x18] sm:$0xff]
          %v1613 = vperm.slane %v1605, 0
          %v1614 = vperm.slane %v1605, 1
          %v1615 = vperm.slane %v1605, 2
          %v1616 = vperm.slane %v1605, 3
          %v1617 = vperm.slane %v1605, 4
          %v1618 = vperm.slane %v1605, 5
          %v1619 = vperm.slane %v1605, 6
          %v1620 = vperm.slane %v1605, 7
          %v1621 = vperm.slane %v1606, 0
          %v1622 = vperm.slane %v1606, 1
          %v1623 = vperm.slane %v1606, 2
          %v1624 = vperm.slane %v1606, 3
          %v1625 = vperm.slane %v1606, 4
          %v1626 = vperm.slane %v1606, 5
          %v1627 = vperm.slane %v1606, 6
          %v1628 = vperm.slane %v1606, 7
          %v1629 = vperm.slane %v1607, 0
          %v1630 = vperm.slane %v1607, 1
          %v1631 = vperm.slane %v1607, 2
          %v1632 = vperm.slane %v1607, 3
          %v1633 = vperm.slane %v1607, 4
          %v1634 = vperm.slane %v1607, 5
          %v1635 = vperm.slane %v1607, 6
          %v1636 = vperm.slane %v1607, 7
          %v1637 = vperm.slane %v1608, 0
          %v1638 = vperm.slane %v1608, 1
          %v1639 = vperm.slane %v1608, 2
          %v1640 = vperm.slane %v1608, 3
          %v1641 = vperm.slane %v1608, 4
          %v1642 = vperm.slane %v1608, 5
          %v1643 = vperm.slane %v1608, 6
          %v1644 = vperm.slane %v1608, 7
          %v1933 = vunpack.c.l.b16 %v1349
          %v1934 = vunpack.c.h.b16 %v1349
          %v1935 = vunpack.c.l.b16 %v1350
          %v1936 = vunpack.c.h.b16 %v1350
          %v1937 = vunpack.c.l.b16 %v1351
          %v1938 = vunpack.c.h.b16 %v1351
          %v1939 = vunpack.c.l.b16 %v1352
          %v1940 = vunpack.c.h.b16 %v1352
          %v1941 = vunpack.c.l.b16 %v1353
          %v1942 = vunpack.c.h.b16 %v1353
          %v1943 = vunpack.c.l.b16 %v1354
          %v1944 = vunpack.c.h.b16 %v1354
          %v1945 = vunpack.c.l.b16 %v1355
          %v1946 = vunpack.c.h.b16 %v1355
          %v1947 = vunpack.c.l.b16 %v1356
          %v1948 = vunpack.c.h.b16 %v1356
          %v1949 = vunpack.c.l.b16 %v1357
          %v1950 = vunpack.c.h.b16 %v1357
          %v1951 = vunpack.c.l.b16 %v1358
          %v1952 = vunpack.c.h.b16 %v1358
          %v1953 = vunpack.c.l.b16 %v1359
          %v1954 = vunpack.c.h.b16 %v1359
          %v1955 = vunpack.c.l.b16 %v1360
          %v1956 = vunpack.c.h.b16 %v1360
          %v1957 = vunpack.c.l.b16 %v1361
          %v1958 = vunpack.c.h.b16 %v1361
          %v1959 = vunpack.c.l.b16 %v1362
          %v1960 = vunpack.c.h.b16 %v1362
          %v1961 = vunpack.c.l.b16 %v1363
          %v1962 = vunpack.c.h.b16 %v1363
          %v1963 = vunpack.c.l.b16 %v1364
          %v1964 = vunpack.c.h.b16 %v1364
          %v1965 = vunpack.c.l.b16 %v1365
          %v1966 = vunpack.c.h.b16 %v1365
          %v1967 = vunpack.c.l.b16 %v1366
          %v1968 = vunpack.c.h.b16 %v1366
          %v1969 = vunpack.c.l.b16 %v1367
          %v1970 = vunpack.c.h.b16 %v1367
          %v1971 = vunpack.c.l.b16 %v1368
          %v1972 = vunpack.c.h.b16 %v1368
          %v1973 = vunpack.c.l.b16 %v1369
          %v1974 = vunpack.c.h.b16 %v1369
          %v1975 = vunpack.c.l.b16 %v1370
          %v1976 = vunpack.c.h.b16 %v1370
          %v1977 = vunpack.c.l.b16 %v1371
          %v1978 = vunpack.c.h.b16 %v1371
          %v1979 = vunpack.c.l.b16 %v1372
          %v1980 = vunpack.c.h.b16 %v1372
          %v1981 = vunpack.c.l.b16 %v1373
          %v1982 = vunpack.c.h.b16 %v1373
          %v1983 = vunpack.c.l.b16 %v1374
          %v1984 = vunpack.c.h.b16 %v1374
          %v1985 = vunpack.c.l.b16 %v1375
          %v1986 = vunpack.c.h.b16 %v1375
          %v1987 = vunpack.c.l.b16 %v1376
          %v1988 = vunpack.c.h.b16 %v1376
          %v1989 = vunpack.c.l.b16 %v1377
          %v1990 = vunpack.c.h.b16 %v1377
          %v1991 = vunpack.c.l.b16 %v1378
          %v1992 = vunpack.c.h.b16 %v1378
          %v1993 = vunpack.c.l.b16 %v1379
          %v1994 = vunpack.c.h.b16 %v1379
          %v1995 = vunpack.c.l.b16 %v1380
          %v1996 = vunpack.c.h.b16 %v1380
          %v1997 = vunpack.c.l.b16 %v1381
          %v1998 = vunpack.c.h.b16 %v1381
          %v1999 = vunpack.c.l.b16 %v1382
          %v2000 = vunpack.c.h.b16 %v1382
          %v2001 = vunpack.c.l.b16 %v1383
          %v2002 = vunpack.c.h.b16 %v1383
          %v2003 = vunpack.c.l.b16 %v1384
          %v2004 = vunpack.c.h.b16 %v1384
          %v2005 = vunpack.c.l.b16 %v1385
          %v2006 = vunpack.c.h.b16 %v1385
          %v2007 = vunpack.c.l.b16 %v1386
          %v2008 = vunpack.c.h.b16 %v1386
          %v2009 = vunpack.c.l.b16 %v1387
          %v2010 = vunpack.c.h.b16 %v1387
          %v2011 = vunpack.c.l.b16 %v1388
          %v2012 = vunpack.c.h.b16 %v1388
          %v2013 = vunpack.c.l.b16 %v1389
          %v2014 = vunpack.c.h.b16 %v1389
          %v2015 = vunpack.c.l.b16 %v1390
          %v2016 = vunpack.c.h.b16 %v1390
          %v2017 = vunpack.c.l.b16 %v1391
          %v2018 = vunpack.c.h.b16 %v1391
          %v2019 = vunpack.c.l.b16 %v1392
          %v2020 = vunpack.c.h.b16 %v1392
          %v2021 = vunpack.c.l.b16 %v1393
          %v2022 = vunpack.c.h.b16 %v1393
          %v2023 = vunpack.c.l.b16 %v1394
          %v2024 = vunpack.c.h.b16 %v1394
          %v2025 = vunpack.c.l.b16 %v1395
          %v2026 = vunpack.c.h.b16 %v1395
          %v2027 = vunpack.c.l.b16 %v1396
          %v2028 = vunpack.c.h.b16 %v1396
          %v2029 = vunpack.c.l.b16 %v1397
          %v2030 = vunpack.c.h.b16 %v1397
          %v2031 = vunpack.c.l.b16 %v1398
          %v2032 = vunpack.c.h.b16 %v1398
          %v2033 = vunpack.c.l.b16 %v1399
          %v2034 = vunpack.c.h.b16 %v1399
          %v2035 = vunpack.c.l.b16 %v1400
          %v2036 = vunpack.c.h.b16 %v1400
          %v2037 = vunpack.c.l.b16 %v1401
          %v2038 = vunpack.c.h.b16 %v1401
          %v2039 = vunpack.c.l.b16 %v1402
          %v2040 = vunpack.c.h.b16 %v1402
          %v2041 = vunpack.c.l.b16 %v1403
          %v2042 = vunpack.c.h.b16 %v1403
          %v2043 = vunpack.c.l.b16 %v1404
          %v2044 = vunpack.c.h.b16 %v1404
          %v2045 = vunpack.c.l.b16 %v1405
          %v2046 = vunpack.c.h.b16 %v1405
          %v2047 = vunpack.c.l.b16 %v1406
          %v2048 = vunpack.c.h.b16 %v1406
          %v2049 = vunpack.c.l.b16 %v1407
          %v2050 = vunpack.c.h.b16 %v1407
          %v2051 = vunpack.c.l.b16 %v1408
          %v2052 = vunpack.c.h.b16 %v1408
          %v2053 = vunpack.c.l.b16 %v1409
          %v2054 = vunpack.c.h.b16 %v1409
          %v2055 = vunpack.c.l.b16 %v1410
          %v2056 = vunpack.c.h.b16 %v1410
          %v2057 = vunpack.c.l.b16 %v1411
          %v2058 = vunpack.c.h.b16 %v1411
          %v2059 = vunpack.c.l.b16 %v1412
          %v2060 = vunpack.c.h.b16 %v1412
          %v2061 = vunpack.c.l.b16 %v1413
          %v2062 = vunpack.c.h.b16 %v1413
          %v2063 = vunpack.c.l.b16 %v1414
          %v2064 = vunpack.c.h.b16 %v1414
          %v2065 = vunpack.c.l.b16 %v1415
          %v2066 = vunpack.c.h.b16 %v1415
          %v2067 = vunpack.c.l.b16 %v1416
          %v2068 = vunpack.c.h.b16 %v1416
          %v2069 = vunpack.c.l.b16 %v1417
          %v2070 = vunpack.c.h.b16 %v1417
          %v2071 = vunpack.c.l.b16 %v1418
          %v2072 = vunpack.c.h.b16 %v1418
          %v2073 = vunpack.c.l.b16 %v1419
          %v2074 = vunpack.c.h.b16 %v1419
          %v2075 = vunpack.c.l.b16 %v1420
          %v2076 = vunpack.c.h.b16 %v1420
          %v2077 = vunpack.c.l.b16 %v1421
          %v2078 = vunpack.c.h.b16 %v1421
          %v2079 = vunpack.c.l.b16 %v1422
          %v2080 = vunpack.c.h.b16 %v1422
          %v2081 = vunpack.c.l.b16 %v1423
          %v2082 = vunpack.c.h.b16 %v1423
          %v2083 = vunpack.c.l.b16 %v1424
          %v2084 = vunpack.c.h.b16 %v1424
          %v2085 = vunpack.c.l.b16 %v1425
          %v2086 = vunpack.c.h.b16 %v1425
          %v2087 = vunpack.c.l.b16 %v1426
          %v2088 = vunpack.c.h.b16 %v1426
          %v2089 = vunpack.c.l.b16 %v1427
          %v2090 = vunpack.c.h.b16 %v1427
          %v2091 = vunpack.c.l.b16 %v1428
          %v2092 = vunpack.c.h.b16 %v1428
          %v2093 = vunpack.c.l.b16 %v1429
          %v2094 = vunpack.c.h.b16 %v1429
          %v2095 = vunpack.c.l.b16 %v1430
          %v2096 = vunpack.c.h.b16 %v1430
          %v2097 = vunpack.c.l.b16 %v1431
          %v2098 = vunpack.c.h.b16 %v1431
          %v2099 = vunpack.c.l.b16 %v1432
          %v2100 = vunpack.c.h.b16 %v1432
          %v2101 = vunpack.c.l.b16 %v1433
          %v2102 = vunpack.c.h.b16 %v1433
          %v2103 = vunpack.c.l.b16 %v1434
          %v2104 = vunpack.c.h.b16 %v1434
          %v2105 = vunpack.c.l.b16 %v1435
          %v2106 = vunpack.c.h.b16 %v1435
          %v2107 = vunpack.c.l.b16 %v1436
          %v2108 = vunpack.c.h.b16 %v1436
          %v2109 = vunpack.c.l.b16 %v1437
          %v2110 = vunpack.c.h.b16 %v1437
          %v2111 = vunpack.c.l.b16 %v1438
          %v2112 = vunpack.c.h.b16 %v1438
          %v2113 = vunpack.c.l.b16 %v1439
          %v2114 = vunpack.c.h.b16 %v1439
          %v2115 = vunpack.c.l.b16 %v1440
          %v2116 = vunpack.c.h.b16 %v1440
          %v2117 = vunpack.c.l.b16 %v1441
          %v2118 = vunpack.c.h.b16 %v1441
          %v2119 = vunpack.c.l.b16 %v1442
          %v2120 = vunpack.c.h.b16 %v1442
          %v2121 = vunpack.c.l.b16 %v1443
          %v2122 = vunpack.c.h.b16 %v1443
          %v2123 = vunpack.c.l.b16 %v1444
          %v2124 = vunpack.c.h.b16 %v1444
          %v2125 = vunpack.c.l.b16 %v1445
          %v2126 = vunpack.c.h.b16 %v1445
          %v2127 = vunpack.c.l.b16 %v1446
          %v2128 = vunpack.c.h.b16 %v1446
          %v2129 = vunpack.c.l.b16 %v1447
          %v2130 = vunpack.c.h.b16 %v1447
          %v2131 = vunpack.c.l.b16 %v1448
          %v2132 = vunpack.c.h.b16 %v1448
          %v2133 = vunpack.c.l.b16 %v1449
          %v2134 = vunpack.c.h.b16 %v1449
          %v2135 = vunpack.c.l.b16 %v1450
          %v2136 = vunpack.c.h.b16 %v1450
          %v2137 = vunpack.c.l.b16 %v1451
          %v2138 = vunpack.c.h.b16 %v1451
          %v2139 = vunpack.c.l.b16 %v1452
          %v2140 = vunpack.c.h.b16 %v1452
          %v2141 = vunpack.c.l.b16 %v1453
          %v2142 = vunpack.c.h.b16 %v1453
          %v2143 = vunpack.c.l.b16 %v1454
          %v2144 = vunpack.c.h.b16 %v1454
          %v2145 = vunpack.c.l.b16 %v1455
          %v2146 = vunpack.c.h.b16 %v1455
          %v2147 = vunpack.c.l.b16 %v1456
          %v2148 = vunpack.c.h.b16 %v1456
          %v2149 = vunpack.c.l.b16 %v1457
          %v2150 = vunpack.c.h.b16 %v1457
          %v2151 = vunpack.c.l.b16 %v1458
          %v2152 = vunpack.c.h.b16 %v1458
          %v2153 = vunpack.c.l.b16 %v1459
          %v2154 = vunpack.c.h.b16 %v1459
          %v2155 = vunpack.c.l.b16 %v1460
          %v2156 = vunpack.c.h.b16 %v1460
          %v2157 = vunpack.c.l.b16 %v1461
          %v2158 = vunpack.c.h.b16 %v1461
          %v2159 = vunpack.c.l.b16 %v1462
          %v2160 = vunpack.c.h.b16 %v1462
          %v2161 = vunpack.c.l.b16 %v1463
          %v2162 = vunpack.c.h.b16 %v1463
          %v2163 = vunpack.c.l.b16 %v1464
          %v2164 = vunpack.c.h.b16 %v1464
          %v2165 = vunpack.c.l.b16 %v1465
          %v2166 = vunpack.c.h.b16 %v1465
          %v2167 = vunpack.c.l.b16 %v1466
          %v2168 = vunpack.c.h.b16 %v1466
          %v2169 = vunpack.c.l.b16 %v1467
          %v2170 = vunpack.c.h.b16 %v1467
          %v2171 = vunpack.c.l.b16 %v1468
          %v2172 = vunpack.c.h.b16 %v1468
          %v2173 = vunpack.c.l.b16 %v1469
          %v2174 = vunpack.c.h.b16 %v1469
          %v2175 = vunpack.c.l.b16 %v1470
          %v2176 = vunpack.c.h.b16 %v1470
          %v2177 = vunpack.c.l.b16 %v1471
          %v2178 = vunpack.c.h.b16 %v1471
          %v2179 = vunpack.c.l.b16 %v1472
          %v2180 = vunpack.c.h.b16 %v1472
          %v2181 = vunpack.c.l.b16 %v1473
          %v2182 = vunpack.c.h.b16 %v1473
          %v2183 = vunpack.c.l.b16 %v1474
          %v2184 = vunpack.c.h.b16 %v1474
          %v2185 = vunpack.c.l.b16 %v1475
          %v2186 = vunpack.c.h.b16 %v1475
          %v2187 = vunpack.c.l.b16 %v1476
          %v2188 = vunpack.c.h.b16 %v1476
          %v2189 = vunpack.c.l.b16 %v1477
          %v2190 = vunpack.c.h.b16 %v1477
          %v2191 = vunpack.c.l.b16 %v1478
          %v2192 = vunpack.c.h.b16 %v1478
          %v2193 = vunpack.c.l.b16 %v1479
          %v2194 = vunpack.c.h.b16 %v1479
          %v2195 = vunpack.c.l.b16 %v1480
          %v2196 = vunpack.c.h.b16 %v1480
          %v2197 = vunpack.c.l.b16 %v1481
          %v2198 = vunpack.c.h.b16 %v1481
          %v2199 = vunpack.c.l.b16 %v1482
          %v2200 = vunpack.c.h.b16 %v1482
          %v2201 = vunpack.c.l.b16 %v1483
          %v2202 = vunpack.c.h.b16 %v1483
          %v2203 = vunpack.c.l.b16 %v1484
          %v2204 = vunpack.c.h.b16 %v1484
          %v2205 = vunpack.c.l.b16 %v1485
          %v2206 = vunpack.c.h.b16 %v1485
          %v2207 = vunpack.c.l.b16 %v1486
          %v2208 = vunpack.c.h.b16 %v1486
          %v2209 = vunpack.c.l.b16 %v1487
          %v2210 = vunpack.c.h.b16 %v1487
          %v2211 = vunpack.c.l.b16 %v1488
          %v2212 = vunpack.c.h.b16 %v1488
          %v2213 = vunpack.c.l.b16 %v1489
          %v2214 = vunpack.c.h.b16 %v1489
          %v2215 = vunpack.c.l.b16 %v1490
          %v2216 = vunpack.c.h.b16 %v1490
          %v2217 = vunpack.c.l.b16 %v1491
          %v2218 = vunpack.c.h.b16 %v1491
          %v2219 = vunpack.c.l.b16 %v1492
          %v2220 = vunpack.c.h.b16 %v1492
          %v2221 = vunpack.c.l.b16 %v1493
          %v2222 = vunpack.c.h.b16 %v1493
          %v2223 = vunpack.c.l.b16 %v1494
          %v2224 = vunpack.c.h.b16 %v1494
          %v2225 = vunpack.c.l.b16 %v1495
          %v2226 = vunpack.c.h.b16 %v1495
          %v2227 = vunpack.c.l.b16 %v1496
          %v2228 = vunpack.c.h.b16 %v1496
          %v2229 = vunpack.c.l.b16 %v1497
          %v2230 = vunpack.c.h.b16 %v1497
          %v2231 = vunpack.c.l.b16 %v1498
          %v2232 = vunpack.c.h.b16 %v1498
          %v2233 = vunpack.c.l.b16 %v1499
          %v2234 = vunpack.c.h.b16 %v1499
          %v2235 = vunpack.c.l.b16 %v1500
          %v2236 = vunpack.c.h.b16 %v1500
          %v2237 = vunpack.c.l.b16 %v1501
          %v2238 = vunpack.c.h.b16 %v1501
          %v2239 = vunpack.c.l.b16 %v1502
          %v2240 = vunpack.c.h.b16 %v1502
          %v2241 = vunpack.c.l.b16 %v1503
          %v2242 = vunpack.c.h.b16 %v1503
          %v2243 = vunpack.c.l.b16 %v1504
          %v2244 = vunpack.c.h.b16 %v1504
          %v2245 = vunpack.c.l.b16 %v1505
          %v2246 = vunpack.c.h.b16 %v1505
          %v2247 = vunpack.c.l.b16 %v1506
          %v2248 = vunpack.c.h.b16 %v1506
          %v2249 = vunpack.c.l.b16 %v1507
          %v2250 = vunpack.c.h.b16 %v1507
          %v2251 = vunpack.c.l.b16 %v1508
          %v2252 = vunpack.c.h.b16 %v1508
          %v2253 = vunpack.c.l.b16 %v1509
          %v2254 = vunpack.c.h.b16 %v1509
          %v2255 = vunpack.c.l.b16 %v1510
          %v2256 = vunpack.c.h.b16 %v1510
          %v2257 = vunpack.c.l.b16 %v1511
          %v2258 = vunpack.c.h.b16 %v1511
          %v2259 = vunpack.c.l.b16 %v1512
          %v2260 = vunpack.c.h.b16 %v1512
          %v2261 = vunpack.c.l.b16 %v1513
          %v2262 = vunpack.c.h.b16 %v1513
          %v2263 = vunpack.c.l.b16 %v1514
          %v2264 = vunpack.c.h.b16 %v1514
          %v2265 = vunpack.c.l.b16 %v1515
          %v2266 = vunpack.c.h.b16 %v1515
          %v2267 = vunpack.c.l.b16 %v1516
          %v2268 = vunpack.c.h.b16 %v1516
          %v2269 = vunpack.c.l.b16 %v1517
          %v2270 = vunpack.c.h.b16 %v1517
          %v2271 = vunpack.c.l.b16 %v1518
          %v2272 = vunpack.c.h.b16 %v1518
          %v2273 = vunpack.c.l.b16 %v1519
          %v2274 = vunpack.c.h.b16 %v1519
          %v2275 = vunpack.c.l.b16 %v1520
          %v2276 = vunpack.c.h.b16 %v1520
          %v2277 = vunpack.c.l.b16 %v1521
          %v2278 = vunpack.c.h.b16 %v1521
          %v2279 = vunpack.c.l.b16 %v1522
          %v2280 = vunpack.c.h.b16 %v1522
          %v2281 = vunpack.c.l.b16 %v1523
          %v2282 = vunpack.c.h.b16 %v1523
          %v2283 = vunpack.c.l.b16 %v1524
          %v2284 = vunpack.c.h.b16 %v1524
          %v2285 = vunpack.c.l.b16 %v1525
          %v2286 = vunpack.c.h.b16 %v1525
          %v2287 = vunpack.c.l.b16 %v1526
          %v2288 = vunpack.c.h.b16 %v1526
          %v2289 = vunpack.c.l.b16 %v1527
          %v2290 = vunpack.c.h.b16 %v1527
          %v2291 = vunpack.c.l.b16 %v1528
          %v2292 = vunpack.c.h.b16 %v1528
          %v2293 = vunpack.c.l.b16 %v1529
          %v2294 = vunpack.c.h.b16 %v1529
          %v2295 = vunpack.c.l.b16 %v1530
          %v2296 = vunpack.c.h.b16 %v1530
          %v2297 = vunpack.c.l.b16 %v1531
          %v2298 = vunpack.c.h.b16 %v1531
          %v2299 = vunpack.c.l.b16 %v1532
          %v2300 = vunpack.c.h.b16 %v1532
          %v2301 = vunpack.c.l.b16 %v1533
          %v2302 = vunpack.c.h.b16 %v1533
          %v2303 = vunpack.c.l.b16 %v1534
          %v2304 = vunpack.c.h.b16 %v1534
          %v2305 = vunpack.c.l.b16 %v1535
          %v2306 = vunpack.c.h.b16 %v1535
          %v2307 = vunpack.c.l.b16 %v1536
          %v2308 = vunpack.c.h.b16 %v1536
          %v2309 = vunpack.c.l.b16 %v1537
          %v2310 = vunpack.c.h.b16 %v1537
          %v2311 = vunpack.c.l.b16 %v1538
          %v2312 = vunpack.c.h.b16 %v1538
          %v2313 = vunpack.c.l.b16 %v1539
          %v2314 = vunpack.c.h.b16 %v1539
          %v2315 = vunpack.c.l.b16 %v1540
          %v2316 = vunpack.c.h.b16 %v1540
          %v2317 = vunpack.c.l.b16 %v1541
          %v2318 = vunpack.c.h.b16 %v1541
          %v2319 = vunpack.c.l.b16 %v1542
          %v2320 = vunpack.c.h.b16 %v1542
          %v2321 = vunpack.c.l.b16 %v1543
          %v2322 = vunpack.c.h.b16 %v1543
          %v2323 = vunpack.c.l.b16 %v1544
          %v2324 = vunpack.c.h.b16 %v1544
          %v2325 = vunpack.c.l.b16 %v1545
          %v2326 = vunpack.c.h.b16 %v1545
          %v2327 = vunpack.c.l.b16 %v1546
          %v2328 = vunpack.c.h.b16 %v1546
          %v2329 = vunpack.c.l.b16 %v1547
          %v2330 = vunpack.c.h.b16 %v1547
          %v2331 = vunpack.c.l.b16 %v1548
          %v2332 = vunpack.c.h.b16 %v1548
          %v2333 = vunpack.c.l.b16 %v1549
          %v2334 = vunpack.c.h.b16 %v1549
          %v2335 = vunpack.c.l.b16 %v1550
          %v2336 = vunpack.c.h.b16 %v1550
          %v2337 = vunpack.c.l.b16 %v1551
          %v2338 = vunpack.c.h.b16 %v1551
          %v2339 = vunpack.c.l.b16 %v1552
          %v2340 = vunpack.c.h.b16 %v1552
          %v2341 = vunpack.c.l.b16 %v1553
          %v2342 = vunpack.c.h.b16 %v1553
          %v2343 = vunpack.c.l.b16 %v1554
          %v2344 = vunpack.c.h.b16 %v1554
          %v2345 = vunpack.c.l.b16 %v1555
          %v2346 = vunpack.c.h.b16 %v1555
          %v2347 = vunpack.c.l.b16 %v1556
          %v2348 = vunpack.c.h.b16 %v1556
          %v2349 = vunpack.c.l.b16 %v1557
          %v2350 = vunpack.c.h.b16 %v1557
          %v2351 = vunpack.c.l.b16 %v1558
          %v2352 = vunpack.c.h.b16 %v1558
          %v2353 = vunpack.c.l.b16 %v1559
          %v2354 = vunpack.c.h.b16 %v1559
          %v2355 = vunpack.c.l.b16 %v1560
          %v2356 = vunpack.c.h.b16 %v1560
          %v2357 = vunpack.c.l.b16 %v1561
          %v2358 = vunpack.c.h.b16 %v1561
          %v2359 = vunpack.c.l.b16 %v1562
          %v2360 = vunpack.c.h.b16 %v1562
          %v2361 = vunpack.c.l.b16 %v1563
          %v2362 = vunpack.c.h.b16 %v1563
          %v2363 = vunpack.c.l.b16 %v1564
          %v2364 = vunpack.c.h.b16 %v1564
          %v2365 = vunpack.c.l.b16 %v1565
          %v2366 = vunpack.c.h.b16 %v1565
          %v2367 = vunpack.c.l.b16 %v1566
          %v2368 = vunpack.c.h.b16 %v1566
          %v2369 = vunpack.c.l.b16 %v1567
          %v2370 = vunpack.c.h.b16 %v1567
          %v2371 = vunpack.c.l.b16 %v1568
          %v2372 = vunpack.c.h.b16 %v1568
          %v2373 = vunpack.c.l.b16 %v1569
          %v2374 = vunpack.c.h.b16 %v1569
          %v2375 = vunpack.c.l.b16 %v1570
          %v2376 = vunpack.c.h.b16 %v1570
          %v2377 = vunpack.c.l.b16 %v1571
          %v2378 = vunpack.c.h.b16 %v1571
          %v2379 = vunpack.c.l.b16 %v1572
          %v2380 = vunpack.c.h.b16 %v1572
          %v2381 = vunpack.c.l.b16 %v1573
          %v2382 = vunpack.c.h.b16 %v1573
          %v2383 = vunpack.c.l.b16 %v1574
          %v2384 = vunpack.c.h.b16 %v1574
          %v2385 = vunpack.c.l.b16 %v1575
          %v2386 = vunpack.c.h.b16 %v1575
          %v2387 = vunpack.c.l.b16 %v1576
          %v2388 = vunpack.c.h.b16 %v1576
          %v2389 = vunpack.c.l.b16 %v1577
          %v2390 = vunpack.c.h.b16 %v1577
          %v2391 = vunpack.c.l.b16 %v1578
          %v2392 = vunpack.c.h.b16 %v1578
          %v2393 = vunpack.c.l.b16 %v1579
          %v2394 = vunpack.c.h.b16 %v1579
          %v2395 = vunpack.c.l.b16 %v1580
          %v2396 = vunpack.c.h.b16 %v1580
          %v2397 = vunpack.c.l.b16 %v1581
          %v2398 = vunpack.c.h.b16 %v1581
          %v2399 = vunpack.c.l.b16 %v1582
          %v2400 = vunpack.c.h.b16 %v1582
          %v2401 = vunpack.c.l.b16 %v1583
          %v2402 = vunpack.c.h.b16 %v1583
          %v2403 = vunpack.c.l.b16 %v1584
          %v2404 = vunpack.c.h.b16 %v1584
          %v2405 = vunpack.c.l.b16 %v1585
          %v2406 = vunpack.c.h.b16 %v1585
          %v2407 = vunpack.c.l.b16 %v1586
          %v2408 = vunpack.c.h.b16 %v1586
          %v2409 = vunpack.c.l.b16 %v1587
          %v2410 = vunpack.c.h.b16 %v1587
          %v2411 = vunpack.c.l.b16 %v1588
          %v2412 = vunpack.c.h.b16 %v1588
          %v2413 = vunpack.c.l.b16 %v1589
          %v2414 = vunpack.c.h.b16 %v1589
          %v2415 = vunpack.c.l.b16 %v1590
          %v2416 = vunpack.c.h.b16 %v1590
          %v2417 = vunpack.c.l.b16 %v1591
          %v2418 = vunpack.c.h.b16 %v1591
          %v2419 = vunpack.c.l.b16 %v1592
          %v2420 = vunpack.c.h.b16 %v1592
          %v2421 = vunpack.c.l.b16 %v1593
          %v2422 = vunpack.c.h.b16 %v1593
          %v2423 = vunpack.c.l.b16 %v1594
          %v2424 = vunpack.c.h.b16 %v1594
          %v2425 = vunpack.c.l.b16 %v1595
          %v2426 = vunpack.c.h.b16 %v1595
          %v2427 = vunpack.c.l.b16 %v1596
          %v2428 = vunpack.c.h.b16 %v1596
          %v2429 = vunpack.c.l.b16 %v1597
          %v2430 = vunpack.c.h.b16 %v1597
          %v2431 = vunpack.c.l.b16 %v1598
          %v2432 = vunpack.c.h.b16 %v1598
          %v2433 = vunpack.c.l.b16 %v1599
          %v2434 = vunpack.c.h.b16 %v1599
          %v2435 = vunpack.c.l.b16 %v1600
          %v2436 = vunpack.c.h.b16 %v1600
          %v2437 = vunpack.c.l.b16 %v1601
          %v2438 = vunpack.c.h.b16 %v1601
          %v2439 = vunpack.c.l.b16 %v1602
          %v2440 = vunpack.c.h.b16 %v1602
          %v2441 = vunpack.c.l.b16 %v1603
          %v2442 = vunpack.c.h.b16 %v1603
          %v2443 = vunpack.c.l.b16 %v1604
          %v2444 = vunpack.c.h.b16 %v1604
          %v2445 = vpack.c.b16 %v1965, %v1933
          %v2446 = vpack.c.b16 %v1966, %v1934
          %v2447 = vpack.c.b16 %v1967, %v1935
          %v2448 = vpack.c.b16 %v1968, %v1936
          %v2449 = vpack.c.b16 %v1969, %v1937
          %v2450 = vpack.c.b16 %v1970, %v1938
          %v2451 = vpack.c.b16 %v1971, %v1939
          %v2452 = vpack.c.b16 %v1972, %v1940
          %v2453 = vpack.c.b16 %v1973, %v1941
          %v2454 = vpack.c.b16 %v1974, %v1942
          %v2455 = vpack.c.b16 %v1975, %v1943
          %v2456 = vpack.c.b16 %v1976, %v1944
          %v2457 = vpack.c.b16 %v1977, %v1945
          %v2458 = vpack.c.b16 %v1978, %v1946
          %v2459 = vpack.c.b16 %v1979, %v1947
          %v2460 = vpack.c.b16 %v1980, %v1948
          %v2461 = vpack.c.b16 %v1981, %v1949
          %v2462 = vpack.c.b16 %v1982, %v1950
          %v2463 = vpack.c.b16 %v1983, %v1951
          %v2464 = vpack.c.b16 %v1984, %v1952
          %v2465 = vpack.c.b16 %v1985, %v1953
          %v2466 = vpack.c.b16 %v1986, %v1954
          %v2467 = vpack.c.b16 %v1987, %v1955
          %v2468 = vpack.c.b16 %v1988, %v1956
          %v2469 = vpack.c.b16 %v1989, %v1957
          %v2470 = vpack.c.b16 %v1990, %v1958
          %v2471 = vpack.c.b16 %v1991, %v1959
          %v2472 = vpack.c.b16 %v1992, %v1960
          %v2473 = vpack.c.b16 %v1993, %v1961
          %v2474 = vpack.c.b16 %v1994, %v1962
          %v2475 = vpack.c.b16 %v1995, %v1963
          %v2476 = vpack.c.b16 %v1996, %v1964
          %v2477 = vpack.c.b16 %v2029, %v1997
          %v2478 = vpack.c.b16 %v2030, %v1998
          %v2479 = vpack.c.b16 %v2031, %v1999
          %v2480 = vpack.c.b16 %v2032, %v2000
          %v2481 = vpack.c.b16 %v2033, %v2001
          %v2482 = vpack.c.b16 %v2034, %v2002
          %v2483 = vpack.c.b16 %v2035, %v2003
          %v2484 = vpack.c.b16 %v2036, %v2004
          %v2485 = vpack.c.b16 %v2037, %v2005
          %v2486 = vpack.c.b16 %v2038, %v2006
          %v2487 = vpack.c.b16 %v2039, %v2007
          %v2488 = vpack.c.b16 %v2040, %v2008
          %v2489 = vpack.c.b16 %v2041, %v2009
          %v2490 = vpack.c.b16 %v2042, %v2010
          %v2491 = vpack.c.b16 %v2043, %v2011
          %v2492 = vpack.c.b16 %v2044, %v2012
          %v2493 = vpack.c.b16 %v2045, %v2013
          %v2494 = vpack.c.b16 %v2046, %v2014
          %v2495 = vpack.c.b16 %v2047, %v2015
          %v2496 = vpack.c.b16 %v2048, %v2016
          %v2497 = vpack.c.b16 %v2049, %v2017
          %v2498 = vpack.c.b16 %v2050, %v2018
          %v2499 = vpack.c.b16 %v2051, %v2019
          %v2500 = vpack.c.b16 %v2052, %v2020
          %v2501 = vpack.c.b16 %v2053, %v2021
          %v2502 = vpack.c.b16 %v2054, %v2022
          %v2503 = vpack.c.b16 %v2055, %v2023
          %v2504 = vpack.c.b16 %v2056, %v2024
          %v2505 = vpack.c.b16 %v2057, %v2025
          %v2506 = vpack.c.b16 %v2058, %v2026
          %v2507 = vpack.c.b16 %v2059, %v2027
          %v2508 = vpack.c.b16 %v2060, %v2028
          %v2509 = vpack.c.b16 %v2093, %v2061
          %v2510 = vpack.c.b16 %v2094, %v2062
          %v2511 = vpack.c.b16 %v2095, %v2063
          %v2512 = vpack.c.b16 %v2096, %v2064
          %v2513 = vpack.c.b16 %v2097, %v2065
          %v2514 = vpack.c.b16 %v2098, %v2066
          %v2515 = vpack.c.b16 %v2099, %v2067
          %v2516 = vpack.c.b16 %v2100, %v2068
          %v2517 = vpack.c.b16 %v2101, %v2069
          %v2518 = vpack.c.b16 %v2102, %v2070
          %v2519 = vpack.c.b16 %v2103, %v2071
          %v2520 = vpack.c.b16 %v2104, %v2072
          %v2521 = vpack.c.b16 %v2105, %v2073
          %v2522 = vpack.c.b16 %v2106, %v2074
          %v2523 = vpack.c.b16 %v2107, %v2075
          %v2524 = vpack.c.b16 %v2108, %v2076
          %v2525 = vpack.c.b16 %v2109, %v2077
          %v2526 = vpack.c.b16 %v2110, %v2078
          %v2527 = vpack.c.b16 %v2111, %v2079
          %v2528 = vpack.c.b16 %v2112, %v2080
          %v2529 = vpack.c.b16 %v2113, %v2081
          %v2530 = vpack.c.b16 %v2114, %v2082
          %v2531 = vpack.c.b16 %v2115, %v2083
          %v2532 = vpack.c.b16 %v2116, %v2084
          %v2533 = vpack.c.b16 %v2117, %v2085
          %v2534 = vpack.c.b16 %v2118, %v2086
          %v2535 = vpack.c.b16 %v2119, %v2087
          %v2536 = vpack.c.b16 %v2120, %v2088
          %v2537 = vpack.c.b16 %v2121, %v2089
          %v2538 = vpack.c.b16 %v2122, %v2090
          %v2539 = vpack.c.b16 %v2123, %v2091
          %v2540 = vpack.c.b16 %v2124, %v2092
          %v2541 = vpack.c.b16 %v2157, %v2125
          %v2542 = vpack.c.b16 %v2158, %v2126
          %v2543 = vpack.c.b16 %v2159, %v2127
          %v2544 = vpack.c.b16 %v2160, %v2128
          %v2545 = vpack.c.b16 %v2161, %v2129
          %v2546 = vpack.c.b16 %v2162, %v2130
          %v2547 = vpack.c.b16 %v2163, %v2131
          %v2548 = vpack.c.b16 %v2164, %v2132
          %v2549 = vpack.c.b16 %v2165, %v2133
          %v2550 = vpack.c.b16 %v2166, %v2134
          %v2551 = vpack.c.b16 %v2167, %v2135
          %v2552 = vpack.c.b16 %v2168, %v2136
          %v2553 = vpack.c.b16 %v2169, %v2137
          %v2554 = vpack.c.b16 %v2170, %v2138
          %v2555 = vpack.c.b16 %v2171, %v2139
          %v2556 = vpack.c.b16 %v2172, %v2140
          %v2557 = vpack.c.b16 %v2173, %v2141
          %v2558 = vpack.c.b16 %v2174, %v2142
          %v2559 = vpack.c.b16 %v2175, %v2143
          %v2560 = vpack.c.b16 %v2176, %v2144
          %v2561 = vpack.c.b16 %v2177, %v2145
          %v2562 = vpack.c.b16 %v2178, %v2146
          %v2563 = vpack.c.b16 %v2179, %v2147
          %v2564 = vpack.c.b16 %v2180, %v2148
          %v2565 = vpack.c.b16 %v2181, %v2149
          %v2566 = vpack.c.b16 %v2182, %v2150
          %v2567 = vpack.c.b16 %v2183, %v2151
          %v2568 = vpack.c.b16 %v2184, %v2152
          %v2569 = vpack.c.b16 %v2185, %v2153
          %v2570 = vpack.c.b16 %v2186, %v2154
          %v2571 = vpack.c.b16 %v2187, %v2155
          %v2572 = vpack.c.b16 %v2188, %v2156
          %v2573 = vpack.c.b16 %v2221, %v2189
          %v2574 = vpack.c.b16 %v2222, %v2190
          %v2575 = vpack.c.b16 %v2223, %v2191
          %v2576 = vpack.c.b16 %v2224, %v2192
          %v2577 = vpack.c.b16 %v2225, %v2193
          %v2578 = vpack.c.b16 %v2226, %v2194
          %v2579 = vpack.c.b16 %v2227, %v2195
          %v2580 = vpack.c.b16 %v2228, %v2196
          %v2581 = vpack.c.b16 %v2229, %v2197
          %v2582 = vpack.c.b16 %v2230, %v2198
          %v2583 = vpack.c.b16 %v2231, %v2199
          %v2584 = vpack.c.b16 %v2232, %v2200
          %v2585 = vpack.c.b16 %v2233, %v2201
          %v2586 = vpack.c.b16 %v2234, %v2202
          %v2587 = vpack.c.b16 %v2235, %v2203
          %v2588 = vpack.c.b16 %v2236, %v2204
          %v2589 = vpack.c.b16 %v2237, %v2205
          %v2590 = vpack.c.b16 %v2238, %v2206
          %v2591 = vpack.c.b16 %v2239, %v2207
          %v2592 = vpack.c.b16 %v2240, %v2208
          %v2593 = vpack.c.b16 %v2241, %v2209
          %v2594 = vpack.c.b16 %v2242, %v2210
          %v2595 = vpack.c.b16 %v2243, %v2211
          %v2596 = vpack.c.b16 %v2244, %v2212
          %v2597 = vpack.c.b16 %v2245, %v2213
          %v2598 = vpack.c.b16 %v2246, %v2214
          %v2599 = vpack.c.b16 %v2247, %v2215
          %v2600 = vpack.c.b16 %v2248, %v2216
          %v2601 = vpack.c.b16 %v2249, %v2217
          %v2602 = vpack.c.b16 %v2250, %v2218
          %v2603 = vpack.c.b16 %v2251, %v2219
          %v2604 = vpack.c.b16 %v2252, %v2220
          %v2605 = vpack.c.b16 %v2285, %v2253
          %v2606 = vpack.c.b16 %v2286, %v2254
          %v2607 = vpack.c.b16 %v2287, %v2255
          %v2608 = vpack.c.b16 %v2288, %v2256
          %v2609 = vpack.c.b16 %v2289, %v2257
          %v2610 = vpack.c.b16 %v2290, %v2258
          %v2611 = vpack.c.b16 %v2291, %v2259
          %v2612 = vpack.c.b16 %v2292, %v2260
          %v2613 = vpack.c.b16 %v2293, %v2261
          %v2614 = vpack.c.b16 %v2294, %v2262
          %v2615 = vpack.c.b16 %v2295, %v2263
          %v2616 = vpack.c.b16 %v2296, %v2264
          %v2617 = vpack.c.b16 %v2297, %v2265
          %v2618 = vpack.c.b16 %v2298, %v2266
          %v2619 = vpack.c.b16 %v2299, %v2267
          %v2620 = vpack.c.b16 %v2300, %v2268
          %v2621 = vpack.c.b16 %v2301, %v2269
          %v2622 = vpack.c.b16 %v2302, %v2270
          %v2623 = vpack.c.b16 %v2303, %v2271
          %v2624 = vpack.c.b16 %v2304, %v2272
          %v2625 = vpack.c.b16 %v2305, %v2273
          %v2626 = vpack.c.b16 %v2306, %v2274
          %v2627 = vpack.c.b16 %v2307, %v2275
          %v2628 = vpack.c.b16 %v2308, %v2276
          %v2629 = vpack.c.b16 %v2309, %v2277
          %v2630 = vpack.c.b16 %v2310, %v2278
          %v2631 = vpack.c.b16 %v2311, %v2279
          %v2632 = vpack.c.b16 %v2312, %v2280
          %v2633 = vpack.c.b16 %v2313, %v2281
          %v2634 = vpack.c.b16 %v2314, %v2282
          %v2635 = vpack.c.b16 %v2315, %v2283
          %v2636 = vpack.c.b16 %v2316, %v2284
          %v2637 = vpack.c.b16 %v2349, %v2317
          %v2638 = vpack.c.b16 %v2350, %v2318
          %v2639 = vpack.c.b16 %v2351, %v2319
          %v2640 = vpack.c.b16 %v2352, %v2320
          %v2641 = vpack.c.b16 %v2353, %v2321
          %v2642 = vpack.c.b16 %v2354, %v2322
          %v2643 = vpack.c.b16 %v2355, %v2323
          %v2644 = vpack.c.b16 %v2356, %v2324
          %v2645 = vpack.c.b16 %v2357, %v2325
          %v2646 = vpack.c.b16 %v2358, %v2326
          %v2647 = vpack.c.b16 %v2359, %v2327
          %v2648 = vpack.c.b16 %v2360, %v2328
          %v2649 = vpack.c.b16 %v2361, %v2329
          %v2650 = vpack.c.b16 %v2362, %v2330
          %v2651 = vpack.c.b16 %v2363, %v2331
          %v2652 = vpack.c.b16 %v2364, %v2332
          %v2653 = vpack.c.b16 %v2365, %v2333
          %v2654 = vpack.c.b16 %v2366, %v2334
          %v2655 = vpack.c.b16 %v2367, %v2335
          %v2656 = vpack.c.b16 %v2368, %v2336
          %v2657 = vpack.c.b16 %v2369, %v2337
          %v2658 = vpack.c.b16 %v2370, %v2338
          %v2659 = vpack.c.b16 %v2371, %v2339
          %v2660 = vpack.c.b16 %v2372, %v2340
          %v2661 = vpack.c.b16 %v2373, %v2341
          %v2662 = vpack.c.b16 %v2374, %v2342
          %v2663 = vpack.c.b16 %v2375, %v2343
          %v2664 = vpack.c.b16 %v2376, %v2344
          %v2665 = vpack.c.b16 %v2377, %v2345
          %v2666 = vpack.c.b16 %v2378, %v2346
          %v2667 = vpack.c.b16 %v2379, %v2347
          %v2668 = vpack.c.b16 %v2380, %v2348
          %v2669 = vpack.c.b16 %v2413, %v2381
          %v2670 = vpack.c.b16 %v2414, %v2382
          %v2671 = vpack.c.b16 %v2415, %v2383
          %v2672 = vpack.c.b16 %v2416, %v2384
          %v2673 = vpack.c.b16 %v2417, %v2385
          %v2674 = vpack.c.b16 %v2418, %v2386
          %v2675 = vpack.c.b16 %v2419, %v2387
          %v2676 = vpack.c.b16 %v2420, %v2388
          %v2677 = vpack.c.b16 %v2421, %v2389
          %v2678 = vpack.c.b16 %v2422, %v2390
          %v2679 = vpack.c.b16 %v2423, %v2391
          %v2680 = vpack.c.b16 %v2424, %v2392
          %v2681 = vpack.c.b16 %v2425, %v2393
          %v2682 = vpack.c.b16 %v2426, %v2394
          %v2683 = vpack.c.b16 %v2427, %v2395
          %v2684 = vpack.c.b16 %v2428, %v2396
          %v2685 = vpack.c.b16 %v2429, %v2397
          %v2686 = vpack.c.b16 %v2430, %v2398
          %v2687 = vpack.c.b16 %v2431, %v2399
          %v2688 = vpack.c.b16 %v2432, %v2400
          %v2689 = vpack.c.b16 %v2433, %v2401
          %v2690 = vpack.c.b16 %v2434, %v2402
          %v2691 = vpack.c.b16 %v2435, %v2403
          %v2692 = vpack.c.b16 %v2436, %v2404
          %v2693 = vpack.c.b16 %v2437, %v2405
          %v2694 = vpack.c.b16 %v2438, %v2406
          %v2695 = vpack.c.b16 %v2439, %v2407
          %v2696 = vpack.c.b16 %v2440, %v2408
          %v2697 = vpack.c.b16 %v2441, %v2409
          %v2698 = vpack.c.b16 %v2442, %v2410
          %v2699 = vpack.c.b16 %v2443, %v2411
          %v2700 = vpack.c.b16 %v2444, %v2412
          %2957 = vmatpush.bf16.msra.mxu0 %v2669
          %2958 = vmatpush.bf16.msra.mxu0 %v2637
          %2959 = vmatpush.bf16.msra.mxu0 %v2605
          %2960 = vmatpush.bf16.msra.mxu0 %v2573
          %2961 = vmatpush.bf16.msra.mxu0 %v2541
          %2962 = vmatpush.bf16.msra.mxu0 %v2509
          %2963 = vmatpush.bf16.msra.mxu0 %v2477
          %2964 = vmatpush.bf16.msra.mxu0 %v2445
          %2965 = vmatmul.bf16.gmra.mxu0 %v1348
          %v2966 = vpop.f32.mrf.mxu0
          %v2967 = vadd.f32 %v1613, %v2966
          %v2968 = vpop.f32.mrf.mxu0
          %2969 = vdwg.mxu0
          %2970 = vmatpush.bf16.msra.mxu0 %v2670
          %2971 = vmatpush.bf16.msra.mxu0 %v2638
          %2972 = vmatpush.bf16.msra.mxu0 %v2606
          %2973 = vmatpush.bf16.msra.mxu0 %v2574
          %2974 = vmatpush.bf16.msra.mxu0 %v2542
          %2975 = vmatpush.bf16.msra.mxu0 %v2510
          %2976 = vmatpush.bf16.msra.mxu0 %v2478
          %2977 = vmatpush.bf16.msra.mxu0 %v2446
          %2978 = vmatmul.bf16.gmra.mxu0 %v1348
          %v2979 = vpop.f32.mrf.mxu0
          %v2980 = vadd.f32 %v1614, %v2979
          %v2981 = vpop.f32.mrf.mxu0
          %2982 = vdwg.mxu0
          %2983 = vmatpush.bf16.msra.mxu0 %v2671
          %2984 = vmatpush.bf16.msra.mxu0 %v2639
          %2985 = vmatpush.bf16.msra.mxu0 %v2607
          %2986 = vmatpush.bf16.msra.mxu0 %v2575
          %2987 = vmatpush.bf16.msra.mxu0 %v2543
          %2988 = vmatpush.bf16.msra.mxu0 %v2511
          %2989 = vmatpush.bf16.msra.mxu0 %v2479
          %2990 = vmatpush.bf16.msra.mxu0 %v2447
          %2991 = vmatmul.bf16.gmra.mxu0 %v1348
          %v2992 = vpop.f32.mrf.mxu0
          %v2993 = vadd.f32 %v1615, %v2992
          %v2994 = vpop.f32.mrf.mxu0
          %2995 = vdwg.mxu0
          %2996 = vmatpush.bf16.msra.mxu0 %v2672
          %2997 = vmatpush.bf16.msra.mxu0 %v2640
          %2998 = vmatpush.bf16.msra.mxu0 %v2608
          %2999 = vmatpush.bf16.msra.mxu0 %v2576
          %3000 = vmatpush.bf16.msra.mxu0 %v2544
          %3001 = vmatpush.bf16.msra.mxu0 %v2512
          %3002 = vmatpush.bf16.msra.mxu0 %v2480
          %3003 = vmatpush.bf16.msra.mxu0 %v2448
          %3004 = vmatmul.bf16.gmra.mxu0 %v1348
          %v3005 = vpop.f32.mrf.mxu0
          %v3006 = vadd.f32 %v1616, %v3005
          %v3007 = vpop.f32.mrf.mxu0
          %3008 = vdwg.mxu0
          %3009 = vmatpush.bf16.msra.mxu0 %v2673
          %3010 = vmatpush.bf16.msra.mxu0 %v2641
          %3011 = vmatpush.bf16.msra.mxu0 %v2609
          %3012 = vmatpush.bf16.msra.mxu0 %v2577
          %3013 = vmatpush.bf16.msra.mxu0 %v2545
          %3014 = vmatpush.bf16.msra.mxu0 %v2513
          %3015 = vmatpush.bf16.msra.mxu0 %v2481
          %3016 = vmatpush.bf16.msra.mxu0 %v2449
          %3017 = vmatmul.bf16.gmra.mxu0 %v1348
          %v3018 = vpop.f32.mrf.mxu0
          %v3019 = vadd.f32 %v1617, %v3018
          %v3020 = vpop.f32.mrf.mxu0
          %3021 = vdwg.mxu0
          %3022 = vmatpush.bf16.msra.mxu0 %v2674
          %3023 = vmatpush.bf16.msra.mxu0 %v2642
          %3024 = vmatpush.bf16.msra.mxu0 %v2610
          %3025 = vmatpush.bf16.msra.mxu0 %v2578
          %3026 = vmatpush.bf16.msra.mxu0 %v2546
          %3027 = vmatpush.bf16.msra.mxu0 %v2514
          %3028 = vmatpush.bf16.msra.mxu0 %v2482
          %3029 = vmatpush.bf16.msra.mxu0 %v2450
          %3030 = vmatmul.bf16.gmra.mxu0 %v1348
          %v3031 = vpop.f32.mrf.mxu0
          %v3032 = vadd.f32 %v1618, %v3031
          %v3033 = vpop.f32.mrf.mxu0
          %3034 = vdwg.mxu0
          %3035 = vmatpush.bf16.msra.mxu0 %v2675
          %3036 = vmatpush.bf16.msra.mxu0 %v2643
          %3037 = vmatpush.bf16.msra.mxu0 %v2611
          %3038 = vmatpush.bf16.msra.mxu0 %v2579
          %3039 = vmatpush.bf16.msra.mxu0 %v2547
          %3040 = vmatpush.bf16.msra.mxu0 %v2515
          %3041 = vmatpush.bf16.msra.mxu0 %v2483
          %3042 = vmatpush.bf16.msra.mxu0 %v2451
          %3043 = vmatmul.bf16.gmra.mxu0 %v1348
          %v3044 = vpop.f32.mrf.mxu0
          %v3045 = vadd.f32 %v1619, %v3044
          %v3046 = vpop.f32.mrf.mxu0
          %3047 = vdwg.mxu0
          %3048 = vmatpush.bf16.msra.mxu0 %v2676
          %3049 = vmatpush.bf16.msra.mxu0 %v2644
          %3050 = vmatpush.bf16.msra.mxu0 %v2612
          %3051 = vmatpush.bf16.msra.mxu0 %v2580
          %3052 = vmatpush.bf16.msra.mxu0 %v2548
          %3053 = vmatpush.bf16.msra.mxu0 %v2516
          %3054 = vmatpush.bf16.msra.mxu0 %v2484
          %3055 = vmatpush.bf16.msra.mxu0 %v2452
          %3056 = vmatmul.bf16.gmra.mxu0 %v1348
          %v3057 = vpop.f32.mrf.mxu0
          %v3058 = vadd.f32 %v1620, %v3057
          %v3059 = vpop.f32.mrf.mxu0
          %3060 = vdwg.mxu0
          %3061 = vmatpush.bf16.msra.mxu0 %v2677
          %3062 = vmatpush.bf16.msra.mxu0 %v2645
          %3063 = vmatpush.bf16.msra.mxu0 %v2613
          %3064 = vmatpush.bf16.msra.mxu0 %v2581
          %3065 = vmatpush.bf16.msra.mxu0 %v2549
          %3066 = vmatpush.bf16.msra.mxu0 %v2517
          %3067 = vmatpush.bf16.msra.mxu0 %v2485
          %3068 = vmatpush.bf16.msra.mxu0 %v2453
          %3069 = vmatmul.bf16.gmra.mxu0 %v1348
          %v3070 = vpop.f32.mrf.mxu0
          %v3071 = vadd.f32 %v1621, %v3070
          %v3072 = vpop.f32.mrf.mxu0
          %3073 = vdwg.mxu0
          %3074 = vmatpush.bf16.msra.mxu0 %v2678
          %3075 = vmatpush.bf16.msra.mxu0 %v2646
          %3076 = vmatpush.bf16.msra.mxu0 %v2614
          %3077 = vmatpush.bf16.msra.mxu0 %v2582
          %3078 = vmatpush.bf16.msra.mxu0 %v2550
          %3079 = vmatpush.bf16.msra.mxu0 %v2518
          %3080 = vmatpush.bf16.msra.mxu0 %v2486
          %3081 = vmatpush.bf16.msra.mxu0 %v2454
          %3082 = vmatmul.bf16.gmra.mxu0 %v1348
          %v3083 = vpop.f32.mrf.mxu0
          %v3084 = vadd.f32 %v1622, %v3083
          %v3085 = vpop.f32.mrf.mxu0
          %3086 = vdwg.mxu0
          %3087 = vmatpush.bf16.msra.mxu0 %v2679
          %3088 = vmatpush.bf16.msra.mxu0 %v2647
          %3089 = vmatpush.bf16.msra.mxu0 %v2615
          %3090 = vmatpush.bf16.msra.mxu0 %v2583
          %3091 = vmatpush.bf16.msra.mxu0 %v2551
          %3092 = vmatpush.bf16.msra.mxu0 %v2519
          %3093 = vmatpush.bf16.msra.mxu0 %v2487
          %3094 = vmatpush.bf16.msra.mxu0 %v2455
          %3095 = vmatmul.bf16.gmra.mxu0 %v1348
          %v3096 = vpop.f32.mrf.mxu0
          %v3097 = vadd.f32 %v1623, %v3096
          %v3098 = vpop.f32.mrf.mxu0
          %3099 = vdwg.mxu0
          %3100 = vmatpush.bf16.msra.mxu0 %v2680
          %3101 = vmatpush.bf16.msra.mxu0 %v2648
          %3102 = vmatpush.bf16.msra.mxu0 %v2616
          %3103 = vmatpush.bf16.msra.mxu0 %v2584
          %3104 = vmatpush.bf16.msra.mxu0 %v2552
          %3105 = vmatpush.bf16.msra.mxu0 %v2520
          %3106 = vmatpush.bf16.msra.mxu0 %v2488
          %3107 = vmatpush.bf16.msra.mxu0 %v2456
          %3108 = vmatmul.bf16.gmra.mxu0 %v1348
          %v3109 = vpop.f32.mrf.mxu0
          %v3110 = vadd.f32 %v1624, %v3109
          %v3111 = vpop.f32.mrf.mxu0
          %3112 = vdwg.mxu0
          %3113 = vmatpush.bf16.msra.mxu0 %v2681
          %3114 = vmatpush.bf16.msra.mxu0 %v2649
          %3115 = vmatpush.bf16.msra.mxu0 %v2617
          %3116 = vmatpush.bf16.msra.mxu0 %v2585
          %3117 = vmatpush.bf16.msra.mxu0 %v2553
          %3118 = vmatpush.bf16.msra.mxu0 %v2521
          %3119 = vmatpush.bf16.msra.mxu0 %v2489
          %3120 = vmatpush.bf16.msra.mxu0 %v2457
          %3121 = vmatmul.bf16.gmra.mxu0 %v1348
          %v3122 = vpop.f32.mrf.mxu0
          %v3123 = vadd.f32 %v1625, %v3122
          %v3124 = vpop.f32.mrf.mxu0
          %3125 = vdwg.mxu0
          %3126 = vmatpush.bf16.msra.mxu0 %v2682
          %3127 = vmatpush.bf16.msra.mxu0 %v2650
          %3128 = vmatpush.bf16.msra.mxu0 %v2618
          %3129 = vmatpush.bf16.msra.mxu0 %v2586
          %3130 = vmatpush.bf16.msra.mxu0 %v2554
          %3131 = vmatpush.bf16.msra.mxu0 %v2522
          %3132 = vmatpush.bf16.msra.mxu0 %v2490
          %3133 = vmatpush.bf16.msra.mxu0 %v2458
          %3134 = vmatmul.bf16.gmra.mxu0 %v1348
          %v3135 = vpop.f32.mrf.mxu0
          %v3136 = vadd.f32 %v1626, %v3135
          %v3137 = vpop.f32.mrf.mxu0
          %3138 = vdwg.mxu0
          %3139 = vmatpush.bf16.msra.mxu0 %v2683
          %3140 = vmatpush.bf16.msra.mxu0 %v2651
          %3141 = vmatpush.bf16.msra.mxu0 %v2619
          %3142 = vmatpush.bf16.msra.mxu0 %v2587
          %3143 = vmatpush.bf16.msra.mxu0 %v2555
          %3144 = vmatpush.bf16.msra.mxu0 %v2523
          %3145 = vmatpush.bf16.msra.mxu0 %v2491
          %3146 = vmatpush.bf16.msra.mxu0 %v2459
          %3147 = vmatmul.bf16.gmra.mxu0 %v1348
          %v3148 = vpop.f32.mrf.mxu0
          %v3149 = vadd.f32 %v1627, %v3148
          %v3150 = vpop.f32.mrf.mxu0
          %3151 = vdwg.mxu0
          %3152 = vmatpush.bf16.msra.mxu0 %v2684
          %3153 = vmatpush.bf16.msra.mxu0 %v2652
          %3154 = vmatpush.bf16.msra.mxu0 %v2620
          %3155 = vmatpush.bf16.msra.mxu0 %v2588
          %3156 = vmatpush.bf16.msra.mxu0 %v2556
          %3157 = vmatpush.bf16.msra.mxu0 %v2524
          %3158 = vmatpush.bf16.msra.mxu0 %v2492
          %3159 = vmatpush.bf16.msra.mxu0 %v2460
          %3160 = vmatmul.bf16.gmra.mxu0 %v1348
          %v3161 = vpop.f32.mrf.mxu0
          %v3162 = vadd.f32 %v1628, %v3161
          %v3163 = vpop.f32.mrf.mxu0
          %3164 = vdwg.mxu0
          %3165 = vmatpush.bf16.msra.mxu0 %v2685
          %3166 = vmatpush.bf16.msra.mxu0 %v2653
          %3167 = vmatpush.bf16.msra.mxu0 %v2621
          %3168 = vmatpush.bf16.msra.mxu0 %v2589
          %3169 = vmatpush.bf16.msra.mxu0 %v2557
          %3170 = vmatpush.bf16.msra.mxu0 %v2525
          %3171 = vmatpush.bf16.msra.mxu0 %v2493
          %3172 = vmatpush.bf16.msra.mxu0 %v2461
          %3173 = vmatmul.bf16.gmra.mxu0 %v1348
          %v3174 = vpop.f32.mrf.mxu0
          %v3175 = vadd.f32 %v1629, %v3174
          %v3176 = vpop.f32.mrf.mxu0
          %3177 = vdwg.mxu0
          %3178 = vmatpush.bf16.msra.mxu0 %v2686
          %3179 = vmatpush.bf16.msra.mxu0 %v2654
          %3180 = vmatpush.bf16.msra.mxu0 %v2622
          %3181 = vmatpush.bf16.msra.mxu0 %v2590
          %3182 = vmatpush.bf16.msra.mxu0 %v2558
          %3183 = vmatpush.bf16.msra.mxu0 %v2526
          %3184 = vmatpush.bf16.msra.mxu0 %v2494
          %3185 = vmatpush.bf16.msra.mxu0 %v2462
          %3186 = vmatmul.bf16.gmra.mxu0 %v1348
          %v3187 = vpop.f32.mrf.mxu0
          %v3188 = vadd.f32 %v1630, %v3187
          %v3189 = vpop.f32.mrf.mxu0
          %3190 = vdwg.mxu0
          %3191 = vmatpush.bf16.msra.mxu0 %v2687
          %3192 = vmatpush.bf16.msra.mxu0 %v2655
          %3193 = vmatpush.bf16.msra.mxu0 %v2623
          %3194 = vmatpush.bf16.msra.mxu0 %v2591
          %3195 = vmatpush.bf16.msra.mxu0 %v2559
          %3196 = vmatpush.bf16.msra.mxu0 %v2527
          %3197 = vmatpush.bf16.msra.mxu0 %v2495
          %3198 = vmatpush.bf16.msra.mxu0 %v2463
          %3199 = vmatmul.bf16.gmra.mxu0 %v1348
          %v3200 = vpop.f32.mrf.mxu0
          %v3201 = vadd.f32 %v1631, %v3200
          %v3202 = vpop.f32.mrf.mxu0
          %3203 = vdwg.mxu0
          %3204 = vmatpush.bf16.msra.mxu0 %v2688
          %3205 = vmatpush.bf16.msra.mxu0 %v2656
          %3206 = vmatpush.bf16.msra.mxu0 %v2624
          %3207 = vmatpush.bf16.msra.mxu0 %v2592
          %3208 = vmatpush.bf16.msra.mxu0 %v2560
          %3209 = vmatpush.bf16.msra.mxu0 %v2528
          %3210 = vmatpush.bf16.msra.mxu0 %v2496
          %3211 = vmatpush.bf16.msra.mxu0 %v2464
          %3212 = vmatmul.bf16.gmra.mxu0 %v1348
          %v3213 = vpop.f32.mrf.mxu0
          %v3214 = vadd.f32 %v1632, %v3213
          %v3215 = vpop.f32.mrf.mxu0
          %3216 = vdwg.mxu0
          %3217 = vmatpush.bf16.msra.mxu0 %v2689
          %3218 = vmatpush.bf16.msra.mxu0 %v2657
          %3219 = vmatpush.bf16.msra.mxu0 %v2625
          %3220 = vmatpush.bf16.msra.mxu0 %v2593
          %3221 = vmatpush.bf16.msra.mxu0 %v2561
          %3222 = vmatpush.bf16.msra.mxu0 %v2529
          %3223 = vmatpush.bf16.msra.mxu0 %v2497
          %3224 = vmatpush.bf16.msra.mxu0 %v2465
          %3225 = vmatmul.bf16.gmra.mxu0 %v1348
          %v3226 = vpop.f32.mrf.mxu0
          %v3227 = vadd.f32 %v1633, %v3226
          %v3228 = vpop.f32.mrf.mxu0
          %3229 = vdwg.mxu0
          %3230 = vmatpush.bf16.msra.mxu0 %v2690
          %3231 = vmatpush.bf16.msra.mxu0 %v2658
          %3232 = vmatpush.bf16.msra.mxu0 %v2626
          %3233 = vmatpush.bf16.msra.mxu0 %v2594
          %3234 = vmatpush.bf16.msra.mxu0 %v2562
          %3235 = vmatpush.bf16.msra.mxu0 %v2530
          %3236 = vmatpush.bf16.msra.mxu0 %v2498
          %3237 = vmatpush.bf16.msra.mxu0 %v2466
          %3238 = vmatmul.bf16.gmra.mxu0 %v1348
          %v3239 = vpop.f32.mrf.mxu0
          %v3240 = vadd.f32 %v1634, %v3239
          %v3241 = vpop.f32.mrf.mxu0
          %3242 = vdwg.mxu0
          %3243 = vmatpush.bf16.msra.mxu0 %v2691
          %3244 = vmatpush.bf16.msra.mxu0 %v2659
          %3245 = vmatpush.bf16.msra.mxu0 %v2627
          %3246 = vmatpush.bf16.msra.mxu0 %v2595
          %3247 = vmatpush.bf16.msra.mxu0 %v2563
          %3248 = vmatpush.bf16.msra.mxu0 %v2531
          %3249 = vmatpush.bf16.msra.mxu0 %v2499
          %3250 = vmatpush.bf16.msra.mxu0 %v2467
          %3251 = vmatmul.bf16.gmra.mxu0 %v1348
          %v3252 = vpop.f32.mrf.mxu0
          %v3253 = vadd.f32 %v1635, %v3252
          %v3254 = vpop.f32.mrf.mxu0
          %3255 = vdwg.mxu0
          %3256 = vmatpush.bf16.msra.mxu0 %v2692
          %3257 = vmatpush.bf16.msra.mxu0 %v2660
          %3258 = vmatpush.bf16.msra.mxu0 %v2628
          %3259 = vmatpush.bf16.msra.mxu0 %v2596
          %3260 = vmatpush.bf16.msra.mxu0 %v2564
          %3261 = vmatpush.bf16.msra.mxu0 %v2532
          %3262 = vmatpush.bf16.msra.mxu0 %v2500
          %3263 = vmatpush.bf16.msra.mxu0 %v2468
          %3264 = vmatmul.bf16.gmra.mxu0 %v1348
          %v3265 = vpop.f32.mrf.mxu0
          %v3266 = vadd.f32 %v1636, %v3265
          %v3267 = vpop.f32.mrf.mxu0
          %3268 = vdwg.mxu0
          %3269 = vmatpush.bf16.msra.mxu0 %v2693
          %3270 = vmatpush.bf16.msra.mxu0 %v2661
          %3271 = vmatpush.bf16.msra.mxu0 %v2629
          %3272 = vmatpush.bf16.msra.mxu0 %v2597
          %3273 = vmatpush.bf16.msra.mxu0 %v2565
          %3274 = vmatpush.bf16.msra.mxu0 %v2533
          %3275 = vmatpush.bf16.msra.mxu0 %v2501
          %3276 = vmatpush.bf16.msra.mxu0 %v2469
          %3277 = vmatmul.bf16.gmra.mxu0 %v1348
          %v3278 = vpop.f32.mrf.mxu0
          %v3279 = vadd.f32 %v1637, %v3278
          %v3280 = vpop.f32.mrf.mxu0
          %3281 = vdwg.mxu0
          %3282 = vmatpush.bf16.msra.mxu0 %v2694
          %3283 = vmatpush.bf16.msra.mxu0 %v2662
          %3284 = vmatpush.bf16.msra.mxu0 %v2630
          %3285 = vmatpush.bf16.msra.mxu0 %v2598
          %3286 = vmatpush.bf16.msra.mxu0 %v2566
          %3287 = vmatpush.bf16.msra.mxu0 %v2534
          %3288 = vmatpush.bf16.msra.mxu0 %v2502
          %3289 = vmatpush.bf16.msra.mxu0 %v2470
          %3290 = vmatmul.bf16.gmra.mxu0 %v1348
          %v3291 = vpop.f32.mrf.mxu0
          %v3292 = vadd.f32 %v1638, %v3291
          %v3293 = vpop.f32.mrf.mxu0
          %3294 = vdwg.mxu0
          %3295 = vmatpush.bf16.msra.mxu0 %v2695
          %3296 = vmatpush.bf16.msra.mxu0 %v2663
          %3297 = vmatpush.bf16.msra.mxu0 %v2631
          %3298 = vmatpush.bf16.msra.mxu0 %v2599
          %3299 = vmatpush.bf16.msra.mxu0 %v2567
          %3300 = vmatpush.bf16.msra.mxu0 %v2535
          %3301 = vmatpush.bf16.msra.mxu0 %v2503
          %3302 = vmatpush.bf16.msra.mxu0 %v2471
          %3303 = vmatmul.bf16.gmra.mxu0 %v1348
          %v3304 = vpop.f32.mrf.mxu0
          %v3305 = vadd.f32 %v1639, %v3304
          %v3306 = vpop.f32.mrf.mxu0
          %3307 = vdwg.mxu0
          %3308 = vmatpush.bf16.msra.mxu0 %v2696
          %3309 = vmatpush.bf16.msra.mxu0 %v2664
          %3310 = vmatpush.bf16.msra.mxu0 %v2632
          %3311 = vmatpush.bf16.msra.mxu0 %v2600
          %3312 = vmatpush.bf16.msra.mxu0 %v2568
          %3313 = vmatpush.bf16.msra.mxu0 %v2536
          %3314 = vmatpush.bf16.msra.mxu0 %v2504
          %3315 = vmatpush.bf16.msra.mxu0 %v2472
          %3316 = vmatmul.bf16.gmra.mxu0 %v1348
          %v3317 = vpop.f32.mrf.mxu0
          %v3318 = vadd.f32 %v1640, %v3317
          %v3319 = vpop.f32.mrf.mxu0
          %3320 = vdwg.mxu0
          %3321 = vmatpush.bf16.msra.mxu0 %v2697
          %3322 = vmatpush.bf16.msra.mxu0 %v2665
          %3323 = vmatpush.bf16.msra.mxu0 %v2633
          %3324 = vmatpush.bf16.msra.mxu0 %v2601
          %3325 = vmatpush.bf16.msra.mxu0 %v2569
          %3326 = vmatpush.bf16.msra.mxu0 %v2537
          %3327 = vmatpush.bf16.msra.mxu0 %v2505
          %3328 = vmatpush.bf16.msra.mxu0 %v2473
          %3329 = vmatmul.bf16.gmra.mxu0 %v1348
          %v3330 = vpop.f32.mrf.mxu0
          %v3331 = vadd.f32 %v1641, %v3330
          %v3332 = vpop.f32.mrf.mxu0
          %3333 = vdwg.mxu0
          %3334 = vmatpush.bf16.msra.mxu0 %v2698
          %3335 = vmatpush.bf16.msra.mxu0 %v2666
          %3336 = vmatpush.bf16.msra.mxu0 %v2634
          %3337 = vmatpush.bf16.msra.mxu0 %v2602
          %3338 = vmatpush.bf16.msra.mxu0 %v2570
          %3339 = vmatpush.bf16.msra.mxu0 %v2538
          %3340 = vmatpush.bf16.msra.mxu0 %v2506
          %3341 = vmatpush.bf16.msra.mxu0 %v2474
          %3342 = vmatmul.bf16.gmra.mxu0 %v1348
          %v3343 = vpop.f32.mrf.mxu0
          %v3344 = vadd.f32 %v1642, %v3343
          %v3345 = vpop.f32.mrf.mxu0
          %3346 = vdwg.mxu0
          %3347 = vmatpush.bf16.msra.mxu0 %v2699
          %3348 = vmatpush.bf16.msra.mxu0 %v2667
          %3349 = vmatpush.bf16.msra.mxu0 %v2635
          %3350 = vmatpush.bf16.msra.mxu0 %v2603
          %3351 = vmatpush.bf16.msra.mxu0 %v2571
          %3352 = vmatpush.bf16.msra.mxu0 %v2539
          %3353 = vmatpush.bf16.msra.mxu0 %v2507
          %3354 = vmatpush.bf16.msra.mxu0 %v2475
          %3355 = vmatmul.bf16.gmra.mxu0 %v1348
          %v3356 = vpop.f32.mrf.mxu0
          %v3357 = vadd.f32 %v1643, %v3356
          %v3358 = vpop.f32.mrf.mxu0
          %3359 = vdwg.mxu0
          %3360 = vmatpush.bf16.msra.mxu0 %v2700
          %3361 = vmatpush.bf16.msra.mxu0 %v2668
          %3362 = vmatpush.bf16.msra.mxu0 %v2636
          %3363 = vmatpush.bf16.msra.mxu0 %v2604
          %3364 = vmatpush.bf16.msra.mxu0 %v2572
          %3365 = vmatpush.bf16.msra.mxu0 %v2540
          %3366 = vmatpush.bf16.msra.mxu0 %v2508
          %3367 = vmatpush.bf16.msra.mxu0 %v2476
          %3368 = vmatmul.bf16.gmra.mxu0 %v1348
          %v3369 = vpop.f32.mrf.mxu0
          %v3370 = vadd.f32 %v1644, %v3369
          %v3371 = vpop.f32.mrf.mxu0
          %3372 = vdwg.mxu0
          %v3373 = vpack.c.bf16 %v2980, %v2967
          %v3374 = vpack.c.bf16 %v3006, %v2993
          %v3375 = vpack.c.bf16 %v3032, %v3019
          %v3376 = vpack.c.bf16 %v3058, %v3045
          %v3377 = vpack.c.bf16 %v3084, %v3071
          %v3378 = vpack.c.bf16 %v3110, %v3097
          %v3379 = vpack.c.bf16 %v3136, %v3123
          %v3380 = vpack.c.bf16 %v3162, %v3149
          %v3381 = vpack.c.bf16 %v3188, %v3175
          %v3382 = vpack.c.bf16 %v3214, %v3201
          %v3383 = vpack.c.bf16 %v3240, %v3227
          %v3384 = vpack.c.bf16 %v3266, %v3253
          %v3385 = vpack.c.bf16 %v3292, %v3279
          %v3386 = vpack.c.bf16 %v3318, %v3305
          %v3387 = vpack.c.bf16 %v3344, %v3331
          %v3388 = vpack.c.bf16 %v3370, %v3357
          %v3405 = vrot.slane %v3373, 3
          %v3406 = vrot.slane %v3374, 6
          %v3407 = vrot.slane %v3374, 1
          %v3408 = vrot.slane %v3375, 4
          %v3409 = vrot.slane %v3375, 7
          %v3410 = vrot.slane %v3376, 2
          %v3411 = vrot.slane %v3376, 5
          %v3412 = vrot.slane %v3377, 3
          %v3413 = vrot.slane %v3378, 6
          %v3414 = vrot.slane %v3378, 1
          %v3415 = vrot.slane %v3379, 4
          %v3416 = vrot.slane %v3379, 7
          %v3417 = vrot.slane %v3380, 2
          %v3418 = vrot.slane %v3380, 5
          %v3419 = vrot.slane %v3381, 3
          %v3420 = vrot.slane %v3382, 6
          %v3421 = vrot.slane %v3382, 1
          %v3422 = vrot.slane %v3383, 4
          %v3423 = vrot.slane %v3383, 7
          %v3424 = vrot.slane %v3384, 2
          %v3425 = vrot.slane %v3384, 5
          %v3426 = vrot.slane %v3385, 3
          %v3427 = vrot.slane %v3386, 6
          %v3428 = vrot.slane %v3386, 1
          %v3429 = vrot.slane %v3387, 4
          %v3430 = vrot.slane %v3387, 7
          %v3431 = vrot.slane %v3388, 2
          %v3432 = vrot.slane %v3388, 5
          %vm3433 = vcmask 1040384
          %v3436 = vsel %vm3433, %v3373, %v3405
          %vm3437 = vcmask 1042434
          %v3440 = vsel %vm3437, %v3406, %v3407
          %v3441 = vsel %vm1316, %v3436, %v3440
          %vm3442 = vcmask 1044484
          %v3445 = vsel %vm3442, %v3408, %v3409
          %vm3446 = vcmask 1046534
          %v3449 = vsel %vm3446, %v3410, %v3411
          %vm3450 = vcmask 1045508
          %v3451 = vsel %vm3450, %v3445, %v3449
          %vm3452 = vcmask 1043456
          %v3453 = vsel %vm3452, %v3441, %v3451
          %v3456 = vsel %vm3433, %v3377, %v3412
          %v3459 = vsel %vm3437, %v3413, %v3414
          %v3460 = vsel %vm1316, %v3456, %v3459
          %v3463 = vsel %vm3442, %v3415, %v3416
          %v3466 = vsel %vm3446, %v3417, %v3418
          %v3467 = vsel %vm3450, %v3463, %v3466
          %v3468 = vsel %vm3452, %v3460, %v3467
          %v3471 = vsel %vm3433, %v3381, %v3419
          %v3474 = vsel %vm3437, %v3420, %v3421
          %v3475 = vsel %vm1316, %v3471, %v3474
          %v3478 = vsel %vm3442, %v3422, %v3423
          %v3481 = vsel %vm3446, %v3424, %v3425
          %v3482 = vsel %vm3450, %v3478, %v3481
          %v3483 = vsel %vm3452, %v3475, %v3482
          %v3486 = vsel %vm3433, %v3385, %v3426
          %v3489 = vsel %vm3437, %v3427, %v3428
          %v3490 = vsel %vm1316, %v3486, %v3489
          %v3493 = vsel %vm3442, %v3429, %v3430
          %v3496 = vsel %vm3446, %v3431, %v3432
          %v3497 = vsel %vm3450, %v3493, %v3496
          %v3498 = vsel %vm3452, %v3490, %v3497
          %3503 = vst [vmem:[%s8] sm:$0xff] %v3453
          %3504 = vst [vmem:[%s8 + $0x8] sm:$0xff] %v3468
          %3505 = vst [vmem:[%s8 + $0x10] sm:$0xff] %v3483
          %3506 = vst [vmem:[%s8 + $0x18] sm:$0xff] %v3498
        $region52: #{vae_forward.7} parent=43 // pred_fallthru
          _
        // Predicated region
        $region53: #{vae_forward.7} parent=43 // pred_check
          %p3507 = pneg %p171
        $region54: #{vae_forward.7} parent=43 // pred_check_branch
          %3509 = sbr.rel (%p3507) target = $region56
        $region55: #{vae_forward.7} parent=43 // pred_region
          %3511 = vsyncadd [#allocation4], 0
          %s3513 = sshll.u32 [#allocation3], 4
          %s3514 = int_to_ptr.vmem [resolvable:$true] %s3513
          %s3515 = sshll.u32 %s6, 4
          %s3516 = int_to_ptr.hbm [resolvable:$true] %s3515
          %3518 = dma.vmem_to_hbm [thread:$0]  %s3514, 32, %s3516, [#allocation4]
        $region56: #{vae_forward.7} parent=43 // pred_fallthru
          _
        // Predicated region
        $region57: #{vae_forward.7} parent=43 // pred_check
          %p3519 = pneg %p192
        $region58: #{vae_forward.7} parent=43 // pred_check_branch
          %3521 = sbr.rel (%p3519) target = $region60
        $region59: #{vae_forward.7} parent=43 // pred_region
          %3523 = vsyncadd [#allocation6], 0
          %s3525 = sshll.u32 [#allocation5], 4
          %s3526 = int_to_ptr.vmem [resolvable:$true] %s3525
          %s3527 = sshll.u32 %s7, 4
          %s3528 = int_to_ptr.hbm [resolvable:$true] %s3527
          %3530 = dma.vmem_to_hbm [thread:$0]  %s3526, 32, %s3528, [#allocation6]
        $region60: #{vae_forward.7} parent=43 // pred_fallthru
          _
        // Predicated region
        $region61: #{vae_forward.7} parent=43 // pred_check
          %p3531 = pneg %p213
        $region62: #{vae_forward.7} parent=43 // pred_check_branch
          %3533 = sbr.rel (%p3531) target = $region64
        $region63: #{vae_forward.7} parent=43 // pred_region
          _
        $region64: #{vae_forward.7} parent=43 // pred_fallthru
          _
        // Predicated region
        $region65: #{vae_forward.7} parent=43 // pred_check
          %p3534 = pneg %p171
        $region66: #{vae_forward.7} parent=43 // pred_check_branch
          %3536 = sbr.rel (%p3534) target = $region68
        $region67: #{vae_forward.7} parent=43 // pred_region
          %3538 = dma.done [#allocation4], 32
        $region68: #{vae_forward.7} parent=43 // pred_fallthru
          _
        // Predicated region
        $region69: #{vae_forward.7} parent=43 // pred_check
          %p3539 = pneg %p192
        $region70: #{vae_forward.7} parent=43 // pred_check_branch
          %3541 = sbr.rel (%p3539) target = $region72
        $region71: #{vae_forward.7} parent=43 // pred_region
          %3543 = dma.done [#allocation6], 32
        $region72: #{vae_forward.7} parent=43 // pred_fallthru
          _
        // Predicated region
        $region73: #{vae_forward.7} parent=43 // pred_check
          %p3544 = pneg %p213
        $region74: #{vae_forward.7} parent=43 // pred_check_branch
          %3546 = sbr.rel (%p3544) target = $region76
        $region75: #{vae_forward.7} parent=43 // pred_region
          _
        $region76: #{vae_forward.7} parent=43 // pred_fallthru
          _
      $region44: #{vae_forward.7} parent=5 // pred_fallthru
        _
      %p3547 = scmp.le.s32.totalorder 2, %s17
      // Predicated region
      $region77: #{vae_forward.7} parent=5 // pred_check
        %p3548 = pneg %p3547
      $region78: #{vae_forward.7} parent=5 // pred_check_branch
        %3550 = sbr.rel (%p3548) target = $region80
      $region79: #{vae_forward.7} parent=5 // pred_region
        %s3551 = ssub.s32 %s17, 2
      $region80: #{vae_forward.7} parent=5 // pred_fallthru
        _
    $region6: #{vae_forward.7} parent=1 // loop_footer
      %s21 = sadd.s32 1, %s17
    $region7: #{vae_forward.7} parent=1 // loop_footer_branch
      %16 = sbr.rel target = $region3
    $region8: #{vae_forward.7} parent=1 // loop_exit
      _
    %3552 = vsyncpa [#allocation4], 1
    %s3553 = scalar_lea.sflag [#allocation4], 1
    %3554 = vsyncpa %s3553, 1
    %3555 = vsyncpa [#allocation6], 1

// kernel: vae_forward.8
$region0: #{vae_forward.8}
  #allocation0 [shape = 'u32[]', space=smem, size = 0x4, offset = 0x4, fixed_abs, tag = 'smem constant byte address 0x4 - core index']
  #allocation1 [shape = 'u32[72,128]{1,0:T(1,128)}', space=vmem, size = 0x9000, scoped, tag = 'internal scratch']
  %s0 = inlined_call_operand.vmem [shape: bf16[162,256], index: 0, kind: input, shape index: {}]
  %s1 = inlined_call_operand.vmem [shape: bf16[256,128], index: 1, kind: input, shape index: {}]
  %s2 = inlined_call_operand.vmem [shape: f32[1,128], index: 2, kind: input, shape index: {}]
  %s3 = inlined_call_operand.vmem [shape: bf16[162,128], index: 3, kind: output, shape index: {}]
  %s4 = sld [smem:[#allocation0]]
  $region22: #{vae_forward.8} parent=0
    _
  %s6 = ssub.s32 1, %s4
  %s7 = scalar_select 0, %s6, %s4
  // Predicated region
  $region2: #{vae_forward.8} parent=0 // pred_check
    _
  $region3: #{vae_forward.8} parent=0 // pred_check_branch
    %9 = sbr.rel (0) target = $region5
  $region4: #{vae_forward.8} parent=0 // pred_region
    _
  $region5: #{vae_forward.8} parent=0 // pred_fallthru
    _
  // Predicated region
  $region6: #{vae_forward.8} parent=0 // pred_check
    _
  $region7: #{vae_forward.8} parent=0 // pred_check_branch
    %11 = sbr.rel (0) target = $region9
  $region8: #{vae_forward.8} parent=0 // pred_region
    _
  $region9: #{vae_forward.8} parent=0 // pred_fallthru
    _
  // Predicated region
  $region10: #{vae_forward.8} parent=0 // pred_check
    _
  $region11: #{vae_forward.8} parent=0 // pred_check_branch
    %13 = sbr.rel (0) target = $region13
  $region12: #{vae_forward.8} parent=0 // pred_region
    _
  $region13: #{vae_forward.8} parent=0 // pred_fallthru
    _
  %v14 = vld [vmem:[%s0] sm:$0xff]
  %v15 = vld [vmem:[%s0 + $0x8] sm:$0xff]
  %v16 = vld [vmem:[%s0 + $0x10] sm:$0xff]
  %v17 = vld [vmem:[%s0 + $0x18] sm:$0xff]
  %v18 = vld [vmem:[%s0 + $0x20] sm:$0xff]
  %v19 = vld [vmem:[%s0 + $0x28] sm:$0xff]
  %v20 = vld [vmem:[%s0 + $0x30] sm:$0xff]
  %v21 = vld [vmem:[%s0 + $0x38] sm:$0xff]
  %v22 = vld [vmem:[%s0 + $0x40] sm:$0xff]
  %v23 = vld [vmem:[%s0 + $0x48] sm:$0xff]
  %v24 = vld [vmem:[%s0 + $0x50] sm:$0xff]
  %v25 = vld [vmem:[%s0 + $0x58] sm:$0xff]
  %v26 = vld [vmem:[%s0 + $0x60] sm:$0xff]
  %v27 = vld [vmem:[%s0 + $0x68] sm:$0xff]
  %v28 = vld [vmem:[%s0 + $0x70] sm:$0xff]
  %v29 = vld [vmem:[%s0 + $0x78] sm:$0xff]
  %v30 = vld [vmem:[%s0 + $0x80] sm:$0xff]
  %v31 = vld [vmem:[%s0 + $0x88] sm:$0xff]
  %v32 = vld [vmem:[%s0 + $0x90] sm:$0xff]
  %v33 = vld [vmem:[%s0 + $0x98] sm:$0xff]
  %v34 = vld [vmem:[%s0 + $0xa0] sm:$0x11]
  %v35 = vld [vmem:[%s1] sm:$0xf]
  %v36 = vld [vmem:[%s1 + $0x4] sm:$0xf]
  %v37 = vld [vmem:[%s1 + $0x8] sm:$0xf]
  %v38 = vld [vmem:[%s1 + $0xc] sm:$0xf]
  %v39 = vld [vmem:[%s1 + $0x10] sm:$0xf]
  %v40 = vld [vmem:[%s1 + $0x14] sm:$0xf]
  %v41 = vld [vmem:[%s1 + $0x18] sm:$0xf]
  %v42 = vld [vmem:[%s1 + $0x1c] sm:$0xf]
  %v43 = vld [vmem:[%s1 + $0x20] sm:$0xf]
  %v44 = vld [vmem:[%s1 + $0x24] sm:$0xf]
  %v45 = vld [vmem:[%s1 + $0x28] sm:$0xf]
  %v46 = vld [vmem:[%s1 + $0x2c] sm:$0xf]
  %v47 = vld [vmem:[%s1 + $0x30] sm:$0xf]
  %v48 = vld [vmem:[%s1 + $0x34] sm:$0xf]
  %v49 = vld [vmem:[%s1 + $0x38] sm:$0xf]
  %v50 = vld [vmem:[%s1 + $0x3c] sm:$0xf]
  %v51 = vld [vmem:[%s1 + $0x40] sm:$0xf]
  %v52 = vld [vmem:[%s1 + $0x44] sm:$0xf]
  %v53 = vld [vmem:[%s1 + $0x48] sm:$0xf]
  %v54 = vld [vmem:[%s1 + $0x4c] sm:$0xf]
  %v55 = vld [vmem:[%s1 + $0x50] sm:$0xf]
  %v56 = vld [vmem:[%s1 + $0x54] sm:$0xf]
  %v57 = vld [vmem:[%s1 + $0x58] sm:$0xf]
  %v58 = vld [vmem:[%s1 + $0x5c] sm:$0xf]
  %v59 = vld [vmem:[%s1 + $0x60] sm:$0xf]
  %v60 = vld [vmem:[%s1 + $0x64] sm:$0xf]
  %v61 = vld [vmem:[%s1 + $0x68] sm:$0xf]
  %v62 = vld [vmem:[%s1 + $0x6c] sm:$0xf]
  %v63 = vld [vmem:[%s1 + $0x70] sm:$0xf]
  %v64 = vld [vmem:[%s1 + $0x74] sm:$0xf]
  %v65 = vld [vmem:[%s1 + $0x78] sm:$0xf]
  %v66 = vld [vmem:[%s1 + $0x7c] sm:$0xf]
  %v67 = vld [vmem:[%s2] sm:$0x1]
  %v69 = vperm.slane %v67, 0
  %v92 = vunpack.c.l.b16 %v14
  %v93 = vunpack.c.h.b16 %v14
  %v94 = vunpack.c.l.b16 %v15
  %v95 = vunpack.c.h.b16 %v15
  %v96 = vunpack.c.l.b16 %v16
  %v97 = vunpack.c.h.b16 %v16
  %v98 = vunpack.c.l.b16 %v17
  %v99 = vunpack.c.h.b16 %v17
  %v100 = vunpack.c.l.b16 %v18
  %v101 = vunpack.c.h.b16 %v18
  %v102 = vunpack.c.l.b16 %v19
  %v103 = vunpack.c.h.b16 %v19
  %v104 = vunpack.c.l.b16 %v20
  %v105 = vunpack.c.h.b16 %v20
  %v106 = vunpack.c.l.b16 %v21
  %v107 = vunpack.c.h.b16 %v21
  %v108 = vunpack.c.l.b16 %v22
  %v109 = vunpack.c.h.b16 %v22
  %v110 = vunpack.c.l.b16 %v23
  %v111 = vunpack.c.h.b16 %v23
  %v112 = vunpack.c.l.b16 %v24
  %v113 = vunpack.c.h.b16 %v24
  %v114 = vunpack.c.l.b16 %v25
  %v115 = vunpack.c.h.b16 %v25
  %v116 = vunpack.c.l.b16 %v26
  %v117 = vunpack.c.h.b16 %v26
  %v118 = vunpack.c.l.b16 %v27
  %v119 = vunpack.c.h.b16 %v27
  %v120 = vunpack.c.l.b16 %v28
  %v121 = vunpack.c.h.b16 %v28
  %v122 = vunpack.c.l.b16 %v29
  %v123 = vunpack.c.h.b16 %v29
  %v124 = vunpack.c.l.b16 %v30
  %v125 = vunpack.c.h.b16 %v30
  %v126 = vunpack.c.l.b16 %v31
  %v127 = vunpack.c.h.b16 %v31
  %v128 = vunpack.c.l.b16 %v32
  %v129 = vunpack.c.h.b16 %v32
  %v130 = vunpack.c.l.b16 %v33
  %v131 = vunpack.c.h.b16 %v33
  %v132 = vunpack.c.l.b16 %v34
  %v133 = vunpack.c.h.b16 %v34
  %v134 = vpack.c.b16 %v94, %v92
  %v135 = vpack.c.b16 %v95, %v93
  %v136 = vpack.c.b16 %v98, %v96
  %v137 = vpack.c.b16 %v99, %v97
  %v138 = vpack.c.b16 %v102, %v100
  %v139 = vpack.c.b16 %v103, %v101
  %v140 = vpack.c.b16 %v106, %v104
  %v141 = vpack.c.b16 %v107, %v105
  %v142 = vpack.c.b16 %v110, %v108
  %v143 = vpack.c.b16 %v111, %v109
  %v144 = vpack.c.b16 %v114, %v112
  %v145 = vpack.c.b16 %v115, %v113
  %v146 = vpack.c.b16 %v118, %v116
  %v147 = vpack.c.b16 %v119, %v117
  %v148 = vpack.c.b16 %v122, %v120
  %v149 = vpack.c.b16 %v123, %v121
  %v150 = vpack.c.b16 %v126, %v124
  %v151 = vpack.c.b16 %v127, %v125
  %v152 = vpack.c.b16 %v130, %v128
  %v153 = vpack.c.b16 %v131, %v129
  %v154 = vpack.c.b16 %v132, %v132
  %v155 = vpack.c.b16 %v133, %v133
  %v210 = vunpack.c.l.b16 %v35
  %v211 = vunpack.c.l.b16 %v36
  %v212 = vunpack.c.l.b16 %v37
  %v213 = vunpack.c.l.b16 %v38
  %v214 = vunpack.c.l.b16 %v39
  %v215 = vunpack.c.l.b16 %v40
  %v216 = vunpack.c.l.b16 %v41
  %v217 = vunpack.c.l.b16 %v42
  %v218 = vunpack.c.l.b16 %v43
  %v219 = vunpack.c.l.b16 %v44
  %v220 = vunpack.c.l.b16 %v45
  %v221 = vunpack.c.l.b16 %v46
  %v222 = vunpack.c.l.b16 %v47
  %v223 = vunpack.c.l.b16 %v48
  %v224 = vunpack.c.l.b16 %v49
  %v225 = vunpack.c.l.b16 %v50
  %v226 = vunpack.c.l.b16 %v51
  %v227 = vunpack.c.l.b16 %v52
  %v228 = vunpack.c.l.b16 %v53
  %v229 = vunpack.c.l.b16 %v54
  %v230 = vunpack.c.l.b16 %v55
  %v231 = vunpack.c.l.b16 %v56
  %v232 = vunpack.c.l.b16 %v57
  %v233 = vunpack.c.l.b16 %v58
  %v234 = vunpack.c.l.b16 %v59
  %v235 = vunpack.c.l.b16 %v60
  %v236 = vunpack.c.l.b16 %v61
  %v237 = vunpack.c.l.b16 %v62
  %v238 = vunpack.c.l.b16 %v63
  %v239 = vunpack.c.l.b16 %v64
  %v240 = vunpack.c.l.b16 %v65
  %v241 = vunpack.c.l.b16 %v66
  %v242 = vpack.c.b16 %v211, %v210
  %v243 = vpack.c.b16 %v213, %v212
  %v244 = vpack.c.b16 %v215, %v214
  %v245 = vpack.c.b16 %v217, %v216
  %v246 = vpack.c.b16 %v219, %v218
  %v247 = vpack.c.b16 %v221, %v220
  %v248 = vpack.c.b16 %v223, %v222
  %v249 = vpack.c.b16 %v225, %v224
  %v250 = vpack.c.b16 %v227, %v226
  %v251 = vpack.c.b16 %v229, %v228
  %v252 = vpack.c.b16 %v231, %v230
  %v253 = vpack.c.b16 %v233, %v232
  %v254 = vpack.c.b16 %v235, %v234
  %v255 = vpack.c.b16 %v237, %v236
  %v256 = vpack.c.b16 %v239, %v238
  %v257 = vpack.c.b16 %v241, %v240
  %274 = vmatpush.bf16.msra.mxu0 %v249
  %275 = vmatpush.bf16.msra.mxu0 %v248
  %276 = vmatpush.bf16.msra.mxu0 %v247
  %277 = vmatpush.bf16.msra.mxu0 %v246
  %278 = vmatpush.bf16.msra.mxu0 %v245
  %279 = vmatpush.bf16.msra.mxu0 %v244
  %280 = vmatpush.bf16.msra.mxu0 %v243
  %281 = vmatpush.bf16.msra.mxu0 %v242
  %282 = vmatmul.bf16.gmra.mxu0 %v134
  %v283 = vpop.f32.mrf.mxu0
  %v284 = vadd.f32 %v69, %v283
  %v285 = vpop.f32.mrf.mxu0
  %v286 = vadd.f32 %v69, %v285
  %287 = vmatmul.bf16.gmra.mxu0 %v136
  %v288 = vpop.f32.mrf.mxu0
  %v289 = vadd.f32 %v69, %v288
  %v290 = vpop.f32.mrf.mxu0
  %v291 = vadd.f32 %v69, %v290
  %292 = vmatmul.bf16.gmra.mxu0 %v138
  %v293 = vpop.f32.mrf.mxu0
  %v294 = vadd.f32 %v69, %v293
  %v295 = vpop.f32.mrf.mxu0
  %v296 = vadd.f32 %v69, %v295
  %297 = vmatmul.bf16.gmra.mxu0 %v140
  %v298 = vpop.f32.mrf.mxu0
  %v299 = vadd.f32 %v69, %v298
  %v300 = vpop.f32.mrf.mxu0
  %v301 = vadd.f32 %v69, %v300
  %302 = vmatmul.bf16.gmra.mxu0 %v142
  %v303 = vpop.f32.mrf.mxu0
  %v304 = vadd.f32 %v69, %v303
  %v305 = vpop.f32.mrf.mxu0
  %v306 = vadd.f32 %v69, %v305
  %307 = vmatmul.bf16.gmra.mxu0 %v144
  %v308 = vpop.f32.mrf.mxu0
  %v309 = vadd.f32 %v69, %v308
  %v310 = vpop.f32.mrf.mxu0
  %v311 = vadd.f32 %v69, %v310
  %312 = vmatmul.bf16.gmra.mxu0 %v146
  %v313 = vpop.f32.mrf.mxu0
  %v314 = vadd.f32 %v69, %v313
  %v315 = vpop.f32.mrf.mxu0
  %v316 = vadd.f32 %v69, %v315
  %317 = vmatmul.bf16.gmra.mxu0 %v148
  %v318 = vpop.f32.mrf.mxu0
  %v319 = vadd.f32 %v69, %v318
  %v320 = vpop.f32.mrf.mxu0
  %v321 = vadd.f32 %v69, %v320
  %322 = vmatmul.bf16.gmra.mxu0 %v150
  %v323 = vpop.f32.mrf.mxu0
  %v324 = vadd.f32 %v69, %v323
  %v325 = vpop.f32.mrf.mxu0
  %v326 = vadd.f32 %v69, %v325
  %327 = vmatmul.bf16.gmra.mxu0 %v152
  %v328 = vpop.f32.mrf.mxu0
  %v329 = vadd.f32 %v69, %v328
  %v330 = vpop.f32.mrf.mxu0
  %v331 = vadd.f32 %v69, %v330
  %332 = vmatmul.bf16.gmra.mxu0 %v154
  %v333 = vpop.f32.mrf.mxu0
  %v334 = vadd.f32 %v69, %v333
  %v335 = vpop.f32.mrf.mxu0
  %336 = vdwg.mxu0
  %337 = vmatpush.bf16.msra.mxu0 %v257
  %338 = vmatpush.bf16.msra.mxu0 %v256
  %339 = vmatpush.bf16.msra.mxu0 %v255
  %340 = vmatpush.bf16.msra.mxu0 %v254
  %341 = vmatpush.bf16.msra.mxu0 %v253
  %342 = vmatpush.bf16.msra.mxu0 %v252
  %343 = vmatpush.bf16.msra.mxu0 %v251
  %344 = vmatpush.bf16.msra.mxu0 %v250
  %345 = vmatmul.bf16.gmra.mxu0 %v135
  %v346 = vpop.f32.mrf.mxu0
  %v347 = vadd.f32 %v284, %v346
  %v348 = vpop.f32.mrf.mxu0
  %v349 = vadd.f32 %v286, %v348
  %350 = vmatmul.bf16.gmra.mxu0 %v137
  %v351 = vpop.f32.mrf.mxu0
  %v352 = vadd.f32 %v289, %v351
  %v353 = vpop.f32.mrf.mxu0
  %v354 = vadd.f32 %v291, %v353
  %355 = vmatmul.bf16.gmra.mxu0 %v139
  %v356 = vpop.f32.mrf.mxu0
  %v357 = vadd.f32 %v294, %v356
  %v358 = vpop.f32.mrf.mxu0
  %v359 = vadd.f32 %v296, %v358
  %360 = vmatmul.bf16.gmra.mxu0 %v141
  %v361 = vpop.f32.mrf.mxu0
  %v362 = vadd.f32 %v299, %v361
  %v363 = vpop.f32.mrf.mxu0
  %v364 = vadd.f32 %v301, %v363
  %365 = vmatmul.bf16.gmra.mxu0 %v143
  %v366 = vpop.f32.mrf.mxu0
  %v367 = vadd.f32 %v304, %v366
  %v368 = vpop.f32.mrf.mxu0
  %v369 = vadd.f32 %v306, %v368
  %370 = vmatmul.bf16.gmra.mxu0 %v145
  %v371 = vpop.f32.mrf.mxu0
  %v372 = vadd.f32 %v309, %v371
  %v373 = vpop.f32.mrf.mxu0
  %v374 = vadd.f32 %v311, %v373
  %375 = vmatmul.bf16.gmra.mxu0 %v147
  %v376 = vpop.f32.mrf.mxu0
  %v377 = vadd.f32 %v314, %v376
  %v378 = vpop.f32.mrf.mxu0
  %v379 = vadd.f32 %v316, %v378
  %380 = vmatmul.bf16.gmra.mxu0 %v149
  %v381 = vpop.f32.mrf.mxu0
  %v382 = vadd.f32 %v319, %v381
  %v383 = vpop.f32.mrf.mxu0
  %v384 = vadd.f32 %v321, %v383
  %385 = vmatmul.bf16.gmra.mxu0 %v151
  %v386 = vpop.f32.mrf.mxu0
  %v387 = vadd.f32 %v324, %v386
  %v388 = vpop.f32.mrf.mxu0
  %v389 = vadd.f32 %v326, %v388
  %390 = vmatmul.bf16.gmra.mxu0 %v153
  %v391 = vpop.f32.mrf.mxu0
  %v392 = vadd.f32 %v329, %v391
  %v393 = vpop.f32.mrf.mxu0
  %v394 = vadd.f32 %v331, %v393
  %395 = vmatmul.bf16.gmra.mxu0 %v155
  %v396 = vpop.f32.mrf.mxu0
  %v397 = vadd.f32 %v334, %v396
  %v398 = vpop.f32.mrf.mxu0
  %399 = vdwg.mxu0
  %v400 = vmax.f32 %v347, 0.0
  %v401 = vmax.f32 %v349, 0.0
  %v402 = vmax.f32 %v352, 0.0
  %v403 = vmax.f32 %v354, 0.0
  %v404 = vmax.f32 %v357, 0.0
  %v405 = vmax.f32 %v359, 0.0
  %v406 = vmax.f32 %v362, 0.0
  %v407 = vmax.f32 %v364, 0.0
  %v408 = vmax.f32 %v367, 0.0
  %v409 = vmax.f32 %v369, 0.0
  %v410 = vmax.f32 %v372, 0.0
  %v411 = vmax.f32 %v374, 0.0
  %v412 = vmax.f32 %v377, 0.0
  %v413 = vmax.f32 %v379, 0.0
  %v414 = vmax.f32 %v382, 0.0
  %v415 = vmax.f32 %v384, 0.0
  %v416 = vmax.f32 %v387, 0.0
  %v417 = vmax.f32 %v389, 0.0
  %v418 = vmax.f32 %v392, 0.0
  %v419 = vmax.f32 %v394, 0.0
  %v420 = vmax.f32 %v397, 0.0
  %v421 = vpack.c.bf16 %v400, %v400
  %v422 = vpack.c.bf16 %v401, %v401
  %v423 = vpack.c.bf16 %v402, %v402
  %v424 = vpack.c.bf16 %v403, %v403
  %v425 = vpack.c.bf16 %v404, %v404
  %v426 = vpack.c.bf16 %v405, %v405
  %v427 = vpack.c.bf16 %v406, %v406
  %v428 = vpack.c.bf16 %v407, %v407
  %v429 = vpack.c.bf16 %v408, %v408
  %v430 = vpack.c.bf16 %v409, %v409
  %v431 = vpack.c.bf16 %v410, %v410
  %v432 = vpack.c.bf16 %v411, %v411
  %v433 = vpack.c.bf16 %v412, %v412
  %v434 = vpack.c.bf16 %v413, %v413
  %v435 = vpack.c.bf16 %v414, %v414
  %v436 = vpack.c.bf16 %v415, %v415
  %v437 = vpack.c.bf16 %v416, %v416
  %v438 = vpack.c.bf16 %v417, %v417
  %v439 = vpack.c.bf16 %v418, %v418
  %v440 = vpack.c.bf16 %v419, %v419
  %v441 = vpack.c.bf16 %v420, %v420
  %442 = vst [vmem:[%s3] sm:$0xf] %v421
  %443 = vst [vmem:[%s3 + $0x4] sm:$0xf] %v422
  %444 = vst [vmem:[%s3 + $0x8] sm:$0xf] %v423
  %445 = vst [vmem:[%s3 + $0xc] sm:$0xf] %v424
  %446 = vst [vmem:[%s3 + $0x10] sm:$0xf] %v425
  %447 = vst [vmem:[%s3 + $0x14] sm:$0xf] %v426
  %448 = vst [vmem:[%s3 + $0x18] sm:$0xf] %v427
  %449 = vst [vmem:[%s3 + $0x1c] sm:$0xf] %v428
  %450 = vst [vmem:[%s3 + $0x20] sm:$0xf] %v429
  %451 = vst [vmem:[%s3 + $0x24] sm:$0xf] %v430
  %452 = vst [vmem:[%s3 + $0x28] sm:$0xf] %v431
  %453 = vst [vmem:[%s3 + $0x2c] sm:$0xf] %v432
  %454 = vst [vmem:[%s3 + $0x30] sm:$0xf] %v433
  %455 = vst [vmem:[%s3 + $0x34] sm:$0xf] %v434
  %456 = vst [vmem:[%s3 + $0x38] sm:$0xf] %v435
  %457 = vst [vmem:[%s3 + $0x3c] sm:$0xf] %v436
  %458 = vst [vmem:[%s3 + $0x40] sm:$0xf] %v437
  %459 = vst [vmem:[%s3 + $0x44] sm:$0xf] %v438
  %460 = vst [vmem:[%s3 + $0x48] sm:$0xf] %v439
  %461 = vst [vmem:[%s3 + $0x4c] sm:$0xf] %v440
  %462 = vst [vmem:[%s3 + $0x50] sm:$0x1] %v441
  // Predicated region
  $region14: #{vae_forward.8} parent=0 // pred_check
    _
  $region15: #{vae_forward.8} parent=0 // pred_check_branch
    %464 = sbr.rel (0) target = $region17
  $region16: #{vae_forward.8} parent=0 // pred_region
    _
  $region17: #{vae_forward.8} parent=0 // pred_fallthru
    _
  // Predicated region
  $region18: #{vae_forward.8} parent=0 // pred_check
    _
  $region19: #{vae_forward.8} parent=0 // pred_check_branch
    %466 = sbr.rel (0) target = $region21
  $region20: #{vae_forward.8} parent=0 // pred_region
    _
  $region21: #{vae_forward.8} parent=0 // pred_fallthru
    _

// kernel: vae_forward.9
$region0: #{vae_forward.9}
  #allocation0 [shape = 'u32[]', space=smem, size = 0x4, offset = 0x4, fixed_abs, tag = 'smem constant byte address 0x4 - core index']
  #allocation1 [shape = 'u32[72,128]{1,0:T(1,128)}', space=vmem, size = 0x9000, scoped, tag = 'internal scratch']
  %s0 = inlined_call_operand.vmem [shape: bf16[578,128], index: 0, kind: input, shape index: {}]
  %s1 = inlined_call_operand.vmem [shape: bf16[128,128], index: 1, kind: input, shape index: {}]
  %s2 = inlined_call_operand.vmem [shape: f32[1,128], index: 2, kind: input, shape index: {}]
  %s3 = inlined_call_operand.vmem [shape: f32[578,128], index: 3, kind: output, shape index: {}]
  %s4 = sld [smem:[#allocation0]]
  $region22: #{vae_forward.9} parent=0
    _
  %s6 = ssub.s32 1, %s4
  %s7 = scalar_select 0, %s6, %s4
  // Predicated region
  $region2: #{vae_forward.9} parent=0 // pred_check
    _
  $region3: #{vae_forward.9} parent=0 // pred_check_branch
    %9 = sbr.rel (0) target = $region5
  $region4: #{vae_forward.9} parent=0 // pred_region
    _
  $region5: #{vae_forward.9} parent=0 // pred_fallthru
    _
  // Predicated region
  $region6: #{vae_forward.9} parent=0 // pred_check
    _
  $region7: #{vae_forward.9} parent=0 // pred_check_branch
    %11 = sbr.rel (0) target = $region9
  $region8: #{vae_forward.9} parent=0 // pred_region
    _
  $region9: #{vae_forward.9} parent=0 // pred_fallthru
    _
  // Predicated region
  $region10: #{vae_forward.9} parent=0 // pred_check
    _
  $region11: #{vae_forward.9} parent=0 // pred_check_branch
    %13 = sbr.rel (0) target = $region13
  $region12: #{vae_forward.9} parent=0 // pred_region
    _
  $region13: #{vae_forward.9} parent=0 // pred_fallthru
    _
  %v14 = vld [vmem:[%s0] sm:$0xf]
  %v15 = vld [vmem:[%s0 + $0x4] sm:$0xf]
  %v16 = vld [vmem:[%s0 + $0x8] sm:$0xf]
  %v17 = vld [vmem:[%s0 + $0xc] sm:$0xf]
  %v18 = vld [vmem:[%s0 + $0x10] sm:$0xf]
  %v19 = vld [vmem:[%s0 + $0x14] sm:$0xf]
  %v20 = vld [vmem:[%s0 + $0x18] sm:$0xf]
  %v21 = vld [vmem:[%s0 + $0x1c] sm:$0xf]
  %v22 = vld [vmem:[%s0 + $0x20] sm:$0xf]
  %v23 = vld [vmem:[%s0 + $0x24] sm:$0xf]
  %v24 = vld [vmem:[%s0 + $0x28] sm:$0xf]
  %v25 = vld [vmem:[%s0 + $0x2c] sm:$0xf]
  %v26 = vld [vmem:[%s0 + $0x30] sm:$0xf]
  %v27 = vld [vmem:[%s0 + $0x34] sm:$0xf]
  %v28 = vld [vmem:[%s0 + $0x38] sm:$0xf]
  %v29 = vld [vmem:[%s0 + $0x3c] sm:$0xf]
  %v30 = vld [vmem:[%s0 + $0x40] sm:$0xf]
  %v31 = vld [vmem:[%s0 + $0x44] sm:$0xf]
  %v32 = vld [vmem:[%s0 + $0x48] sm:$0xf]
  %v33 = vld [vmem:[%s0 + $0x4c] sm:$0xf]
  %v34 = vld [vmem:[%s0 + $0x50] sm:$0xf]
  %v35 = vld [vmem:[%s0 + $0x54] sm:$0xf]
  %v36 = vld [vmem:[%s0 + $0x58] sm:$0xf]
  %v37 = vld [vmem:[%s0 + $0x5c] sm:$0xf]
  %v38 = vld [vmem:[%s0 + $0x60] sm:$0xf]
  %v39 = vld [vmem:[%s0 + $0x64] sm:$0xf]
  %v40 = vld [vmem:[%s0 + $0x68] sm:$0xf]
  %v41 = vld [vmem:[%s0 + $0x6c] sm:$0xf]
  %v42 = vld [vmem:[%s0 + $0x70] sm:$0xf]
  %v43 = vld [vmem:[%s0 + $0x74] sm:$0xf]
  %v44 = vld [vmem:[%s0 + $0x78] sm:$0xf]
  %v45 = vld [vmem:[%s0 + $0x7c] sm:$0xf]
  %v46 = vld [vmem:[%s0 + $0x80] sm:$0xf]
  %v47 = vld [vmem:[%s0 + $0x84] sm:$0xf]
  %v48 = vld [vmem:[%s0 + $0x88] sm:$0xf]
  %v49 = vld [vmem:[%s0 + $0x8c] sm:$0xf]
  %v50 = vld [vmem:[%s0 + $0x90] sm:$0xf]
  %v51 = vld [vmem:[%s0 + $0x94] sm:$0xf]
  %v52 = vld [vmem:[%s0 + $0x98] sm:$0xf]
  %v53 = vld [vmem:[%s0 + $0x9c] sm:$0xf]
  %v54 = vld [vmem:[%s0 + $0xa0] sm:$0xf]
  %v55 = vld [vmem:[%s0 + $0xa4] sm:$0xf]
  %v56 = vld [vmem:[%s0 + $0xa8] sm:$0xf]
  %v57 = vld [vmem:[%s0 + $0xac] sm:$0xf]
  %v58 = vld [vmem:[%s0 + $0xb0] sm:$0xf]
  %v59 = vld [vmem:[%s0 + $0xb4] sm:$0xf]
  %v60 = vld [vmem:[%s0 + $0xb8] sm:$0xf]
  %v61 = vld [vmem:[%s0 + $0xbc] sm:$0xf]
  %v62 = vld [vmem:[%s0 + $0xc0] sm:$0xf]
  %v63 = vld [vmem:[%s0 + $0xc4] sm:$0xf]
  %v64 = vld [vmem:[%s0 + $0xc8] sm:$0xf]
  %v65 = vld [vmem:[%s0 + $0xcc] sm:$0xf]
  %v66 = vld [vmem:[%s0 + $0xd0] sm:$0xf]
  %v67 = vld [vmem:[%s0 + $0xd4] sm:$0xf]
  %v68 = vld [vmem:[%s0 + $0xd8] sm:$0xf]
  %v69 = vld [vmem:[%s0 + $0xdc] sm:$0xf]
  %v70 = vld [vmem:[%s0 + $0xe0] sm:$0xf]
  %v71 = vld [vmem:[%s0 + $0xe4] sm:$0xf]
  %v72 = vld [vmem:[%s0 + $0xe8] sm:$0xf]
  %v73 = vld [vmem:[%s0 + $0xec] sm:$0xf]
  %v74 = vld [vmem:[%s0 + $0xf0] sm:$0xf]
  %v75 = vld [vmem:[%s0 + $0xf4] sm:$0xf]
  %v76 = vld [vmem:[%s0 + $0xf8] sm:$0xf]
  %v77 = vld [vmem:[%s0 + $0xfc] sm:$0xf]
  %v78 = vld [vmem:[%s0 + $0x100] sm:$0xf]
  %v79 = vld [vmem:[%s0 + $0x104] sm:$0xf]
  %v80 = vld [vmem:[%s0 + $0x108] sm:$0xf]
  %v81 = vld [vmem:[%s0 + $0x10c] sm:$0xf]
  %v82 = vld [vmem:[%s0 + $0x110] sm:$0xf]
  %v83 = vld [vmem:[%s0 + $0x114] sm:$0xf]
  %v84 = vld [vmem:[%s0 + $0x118] sm:$0xf]
  %v85 = vld [vmem:[%s0 + $0x11c] sm:$0xf]
  %v86 = vld [vmem:[%s0 + $0x120] sm:$0x1]
  %v87 = vld [vmem:[%s1] sm:$0xf]
  %v88 = vld [vmem:[%s1 + $0x4] sm:$0xf]
  %v89 = vld [vmem:[%s1 + $0x8] sm:$0xf]
  %v90 = vld [vmem:[%s1 + $0xc] sm:$0xf]
  %v91 = vld [vmem:[%s1 + $0x10] sm:$0xf]
  %v92 = vld [vmem:[%s1 + $0x14] sm:$0xf]
  %v93 = vld [vmem:[%s1 + $0x18] sm:$0xf]
  %v94 = vld [vmem:[%s1 + $0x1c] sm:$0xf]
  %v95 = vld [vmem:[%s1 + $0x20] sm:$0xf]
  %v96 = vld [vmem:[%s1 + $0x24] sm:$0xf]
  %v97 = vld [vmem:[%s1 + $0x28] sm:$0xf]
  %v98 = vld [vmem:[%s1 + $0x2c] sm:$0xf]
  %v99 = vld [vmem:[%s1 + $0x30] sm:$0xf]
  %v100 = vld [vmem:[%s1 + $0x34] sm:$0xf]
  %v101 = vld [vmem:[%s1 + $0x38] sm:$0xf]
  %v102 = vld [vmem:[%s1 + $0x3c] sm:$0xf]
  %v103 = vld [vmem:[%s2] sm:$0x1]
  %v105 = vperm.slane %v103, 0
  %v180 = vunpack.c.l.b16 %v14
  %v181 = vunpack.c.l.b16 %v15
  %v182 = vunpack.c.l.b16 %v16
  %v183 = vunpack.c.l.b16 %v17
  %v184 = vunpack.c.l.b16 %v18
  %v185 = vunpack.c.l.b16 %v19
  %v186 = vunpack.c.l.b16 %v20
  %v187 = vunpack.c.l.b16 %v21
  %v188 = vunpack.c.l.b16 %v22
  %v189 = vunpack.c.l.b16 %v23
  %v190 = vunpack.c.l.b16 %v24
  %v191 = vunpack.c.l.b16 %v25
  %v192 = vunpack.c.l.b16 %v26
  %v193 = vunpack.c.l.b16 %v27
  %v194 = vunpack.c.l.b16 %v28
  %v195 = vunpack.c.l.b16 %v29
  %v196 = vunpack.c.l.b16 %v30
  %v197 = vunpack.c.l.b16 %v31
  %v198 = vunpack.c.l.b16 %v32
  %v199 = vunpack.c.l.b16 %v33
  %v200 = vunpack.c.l.b16 %v34
  %v201 = vunpack.c.l.b16 %v35
  %v202 = vunpack.c.l.b16 %v36
  %v203 = vunpack.c.l.b16 %v37
  %v204 = vunpack.c.l.b16 %v38
  %v205 = vunpack.c.l.b16 %v39
  %v206 = vunpack.c.l.b16 %v40
  %v207 = vunpack.c.l.b16 %v41
  %v208 = vunpack.c.l.b16 %v42
  %v209 = vunpack.c.l.b16 %v43
  %v210 = vunpack.c.l.b16 %v44
  %v211 = vunpack.c.l.b16 %v45
  %v212 = vunpack.c.l.b16 %v46
  %v213 = vunpack.c.l.b16 %v47
  %v214 = vunpack.c.l.b16 %v48
  %v215 = vunpack.c.l.b16 %v49
  %v216 = vunpack.c.l.b16 %v50
  %v217 = vunpack.c.l.b16 %v51
  %v218 = vunpack.c.l.b16 %v52
  %v219 = vunpack.c.l.b16 %v53
  %v220 = vunpack.c.l.b16 %v54
  %v221 = vunpack.c.l.b16 %v55
  %v222 = vunpack.c.l.b16 %v56
  %v223 = vunpack.c.l.b16 %v57
  %v224 = vunpack.c.l.b16 %v58
  %v225 = vunpack.c.l.b16 %v59
  %v226 = vunpack.c.l.b16 %v60
  %v227 = vunpack.c.l.b16 %v61
  %v228 = vunpack.c.l.b16 %v62
  %v229 = vunpack.c.l.b16 %v63
  %v230 = vunpack.c.l.b16 %v64
  %v231 = vunpack.c.l.b16 %v65
  %v232 = vunpack.c.l.b16 %v66
  %v233 = vunpack.c.l.b16 %v67
  %v234 = vunpack.c.l.b16 %v68
  %v235 = vunpack.c.l.b16 %v69
  %v236 = vunpack.c.l.b16 %v70
  %v237 = vunpack.c.l.b16 %v71
  %v238 = vunpack.c.l.b16 %v72
  %v239 = vunpack.c.l.b16 %v73
  %v240 = vunpack.c.l.b16 %v74
  %v241 = vunpack.c.l.b16 %v75
  %v242 = vunpack.c.l.b16 %v76
  %v243 = vunpack.c.l.b16 %v77
  %v244 = vunpack.c.l.b16 %v78
  %v245 = vunpack.c.l.b16 %v79
  %v246 = vunpack.c.l.b16 %v80
  %v247 = vunpack.c.l.b16 %v81
  %v248 = vunpack.c.l.b16 %v82
  %v249 = vunpack.c.l.b16 %v83
  %v250 = vunpack.c.l.b16 %v84
  %v251 = vunpack.c.l.b16 %v85
  %v252 = vunpack.c.l.b16 %v86
  %v253 = vpack.c.b16 %v181, %v180
  %v254 = vpack.c.b16 %v183, %v182
  %v255 = vpack.c.b16 %v185, %v184
  %v256 = vpack.c.b16 %v187, %v186
  %v257 = vpack.c.b16 %v189, %v188
  %v258 = vpack.c.b16 %v191, %v190
  %v259 = vpack.c.b16 %v193, %v192
  %v260 = vpack.c.b16 %v195, %v194
  %v261 = vpack.c.b16 %v197, %v196
  %v262 = vpack.c.b16 %v199, %v198
  %v263 = vpack.c.b16 %v201, %v200
  %v264 = vpack.c.b16 %v203, %v202
  %v265 = vpack.c.b16 %v205, %v204
  %v266 = vpack.c.b16 %v207, %v206
  %v267 = vpack.c.b16 %v209, %v208
  %v268 = vpack.c.b16 %v211, %v210
  %v269 = vpack.c.b16 %v213, %v212
  %v270 = vpack.c.b16 %v215, %v214
  %v271 = vpack.c.b16 %v217, %v216
  %v272 = vpack.c.b16 %v219, %v218
  %v273 = vpack.c.b16 %v221, %v220
  %v274 = vpack.c.b16 %v223, %v222
  %v275 = vpack.c.b16 %v225, %v224
  %v276 = vpack.c.b16 %v227, %v226
  %v277 = vpack.c.b16 %v229, %v228
  %v278 = vpack.c.b16 %v231, %v230
  %v279 = vpack.c.b16 %v233, %v232
  %v280 = vpack.c.b16 %v235, %v234
  %v281 = vpack.c.b16 %v237, %v236
  %v282 = vpack.c.b16 %v239, %v238
  %v283 = vpack.c.b16 %v241, %v240
  %v284 = vpack.c.b16 %v243, %v242
  %v285 = vpack.c.b16 %v245, %v244
  %v286 = vpack.c.b16 %v247, %v246
  %v287 = vpack.c.b16 %v249, %v248
  %v288 = vpack.c.b16 %v251, %v250
  %v289 = vpack.c.b16 %v252, %v252
  %v343 = vunpack.c.l.b16 %v87
  %v344 = vunpack.c.l.b16 %v88
  %v345 = vunpack.c.l.b16 %v89
  %v346 = vunpack.c.l.b16 %v90
  %v347 = vunpack.c.l.b16 %v91
  %v348 = vunpack.c.l.b16 %v92
  %v349 = vunpack.c.l.b16 %v93
  %v350 = vunpack.c.l.b16 %v94
  %v351 = vunpack.c.l.b16 %v95
  %v352 = vunpack.c.l.b16 %v96
  %v353 = vunpack.c.l.b16 %v97
  %v354 = vunpack.c.l.b16 %v98
  %v355 = vunpack.c.l.b16 %v99
  %v356 = vunpack.c.l.b16 %v100
  %v357 = vunpack.c.l.b16 %v101
  %v358 = vunpack.c.l.b16 %v102
  %v359 = vpack.c.b16 %v344, %v343
  %v360 = vpack.c.b16 %v346, %v345
  %v361 = vpack.c.b16 %v348, %v347
  %v362 = vpack.c.b16 %v350, %v349
  %v363 = vpack.c.b16 %v352, %v351
  %v364 = vpack.c.b16 %v354, %v353
  %v365 = vpack.c.b16 %v356, %v355
  %v366 = vpack.c.b16 %v358, %v357
  %375 = vmatpush.bf16.msra.mxu0 %v366
  %376 = vmatpush.bf16.msra.mxu0 %v365
  %377 = vmatpush.bf16.msra.mxu0 %v364
  %378 = vmatpush.bf16.msra.mxu0 %v363
  %379 = vmatpush.bf16.msra.mxu0 %v362
  %380 = vmatpush.bf16.msra.mxu0 %v361
  %381 = vmatpush.bf16.msra.mxu0 %v360
  %382 = vmatpush.bf16.msra.mxu0 %v359
  %383 = vmatmul.bf16.gmra.mxu0 %v253
  %v384 = vpop.f32.mrf.mxu0
  %v385 = vadd.f32 %v105, %v384
  %v386 = vpop.f32.mrf.mxu0
  %v387 = vadd.f32 %v105, %v386
  %388 = vmatmul.bf16.gmra.mxu0 %v254
  %v389 = vpop.f32.mrf.mxu0
  %v390 = vadd.f32 %v105, %v389
  %v391 = vpop.f32.mrf.mxu0
  %v392 = vadd.f32 %v105, %v391
  %393 = vmatmul.bf16.gmra.mxu0 %v255
  %v394 = vpop.f32.mrf.mxu0
  %v395 = vadd.f32 %v105, %v394
  %v396 = vpop.f32.mrf.mxu0
  %v397 = vadd.f32 %v105, %v396
  %398 = vmatmul.bf16.gmra.mxu0 %v256
  %v399 = vpop.f32.mrf.mxu0
  %v400 = vadd.f32 %v105, %v399
  %v401 = vpop.f32.mrf.mxu0
  %v402 = vadd.f32 %v105, %v401
  %403 = vmatmul.bf16.gmra.mxu0 %v257
  %v404 = vpop.f32.mrf.mxu0
  %v405 = vadd.f32 %v105, %v404
  %v406 = vpop.f32.mrf.mxu0
  %v407 = vadd.f32 %v105, %v406
  %408 = vmatmul.bf16.gmra.mxu0 %v258
  %v409 = vpop.f32.mrf.mxu0
  %v410 = vadd.f32 %v105, %v409
  %v411 = vpop.f32.mrf.mxu0
  %v412 = vadd.f32 %v105, %v411
  %413 = vmatmul.bf16.gmra.mxu0 %v259
  %v414 = vpop.f32.mrf.mxu0
  %v415 = vadd.f32 %v105, %v414
  %v416 = vpop.f32.mrf.mxu0
  %v417 = vadd.f32 %v105, %v416
  %418 = vmatmul.bf16.gmra.mxu0 %v260
  %v419 = vpop.f32.mrf.mxu0
  %v420 = vadd.f32 %v105, %v419
  %v421 = vpop.f32.mrf.mxu0
  %v422 = vadd.f32 %v105, %v421
  %423 = vmatmul.bf16.gmra.mxu0 %v261
  %v424 = vpop.f32.mrf.mxu0
  %v425 = vadd.f32 %v105, %v424
  %v426 = vpop.f32.mrf.mxu0
  %v427 = vadd.f32 %v105, %v426
  %428 = vmatmul.bf16.gmra.mxu0 %v262
  %v429 = vpop.f32.mrf.mxu0
  %v430 = vadd.f32 %v105, %v429
  %v431 = vpop.f32.mrf.mxu0
  %v432 = vadd.f32 %v105, %v431
  %433 = vmatmul.bf16.gmra.mxu0 %v263
  %v434 = vpop.f32.mrf.mxu0
  %v435 = vadd.f32 %v105, %v434
  %v436 = vpop.f32.mrf.mxu0
  %v437 = vadd.f32 %v105, %v436
  %438 = vmatmul.bf16.gmra.mxu0 %v264
  %v439 = vpop.f32.mrf.mxu0
  %v440 = vadd.f32 %v105, %v439
  %v441 = vpop.f32.mrf.mxu0
  %v442 = vadd.f32 %v105, %v441
  %443 = vmatmul.bf16.gmra.mxu0 %v265
  %v444 = vpop.f32.mrf.mxu0
  %v445 = vadd.f32 %v105, %v444
  %v446 = vpop.f32.mrf.mxu0
  %v447 = vadd.f32 %v105, %v446
  %448 = vmatmul.bf16.gmra.mxu0 %v266
  %v449 = vpop.f32.mrf.mxu0
  %v450 = vadd.f32 %v105, %v449
  %v451 = vpop.f32.mrf.mxu0
  %v452 = vadd.f32 %v105, %v451
  %453 = vmatmul.bf16.gmra.mxu0 %v267
  %v454 = vpop.f32.mrf.mxu0
  %v455 = vadd.f32 %v105, %v454
  %v456 = vpop.f32.mrf.mxu0
  %v457 = vadd.f32 %v105, %v456
  %458 = vmatmul.bf16.gmra.mxu0 %v268
  %v459 = vpop.f32.mrf.mxu0
  %v460 = vadd.f32 %v105, %v459
  %v461 = vpop.f32.mrf.mxu0
  %v462 = vadd.f32 %v105, %v461
  %463 = vmatmul.bf16.gmra.mxu0 %v269
  %v464 = vpop.f32.mrf.mxu0
  %v465 = vadd.f32 %v105, %v464
  %v466 = vpop.f32.mrf.mxu0
  %v467 = vadd.f32 %v105, %v466
  %468 = vmatmul.bf16.gmra.mxu0 %v270
  %v469 = vpop.f32.mrf.mxu0
  %v470 = vadd.f32 %v105, %v469
  %v471 = vpop.f32.mrf.mxu0
  %v472 = vadd.f32 %v105, %v471
  %473 = vmatmul.bf16.gmra.mxu0 %v271
  %v474 = vpop.f32.mrf.mxu0
  %v475 = vadd.f32 %v105, %v474
  %v476 = vpop.f32.mrf.mxu0
  %v477 = vadd.f32 %v105, %v476
  %478 = vmatmul.bf16.gmra.mxu0 %v272
  %v479 = vpop.f32.mrf.mxu0
  %v480 = vadd.f32 %v105, %v479
  %v481 = vpop.f32.mrf.mxu0
  %v482 = vadd.f32 %v105, %v481
  %483 = vmatmul.bf16.gmra.mxu0 %v273
  %v484 = vpop.f32.mrf.mxu0
  %v485 = vadd.f32 %v105, %v484
  %v486 = vpop.f32.mrf.mxu0
  %v487 = vadd.f32 %v105, %v486
  %488 = vmatmul.bf16.gmra.mxu0 %v274
  %v489 = vpop.f32.mrf.mxu0
  %v490 = vadd.f32 %v105, %v489
  %v491 = vpop.f32.mrf.mxu0
  %v492 = vadd.f32 %v105, %v491
  %493 = vmatmul.bf16.gmra.mxu0 %v275
  %v494 = vpop.f32.mrf.mxu0
  %v495 = vadd.f32 %v105, %v494
  %v496 = vpop.f32.mrf.mxu0
  %v497 = vadd.f32 %v105, %v496
  %498 = vmatmul.bf16.gmra.mxu0 %v276
  %v499 = vpop.f32.mrf.mxu0
  %v500 = vadd.f32 %v105, %v499
  %v501 = vpop.f32.mrf.mxu0
  %v502 = vadd.f32 %v105, %v501
  %503 = vmatmul.bf16.gmra.mxu0 %v277
  %v504 = vpop.f32.mrf.mxu0
  %v505 = vadd.f32 %v105, %v504
  %v506 = vpop.f32.mrf.mxu0
  %v507 = vadd.f32 %v105, %v506
  %508 = vmatmul.bf16.gmra.mxu0 %v278
  %v509 = vpop.f32.mrf.mxu0
  %v510 = vadd.f32 %v105, %v509
  %v511 = vpop.f32.mrf.mxu0
  %v512 = vadd.f32 %v105, %v511
  %513 = vmatmul.bf16.gmra.mxu0 %v279
  %v514 = vpop.f32.mrf.mxu0
  %v515 = vadd.f32 %v105, %v514
  %v516 = vpop.f32.mrf.mxu0
  %v517 = vadd.f32 %v105, %v516
  %518 = vmatmul.bf16.gmra.mxu0 %v280
  %v519 = vpop.f32.mrf.mxu0
  %v520 = vadd.f32 %v105, %v519
  %v521 = vpop.f32.mrf.mxu0
  %v522 = vadd.f32 %v105, %v521
  %523 = vmatmul.bf16.gmra.mxu0 %v281
  %v524 = vpop.f32.mrf.mxu0
  %v525 = vadd.f32 %v105, %v524
  %v526 = vpop.f32.mrf.mxu0
  %v527 = vadd.f32 %v105, %v526
  %528 = vmatmul.bf16.gmra.mxu0 %v282
  %v529 = vpop.f32.mrf.mxu0
  %v530 = vadd.f32 %v105, %v529
  %v531 = vpop.f32.mrf.mxu0
  %v532 = vadd.f32 %v105, %v531
  %533 = vmatmul.bf16.gmra.mxu0 %v283
  %v534 = vpop.f32.mrf.mxu0
  %v535 = vadd.f32 %v105, %v534
  %v536 = vpop.f32.mrf.mxu0
  %v537 = vadd.f32 %v105, %v536
  %538 = vmatmul.bf16.gmra.mxu0 %v284
  %v539 = vpop.f32.mrf.mxu0
  %v540 = vadd.f32 %v105, %v539
  %v541 = vpop.f32.mrf.mxu0
  %v542 = vadd.f32 %v105, %v541
  %543 = vmatmul.bf16.gmra.mxu0 %v285
  %v544 = vpop.f32.mrf.mxu0
  %v545 = vadd.f32 %v105, %v544
  %v546 = vpop.f32.mrf.mxu0
  %v547 = vadd.f32 %v105, %v546
  %548 = vmatmul.bf16.gmra.mxu0 %v286
  %v549 = vpop.f32.mrf.mxu0
  %v550 = vadd.f32 %v105, %v549
  %v551 = vpop.f32.mrf.mxu0
  %v552 = vadd.f32 %v105, %v551
  %553 = vmatmul.bf16.gmra.mxu0 %v287
  %v554 = vpop.f32.mrf.mxu0
  %v555 = vadd.f32 %v105, %v554
  %v556 = vpop.f32.mrf.mxu0
  %v557 = vadd.f32 %v105, %v556
  %558 = vmatmul.bf16.gmra.mxu0 %v288
  %v559 = vpop.f32.mrf.mxu0
  %v560 = vadd.f32 %v105, %v559
  %v561 = vpop.f32.mrf.mxu0
  %v562 = vadd.f32 %v105, %v561
  %563 = vmatmul.bf16.gmra.mxu0 %v289
  %v564 = vpop.f32.mrf.mxu0
  %v565 = vadd.f32 %v105, %v564
  %v566 = vpop.f32.mrf.mxu0
  %567 = vdwg.mxu0
  %v568 = vtanh.pop %v385
  %v569 = vtanh.pop %v387
  %v570 = vtanh.pop %v390
  %v571 = vtanh.pop %v392
  %v572 = vtanh.pop %v395
  %v573 = vtanh.pop %v397
  %v574 = vtanh.pop %v400
  %v575 = vtanh.pop %v402
  %v576 = vtanh.pop %v405
  %v577 = vtanh.pop %v407
  %v578 = vtanh.pop %v410
  %v579 = vtanh.pop %v412
  %v580 = vtanh.pop %v415
  %v581 = vtanh.pop %v417
  %v582 = vtanh.pop %v420
  %v583 = vtanh.pop %v422
  %v584 = vtanh.pop %v425
  %v585 = vtanh.pop %v427
  %v586 = vtanh.pop %v430
  %v587 = vtanh.pop %v432
  %v588 = vtanh.pop %v435
  %v589 = vtanh.pop %v437
  %v590 = vtanh.pop %v440
  %v591 = vtanh.pop %v442
  %v592 = vtanh.pop %v445
  %v593 = vtanh.pop %v447
  %v594 = vtanh.pop %v450
  %v595 = vtanh.pop %v452
  %v596 = vtanh.pop %v455
  %v597 = vtanh.pop %v457
  %v598 = vtanh.pop %v460
  %v599 = vtanh.pop %v462
  %v600 = vtanh.pop %v465
  %v601 = vtanh.pop %v467
  %v602 = vtanh.pop %v470
  %v603 = vtanh.pop %v472
  %v604 = vtanh.pop %v475
  %v605 = vtanh.pop %v477
  %v606 = vtanh.pop %v480
  %v607 = vtanh.pop %v482
  %v608 = vtanh.pop %v485
  %v609 = vtanh.pop %v487
  %v610 = vtanh.pop %v490
  %v611 = vtanh.pop %v492
  %v612 = vtanh.pop %v495
  %v613 = vtanh.pop %v497
  %v614 = vtanh.pop %v500
  %v615 = vtanh.pop %v502
  %v616 = vtanh.pop %v505
  %v617 = vtanh.pop %v507
  %v618 = vtanh.pop %v510
  %v619 = vtanh.pop %v512
  %v620 = vtanh.pop %v515
  %v621 = vtanh.pop %v517
  %v622 = vtanh.pop %v520
  %v623 = vtanh.pop %v522
  %v624 = vtanh.pop %v525
  %v625 = vtanh.pop %v527
  %v626 = vtanh.pop %v530
  %v627 = vtanh.pop %v532
  %v628 = vtanh.pop %v535
  %v629 = vtanh.pop %v537
  %v630 = vtanh.pop %v540
  %v631 = vtanh.pop %v542
  %v632 = vtanh.pop %v545
  %v633 = vtanh.pop %v547
  %v634 = vtanh.pop %v550
  %v635 = vtanh.pop %v552
  %v636 = vtanh.pop %v555
  %v637 = vtanh.pop %v557
  %v638 = vtanh.pop %v560
  %v639 = vtanh.pop %v562
  %v640 = vtanh.pop %v565
  %641 = vst [vmem:[%s3] sm:$0xff] %v568
  %642 = vst [vmem:[%s3 + $0x8] sm:$0xff] %v569
  %643 = vst [vmem:[%s3 + $0x10] sm:$0xff] %v570
  %644 = vst [vmem:[%s3 + $0x18] sm:$0xff] %v571
  %645 = vst [vmem:[%s3 + $0x20] sm:$0xff] %v572
  %646 = vst [vmem:[%s3 + $0x28] sm:$0xff] %v573
  %647 = vst [vmem:[%s3 + $0x30] sm:$0xff] %v574
  %648 = vst [vmem:[%s3 + $0x38] sm:$0xff] %v575
  %649 = vst [vmem:[%s3 + $0x40] sm:$0xff] %v576
  %650 = vst [vmem:[%s3 + $0x48] sm:$0xff] %v577
  %651 = vst [vmem:[%s3 + $0x50] sm:$0xff] %v578
  %652 = vst [vmem:[%s3 + $0x58] sm:$0xff] %v579
  %653 = vst [vmem:[%s3 + $0x60] sm:$0xff] %v580
  %654 = vst [vmem:[%s3 + $0x68] sm:$0xff] %v581
  %655 = vst [vmem:[%s3 + $0x70] sm:$0xff] %v582
  %656 = vst [vmem:[%s3 + $0x78] sm:$0xff] %v583
  %657 = vst [vmem:[%s3 + $0x80] sm:$0xff] %v584
  %658 = vst [vmem:[%s3 + $0x88] sm:$0xff] %v585
  %659 = vst [vmem:[%s3 + $0x90] sm:$0xff] %v586
  %660 = vst [vmem:[%s3 + $0x98] sm:$0xff] %v587
  %661 = vst [vmem:[%s3 + $0xa0] sm:$0xff] %v588
  %662 = vst [vmem:[%s3 + $0xa8] sm:$0xff] %v589
  %663 = vst [vmem:[%s3 + $0xb0] sm:$0xff] %v590
  %664 = vst [vmem:[%s3 + $0xb8] sm:$0xff] %v591
  %665 = vst [vmem:[%s3 + $0xc0] sm:$0xff] %v592
  %666 = vst [vmem:[%s3 + $0xc8] sm:$0xff] %v593
  %667 = vst [vmem:[%s3 + $0xd0] sm:$0xff] %v594
  %668 = vst [vmem:[%s3 + $0xd8] sm:$0xff] %v595
  %669 = vst [vmem:[%s3 + $0xe0] sm:$0xff] %v596
  %670 = vst [vmem:[%s3 + $0xe8] sm:$0xff] %v597
  %671 = vst [vmem:[%s3 + $0xf0] sm:$0xff] %v598
  %672 = vst [vmem:[%s3 + $0xf8] sm:$0xff] %v599
  %673 = vst [vmem:[%s3 + $0x100] sm:$0xff] %v600
  %674 = vst [vmem:[%s3 + $0x108] sm:$0xff] %v601
  %675 = vst [vmem:[%s3 + $0x110] sm:$0xff] %v602
  %676 = vst [vmem:[%s3 + $0x118] sm:$0xff] %v603
  %677 = vst [vmem:[%s3 + $0x120] sm:$0xff] %v604
  %678 = vst [vmem:[%s3 + $0x128] sm:$0xff] %v605
  %679 = vst [vmem:[%s3 + $0x130] sm:$0xff] %v606
  %680 = vst [vmem:[%s3 + $0x138] sm:$0xff] %v607
  %681 = vst [vmem:[%s3 + $0x140] sm:$0xff] %v608
  %682 = vst [vmem:[%s3 + $0x148] sm:$0xff] %v609
  %683 = vst [vmem:[%s3 + $0x150] sm:$0xff] %v610
  %684 = vst [vmem:[%s3 + $0x158] sm:$0xff] %v611
  %685 = vst [vmem:[%s3 + $0x160] sm:$0xff] %v612
  %686 = vst [vmem:[%s3 + $0x168] sm:$0xff] %v613
  %687 = vst [vmem:[%s3 + $0x170] sm:$0xff] %v614
  %688 = vst [vmem:[%s3 + $0x178] sm:$0xff] %v615
  %689 = vst [vmem:[%s3 + $0x180] sm:$0xff] %v616
  %690 = vst [vmem:[%s3 + $0x188] sm:$0xff] %v617
  %691 = vst [vmem:[%s3 + $0x190] sm:$0xff] %v618
  %692 = vst [vmem:[%s3 + $0x198] sm:$0xff] %v619
  %693 = vst [vmem:[%s3 + $0x1a0] sm:$0xff] %v620
  %694 = vst [vmem:[%s3 + $0x1a8] sm:$0xff] %v621
  %695 = vst [vmem:[%s3 + $0x1b0] sm:$0xff] %v622
  %696 = vst [vmem:[%s3 + $0x1b8] sm:$0xff] %v623
  %697 = vst [vmem:[%s3 + $0x1c0] sm:$0xff] %v624
  %698 = vst [vmem:[%s3 + $0x1c8] sm:$0xff] %v625
  %699 = vst [vmem:[%s3 + $0x1d0] sm:$0xff] %v626
  %700 = vst [vmem:[%s3 + $0x1d8] sm:$0xff] %v627
  %701 = vst [vmem:[%s3 + $0x1e0] sm:$0xff] %v628
  %702 = vst [vmem:[%s3 + $0x1e8] sm:$0xff] %v629
  %703 = vst [vmem:[%s3 + $0x1f0] sm:$0xff] %v630
  %704 = vst [vmem:[%s3 + $0x1f8] sm:$0xff] %v631
  %705 = vst [vmem:[%s3 + $0x200] sm:$0xff] %v632
  %706 = vst [vmem:[%s3 + $0x208] sm:$0xff] %v633
  %707 = vst [vmem:[%s3 + $0x210] sm:$0xff] %v634
  %708 = vst [vmem:[%s3 + $0x218] sm:$0xff] %v635
  %709 = vst [vmem:[%s3 + $0x220] sm:$0xff] %v636
  %710 = vst [vmem:[%s3 + $0x228] sm:$0xff] %v637
  %711 = vst [vmem:[%s3 + $0x230] sm:$0xff] %v638
  %712 = vst [vmem:[%s3 + $0x238] sm:$0xff] %v639
  %713 = vst [vmem:[%s3 + $0x240] sm:$0x3] %v640
  // Predicated region
  $region14: #{vae_forward.9} parent=0 // pred_check
    _
  $region15: #{vae_forward.9} parent=0 // pred_check_branch
    %715 = sbr.rel (0) target = $region17
  $region16: #{vae_forward.9} parent=0 // pred_region
    _
  $region17: #{vae_forward.9} parent=0 // pred_fallthru
    _
  // Predicated region
  $region18: #{vae_forward.9} parent=0 // pred_check
    _
  $region19: #{vae_forward.9} parent=0 // pred_check_branch
    %717 = sbr.rel (0) target = $region21
  $region20: #{vae_forward.9} parent=0 // pred_region
    _
  $region21: #{vae_forward.9} parent=0 // pred_fallthru
    _

</llo_original>
